<compile_context>
chip_gen: v7x
topology: tpu7x:2x2x1
jax: 0.10.0
libtpu: 0.0.40
codegen_flags: <defaults>
</compile_context>

<pallas_src>
import math
from functools import partial

import jax
import jax.numpy as jnp
from jax import lax
from jax.experimental import pallas as pl
from jax.experimental.pallas import tpu as pltpu


_VMEM_LIMIT = 48 * 1024 * 1024


# ----------------------------- in-kernel helpers -----------------------------

def _layernorm(x, g, b, eps=1e-5):
    mu = jnp.mean(x, axis=-1, keepdims=True)
    var = jnp.mean((x - mu) ** 2, axis=-1, keepdims=True)
    return (x - mu) * lax.rsqrt(var + eps) * g + b


def _gelu_exact(x):
    # nn.GELU() default (erf form).
    # TODO(synk): if the MLP bundle shows the VALU slot binding before the MXU,
    #             switch to the tanh-approx GELU (EUP tanh slot is idle there).
    return 0.5 * x * (1.0 + lax.erf(x * (1.0 / math.sqrt(2.0))))


def _silu(x):
    # exact divide: 1/(1+inf) -> 0 for very negative x (numerically safe)
    return x / (1.0 + jnp.exp(-x))


def _row_block(m):
    for c in (512, 256, 128, 64, 32, 16, 8):
        if m % c == 0:
            return c
    return m


def _col_block(n):
    for c in (512, 256, 128):
        if n > c and n % c == 0:
            return c
    return n


def _cparams(sem):
    return pltpu.CompilerParams(dimension_semantics=sem,
                                vmem_limit_bytes=_VMEM_LIMIT)


# --------------------------------- kernels -----------------------------------

def _make_ln_qkv_kernel(nh, hd3):
    """LayerNorm (f32) + QKV projection (bf16/f32-acc), stored head-major.

    Output layout per token block is (nh, bm, 3*hd) so the attention kernel can
    DMA exactly one head's q|k|v per grid step (no XLA transpose pass)."""
    def kernel(x_ref, g_ref, b_ref, w_ref, bias_ref, o_ref):
        xn = _layernorm(x_ref[0], g_ref[...], b_ref[...])
        y = jnp.dot(xn.astype(jnp.bfloat16), w_ref[...],
                    preferred_element_type=jnp.float32) + bias_ref[...]
        y = y.astype(jnp.bfloat16)
        for h in range(nh):                      # static slices / static stores
            o_ref[0, h] = y[:, h * hd3:(h + 1) * hd3]
    return kernel


def _make_attn_kernel(nh, hd, n_tok, tk):
    """One (batch, head) grid step: KV-tiled online softmax with decomposed
    rel-pos bias; per-head output goes to a persistent VMEM scratch; at the
    last head a single (N,C)@(C,C) projection + bias + residual is stored
    lane-dense."""
    nkv = n_tok // tk

    def kernel(qkv_ref, rel_ref, ehw_ref, wp_ref, bp_ref, res_ref, o_ref,
               ocat_ref):
        h = pl.program_id(1)
        q = qkv_ref[0, 0, :, 0:hd]                       # (N, hd) bf16, scaled
        rel = rel_ref[0, 0]                              # (N, H+W) bf16

        def kv_step(j, carry):
            m, l, acc = carry
            start = pl.multiple_of(j * tk, tk)
            k_j = qkv_ref[0, 0, pl.ds(start, tk), hd:2 * hd]      # (tk, hd)
            v_j = qkv_ref[0, 0, pl.ds(start, tk), 2 * hd:3 * hd]  # (tk, hd)
            e_j = ehw_ref[pl.ds(start, tk), :]                    # (tk, H+W)

            s = lax.dot_general(q, k_j, (((1,), (1,)), ((), ())),
                                preferred_element_type=jnp.float32)   # (N, tk)
            # bias[q, k] = rel_h[q, k//W] + rel_w[q, k%W] via one-hot expansion
            s = s + lax.dot_general(rel, e_j, (((1,), (1,)), ((), ())),
                                    preferred_element_type=jnp.float32)

            m_new = jnp.maximum(m, jnp.max(s, axis=-1, keepdims=True))
            alpha = jnp.exp(m - m_new)
            p = jnp.exp(s - m_new)
            l_new = alpha * l + jnp.sum(p, axis=-1, keepdims=True)
            acc_new = alpha * acc + jnp.dot(p.astype(jnp.bfloat16), v_j,
                                            preferred_element_type=jnp.float32)
            return m_new, l_new, acc_new

        m0 = jnp.full((n_tok, 1), -jnp.inf, jnp.float32)
        l0 = jnp.zeros((n_tok, 1), jnp.float32)
        a0 = jnp.zeros((n_tok, hd), jnp.float32)
        m, l, acc = lax.fori_loop(0, nkv, kv_step, (m0, l0, a0))

        ocat_ref[h] = (acc / l).astype(jnp.bfloat16)     # exact normalization

        @pl.when(h == nh - 1)
        def _():
            # TODO(synk): add a parallel query-tile grid axis for v7x megacore
            #             when B is small.
            o_cat = jnp.concatenate([ocat_ref[i] for i in range(nh)], axis=-1)
            out = jnp.dot(o_cat, wp_ref[...],
                          preferred_element_type=jnp.float32)          # (N, C)
            o_ref[0] = (res_ref[0] + out + bp_ref[...]).astype(o_ref.dtype)
    return kernel


def _ln_mlp_kernel(x_ref, g_ref, b_ref, w1_ref, b1_ref, w2_ref, b2_ref,
                   o_ref, xn_ref, acc_ref):
    """LayerNorm -> fc1 -> GELU -> fc2 -> + residual, hidden axis tiled."""
    j = pl.program_id(1)

    @pl.when(j == 0)
    def _():
        xn_ref[...] = _layernorm(x_ref[...], g_ref[...],
                                 b_ref[...]).astype(jnp.bfloat16)
        acc_ref[...] = jnp.zeros_like(acc_ref)

    hchunk = jnp.dot(xn_ref[...], w1_ref[...],
                     preferred_element_type=jnp.float32) + b1_ref[...]
    hchunk = _gelu_exact(hchunk)
    acc_ref[...] += jnp.dot(hchunk.astype(jnp.bfloat16), w2_ref[...],
                            preferred_element_type=jnp.float32)

    @pl.when(j == pl.num_programs(1) - 1)
    def _():
        o_ref[...] = (x_ref[...] + acc_ref[...] + b2_ref[...]).astype(o_ref.dtype)


def _make_conv_kernel(H, W, Cin, with_residual):
    """3x3 conv (pad=1) as 9 accumulating K=Cin matmuls into an f32 VMEM
    scratch, + folded BN + SiLU (+ optional residual)."""
    HW = H * W

    def compute(x_ref, w_ref, scale_ref, shift_ref, acc_ref):
        for t in range(9):
            dy, dx = divmod(t, 3)
            tap = x_ref[0, dy:dy + H, dx:dx + W, :].reshape(HW, Cin)   # bf16
            contrib = jnp.dot(tap, w_ref[t],
                              preferred_element_type=jnp.float32)
            if t == 0:
                acc_ref[...] = contrib
            else:
                acc_ref[...] += contrib
        y = acc_ref[...] * scale_ref[...] + shift_ref[...]
        return _silu(y)

    if with_residual:
        def kernel(x_ref, w_ref, scale_ref, shift_ref, res_ref, o_ref, acc_ref):
            y = compute(x_ref, w_ref, scale_ref, shift_ref, acc_ref)
            o_ref[0] = (res_ref[0] + y).astype(o_ref.dtype)
    else:
        def kernel(x_ref, w_ref, scale_ref, shift_ref, o_ref, acc_ref):
            y = compute(x_ref, w_ref, scale_ref, shift_ref, acc_ref)
            o_ref[0] = y.astype(o_ref.dtype)
    return kernel


# -------------------------------- wrappers ------------------------------------

def ln_qkv(x, g, b, w_bf16, bias, nh, hd):
    B, N, C = x.shape
    hd3 = 3 * hd
    bm = _row_block(N)
    kernel = _make_ln_qkv_kernel(nh, hd3)
    return pl.pallas_call(
        kernel,
        out_shape=jax.ShapeDtypeStruct((B, nh, N, hd3), jnp.bfloat16),
        grid=(B, N // bm),
        in_specs=[
            pl.BlockSpec((1, bm, C), lambda bb, i: (bb, i, 0)),
            pl.BlockSpec((1, C), lambda bb, i: (0, 0)),
            pl.BlockSpec((1, C), lambda bb, i: (0, 0)),
            pl.BlockSpec((C, 3 * C), lambda bb, i: (0, 0)),
            pl.BlockSpec((1, 3 * C), lambda bb, i: (0, 0)),
        ],
        out_specs=pl.BlockSpec((1, nh, bm, hd3), lambda bb, i: (bb, 0, i, 0)),
        compiler_params=_cparams(("parallel", "parallel")),
    )(x, g.reshape(1, C), b.reshape(1, C), w_bf16, bias.reshape(1, 3 * C))


def attention_proj_residual(qkv_heads, rel_hw, ehw, w_proj, b_proj, x_res,
                            kv_chunk=512):
    B, nh, N, hd3 = qkv_heads.shape
    hd = hd3 // 3
    C = w_proj.shape[1]
    HW2 = ehw.shape[1]
    tk = N if N <= kv_chunk else kv_chunk
    assert N % tk == 0
    kernel = _make_attn_kernel(nh, hd, N, tk)
    return pl.pallas_call(
        kernel,
        out_shape=jax.ShapeDtypeStruct((B, N, C), jnp.float32),
        grid=(B, nh),
        in_specs=[
            pl.BlockSpec((1, 1, N, hd3), lambda b, h: (b, h, 0, 0)),
            pl.BlockSpec((1, 1, N, HW2), lambda b, h: (b, h, 0, 0)),
            pl.BlockSpec((N, HW2), lambda b, h: (0, 0)),
            pl.BlockSpec((C, C), lambda b, h: (0, 0)),
            pl.BlockSpec((1, C), lambda b, h: (0, 0)),
            pl.BlockSpec((1, N, C), lambda b, h: (b, 0, 0)),
        ],
        out_specs=pl.BlockSpec((1, N, C), lambda b, h: (b, 0, 0)),
        scratch_shapes=[pltpu.VMEM((nh, N, hd), jnp.bfloat16)],
        compiler_params=_cparams(("parallel", "arbitrary")),
    )(qkv_heads, rel_hw, ehw, w_proj, b_proj.reshape(1, C), x_res)


def ln_mlp(x, g, b, w1, b1, w2, b2):
    M, C = x.shape
    Hd = w1.shape[1]
    bm = _row_block(M)
    bh = _col_block(Hd)
    return pl.pallas_call(
        _ln_mlp_kernel,
        out_shape=jax.ShapeDtypeStruct((M, C), jnp.float32),
        grid=(M // bm, Hd // bh),
        in_specs=[
            pl.BlockSpec((bm, C), lambda i, j: (i, 0)),
            pl.BlockSpec((1, C), lambda i, j: (0, 0)),
            pl.BlockSpec((1, C), lambda i, j: (0, 0)),
            pl.BlockSpec((C, bh), lambda i, j: (0, j)),
            pl.BlockSpec((1, bh), lambda i, j: (0, j)),
            pl.BlockSpec((bh, C), lambda i, j: (j, 0)),
            pl.BlockSpec((1, C), lambda i, j: (0, 0)),
        ],
        out_specs=pl.BlockSpec((bm, C), lambda i, j: (i, 0)),
        scratch_shapes=[pltpu.VMEM((bm, C), jnp.bfloat16),
                        pltpu.VMEM((bm, C), jnp.float32)],
        compiler_params=_cparams(("parallel", "arbitrary")),
    )(x, g.reshape(1, C), b.reshape(1, C), w1, b1.reshape(1, Hd), w2,
      b2.reshape(1, C))


def conv3x3_bn_silu(x_nhwc, w9_bf16, scale, shift, residual=None,
                    out_dtype=jnp.float32):
    """3x3 grouped conv (dense block-diag weight, 9 accumulating matmuls)
    + folded BN + SiLU (+ optional residual)."""
    B, H, W, Cin = x_nhwc.shape
    Cout = w9_bf16.shape[2]
    N = H * W
    # TODO(synk): at large H*W, row-block the conv with an in-kernel halo/mask
    #             instead of padding the whole image (v7x 64 MiB VMEM, megacore).
    xp = jnp.pad(x_nhwc.astype(jnp.bfloat16), ((0, 0), (1, 1), (1, 1), (0, 0)))

    kernel = _make_conv_kernel(H, W, Cin, residual is not None)
    in_specs = [
        pl.BlockSpec((1, H + 2, W + 2, Cin), lambda b: (b, 0, 0, 0)),
        pl.BlockSpec((9, Cin, Cout), lambda b: (0, 0, 0)),
        pl.BlockSpec((1, Cout), lambda b: (0, 0)),
        pl.BlockSpec((1, Cout), lambda b: (0, 0)),
    ]
    args = [xp, w9_bf16, scale.reshape(1, Cout), shift.reshape(1, Cout)]
    if residual is not None:
        in_specs.append(pl.BlockSpec((1, N, Cout), lambda b: (b, 0, 0)))
        args.append(residual)

    return pl.pallas_call(
        kernel,
        out_shape=jax.ShapeDtypeStruct((B, N, Cout), out_dtype),
        grid=(B,),
        in_specs=in_specs,
        out_specs=pl.BlockSpec((1, N, Cout), lambda b: (b, 0, 0)),
        scratch_shapes=[pltpu.VMEM((N, Cout), jnp.float32)],
        compiler_params=_cparams(("parallel",)),
    )(*args)


# --------------------------- JAX-side glue helpers ----------------------------

def _grouped_to_dense(w, groups):
    """PyTorch conv weight (Cout, Cin/g, 3, 3) -> dense (9, Cin, Cout)."""
    cout, cin_g, kh, kw = w.shape
    cin = cin_g * groups
    cout_g = cout // groups
    wt = jnp.transpose(w, (2, 3, 1, 0)).reshape(kh * kw, cin_g, cout)
    dense = jnp.zeros((kh * kw, cin, cout), w.dtype)
    for g in range(groups):
        dense = dense.at[:, g * cin_g:(g + 1) * cin_g,
                         g * cout_g:(g + 1) * cout_g].set(
            wt[:, :, g * cout_g:(g + 1) * cout_g])
    return dense


def _fold_bn(conv_b, gamma, beta, mean, var, eps=1e-5):
    s = gamma / jnp.sqrt(var + eps)
    t = beta - mean * s + conv_b * s
    return s, t


# ----------------------------- parameter init ---------------------------------

def init_params(key, dim, num_heads, hidden, group, q_size):
    hd = dim // num_heads
    rel_dim = 2 * q_size - 1
    keys = list(jax.random.split(key, 40))
    it = iter(keys)

    def nrm(shape, s=0.02):
        return jax.random.normal(next(it), shape, jnp.float32) * s

    p = {}
    p['g1'] = 1.0 + nrm((dim,))
    p['b1'] = nrm((dim,))
    p['w_qkv'] = nrm((dim, 3 * dim))
    p['b_qkv'] = nrm((3 * dim,))
    p['rel_pos_h'] = nrm((rel_dim, hd))
    p['rel_pos_w'] = nrm((rel_dim, hd))
    p['w_proj'] = nrm((dim, dim))
    p['b_proj'] = nrm((dim,))
    p['g2'] = 1.0 + nrm((dim,))
    p['b2'] = nrm((dim,))
    p['w_fc1'] = nrm((dim, hidden))
    p['b_fc1'] = nrm((hidden,))
    p['w_fc2'] = nrm((hidden, dim))
    p['b_fc2'] = nrm((dim,))

    # PCM: conv1(dim->hidden) + BN + SiLU
    w1 = nrm((hidden, dim // group, 3, 3))
    b1 = nrm((hidden,))
    g1, be1, m1, v1 = (1.0 + nrm((hidden,)), nrm((hidden,)), nrm((hidden,)),
                       1.0 + jnp.abs(nrm((hidden,))))
    s1, t1 = _fold_bn(b1, g1, be1, m1, v1)
    p['pcm1_w'], p['pcm1_scale'], p['pcm1_shift'] = _grouped_to_dense(w1, group), s1, t1

    # conv2(hidden->dim) + BN + SiLU
    w2 = nrm((dim, hidden // group, 3, 3))
    b2 = nrm((dim,))
    g2, be2, m2, v2 = (1.0 + nrm((dim,)), nrm((dim,)), nrm((dim,)),
                       1.0 + jnp.abs(nrm((dim,))))
    s2, t2 = _fold_bn(b2, g2, be2, m2, v2)
    p['pcm2_w'], p['pcm2_scale'], p['pcm2_shift'] = _grouped_to_dense(w2, group), s2, t2

    # conv3(dim->dim) + SiLU (no BN)
    w3 = nrm((dim, dim // group, 3, 3))
    b3 = nrm((dim,))
    p['pcm3_w'] = _grouped_to_dense(w3, group)
    p['pcm3_scale'] = jnp.ones((dim,), jnp.float32)
    p['pcm3_shift'] = b3
    return p


def prepare_params(p, H, W, num_heads):
    """Precompute all inference-time constants ONCE (outside the forward)."""
    C = p['w_qkv'].shape[0]
    nh = num_heads
    hd = C // nh
    scale = hd ** -0.5
    bf16 = jnp.bfloat16
    N = H * W
    assert p['rel_pos_h'].shape[0] >= 2 * H - 1
    assert p['rel_pos_w'].shape[0] >= 2 * W - 1

    # fold softmax scale into q columns, then permute columns to head-major
    # order [q_h | k_h | v_h] so the QKV kernel can store (B, nh, N, 3*hd).
    w = jnp.concatenate([p['w_qkv'][:, :C] * scale, p['w_qkv'][:, C:]], axis=1)
    b = jnp.concatenate([p['b_qkv'][:C] * scale, p['b_qkv'][C:]])
    w = w.reshape(C, 3, nh, hd).transpose(0, 2, 1, 3).reshape(C, 3 * C)
    b = b.reshape(3, nh, hd).transpose(1, 0, 2).reshape(3 * C)

    idx_h = jnp.arange(H)[:, None] - jnp.arange(H)[None, :] + (H - 1)
    idx_w = jnp.arange(W)[:, None] - jnp.arange(W)[None, :] + (W - 1)

    kk = jnp.arange(N)
    eh = jax.nn.one_hot(kk // W, H, dtype=jnp.float32)
    ew = jax.nn.one_hot(kk % W, W, dtype=jnp.float32)

    return dict(
        g1=p['g1'], b1=p['b1'], g2=p['g2'], b2=p['b2'],
        w_qkv=w.astype(bf16), b_qkv=b,
        Rh=p['rel_pos_h'][idx_h], Rw=p['rel_pos_w'][idx_w],
        ehw=jnp.concatenate([eh, ew], axis=-1).astype(bf16),
        w_proj=p['w_proj'].astype(bf16), b_proj=p['b_proj'],
        w_fc1=p['w_fc1'].astype(bf16), b_fc1=p['b_fc1'],
        w_fc2=p['w_fc2'].astype(bf16), b_fc2=p['b_fc2'],
        pcm1_w=p['pcm1_w'].astype(bf16), pcm1_scale=p['pcm1_scale'],
        pcm1_shift=p['pcm1_shift'],
        pcm2_w=p['pcm2_w'].astype(bf16), pcm2_scale=p['pcm2_scale'],
        pcm2_shift=p['pcm2_shift'],
        pcm3_w=p['pcm3_w'].astype(bf16), pcm3_scale=p['pcm3_scale'],
        pcm3_shift=p['pcm3_shift'],
    )


# ------------------------------ forward pass -----------------------------------

def normal_cell_forward(x, prep, H, W, num_heads):
    B, N, C = x.shape
    nh = num_heads
    hd = C // nh
    bf16 = jnp.bfloat16

    # ---- PCM branch (uses the ORIGINAL x); third conv fused with residual ----
    hidden = prep['pcm1_w'].shape[2]
    z = conv3x3_bn_silu(x.reshape(B, H, W, C), prep['pcm1_w'],
                        prep['pcm1_scale'], prep['pcm1_shift'], out_dtype=bf16)
    z = conv3x3_bn_silu(z.reshape(B, H, W, hidden), prep['pcm2_w'],
                        prep['pcm2_scale'], prep['pcm2_shift'], out_dtype=bf16)

    # ---- attention branch: norm1 + qkv (bf16, head-major, q pre-scaled) ----
    qkv = ln_qkv(x, prep['g1'], prep['b1'], prep['w_qkv'], prep['b_qkv'],
                 nh, hd)                                   # (B, nh, N, 3*hd)

    # decomposed relative position terms (O(N*(H+W)); tiny XLA einsum on the
    # SCALED q, matching the reference which calls calc_rel_pos after q*scale)
    r_q = qkv[:, :, :, :hd].reshape(B, nh, H, W, hd)
    rel_h = jnp.einsum('bnhwc,hkc->bnhwk', r_q, prep['Rh'],
                       preferred_element_type=jnp.float32).reshape(B, nh, N, H)
    rel_w = jnp.einsum('bnhwc,wkc->bnhwk', r_q, prep['Rw'],
                       preferred_element_type=jnp.float32).reshape(B, nh, N, W)
    rel_hw = jnp.concatenate([rel_h, rel_w], axis=-1).astype(bf16)

    # x1 = x + attn_out  (flash softmax + single proj + residual fused)
    x1 = attention_proj_residual(qkv, rel_hw, prep['ehw'], prep['w_proj'],
                                 prep['b_proj'], x)

    # x2 = x1 + convX  (third PCM conv + SiLU + residual fused)
    x2 = conv3x3_bn_silu(z.reshape(B, H, W, C), prep['pcm3_w'],
                         prep['pcm3_scale'], prep['pcm3_shift'],
                         residual=x1, out_dtype=jnp.float32)

    # x3 = x2 + mlp(norm2(x2))  (fused LN + fc1 + GELU + fc2 + residual)
    x3 = ln_mlp(x2.reshape(B * N, C), prep['g2'], prep['b2'],
                prep['w_fc1'], prep['b_fc1'],
                prep['w_fc2'], prep['b_fc2']).reshape(B, N, C)
    return x3


# ----------------------------------- main --------------------------------------

if __name__ == "__main__":
    B, H, W = 2, 8, 8
    dim, num_heads, group = 32, 4, 4
    mlp_ratio = 4.0
    hidden = int(dim * mlp_ratio)
    N = H * W

    key = jax.random.PRNGKey(0)
    kx, kp = jax.random.split(key)
    x = jax.random.normal(kx, (B, N, dim), jnp.float32)
    raw_params = init_params(kp, dim, num_heads, hidden, group, q_size=H)
    prep = prepare_params(raw_params, H, W, num_heads)

    fwd = jax.jit(partial(normal_cell_forward, H=H, W=W, num_heads=num_heads))
    out = fwd(x, prep)
    out = jax.block_until_ready(out)
    assert out.shape == (B, N, dim)
    assert bool(jnp.all(jnp.isfinite(out)))
    print("KERNEL_OK")
</pallas_src>

<mosaic_0001>
module attributes {stable_mosaic.version = 11 : i64} {
  func.func @kernel(%arg0: i32, %arg1: i32, %arg2: memref<1x64x32xf32, #tpu.memory_space<vmem>>, %arg3: memref<1x32xf32, #tpu.memory_space<vmem>>, %arg4: memref<1x32xf32, #tpu.memory_space<vmem>>, %arg5: memref<32x96xbf16, #tpu.memory_space<vmem>>, %arg6: memref<1x96xf32, #tpu.memory_space<vmem>>, %arg7: memref<1x4x64x24xbf16, #tpu.memory_space<vmem>>) attributes {dimension_semantics = [#tpu.dimension_semantics<parallel>, #tpu.dimension_semantics<parallel>], iteration_bounds = array<i64: 2, 1>, scalar_prefetch = 0 : i64, scratch_operands = 0 : i64, tpu.core_type = #tpu.core_type<tc>, window_params = [{transform_indices = @transform_0, window_bounds = array<i64: 1, 64, 32>}, {pipeline_mode = #tpu.pipeline_mode<synchronous>, transform_indices = @transform_1, window_bounds = array<i64: 1, 32>}, {pipeline_mode = #tpu.pipeline_mode<synchronous>, transform_indices = @transform_2, window_bounds = array<i64: 1, 32>}, {pipeline_mode = #tpu.pipeline_mode<synchronous>, transform_indices = @transform_3, window_bounds = array<i64: 32, 96>}, {pipeline_mode = #tpu.pipeline_mode<synchronous>, transform_indices = @transform_4, window_bounds = array<i64: 1, 96>}, {transform_indices = @transform_5, window_bounds = array<i64: 1, 4, 64, 24>}]} {
    %c0 = arith.constant 0 : index
    %c0_0 = arith.constant 0 : index
    %c0_1 = arith.constant 0 : index
    %0 = vector.load %arg2[%c0, %c0_0, %c0_1] : memref<1x64x32xf32, #tpu.memory_space<vmem>>, vector<1x64x32xf32>
    %1 = vector.shape_cast %0 : vector<1x64x32xf32> to vector<64x32xf32>
    %c0_2 = arith.constant 0 : index
    %c0_3 = arith.constant 0 : index
    %2 = vector.load %arg3[%c0_2, %c0_3] : memref<1x32xf32, #tpu.memory_space<vmem>>, vector<1x32xf32>
    %c0_4 = arith.constant 0 : index
    %c0_5 = arith.constant 0 : index
    %3 = vector.load %arg4[%c0_4, %c0_5] : memref<1x32xf32, #tpu.memory_space<vmem>>, vector<1x32xf32>
    %cst = arith.constant dense<0.000000e+00> : vector<64xf32>
    %4 = vector.multi_reduction <add>, %1, %cst [1] : vector<64x32xf32> to vector<64xf32>
    %5 = vector.shape_cast %4 : vector<64xf32> to vector<64x1xf32>
    %cst_6 = arith.constant 3.200000e+01 : f32
    %6 = vector.broadcast %cst_6 : f32 to vector<64x1xf32>
    %7 = arith.divf %5, %6 : vector<64x1xf32>
    %8 = vector.broadcast %7 : vector<64x1xf32> to vector<64x32xf32>
    %9 = arith.subf %1, %8 : vector<64x32xf32>
    %10 = arith.mulf %9, %9 : vector<64x32xf32>
    %cst_7 = arith.constant dense<0.000000e+00> : vector<64xf32>
    %11 = vector.multi_reduction <add>, %10, %cst_7 [1] : vector<64x32xf32> to vector<64xf32>
    %12 = vector.shape_cast %11 : vector<64xf32> to vector<64x1xf32>
    %cst_8 = arith.constant 3.200000e+01 : f32
    %13 = vector.broadcast %cst_8 : f32 to vector<64x1xf32>
    %14 = arith.divf %12, %13 : vector<64x1xf32>
    %15 = vector.broadcast %7 : vector<64x1xf32> to vector<64x32xf32>
    %16 = arith.subf %1, %15 : vector<64x32xf32>
    %cst_9 = arith.constant 9.99999974E-6 : f32
    %17 = vector.broadcast %cst_9 : f32 to vector<64x1xf32>
    %18 = arith.addf %14, %17 : vector<64x1xf32>
    %19 = math.rsqrt %18 : vector<64x1xf32>
    %20 = vector.broadcast %19 : vector<64x1xf32> to vector<64x32xf32>
    %21 = arith.mulf %16, %20 : vector<64x32xf32>
    %22 = vector.broadcast %2 : vector<1x32xf32> to vector<64x32xf32>
    %23 = arith.mulf %21, %22 : vector<64x32xf32>
    %24 = vector.broadcast %3 : vector<1x32xf32> to vector<64x32xf32>
    %25 = arith.addf %23, %24 : vector<64x32xf32>
    %26 = arith.truncf %25 : vector<64x32xf32> to vector<64x32xbf16>
    %c0_10 = arith.constant 0 : index
    %c0_11 = arith.constant 0 : index
    %27 = vector.load %arg5[%c0_10, %c0_11] : memref<32x96xbf16, #tpu.memory_space<vmem>>, vector<32x96xbf16>
    %cst_12 = arith.constant dense<0.000000e+00> : vector<64x96xf32>
    %28 = tpu.matmul %26, %27, %cst_12 {dimension_numbers = #tpu.dot_dimension_numbers<[1], [0], [0], [1], [0, 0, 1, 1], [], []>} : vector<64x32xbf16>, vector<32x96xbf16>, vector<64x96xf32> -> vector<64x96xf32>
    %c0_13 = arith.constant 0 : index
    %c0_14 = arith.constant 0 : index
    %29 = vector.load %arg6[%c0_13, %c0_14] : memref<1x96xf32, #tpu.memory_space<vmem>>, vector<1x96xf32>
    %30 = vector.broadcast %29 : vector<1x96xf32> to vector<64x96xf32>
    %31 = arith.addf %28, %30 : vector<64x96xf32>
    %32 = arith.truncf %31 : vector<64x96xf32> to vector<64x96xbf16>
    %33 = vector.extract_strided_slice %32 {offsets = [0, 0], sizes = [64, 24], strides = [1, 1]} : vector<64x96xbf16> to vector<64x24xbf16>
    %c0_15 = arith.constant 0 : index
    %c0_16 = arith.constant 0 : index
    %c0_17 = arith.constant 0 : index
    %c0_18 = arith.constant 0 : index
    %34 = vector.load %arg7[%c0_15, %c0_16, %c0_17, %c0_18] : memref<1x4x64x24xbf16, #tpu.memory_space<vmem>>, vector<1x1x64x24xbf16>
    %35 = vector.shape_cast %34 : vector<1x1x64x24xbf16> to vector<64x24xbf16>
    %36 = vector.shape_cast %33 : vector<64x24xbf16> to vector<1x1x64x24xbf16>
    tpu.vector_store %arg7[%c0_15, %c0_16, %c0_17, %c0_18], %36 {strides = array<i32>} : memref<1x4x64x24xbf16, #tpu.memory_space<vmem>>, vector<1x1x64x24xbf16>,
    %37 = vector.extract_strided_slice %32 {offsets = [0, 24], sizes = [64, 24], strides = [1, 1]} : vector<64x96xbf16> to vector<64x24xbf16>
    %c0_19 = arith.constant 0 : index
    %c1 = arith.constant 1 : index
    %c0_20 = arith.constant 0 : index
    %c0_21 = arith.constant 0 : index
    %38 = vector.load %arg7[%c0_19, %c1, %c0_20, %c0_21] : memref<1x4x64x24xbf16, #tpu.memory_space<vmem>>, vector<1x1x64x24xbf16>
    %39 = vector.shape_cast %38 : vector<1x1x64x24xbf16> to vector<64x24xbf16>
    %40 = vector.shape_cast %37 : vector<64x24xbf16> to vector<1x1x64x24xbf16>
    tpu.vector_store %arg7[%c0_19, %c1, %c0_20, %c0_21], %40 {strides = array<i32>} : memref<1x4x64x24xbf16, #tpu.memory_space<vmem>>, vector<1x1x64x24xbf16>,
    %41 = vector.extract_strided_slice %32 {offsets = [0, 48], sizes = [64, 24], strides = [1, 1]} : vector<64x96xbf16> to vector<64x24xbf16>
    %c0_22 = arith.constant 0 : index
    %c2 = arith.constant 2 : index
    %c0_23 = arith.constant 0 : index
    %c0_24 = arith.constant 0 : index
    %42 = vector.load %arg7[%c0_22, %c2, %c0_23, %c0_24] : memref<1x4x64x24xbf16, #tpu.memory_space<vmem>>, vector<1x1x64x24xbf16>
    %43 = vector.shape_cast %42 : vector<1x1x64x24xbf16> to vector<64x24xbf16>
    %44 = vector.shape_cast %41 : vector<64x24xbf16> to vector<1x1x64x24xbf16>
    tpu.vector_store %arg7[%c0_22, %c2, %c0_23, %c0_24], %44 {strides = array<i32>} : memref<1x4x64x24xbf16, #tpu.memory_space<vmem>>, vector<1x1x64x24xbf16>,
    %45 = vector.extract_strided_slice %32 {offsets = [0, 72], sizes = [64, 24], strides = [1, 1]} : vector<64x96xbf16> to vector<64x24xbf16>
    %c0_25 = arith.constant 0 : index
    %c3 = arith.constant 3 : index
    %c0_26 = arith.constant 0 : index
    %c0_27 = arith.constant 0 : index
    %46 = vector.load %arg7[%c0_25, %c3, %c0_26, %c0_27] : memref<1x4x64x24xbf16, #tpu.memory_space<vmem>>, vector<1x1x64x24xbf16>
    %47 = vector.shape_cast %46 : vector<1x1x64x24xbf16> to vector<64x24xbf16>
    %48 = vector.shape_cast %45 : vector<64x24xbf16> to vector<1x1x64x24xbf16>
    tpu.vector_store %arg7[%c0_25, %c3, %c0_26, %c0_27], %48 {strides = array<i32>} : memref<1x4x64x24xbf16, #tpu.memory_space<vmem>>, vector<1x1x64x24xbf16>,
    return
  }
  func.func @transform_0(%arg0: i32, %arg1: i32) -> (i32, i32, i32) {
    %c0_i32 = arith.constant 0 : i32
    %c0_i32_0 = arith.constant 0 : i32
    return %arg0, %arg1, %c0_i32 : i32, i32, i32
  }
  func.func @transform_1(%arg0: i32, %arg1: i32) -> (i32, i32) {
    %c0_i32 = arith.constant 0 : i32
    %c0_i32_0 = arith.constant 0 : i32
    %c0_i32_1 = arith.constant 0 : i32
    return %c0_i32, %c0_i32_0 : i32, i32
  }
  func.func @transform_2(%arg0: i32, %arg1: i32) -> (i32, i32) {
    %c0_i32 = arith.constant 0 : i32
    %c0_i32_0 = arith.constant 0 : i32
    %c0_i32_1 = arith.constant 0 : i32
    return %c0_i32, %c0_i32_0 : i32, i32
  }
  func.func @transform_3(%arg0: i32, %arg1: i32) -> (i32, i32) {
    %c0_i32 = arith.constant 0 : i32
    %c0_i32_0 = arith.constant 0 : i32
    %c0_i32_1 = arith.constant 0 : i32
    return %c0_i32, %c0_i32_0 : i32, i32
  }
  func.func @transform_4(%arg0: i32, %arg1: i32) -> (i32, i32) {
    %c0_i32 = arith.constant 0 : i32
    %c0_i32_0 = arith.constant 0 : i32
    %c0_i32_1 = arith.constant 0 : i32
    return %c0_i32, %c0_i32_0 : i32, i32
  }
  func.func @transform_5(%arg0: i32, %arg1: i32) -> (i32, i32, i32, i32) {
    %c0_i32 = arith.constant 0 : i32
    %c0_i32_0 = arith.constant 0 : i32
    %c0_i32_1 = arith.constant 0 : i32
    return %arg0, %c0_i32, %arg1, %c0_i32_0 : i32, i32, i32, i32
  }
}

module attributes {stable_mosaic.version = 11 : i64} {
  func.func @kernel(%arg0: i32, %arg1: i32, %arg2: memref<1x1x64x24xbf16, #tpu.memory_space<vmem>>, %arg3: memref<1x1x64x16xbf16, #tpu.memory_space<vmem>>, %arg4: memref<64x16xbf16, #tpu.memory_space<vmem>>, %arg5: memref<32x32xbf16, #tpu.memory_space<vmem>>, %arg6: memref<1x32xf32, #tpu.memory_space<vmem>>, %arg7: memref<1x64x32xf32, #tpu.memory_space<vmem>>, %arg8: memref<1x64x32xf32, #tpu.memory_space<vmem>>, %arg9: memref<4x64x8xbf16, #tpu.memory_space<vmem>>) attributes {dimension_semantics = [#tpu.dimension_semantics<parallel>, #tpu.dimension_semantics<arbitrary>], iteration_bounds = array<i64: 2, 4>, scalar_prefetch = 0 : i64, scratch_operands = 1 : i64, tpu.core_type = #tpu.core_type<tc>, window_params = [{transform_indices = @transform_0, window_bounds = array<i64: 1, 1, 64, 24>}, {transform_indices = @transform_1, window_bounds = array<i64: 1, 1, 64, 16>}, {pipeline_mode = #tpu.pipeline_mode<synchronous>, transform_indices = @transform_2, window_bounds = array<i64: 64, 16>}, {pipeline_mode = #tpu.pipeline_mode<synchronous>, transform_indices = @transform_3, window_bounds = array<i64: 32, 32>}, {pipeline_mode = #tpu.pipeline_mode<synchronous>, transform_indices = @transform_4, window_bounds = array<i64: 1, 32>}, {transform_indices = @transform_5, window_bounds = array<i64: 1, 64, 32>}, {transform_indices = @transform_6, window_bounds = array<i64: 1, 64, 32>}]} {
    %c0 = arith.constant 0 : index
    %c0_0 = arith.constant 0 : index
    %c0_1 = arith.constant 0 : index
    %c0_2 = arith.constant 0 : index
    %0 = vector.load %arg2[%c0, %c0_0, %c0_1, %c0_2] : memref<1x1x64x24xbf16, #tpu.memory_space<vmem>>, vector<1x1x64x8xbf16>
    %1 = vector.shape_cast %0 : vector<1x1x64x8xbf16> to vector<64x8xbf16>
    %c0_3 = arith.constant 0 : index
    %c0_4 = arith.constant 0 : index
    %c0_5 = arith.constant 0 : index
    %c0_6 = arith.constant 0 : index
    %2 = vector.load %arg3[%c0_3, %c0_4, %c0_5, %c0_6] : memref<1x1x64x16xbf16, #tpu.memory_space<vmem>>, vector<1x1x64x16xbf16>
    %3 = vector.shape_cast %2 : vector<1x1x64x16xbf16> to vector<64x16xbf16>
    %cst = arith.constant 0xFF800000 : f32
    %4 = vector.broadcast %cst : f32 to vector<64x1xf32>
    %cst_7 = arith.constant 0.000000e+00 : f32
    %5 = vector.broadcast %cst_7 : f32 to vector<64x1xf32>
    %cst_8 = arith.constant 0.000000e+00 : f32
    %6 = vector.broadcast %cst_8 : f32 to vector<64x8xf32>
    %c0_i32 = arith.constant 0 : i32
    %c64_i32 = arith.constant 64 : i32
    %7 = arith.muli %c0_i32, %c64_i32 : i32
    %8 = tpu.assume_multiple %7, 64 : i32
    %c0_9 = arith.constant 0 : index
    %c0_10 = arith.constant 0 : index
    %9 = arith.index_cast %8 : i32 to index
    %c8 = arith.constant 8 : index
    %10 = vector.load %arg2[%c0_9, %c0_10, %9, %c8] : memref<1x1x64x24xbf16, #tpu.memory_space<vmem>>, vector<1x1x64x8xbf16>
    %11 = vector.shape_cast %10 : vector<1x1x64x8xbf16> to vector<64x8xbf16>
    %c0_11 = arith.constant 0 : index
    %c0_12 = arith.constant 0 : index
    %12 = arith.index_cast %8 : i32 to index
    %c16 = arith.constant 16 : index
    %13 = vector.load %arg2[%c0_11, %c0_12, %12, %c16] : memref<1x1x64x24xbf16, #tpu.memory_space<vmem>>, vector<1x1x64x8xbf16>
    %14 = vector.shape_cast %13 : vector<1x1x64x8xbf16> to vector<64x8xbf16>
    %15 = arith.index_cast %8 : i32 to index
    %c0_13 = arith.constant 0 : index
    %16 = vector.load %arg4[%15, %c0_13] : memref<64x16xbf16, #tpu.memory_space<vmem>>, vector<64x16xbf16>
    %cst_14 = arith.constant dense<0.000000e+00> : vector<64x64xf32>
    %17 = tpu.matmul %1, %11, %cst_14 {dimension_numbers = #tpu.dot_dimension_numbers<[1], [1], [0], [0], [0, 0, 1, 0], [], []>} : vector<64x8xbf16>, vector<64x8xbf16>, vector<64x64xf32> -> vector<64x64xf32>
    %cst_15 = arith.constant dense<0.000000e+00> : vector<64x64xf32>
    %18 = tpu.matmul %3, %16, %cst_15 {dimension_numbers = #tpu.dot_dimension_numbers<[1], [1], [0], [0], [0, 0, 1, 0], [], []>} : vector<64x16xbf16>, vector<64x16xbf16>, vector<64x64xf32> -> vector<64x64xf32>
    %19 = arith.addf %17, %18 : vector<64x64xf32>
    %cst_16 = arith.constant dense<0xFF800000> : vector<64xf32>
    %20 = vector.multi_reduction <maximumf>, %19, %cst_16 [1] : vector<64x64xf32> to vector<64xf32>
    %21 = vector.shape_cast %20 : vector<64xf32> to vector<64x1xf32>
    %22 = arith.maximumf %4, %21 : vector<64x1xf32>
    %23 = arith.subf %4, %22 : vector<64x1xf32>
    %24 = math.exp %23 : vector<64x1xf32>
    %25 = vector.broadcast %22 : vector<64x1xf32> to vector<64x64xf32>
    %26 = arith.subf %19, %25 : vector<64x64xf32>
    %27 = math.exp %26 : vector<64x64xf32>
    %28 = arith.mulf %24, %5 : vector<64x1xf32>
    %cst_17 = arith.constant dense<0.000000e+00> : vector<64xf32>
    %29 = vector.multi_reduction <add>, %27, %cst_17 [1] : vector<64x64xf32> to vector<64xf32>
    %30 = vector.shape_cast %29 : vector<64xf32> to vector<64x1xf32>
    %31 = arith.addf %28, %30 : vector<64x1xf32>
    %32 = vector.broadcast %24 : vector<64x1xf32> to vector<64x8xf32>
    %33 = arith.mulf %32, %6 : vector<64x8xf32>
    %34 = arith.truncf %27 : vector<64x64xf32> to vector<64x64xbf16>
    %cst_18 = arith.constant dense<0.000000e+00> : vector<64x8xf32>
    %35 = tpu.matmul %34, %14, %cst_18 {dimension_numbers = #tpu.dot_dimension_numbers<[1], [0], [0], [1], [0, 0, 1, 1], [], []>} : vector<64x64xbf16>, vector<64x8xbf16>, vector<64x8xf32> -> vector<64x8xf32>
    %36 = arith.addf %33, %35 : vector<64x8xf32>
    %c1_i32 = arith.constant 1 : i32
    %37 = vector.broadcast %31 : vector<64x1xf32> to vector<64x8xf32>
    %38 = arith.divf %36, %37 : vector<64x8xf32>
    %39 = arith.truncf %38 : vector<64x8xf32> to vector<64x8xbf16>
    %40 = arith.index_cast %arg1 : i32 to index
    %c0_19 = arith.constant 0 : index
    %c0_20 = arith.constant 0 : index
    %41 = vector.load %arg9[%40, %c0_19, %c0_20] : memref<4x64x8xbf16, #tpu.memory_space<vmem>>, vector<1x64x8xbf16>
    %42 = vector.shape_cast %41 : vector<1x64x8xbf16> to vector<64x8xbf16>
    %43 = vector.shape_cast %39 : vector<64x8xbf16> to vector<1x64x8xbf16>
    tpu.vector_store %arg9[%40, %c0_19, %c0_20], %43 {strides = array<i32>} : memref<4x64x8xbf16, #tpu.memory_space<vmem>>, vector<1x64x8xbf16>,
    %c3_i32 = arith.constant 3 : i32
    %44 = arith.cmpi eq, %arg1, %c3_i32 : i32
    %45 = arith.extui %44 : i1 to i32
    %c0_i32_21 = arith.constant 0 : i32
    %46 = arith.cmpi ne, %45, %c0_i32_21 : i32
    scf.if %46 {
      %c0_22 = arith.constant 0 : index
      %c0_23 = arith.constant 0 : index
      %c0_24 = arith.constant 0 : index
      %47 = vector.load %arg9[%c0_22, %c0_23, %c0_24] : memref<4x64x8xbf16, #tpu.memory_space<vmem>>, vector<1x64x8xbf16>
      %48 = vector.shape_cast %47 : vector<1x64x8xbf16> to vector<64x8xbf16>
      %c1 = arith.constant 1 : index
      %c0_25 = arith.constant 0 : index
      %c0_26 = arith.constant 0 : index
      %49 = vector.load %arg9[%c1, %c0_25, %c0_26] : memref<4x64x8xbf16, #tpu.memory_space<vmem>>, vector<1x64x8xbf16>
      %50 = vector.shape_cast %49 : vector<1x64x8xbf16> to vector<64x8xbf16>
      %c2 = arith.constant 2 : index
      %c0_27 = arith.constant 0 : index
      %c0_28 = arith.constant 0 : index
      %51 = vector.load %arg9[%c2, %c0_27, %c0_28] : memref<4x64x8xbf16, #tpu.memory_space<vmem>>, vector<1x64x8xbf16>
      %52 = vector.shape_cast %51 : vector<1x64x8xbf16> to vector<64x8xbf16>
      %c3 = arith.constant 3 : index
      %c0_29 = arith.constant 0 : index
      %c0_30 = arith.constant 0 : index
      %53 = vector.load %arg9[%c3, %c0_29, %c0_30] : memref<4x64x8xbf16, #tpu.memory_space<vmem>>, vector<1x64x8xbf16>
      %54 = vector.shape_cast %53 : vector<1x64x8xbf16> to vector<64x8xbf16>
      %55 = tpu.concatenate %48, %50, %52, %54 in 1 : vector<64x8xbf16>, vector<64x8xbf16>, vector<64x8xbf16>, vector<64x8xbf16> -> vector<64x32xbf16>
      %c0_31 = arith.constant 0 : index
      %c0_32 = arith.constant 0 : index
      %56 = vector.load %arg5[%c0_31, %c0_32] : memref<32x32xbf16, #tpu.memory_space<vmem>>, vector<32x32xbf16>
      %cst_33 = arith.constant dense<0.000000e+00> : vector<64x32xf32>
      %57 = tpu.matmul %55, %56, %cst_33 {dimension_numbers = #tpu.dot_dimension_numbers<[1], [0], [0], [1], [0, 0, 1, 1], [], []>} : vector<64x32xbf16>, vector<32x32xbf16>, vector<64x32xf32> -> vector<64x32xf32>
      %c0_34 = arith.constant 0 : index
      %c0_35 = arith.constant 0 : index
      %c0_36 = arith.constant 0 : index
      %58 = vector.load %arg7[%c0_34, %c0_35, %c0_36] : memref<1x64x32xf32, #tpu.memory_space<vmem>>, vector<1x64x32xf32>
      %59 = vector.shape_cast %58 : vector<1x64x32xf32> to vector<64x32xf32>
      %60 = arith.addf %59, %57 : vector<64x32xf32>
      %c0_37 = arith.constant 0 : index
      %c0_38 = arith.constant 0 : index
      %61 = vector.load %arg6[%c0_37, %c0_38] : memref<1x32xf32, #tpu.memory_space<vmem>>, vector<1x32xf32>
      %62 = vector.broadcast %61 : vector<1x32xf32> to vector<64x32xf32>
      %63 = arith.addf %60, %62 : vector<64x32xf32>
      %c0_39 = arith.constant 0 : index
      %c0_40 = arith.constant 0 : index
      %c0_41 = arith.constant 0 : index
      %64 = vector.load %arg8[%c0_39, %c0_40, %c0_41] : memref<1x64x32xf32, #tpu.memory_space<vmem>>, vector<1x64x32xf32>
      %65 = vector.shape_cast %64 : vector<1x64x32xf32> to vector<64x32xf32>
      %66 = vector.shape_cast %63 : vector<64x32xf32> to vector<1x64x32xf32>
      tpu.vector_store %arg8[%c0_39, %c0_40, %c0_41], %66 {strides = array<i32>} : memref<1x64x32xf32, #tpu.memory_space<vmem>>, vector<1x64x32xf32>,
    } else {
    }
    return
  }
  func.func @transform_0(%arg0: i32, %arg1: i32) -> (i32, i32, i32, i32) {
    %c0_i32 = arith.constant 0 : i32
    %c0_i32_0 = arith.constant 0 : i32
    %c0_i32_1 = arith.constant 0 : i32
    return %arg0, %arg1, %c0_i32, %c0_i32_0 : i32, i32, i32, i32
  }
  func.func @transform_1(%arg0: i32, %arg1: i32) -> (i32, i32, i32, i32) {
    %c0_i32 = arith.constant 0 : i32
    %c0_i32_0 = arith.constant 0 : i32
    %c0_i32_1 = arith.constant 0 : i32
    return %arg0, %arg1, %c0_i32, %c0_i32_0 : i32, i32, i32, i32
  }
  func.func @transform_2(%arg0: i32, %arg1: i32) -> (i32, i32) {
    %c0_i32 = arith.constant 0 : i32
    %c0_i32_0 = arith.constant 0 : i32
    %c0_i32_1 = arith.constant 0 : i32
    return %c0_i32, %c0_i32_0 : i32, i32
  }
  func.func @transform_3(%arg0: i32, %arg1: i32) -> (i32, i32) {
    %c0_i32 = arith.constant 0 : i32
    %c0_i32_0 = arith.constant 0 : i32
    %c0_i32_1 = arith.constant 0 : i32
    return %c0_i32, %c0_i32_0 : i32, i32
  }
  func.func @transform_4(%arg0: i32, %arg1: i32) -> (i32, i32) {
    %c0_i32 = arith.constant 0 : i32
    %c0_i32_0 = arith.constant 0 : i32
    %c0_i32_1 = arith.constant 0 : i32
    return %c0_i32, %c0_i32_0 : i32, i32
  }
  func.func @transform_5(%arg0: i32, %arg1: i32) -> (i32, i32, i32) {
    %c0_i32 = arith.constant 0 : i32
    %c0_i32_0 = arith.constant 0 : i32
    %c0_i32_1 = arith.constant 0 : i32
    return %arg0, %c0_i32, %c0_i32_0 : i32, i32, i32
  }
  func.func @transform_6(%arg0: i32, %arg1: i32) -> (i32, i32, i32) {
    %c0_i32 = arith.constant 0 : i32
    %c0_i32_0 = arith.constant 0 : i32
    %c0_i32_1 = arith.constant 0 : i32
    return %arg0, %c0_i32, %c0_i32_0 : i32, i32, i32
  }
}

module attributes {stable_mosaic.version = 11 : i64} {
  func.func @kernel(%arg0: i32, %arg1: memref<1x10x10x32xbf16, #tpu.memory_space<vmem>>, %arg2: memref<9x32x128xbf16, #tpu.memory_space<vmem>>, %arg3: memref<1x128xf32, #tpu.memory_space<vmem>>, %arg4: memref<1x128xf32, #tpu.memory_space<vmem>>, %arg5: memref<1x64x128xbf16, #tpu.memory_space<vmem>>, %arg6: memref<64x128xf32, #tpu.memory_space<vmem>>) attributes {dimension_semantics = [#tpu.dimension_semantics<parallel>], iteration_bounds = array<i64: 2>, scalar_prefetch = 0 : i64, scratch_operands = 1 : i64, tpu.core_type = #tpu.core_type<tc>, window_params = [{transform_indices = @transform_0, window_bounds = array<i64: 1, 10, 10, 32>}, {pipeline_mode = #tpu.pipeline_mode<synchronous>, transform_indices = @transform_1, window_bounds = array<i64: 9, 32, 128>}, {pipeline_mode = #tpu.pipeline_mode<synchronous>, transform_indices = @transform_2, window_bounds = array<i64: 1, 128>}, {pipeline_mode = #tpu.pipeline_mode<synchronous>, transform_indices = @transform_3, window_bounds = array<i64: 1, 128>}, {transform_indices = @transform_4, window_bounds = array<i64: 1, 64, 128>}]} {
    %c0 = arith.constant 0 : index
    %c0_0 = arith.constant 0 : index
    %c0_1 = arith.constant 0 : index
    %c0_2 = arith.constant 0 : index
    %0 = vector.load %arg1[%c0, %c0_0, %c0_1, %c0_2] : memref<1x10x10x32xbf16, #tpu.memory_space<vmem>>, vector<1x8x8x32xbf16>
    %1 = vector.shape_cast %0 : vector<1x8x8x32xbf16> to vector<8x8x32xbf16>
    %2 = vector.shape_cast %1 : vector<8x8x32xbf16> to vector<64x32xbf16>
    %c0_3 = arith.constant 0 : index
    %c0_4 = arith.constant 0 : index
    %c0_5 = arith.constant 0 : index
    %3 = vector.load %arg2[%c0_3, %c0_4, %c0_5] : memref<9x32x128xbf16, #tpu.memory_space<vmem>>, vector<1x32x128xbf16>
    %4 = vector.shape_cast %3 : vector<1x32x128xbf16> to vector<32x128xbf16>
    %cst = arith.constant dense<0.000000e+00> : vector<64x128xf32>
    %5 = tpu.matmul %2, %4, %cst {dimension_numbers = #tpu.dot_dimension_numbers<[1], [0], [0], [1], [0, 0, 1, 1], [], []>} : vector<64x32xbf16>, vector<32x128xbf16>, vector<64x128xf32> -> vector<64x128xf32>
    %c0_6 = arith.constant 0 : index
    %c0_7 = arith.constant 0 : index
    %6 = vector.load %arg6[%c0_6, %c0_7] : memref<64x128xf32, #tpu.memory_space<vmem>>, vector<64x128xf32>
    tpu.vector_store %arg6[%c0_6, %c0_7], %5 {strides = array<i32>} : memref<64x128xf32, #tpu.memory_space<vmem>>, vector<64x128xf32>,
    %c0_8 = arith.constant 0 : index
    %c0_9 = arith.constant 0 : index
    %c1 = arith.constant 1 : index
    %c0_10 = arith.constant 0 : index
    %7 = vector.load %arg1[%c0_8, %c0_9, %c1, %c0_10] : memref<1x10x10x32xbf16, #tpu.memory_space<vmem>>, vector<1x8x8x32xbf16>
    %8 = vector.shape_cast %7 : vector<1x8x8x32xbf16> to vector<8x8x32xbf16>
    %9 = vector.shape_cast %8 : vector<8x8x32xbf16> to vector<64x32xbf16>
    %c1_11 = arith.constant 1 : index
    %c0_12 = arith.constant 0 : index
    %c0_13 = arith.constant 0 : index
    %10 = vector.load %arg2[%c1_11, %c0_12, %c0_13] : memref<9x32x128xbf16, #tpu.memory_space<vmem>>, vector<1x32x128xbf16>
    %11 = vector.shape_cast %10 : vector<1x32x128xbf16> to vector<32x128xbf16>
    %cst_14 = arith.constant dense<0.000000e+00> : vector<64x128xf32>
    %12 = tpu.matmul %9, %11, %cst_14 {dimension_numbers = #tpu.dot_dimension_numbers<[1], [0], [0], [1], [0, 0, 1, 1], [], []>} : vector<64x32xbf16>, vector<32x128xbf16>, vector<64x128xf32> -> vector<64x128xf32>
    %c0_15 = arith.constant 0 : index
    %c0_16 = arith.constant 0 : index
    %13 = vector.load %arg6[%c0_15, %c0_16] : memref<64x128xf32, #tpu.memory_space<vmem>>, vector<64x128xf32>
    %14 = arith.addf %13, %12 : vector<64x128xf32>
    %c0_17 = arith.constant 0 : index
    %c0_18 = arith.constant 0 : index
    %15 = vector.load %arg6[%c0_17, %c0_18] : memref<64x128xf32, #tpu.memory_space<vmem>>, vector<64x128xf32>
    tpu.vector_store %arg6[%c0_17, %c0_18], %14 {strides = array<i32>} : memref<64x128xf32, #tpu.memory_space<vmem>>, vector<64x128xf32>,
    %c0_19 = arith.constant 0 : index
    %c0_20 = arith.constant 0 : index
    %c2 = arith.constant 2 : index
    %c0_21 = arith.constant 0 : index
    %16 = vector.load %arg1[%c0_19, %c0_20, %c2, %c0_21] : memref<1x10x10x32xbf16, #tpu.memory_space<vmem>>, vector<1x8x8x32xbf16>
    %17 = vector.shape_cast %16 : vector<1x8x8x32xbf16> to vector<8x8x32xbf16>
    %18 = vector.shape_cast %17 : vector<8x8x32xbf16> to vector<64x32xbf16>
    %c2_22 = arith.constant 2 : index
    %c0_23 = arith.constant 0 : index
    %c0_24 = arith.constant 0 : index
    %19 = vector.load %arg2[%c2_22, %c0_23, %c0_24] : memref<9x32x128xbf16, #tpu.memory_space<vmem>>, vector<1x32x128xbf16>
    %20 = vector.shape_cast %19 : vector<1x32x128xbf16> to vector<32x128xbf16>
    %cst_25 = arith.constant dense<0.000000e+00> : vector<64x128xf32>
    %21 = tpu.matmul %18, %20, %cst_25 {dimension_numbers = #tpu.dot_dimension_numbers<[1], [0], [0], [1], [0, 0, 1, 1], [], []>} : vector<64x32xbf16>, vector<32x128xbf16>, vector<64x128xf32> -> vector<64x128xf32>
    %c0_26 = arith.constant 0 : index
    %c0_27 = arith.constant 0 : index
    %22 = vector.load %arg6[%c0_26, %c0_27] : memref<64x128xf32, #tpu.memory_space<vmem>>, vector<64x128xf32>
    %23 = arith.addf %22, %21 : vector<64x128xf32>
    %c0_28 = arith.constant 0 : index
    %c0_29 = arith.constant 0 : index
    %24 = vector.load %arg6[%c0_28, %c0_29] : memref<64x128xf32, #tpu.memory_space<vmem>>, vector<64x128xf32>
    tpu.vector_store %arg6[%c0_28, %c0_29], %23 {strides = array<i32>} : memref<64x128xf32, #tpu.memory_space<vmem>>, vector<64x128xf32>,
    %c0_30 = arith.constant 0 : index
    %c1_31 = arith.constant 1 : index
    %c0_32 = arith.constant 0 : index
    %c0_33 = arith.constant 0 : index
    %25 = vector.load %arg1[%c0_30, %c1_31, %c0_32, %c0_33] : memref<1x10x10x32xbf16, #tpu.memory_space<vmem>>, vector<1x8x8x32xbf16>
    %26 = vector.shape_cast %25 : vector<1x8x8x32xbf16> to vector<8x8x32xbf16>
    %27 = vector.shape_cast %26 : vector<8x8x32xbf16> to vector<64x32xbf16>
    %c3 = arith.constant 3 : index
    %c0_34 = arith.constant 0 : index
    %c0_35 = arith.constant 0 : index
    %28 = vector.load %arg2[%c3, %c0_34, %c0_35] : memref<9x32x128xbf16, #tpu.memory_space<vmem>>, vector<1x32x128xbf16>
    %29 = vector.shape_cast %28 : vector<1x32x128xbf16> to vector<32x128xbf16>
    %cst_36 = arith.constant dense<0.000000e+00> : vector<64x128xf32>
    %30 = tpu.matmul %27, %29, %cst_36 {dimension_numbers = #tpu.dot_dimension_numbers<[1], [0], [0], [1], [0, 0, 1, 1], [], []>} : vector<64x32xbf16>, vector<32x128xbf16>, vector<64x128xf32> -> vector<64x128xf32>
    %c0_37 = arith.constant 0 : index
    %c0_38 = arith.constant 0 : index
    %31 = vector.load %arg6[%c0_37, %c0_38] : memref<64x128xf32, #tpu.memory_space<vmem>>, vector<64x128xf32>
    %32 = arith.addf %31, %30 : vector<64x128xf32>
    %c0_39 = arith.constant 0 : index
    %c0_40 = arith.constant 0 : index
    %33 = vector.load %arg6[%c0_39, %c0_40] : memref<64x128xf32, #tpu.memory_space<vmem>>, vector<64x128xf32>
    tpu.vector_store %arg6[%c0_39, %c0_40], %32 {strides = array<i32>} : memref<64x128xf32, #tpu.memory_space<vmem>>, vector<64x128xf32>,
    %c0_41 = arith.constant 0 : index
    %c1_42 = arith.constant 1 : index
    %c1_43 = arith.constant 1 : index
    %c0_44 = arith.constant 0 : index
    %34 = vector.load %arg1[%c0_41, %c1_42, %c1_43, %c0_44] : memref<1x10x10x32xbf16, #tpu.memory_space<vmem>>, vector<1x8x8x32xbf16>
    %35 = vector.shape_cast %34 : vector<1x8x8x32xbf16> to vector<8x8x32xbf16>
    %36 = vector.shape_cast %35 : vector<8x8x32xbf16> to vector<64x32xbf16>
    %c4 = arith.constant 4 : index
    %c0_45 = arith.constant 0 : index
    %c0_46 = arith.constant 0 : index
    %37 = vector.load %arg2[%c4, %c0_45, %c0_46] : memref<9x32x128xbf16, #tpu.memory_space<vmem>>, vector<1x32x128xbf16>
    %38 = vector.shape_cast %37 : vector<1x32x128xbf16> to vector<32x128xbf16>
    %cst_47 = arith.constant dense<0.000000e+00> : vector<64x128xf32>
    %39 = tpu.matmul %36, %38, %cst_47 {dimension_numbers = #tpu.dot_dimension_numbers<[1], [0], [0], [1], [0, 0, 1, 1], [], []>} : vector<64x32xbf16>, vector<32x128xbf16>, vector<64x128xf32> -> vector<64x128xf32>
    %c0_48 = arith.constant 0 : index
    %c0_49 = arith.constant 0 : index
    %40 = vector.load %arg6[%c0_48, %c0_49] : memref<64x128xf32, #tpu.memory_space<vmem>>, vector<64x128xf32>
    %41 = arith.addf %40, %39 : vector<64x128xf32>
    %c0_50 = arith.constant 0 : index
    %c0_51 = arith.constant 0 : index
    %42 = vector.load %arg6[%c0_50, %c0_51] : memref<64x128xf32, #tpu.memory_space<vmem>>, vector<64x128xf32>
    tpu.vector_store %arg6[%c0_50, %c0_51], %41 {strides = array<i32>} : memref<64x128xf32, #tpu.memory_space<vmem>>, vector<64x128xf32>,
    %c0_52 = arith.constant 0 : index
    %c1_53 = arith.constant 1 : index
    %c2_54 = arith.constant 2 : index
    %c0_55 = arith.constant 0 : index
    %43 = vector.load %arg1[%c0_52, %c1_53, %c2_54, %c0_55] : memref<1x10x10x32xbf16, #tpu.memory_space<vmem>>, vector<1x8x8x32xbf16>
    %44 = vector.shape_cast %43 : vector<1x8x8x32xbf16> to vector<8x8x32xbf16>
    %45 = vector.shape_cast %44 : vector<8x8x32xbf16> to vector<64x32xbf16>
    %c5 = arith.constant 5 : index
    %c0_56 = arith.constant 0 : index
    %c0_57 = arith.constant 0 : index
    %46 = vector.load %arg2[%c5, %c0_56, %c0_57] : memref<9x32x128xbf16, #tpu.memory_space<vmem>>, vector<1x32x128xbf16>
    %47 = vector.shape_cast %46 : vector<1x32x128xbf16> to vector<32x128xbf16>
    %cst_58 = arith.constant dense<0.000000e+00> : vector<64x128xf32>
    %48 = tpu.matmul %45, %47, %cst_58 {dimension_numbers = #tpu.dot_dimension_numbers<[1], [0], [0], [1], [0, 0, 1, 1], [], []>} : vector<64x32xbf16>, vector<32x128xbf16>, vector<64x128xf32> -> vector<64x128xf32>
    %c0_59 = arith.constant 0 : index
    %c0_60 = arith.constant 0 : index
    %49 = vector.load %arg6[%c0_59, %c0_60] : memref<64x128xf32, #tpu.memory_space<vmem>>, vector<64x128xf32>
    %50 = arith.addf %49, %48 : vector<64x128xf32>
    %c0_61 = arith.constant 0 : index
    %c0_62 = arith.constant 0 : index
    %51 = vector.load %arg6[%c0_61, %c0_62] : memref<64x128xf32, #tpu.memory_space<vmem>>, vector<64x128xf32>
    tpu.vector_store %arg6[%c0_61, %c0_62], %50 {strides = array<i32>} : memref<64x128xf32, #tpu.memory_space<vmem>>, vector<64x128xf32>,
    %c0_63 = arith.constant 0 : index
    %c2_64 = arith.constant 2 : index
    %c0_65 = arith.constant 0 : index
    %c0_66 = arith.constant 0 : index
    %52 = vector.load %arg1[%c0_63, %c2_64, %c0_65, %c0_66] : memref<1x10x10x32xbf16, #tpu.memory_space<vmem>>, vector<1x8x8x32xbf16>
    %53 = vector.shape_cast %52 : vector<1x8x8x32xbf16> to vector<8x8x32xbf16>
    %54 = vector.shape_cast %53 : vector<8x8x32xbf16> to vector<64x32xbf16>
    %c6 = arith.constant 6 : index
    %c0_67 = arith.constant 0 : index
    %c0_68 = arith.constant 0 : index
    %55 = vector.load %arg2[%c6, %c0_67, %c0_68] : memref<9x32x128xbf16, #tpu.memory_space<vmem>>, vector<1x32x128xbf16>
    %56 = vector.shape_cast %55 : vector<1x32x128xbf16> to vector<32x128xbf16>
    %cst_69 = arith.constant dense<0.000000e+00> : vector<64x128xf32>
    %57 = tpu.matmul %54, %56, %cst_69 {dimension_numbers = #tpu.dot_dimension_numbers<[1], [0], [0], [1], [0, 0, 1, 1], [], []>} : vector<64x32xbf16>, vector<32x128xbf16>, vector<64x128xf32> -> vector<64x128xf32>
    %c0_70 = arith.constant 0 : index
    %c0_71 = arith.constant 0 : index
    %58 = vector.load %arg6[%c0_70, %c0_71] : memref<64x128xf32, #tpu.memory_space<vmem>>, vector<64x128xf32>
    %59 = arith.addf %58, %57 : vector<64x128xf32>
    %c0_72 = arith.constant 0 : index
    %c0_73 = arith.constant 0 : index
    %60 = vector.load %arg6[%c0_72, %c0_73] : memref<64x128xf32, #tpu.memory_space<vmem>>, vector<64x128xf32>
    tpu.vector_store %arg6[%c0_72, %c0_73], %59 {strides = array<i32>} : memref<64x128xf32, #tpu.memory_space<vmem>>, vector<64x128xf32>,
    %c0_74 = arith.constant 0 : index
    %c2_75 = arith.constant 2 : index
    %c1_76 = arith.constant 1 : index
    %c0_77 = arith.constant 0 : index
    %61 = vector.load %arg1[%c0_74, %c2_75, %c1_76, %c0_77] : memref<1x10x10x32xbf16, #tpu.memory_space<vmem>>, vector<1x8x8x32xbf16>
    %62 = vector.shape_cast %61 : vector<1x8x8x32xbf16> to vector<8x8x32xbf16>
    %63 = vector.shape_cast %62 : vector<8x8x32xbf16> to vector<64x32xbf16>
    %c7 = arith.constant 7 : index
    %c0_78 = arith.constant 0 : index
    %c0_79 = arith.constant 0 : index
    %64 = vector.load %arg2[%c7, %c0_78, %c0_79] : memref<9x32x128xbf16, #tpu.memory_space<vmem>>, vector<1x32x128xbf16>
    %65 = vector.shape_cast %64 : vector<1x32x128xbf16> to vector<32x128xbf16>
    %cst_80 = arith.constant dense<0.000000e+00> : vector<64x128xf32>
    %66 = tpu.matmul %63, %65, %cst_80 {dimension_numbers = #tpu.dot_dimension_numbers<[1], [0], [0], [1], [0, 0, 1, 1], [], []>} : vector<64x32xbf16>, vector<32x128xbf16>, vector<64x128xf32> -> vector<64x128xf32>
    %c0_81 = arith.constant 0 : index
    %c0_82 = arith.constant 0 : index
    %67 = vector.load %arg6[%c0_81, %c0_82] : memref<64x128xf32, #tpu.memory_space<vmem>>, vector<64x128xf32>
    %68 = arith.addf %67, %66 : vector<64x128xf32>
    %c0_83 = arith.constant 0 : index
    %c0_84 = arith.constant 0 : index
    %69 = vector.load %arg6[%c0_83, %c0_84] : memref<64x128xf32, #tpu.memory_space<vmem>>, vector<64x128xf32>
    tpu.vector_store %arg6[%c0_83, %c0_84], %68 {strides = array<i32>} : memref<64x128xf32, #tpu.memory_space<vmem>>, vector<64x128xf32>,
    %c0_85 = arith.constant 0 : index
    %c2_86 = arith.constant 2 : index
    %c2_87 = arith.constant 2 : index
    %c0_88 = arith.constant 0 : index
    %70 = vector.load %arg1[%c0_85, %c2_86, %c2_87, %c0_88] : memref<1x10x10x32xbf16, #tpu.memory_space<vmem>>, vector<1x8x8x32xbf16>
    %71 = vector.shape_cast %70 : vector<1x8x8x32xbf16> to vector<8x8x32xbf16>
    %72 = vector.shape_cast %71 : vector<8x8x32xbf16> to vector<64x32xbf16>
    %c8 = arith.constant 8 : index
    %c0_89 = arith.constant 0 : index
    %c0_90 = arith.constant 0 : index
    %73 = vector.load %arg2[%c8, %c0_89, %c0_90] : memref<9x32x128xbf16, #tpu.memory_space<vmem>>, vector<1x32x128xbf16>
    %74 = vector.shape_cast %73 : vector<1x32x128xbf16> to vector<32x128xbf16>
    %cst_91 = arith.constant dense<0.000000e+00> : vector<64x128xf32>
    %75 = tpu.matmul %72, %74, %cst_91 {dimension_numbers = #tpu.dot_dimension_numbers<[1], [0], [0], [1], [0, 0, 1, 1], [], []>} : vector<64x32xbf16>, vector<32x128xbf16>, vector<64x128xf32> -> vector<64x128xf32>
    %c0_92 = arith.constant 0 : index
    %c0_93 = arith.constant 0 : index
    %76 = vector.load %arg6[%c0_92, %c0_93] : memref<64x128xf32, #tpu.memory_space<vmem>>, vector<64x128xf32>
    %77 = arith.addf %76, %75 : vector<64x128xf32>
    %c0_94 = arith.constant 0 : index
    %c0_95 = arith.constant 0 : index
    %78 = vector.load %arg6[%c0_94, %c0_95] : memref<64x128xf32, #tpu.memory_space<vmem>>, vector<64x128xf32>
    tpu.vector_store %arg6[%c0_94, %c0_95], %77 {strides = array<i32>} : memref<64x128xf32, #tpu.memory_space<vmem>>, vector<64x128xf32>,
    %c0_96 = arith.constant 0 : index
    %c0_97 = arith.constant 0 : index
    %79 = vector.load %arg6[%c0_96, %c0_97] : memref<64x128xf32, #tpu.memory_space<vmem>>, vector<64x128xf32>
    %c0_98 = arith.constant 0 : index
    %c0_99 = arith.constant 0 : index
    %80 = vector.load %arg3[%c0_98, %c0_99] : memref<1x128xf32, #tpu.memory_space<vmem>>, vector<1x128xf32>
    %81 = vector.broadcast %80 : vector<1x128xf32> to vector<64x128xf32>
    %82 = arith.mulf %79, %81 : vector<64x128xf32>
    %c0_100 = arith.constant 0 : index
    %c0_101 = arith.constant 0 : index
    %83 = vector.load %arg4[%c0_100, %c0_101] : memref<1x128xf32, #tpu.memory_space<vmem>>, vector<1x128xf32>
    %84 = vector.broadcast %83 : vector<1x128xf32> to vector<64x128xf32>
    %85 = arith.addf %82, %84 : vector<64x128xf32>
    %cst_102 = arith.constant 0.000000e+00 : f32
    %86 = vector.broadcast %cst_102 : f32 to vector<64x128xf32>
    %87 = arith.subf %86, %85 : vector<64x128xf32>
    %88 = math.exp %87 : vector<64x128xf32>
    %cst_103 = arith.constant 1.000000e+00 : f32
    %89 = vector.broadcast %cst_103 : f32 to vector<64x128xf32>
    %90 = arith.addf %89, %88 : vector<64x128xf32>
    %91 = arith.divf %85, %90 : vector<64x128xf32>
    %92 = arith.truncf %91 : vector<64x128xf32> to vector<64x128xbf16>
    %c0_104 = arith.constant 0 : index
    %c0_105 = arith.constant 0 : index
    %c0_106 = arith.constant 0 : index
    %93 = vector.load %arg5[%c0_104, %c0_105, %c0_106] : memref<1x64x128xbf16, #tpu.memory_space<vmem>>, vector<1x64x128xbf16>
    %94 = vector.shape_cast %93 : vector<1x64x128xbf16> to vector<64x128xbf16>
    %95 = vector.shape_cast %92 : vector<64x128xbf16> to vector<1x64x128xbf16>
    tpu.vector_store %arg5[%c0_104, %c0_105, %c0_106], %95 {strides = array<i32>} : memref<1x64x128xbf16, #tpu.memory_space<vmem>>, vector<1x64x128xbf16>,
    return
  }
  func.func @transform_0(%arg0: i32) -> (i32, i32, i32, i32) {
    %c0_i32 = arith.constant 0 : i32
    %c0_i32_0 = arith.constant 0 : i32
    %c0_i32_1 = arith.constant 0 : i32
    %c0_i32_2 = arith.constant 0 : i32
    return %arg0, %c0_i32, %c0_i32_0, %c0_i32_1 : i32, i32, i32, i32
  }
  func.func @transform_1(%arg0: i32) -> (i32, i32, i32) {
    %c0_i32 = arith.constant 0 : i32
    %c0_i32_0 = arith.constant 0 : i32
    %c0_i32_1 = arith.constant 0 : i32
    %c0_i32_2 = arith.constant 0 : i32
    return %c0_i32, %c0_i32_0, %c0_i32_1 : i32, i32, i32
  }
  func.func @transform_2(%arg0: i32) -> (i32, i32) {
    %c0_i32 = arith.constant 0 : i32
    %c0_i32_0 = arith.constant 0 : i32
    %c0_i32_1 = arith.constant 0 : i32
    return %c0_i32, %c0_i32_0 : i32, i32
  }
  func.func @transform_3(%arg0: i32) -> (i32, i32) {
    %c0_i32 = arith.constant 0 : i32
    %c0_i32_0 = arith.constant 0 : i32
    %c0_i32_1 = arith.constant 0 : i32
    return %c0_i32, %c0_i32_0 : i32, i32
  }
  func.func @transform_4(%arg0: i32) -> (i32, i32, i32) {
    %c0_i32 = arith.constant 0 : i32
    %c0_i32_0 = arith.constant 0 : i32
    %c0_i32_1 = arith.constant 0 : i32
    return %arg0, %c0_i32, %c0_i32_0 : i32, i32, i32
  }
}

module attributes {stable_mosaic.version = 11 : i64} {
  func.func @kernel(%arg0: i32, %arg1: memref<1x10x10x32xbf16, #tpu.memory_space<vmem>>, %arg2: memref<9x32x32xbf16, #tpu.memory_space<vmem>>, %arg3: memref<1x32xf32, #tpu.memory_space<vmem>>, %arg4: memref<1x32xf32, #tpu.memory_space<vmem>>, %arg5: memref<1x64x32xf32, #tpu.memory_space<vmem>>, %arg6: memref<1x64x32xf32, #tpu.memory_space<vmem>>, %arg7: memref<64x32xf32, #tpu.memory_space<vmem>>) attributes {dimension_semantics = [#tpu.dimension_semantics<parallel>], iteration_bounds = array<i64: 2>, scalar_prefetch = 0 : i64, scratch_operands = 1 : i64, tpu.core_type = #tpu.core_type<tc>, window_params = [{transform_indices = @transform_0, window_bounds = array<i64: 1, 10, 10, 32>}, {pipeline_mode = #tpu.pipeline_mode<synchronous>, transform_indices = @transform_1, window_bounds = array<i64: 9, 32, 32>}, {pipeline_mode = #tpu.pipeline_mode<synchronous>, transform_indices = @transform_2, window_bounds = array<i64: 1, 32>}, {pipeline_mode = #tpu.pipeline_mode<synchronous>, transform_indices = @transform_3, window_bounds = array<i64: 1, 32>}, {transform_indices = @transform_4, window_bounds = array<i64: 1, 64, 32>}, {transform_indices = @transform_5, window_bounds = array<i64: 1, 64, 32>}]} {
    %c0 = arith.constant 0 : index
    %c0_0 = arith.constant 0 : index
    %c0_1 = arith.constant 0 : index
    %c0_2 = arith.constant 0 : index
    %0 = vector.load %arg1[%c0, %c0_0, %c0_1, %c0_2] : memref<1x10x10x32xbf16, #tpu.memory_space<vmem>>, vector<1x8x8x32xbf16>
    %1 = vector.shape_cast %0 : vector<1x8x8x32xbf16> to vector<8x8x32xbf16>
    %2 = vector.shape_cast %1 : vector<8x8x32xbf16> to vector<64x32xbf16>
    %c0_3 = arith.constant 0 : index
    %c0_4 = arith.constant 0 : index
    %c0_5 = arith.constant 0 : index
    %3 = vector.load %arg2[%c0_3, %c0_4, %c0_5] : memref<9x32x32xbf16, #tpu.memory_space<vmem>>, vector<1x32x32xbf16>
    %4 = vector.shape_cast %3 : vector<1x32x32xbf16> to vector<32x32xbf16>
    %cst = arith.constant dense<0.000000e+00> : vector<64x32xf32>
    %5 = tpu.matmul %2, %4, %cst {dimension_numbers = #tpu.dot_dimension_numbers<[1], [0], [0], [1], [0, 0, 1, 1], [], []>} : vector<64x32xbf16>, vector<32x32xbf16>, vector<64x32xf32> -> vector<64x32xf32>
    %c0_6 = arith.constant 0 : index
    %c0_7 = arith.constant 0 : index
    %6 = vector.load %arg7[%c0_6, %c0_7] : memref<64x32xf32, #tpu.memory_space<vmem>>, vector<64x32xf32>
    tpu.vector_store %arg7[%c0_6, %c0_7], %5 {strides = array<i32>} : memref<64x32xf32, #tpu.memory_space<vmem>>, vector<64x32xf32>,
    %c0_8 = arith.constant 0 : index
    %c0_9 = arith.constant 0 : index
    %c1 = arith.constant 1 : index
    %c0_10 = arith.constant 0 : index
    %7 = vector.load %arg1[%c0_8, %c0_9, %c1, %c0_10] : memref<1x10x10x32xbf16, #tpu.memory_space<vmem>>, vector<1x8x8x32xbf16>
    %8 = vector.shape_cast %7 : vector<1x8x8x32xbf16> to vector<8x8x32xbf16>
    %9 = vector.shape_cast %8 : vector<8x8x32xbf16> to vector<64x32xbf16>
    %c1_11 = arith.constant 1 : index
    %c0_12 = arith.constant 0 : index
    %c0_13 = arith.constant 0 : index
    %10 = vector.load %arg2[%c1_11, %c0_12, %c0_13] : memref<9x32x32xbf16, #tpu.memory_space<vmem>>, vector<1x32x32xbf16>
    %11 = vector.shape_cast %10 : vector<1x32x32xbf16> to vector<32x32xbf16>
    %cst_14 = arith.constant dense<0.000000e+00> : vector<64x32xf32>
    %12 = tpu.matmul %9, %11, %cst_14 {dimension_numbers = #tpu.dot_dimension_numbers<[1], [0], [0], [1], [0, 0, 1, 1], [], []>} : vector<64x32xbf16>, vector<32x32xbf16>, vector<64x32xf32> -> vector<64x32xf32>
    %c0_15 = arith.constant 0 : index
    %c0_16 = arith.constant 0 : index
    %13 = vector.load %arg7[%c0_15, %c0_16] : memref<64x32xf32, #tpu.memory_space<vmem>>, vector<64x32xf32>
    %14 = arith.addf %13, %12 : vector<64x32xf32>
    %c0_17 = arith.constant 0 : index
    %c0_18 = arith.constant 0 : index
    %15 = vector.load %arg7[%c0_17, %c0_18] : memref<64x32xf32, #tpu.memory_space<vmem>>, vector<64x32xf32>
    tpu.vector_store %arg7[%c0_17, %c0_18], %14 {strides = array<i32>} : memref<64x32xf32, #tpu.memory_space<vmem>>, vector<64x32xf32>,
    %c0_19 = arith.constant 0 : index
    %c0_20 = arith.constant 0 : index
    %c2 = arith.constant 2 : index
    %c0_21 = arith.constant 0 : index
    %16 = vector.load %arg1[%c0_19, %c0_20, %c2, %c0_21] : memref<1x10x10x32xbf16, #tpu.memory_space<vmem>>, vector<1x8x8x32xbf16>
    %17 = vector.shape_cast %16 : vector<1x8x8x32xbf16> to vector<8x8x32xbf16>
    %18 = vector.shape_cast %17 : vector<8x8x32xbf16> to vector<64x32xbf16>
    %c2_22 = arith.constant 2 : index
    %c0_23 = arith.constant 0 : index
    %c0_24 = arith.constant 0 : index
    %19 = vector.load %arg2[%c2_22, %c0_23, %c0_24] : memref<9x32x32xbf16, #tpu.memory_space<vmem>>, vector<1x32x32xbf16>
    %20 = vector.shape_cast %19 : vector<1x32x32xbf16> to vector<32x32xbf16>
    %cst_25 = arith.constant dense<0.000000e+00> : vector<64x32xf32>
    %21 = tpu.matmul %18, %20, %cst_25 {dimension_numbers = #tpu.dot_dimension_numbers<[1], [0], [0], [1], [0, 0, 1, 1], [], []>} : vector<64x32xbf16>, vector<32x32xbf16>, vector<64x32xf32> -> vector<64x32xf32>
    %c0_26 = arith.constant 0 : index
    %c0_27 = arith.constant 0 : index
    %22 = vector.load %arg7[%c0_26, %c0_27] : memref<64x32xf32, #tpu.memory_space<vmem>>, vector<64x32xf32>
    %23 = arith.addf %22, %21 : vector<64x32xf32>
    %c0_28 = arith.constant 0 : index
    %c0_29 = arith.constant 0 : index
    %24 = vector.load %arg7[%c0_28, %c0_29] : memref<64x32xf32, #tpu.memory_space<vmem>>, vector<64x32xf32>
    tpu.vector_store %arg7[%c0_28, %c0_29], %23 {strides = array<i32>} : memref<64x32xf32, #tpu.memory_space<vmem>>, vector<64x32xf32>,
    %c0_30 = arith.constant 0 : index
    %c1_31 = arith.constant 1 : index
    %c0_32 = arith.constant 0 : index
    %c0_33 = arith.constant 0 : index
    %25 = vector.load %arg1[%c0_30, %c1_31, %c0_32, %c0_33] : memref<1x10x10x32xbf16, #tpu.memory_space<vmem>>, vector<1x8x8x32xbf16>
    %26 = vector.shape_cast %25 : vector<1x8x8x32xbf16> to vector<8x8x32xbf16>
    %27 = vector.shape_cast %26 : vector<8x8x32xbf16> to vector<64x32xbf16>
    %c3 = arith.constant 3 : index
    %c0_34 = arith.constant 0 : index
    %c0_35 = arith.constant 0 : index
    %28 = vector.load %arg2[%c3, %c0_34, %c0_35] : memref<9x32x32xbf16, #tpu.memory_space<vmem>>, vector<1x32x32xbf16>
    %29 = vector.shape_cast %28 : vector<1x32x32xbf16> to vector<32x32xbf16>
    %cst_36 = arith.constant dense<0.000000e+00> : vector<64x32xf32>
    %30 = tpu.matmul %27, %29, %cst_36 {dimension_numbers = #tpu.dot_dimension_numbers<[1], [0], [0], [1], [0, 0, 1, 1], [], []>} : vector<64x32xbf16>, vector<32x32xbf16>, vector<64x32xf32> -> vector<64x32xf32>
    %c0_37 = arith.constant 0 : index
    %c0_38 = arith.constant 0 : index
    %31 = vector.load %arg7[%c0_37, %c0_38] : memref<64x32xf32, #tpu.memory_space<vmem>>, vector<64x32xf32>
    %32 = arith.addf %31, %30 : vector<64x32xf32>
    %c0_39 = arith.constant 0 : index
    %c0_40 = arith.constant 0 : index
    %33 = vector.load %arg7[%c0_39, %c0_40] : memref<64x32xf32, #tpu.memory_space<vmem>>, vector<64x32xf32>
    tpu.vector_store %arg7[%c0_39, %c0_40], %32 {strides = array<i32>} : memref<64x32xf32, #tpu.memory_space<vmem>>, vector<64x32xf32>,
    %c0_41 = arith.constant 0 : index
    %c1_42 = arith.constant 1 : index
    %c1_43 = arith.constant 1 : index
    %c0_44 = arith.constant 0 : index
    %34 = vector.load %arg1[%c0_41, %c1_42, %c1_43, %c0_44] : memref<1x10x10x32xbf16, #tpu.memory_space<vmem>>, vector<1x8x8x32xbf16>
    %35 = vector.shape_cast %34 : vector<1x8x8x32xbf16> to vector<8x8x32xbf16>
    %36 = vector.shape_cast %35 : vector<8x8x32xbf16> to vector<64x32xbf16>
    %c4 = arith.constant 4 : index
    %c0_45 = arith.constant 0 : index
    %c0_46 = arith.constant 0 : index
    %37 = vector.load %arg2[%c4, %c0_45, %c0_46] : memref<9x32x32xbf16, #tpu.memory_space<vmem>>, vector<1x32x32xbf16>
    %38 = vector.shape_cast %37 : vector<1x32x32xbf16> to vector<32x32xbf16>
    %cst_47 = arith.constant dense<0.000000e+00> : vector<64x32xf32>
    %39 = tpu.matmul %36, %38, %cst_47 {dimension_numbers = #tpu.dot_dimension_numbers<[1], [0], [0], [1], [0, 0, 1, 1], [], []>} : vector<64x32xbf16>, vector<32x32xbf16>, vector<64x32xf32> -> vector<64x32xf32>
    %c0_48 = arith.constant 0 : index
    %c0_49 = arith.constant 0 : index
    %40 = vector.load %arg7[%c0_48, %c0_49] : memref<64x32xf32, #tpu.memory_space<vmem>>, vector<64x32xf32>
    %41 = arith.addf %40, %39 : vector<64x32xf32>
    %c0_50 = arith.constant 0 : index
    %c0_51 = arith.constant 0 : index
    %42 = vector.load %arg7[%c0_50, %c0_51] : memref<64x32xf32, #tpu.memory_space<vmem>>, vector<64x32xf32>
    tpu.vector_store %arg7[%c0_50, %c0_51], %41 {strides = array<i32>} : memref<64x32xf32, #tpu.memory_space<vmem>>, vector<64x32xf32>,
    %c0_52 = arith.constant 0 : index
    %c1_53 = arith.constant 1 : index
    %c2_54 = arith.constant 2 : index
    %c0_55 = arith.constant 0 : index
    %43 = vector.load %arg1[%c0_52, %c1_53, %c2_54, %c0_55] : memref<1x10x10x32xbf16, #tpu.memory_space<vmem>>, vector<1x8x8x32xbf16>
    %44 = vector.shape_cast %43 : vector<1x8x8x32xbf16> to vector<8x8x32xbf16>
    %45 = vector.shape_cast %44 : vector<8x8x32xbf16> to vector<64x32xbf16>
    %c5 = arith.constant 5 : index
    %c0_56 = arith.constant 0 : index
    %c0_57 = arith.constant 0 : index
    %46 = vector.load %arg2[%c5, %c0_56, %c0_57] : memref<9x32x32xbf16, #tpu.memory_space<vmem>>, vector<1x32x32xbf16>
    %47 = vector.shape_cast %46 : vector<1x32x32xbf16> to vector<32x32xbf16>
    %cst_58 = arith.constant dense<0.000000e+00> : vector<64x32xf32>
    %48 = tpu.matmul %45, %47, %cst_58 {dimension_numbers = #tpu.dot_dimension_numbers<[1], [0], [0], [1], [0, 0, 1, 1], [], []>} : vector<64x32xbf16>, vector<32x32xbf16>, vector<64x32xf32> -> vector<64x32xf32>
    %c0_59 = arith.constant 0 : index
    %c0_60 = arith.constant 0 : index
    %49 = vector.load %arg7[%c0_59, %c0_60] : memref<64x32xf32, #tpu.memory_space<vmem>>, vector<64x32xf32>
    %50 = arith.addf %49, %48 : vector<64x32xf32>
    %c0_61 = arith.constant 0 : index
    %c0_62 = arith.constant 0 : index
    %51 = vector.load %arg7[%c0_61, %c0_62] : memref<64x32xf32, #tpu.memory_space<vmem>>, vector<64x32xf32>
    tpu.vector_store %arg7[%c0_61, %c0_62], %50 {strides = array<i32>} : memref<64x32xf32, #tpu.memory_space<vmem>>, vector<64x32xf32>,
    %c0_63 = arith.constant 0 : index
    %c2_64 = arith.constant 2 : index
    %c0_65 = arith.constant 0 : index
    %c0_66 = arith.constant 0 : index
    %52 = vector.load %arg1[%c0_63, %c2_64, %c0_65, %c0_66] : memref<1x10x10x32xbf16, #tpu.memory_space<vmem>>, vector<1x8x8x32xbf16>
    %53 = vector.shape_cast %52 : vector<1x8x8x32xbf16> to vector<8x8x32xbf16>
    %54 = vector.shape_cast %53 : vector<8x8x32xbf16> to vector<64x32xbf16>
    %c6 = arith.constant 6 : index
    %c0_67 = arith.constant 0 : index
    %c0_68 = arith.constant 0 : index
    %55 = vector.load %arg2[%c6, %c0_67, %c0_68] : memref<9x32x32xbf16, #tpu.memory_space<vmem>>, vector<1x32x32xbf16>
    %56 = vector.shape_cast %55 : vector<1x32x32xbf16> to vector<32x32xbf16>
    %cst_69 = arith.constant dense<0.000000e+00> : vector<64x32xf32>
    %57 = tpu.matmul %54, %56, %cst_69 {dimension_numbers = #tpu.dot_dimension_numbers<[1], [0], [0], [1], [0, 0, 1, 1], [], []>} : vector<64x32xbf16>, vector<32x32xbf16>, vector<64x32xf32> -> vector<64x32xf32>
    %c0_70 = arith.constant 0 : index
    %c0_71 = arith.constant 0 : index
    %58 = vector.load %arg7[%c0_70, %c0_71] : memref<64x32xf32, #tpu.memory_space<vmem>>, vector<64x32xf32>
    %59 = arith.addf %58, %57 : vector<64x32xf32>
    %c0_72 = arith.constant 0 : index
    %c0_73 = arith.constant 0 : index
    %60 = vector.load %arg7[%c0_72, %c0_73] : memref<64x32xf32, #tpu.memory_space<vmem>>, vector<64x32xf32>
    tpu.vector_store %arg7[%c0_72, %c0_73], %59 {strides = array<i32>} : memref<64x32xf32, #tpu.memory_space<vmem>>, vector<64x32xf32>,
    %c0_74 = arith.constant 0 : index
    %c2_75 = arith.constant 2 : index
    %c1_76 = arith.constant 1 : index
    %c0_77 = arith.constant 0 : index
    %61 = vector.load %arg1[%c0_74, %c2_75, %c1_76, %c0_77] : memref<1x10x10x32xbf16, #tpu.memory_space<vmem>>, vector<1x8x8x32xbf16>
    %62 = vector.shape_cast %61 : vector<1x8x8x32xbf16> to vector<8x8x32xbf16>
    %63 = vector.shape_cast %62 : vector<8x8x32xbf16> to vector<64x32xbf16>
    %c7 = arith.constant 7 : index
    %c0_78 = arith.constant 0 : index
    %c0_79 = arith.constant 0 : index
    %64 = vector.load %arg2[%c7, %c0_78, %c0_79] : memref<9x32x32xbf16, #tpu.memory_space<vmem>>, vector<1x32x32xbf16>
    %65 = vector.shape_cast %64 : vector<1x32x32xbf16> to vector<32x32xbf16>
    %cst_80 = arith.constant dense<0.000000e+00> : vector<64x32xf32>
    %66 = tpu.matmul %63, %65, %cst_80 {dimension_numbers = #tpu.dot_dimension_numbers<[1], [0], [0], [1], [0, 0, 1, 1], [], []>} : vector<64x32xbf16>, vector<32x32xbf16>, vector<64x32xf32> -> vector<64x32xf32>
    %c0_81 = arith.constant 0 : index
    %c0_82 = arith.constant 0 : index
    %67 = vector.load %arg7[%c0_81, %c0_82] : memref<64x32xf32, #tpu.memory_space<vmem>>, vector<64x32xf32>
    %68 = arith.addf %67, %66 : vector<64x32xf32>
    %c0_83 = arith.constant 0 : index
    %c0_84 = arith.constant 0 : index
    %69 = vector.load %arg7[%c0_83, %c0_84] : memref<64x32xf32, #tpu.memory_space<vmem>>, vector<64x32xf32>
    tpu.vector_store %arg7[%c0_83, %c0_84], %68 {strides = array<i32>} : memref<64x32xf32, #tpu.memory_space<vmem>>, vector<64x32xf32>,
    %c0_85 = arith.constant 0 : index
    %c2_86 = arith.constant 2 : index
    %c2_87 = arith.constant 2 : index
    %c0_88 = arith.constant 0 : index
    %70 = vector.load %arg1[%c0_85, %c2_86, %c2_87, %c0_88] : memref<1x10x10x32xbf16, #tpu.memory_space<vmem>>, vector<1x8x8x32xbf16>
    %71 = vector.shape_cast %70 : vector<1x8x8x32xbf16> to vector<8x8x32xbf16>
    %72 = vector.shape_cast %71 : vector<8x8x32xbf16> to vector<64x32xbf16>
    %c8 = arith.constant 8 : index
    %c0_89 = arith.constant 0 : index
    %c0_90 = arith.constant 0 : index
    %73 = vector.load %arg2[%c8, %c0_89, %c0_90] : memref<9x32x32xbf16, #tpu.memory_space<vmem>>, vector<1x32x32xbf16>
    %74 = vector.shape_cast %73 : vector<1x32x32xbf16> to vector<32x32xbf16>
    %cst_91 = arith.constant dense<0.000000e+00> : vector<64x32xf32>
    %75 = tpu.matmul %72, %74, %cst_91 {dimension_numbers = #tpu.dot_dimension_numbers<[1], [0], [0], [1], [0, 0, 1, 1], [], []>} : vector<64x32xbf16>, vector<32x32xbf16>, vector<64x32xf32> -> vector<64x32xf32>
    %c0_92 = arith.constant 0 : index
    %c0_93 = arith.constant 0 : index
    %76 = vector.load %arg7[%c0_92, %c0_93] : memref<64x32xf32, #tpu.memory_space<vmem>>, vector<64x32xf32>
    %77 = arith.addf %76, %75 : vector<64x32xf32>
    %c0_94 = arith.constant 0 : index
    %c0_95 = arith.constant 0 : index
    %78 = vector.load %arg7[%c0_94, %c0_95] : memref<64x32xf32, #tpu.memory_space<vmem>>, vector<64x32xf32>
    tpu.vector_store %arg7[%c0_94, %c0_95], %77 {strides = array<i32>} : memref<64x32xf32, #tpu.memory_space<vmem>>, vector<64x32xf32>,
    %c0_96 = arith.constant 0 : index
    %c0_97 = arith.constant 0 : index
    %79 = vector.load %arg7[%c0_96, %c0_97] : memref<64x32xf32, #tpu.memory_space<vmem>>, vector<64x32xf32>
    %c0_98 = arith.constant 0 : index
    %c0_99 = arith.constant 0 : index
    %80 = vector.load %arg3[%c0_98, %c0_99] : memref<1x32xf32, #tpu.memory_space<vmem>>, vector<1x32xf32>
    %81 = vector.broadcast %80 : vector<1x32xf32> to vector<64x32xf32>
    %82 = arith.mulf %79, %81 : vector<64x32xf32>
    %c0_100 = arith.constant 0 : index
    %c0_101 = arith.constant 0 : index
    %83 = vector.load %arg4[%c0_100, %c0_101] : memref<1x32xf32, #tpu.memory_space<vmem>>, vector<1x32xf32>
    %84 = vector.broadcast %83 : vector<1x32xf32> to vector<64x32xf32>
    %85 = arith.addf %82, %84 : vector<64x32xf32>
    %cst_102 = arith.constant 0.000000e+00 : f32
    %86 = vector.broadcast %cst_102 : f32 to vector<64x32xf32>
    %87 = arith.subf %86, %85 : vector<64x32xf32>
    %88 = math.exp %87 : vector<64x32xf32>
    %cst_103 = arith.constant 1.000000e+00 : f32
    %89 = vector.broadcast %cst_103 : f32 to vector<64x32xf32>
    %90 = arith.addf %89, %88 : vector<64x32xf32>
    %91 = arith.divf %85, %90 : vector<64x32xf32>
    %c0_104 = arith.constant 0 : index
    %c0_105 = arith.constant 0 : index
    %c0_106 = arith.constant 0 : index
    %92 = vector.load %arg5[%c0_104, %c0_105, %c0_106] : memref<1x64x32xf32, #tpu.memory_space<vmem>>, vector<1x64x32xf32>
    %93 = vector.shape_cast %92 : vector<1x64x32xf32> to vector<64x32xf32>
    %94 = arith.addf %93, %91 : vector<64x32xf32>
    %c0_107 = arith.constant 0 : index
    %c0_108 = arith.constant 0 : index
    %c0_109 = arith.constant 0 : index
    %95 = vector.load %arg6[%c0_107, %c0_108, %c0_109] : memref<1x64x32xf32, #tpu.memory_space<vmem>>, vector<1x64x32xf32>
    %96 = vector.shape_cast %95 : vector<1x64x32xf32> to vector<64x32xf32>
    %97 = vector.shape_cast %94 : vector<64x32xf32> to vector<1x64x32xf32>
    tpu.vector_store %arg6[%c0_107, %c0_108, %c0_109], %97 {strides = array<i32>} : memref<1x64x32xf32, #tpu.memory_space<vmem>>, vector<1x64x32xf32>,
    return
  }
  func.func @transform_0(%arg0: i32) -> (i32, i32, i32, i32) {
    %c0_i32 = arith.constant 0 : i32
    %c0_i32_0 = arith.constant 0 : i32
    %c0_i32_1 = arith.constant 0 : i32
    %c0_i32_2 = arith.constant 0 : i32
    return %arg0, %c0_i32, %c0_i32_0, %c0_i32_1 : i32, i32, i32, i32
  }
  func.func @transform_1(%arg0: i32) -> (i32, i32, i32) {
    %c0_i32 = arith.constant 0 : i32
    %c0_i32_0 = arith.constant 0 : i32
    %c0_i32_1 = arith.constant 0 : i32
    %c0_i32_2 = arith.constant 0 : i32
    return %c0_i32, %c0_i32_0, %c0_i32_1 : i32, i32, i32
  }
  func.func @transform_2(%arg0: i32) -> (i32, i32) {
    %c0_i32 = arith.constant 0 : i32
    %c0_i32_0 = arith.constant 0 : i32
    %c0_i32_1 = arith.constant 0 : i32
    return %c0_i32, %c0_i32_0 : i32, i32
  }
  func.func @transform_3(%arg0: i32) -> (i32, i32) {
    %c0_i32 = arith.constant 0 : i32
    %c0_i32_0 = arith.constant 0 : i32
    %c0_i32_1 = arith.constant 0 : i32
    return %c0_i32, %c0_i32_0 : i32, i32
  }
  func.func @transform_4(%arg0: i32) -> (i32, i32, i32) {
    %c0_i32 = arith.constant 0 : i32
    %c0_i32_0 = arith.constant 0 : i32
    %c0_i32_1 = arith.constant 0 : i32
    return %arg0, %c0_i32, %c0_i32_0 : i32, i32, i32
  }
  func.func @transform_5(%arg0: i32) -> (i32, i32, i32) {
    %c0_i32 = arith.constant 0 : i32
    %c0_i32_0 = arith.constant 0 : i32
    %c0_i32_1 = arith.constant 0 : i32
    return %arg0, %c0_i32, %c0_i32_0 : i32, i32, i32
  }
}

module attributes {stable_mosaic.version = 11 : i64} {
  func.func @kernel(%arg0: i32, %arg1: memref<1x10x10x128xbf16, #tpu.memory_space<vmem>>, %arg2: memref<9x128x32xbf16, #tpu.memory_space<vmem>>, %arg3: memref<1x32xf32, #tpu.memory_space<vmem>>, %arg4: memref<1x32xf32, #tpu.memory_space<vmem>>, %arg5: memref<1x64x32xbf16, #tpu.memory_space<vmem>>, %arg6: memref<64x32xf32, #tpu.memory_space<vmem>>) attributes {dimension_semantics = [#tpu.dimension_semantics<parallel>], iteration_bounds = array<i64: 2>, scalar_prefetch = 0 : i64, scratch_operands = 1 : i64, tpu.core_type = #tpu.core_type<tc>, window_params = [{transform_indices = @transform_0, window_bounds = array<i64: 1, 10, 10, 128>}, {pipeline_mode = #tpu.pipeline_mode<synchronous>, transform_indices = @transform_1, window_bounds = array<i64: 9, 128, 32>}, {pipeline_mode = #tpu.pipeline_mode<synchronous>, transform_indices = @transform_2, window_bounds = array<i64: 1, 32>}, {pipeline_mode = #tpu.pipeline_mode<synchronous>, transform_indices = @transform_3, window_bounds = array<i64: 1, 32>}, {transform_indices = @transform_4, window_bounds = array<i64: 1, 64, 32>}]} {
    %c0 = arith.constant 0 : index
    %c0_0 = arith.constant 0 : index
    %c0_1 = arith.constant 0 : index
    %c0_2 = arith.constant 0 : index
    %0 = vector.load %arg1[%c0, %c0_0, %c0_1, %c0_2] : memref<1x10x10x128xbf16, #tpu.memory_space<vmem>>, vector<1x8x8x128xbf16>
    %1 = vector.shape_cast %0 : vector<1x8x8x128xbf16> to vector<8x8x128xbf16>
    %2 = vector.shape_cast %1 : vector<8x8x128xbf16> to vector<64x128xbf16>
    %c0_3 = arith.constant 0 : index
    %c0_4 = arith.constant 0 : index
    %c0_5 = arith.constant 0 : index
    %3 = vector.load %arg2[%c0_3, %c0_4, %c0_5] : memref<9x128x32xbf16, #tpu.memory_space<vmem>>, vector<1x128x32xbf16>
    %4 = vector.shape_cast %3 : vector<1x128x32xbf16> to vector<128x32xbf16>
    %cst = arith.constant dense<0.000000e+00> : vector<64x32xf32>
    %5 = tpu.matmul %2, %4, %cst {dimension_numbers = #tpu.dot_dimension_numbers<[1], [0], [0], [1], [0, 0, 1, 1], [], []>} : vector<64x128xbf16>, vector<128x32xbf16>, vector<64x32xf32> -> vector<64x32xf32>
    %c0_6 = arith.constant 0 : index
    %c0_7 = arith.constant 0 : index
    %6 = vector.load %arg6[%c0_6, %c0_7] : memref<64x32xf32, #tpu.memory_space<vmem>>, vector<64x32xf32>
    tpu.vector_store %arg6[%c0_6, %c0_7], %5 {strides = array<i32>} : memref<64x32xf32, #tpu.memory_space<vmem>>, vector<64x32xf32>,
    %c0_8 = arith.constant 0 : index
    %c0_9 = arith.constant 0 : index
    %c1 = arith.constant 1 : index
    %c0_10 = arith.constant 0 : index
    %7 = vector.load %arg1[%c0_8, %c0_9, %c1, %c0_10] : memref<1x10x10x128xbf16, #tpu.memory_space<vmem>>, vector<1x8x8x128xbf16>
    %8 = vector.shape_cast %7 : vector<1x8x8x128xbf16> to vector<8x8x128xbf16>
    %9 = vector.shape_cast %8 : vector<8x8x128xbf16> to vector<64x128xbf16>
    %c1_11 = arith.constant 1 : index
    %c0_12 = arith.constant 0 : index
    %c0_13 = arith.constant 0 : index
    %10 = vector.load %arg2[%c1_11, %c0_12, %c0_13] : memref<9x128x32xbf16, #tpu.memory_space<vmem>>, vector<1x128x32xbf16>
    %11 = vector.shape_cast %10 : vector<1x128x32xbf16> to vector<128x32xbf16>
    %cst_14 = arith.constant dense<0.000000e+00> : vector<64x32xf32>
    %12 = tpu.matmul %9, %11, %cst_14 {dimension_numbers = #tpu.dot_dimension_numbers<[1], [0], [0], [1], [0, 0, 1, 1], [], []>} : vector<64x128xbf16>, vector<128x32xbf16>, vector<64x32xf32> -> vector<64x32xf32>
    %c0_15 = arith.constant 0 : index
    %c0_16 = arith.constant 0 : index
    %13 = vector.load %arg6[%c0_15, %c0_16] : memref<64x32xf32, #tpu.memory_space<vmem>>, vector<64x32xf32>
    %14 = arith.addf %13, %12 : vector<64x32xf32>
    %c0_17 = arith.constant 0 : index
    %c0_18 = arith.constant 0 : index
    %15 = vector.load %arg6[%c0_17, %c0_18] : memref<64x32xf32, #tpu.memory_space<vmem>>, vector<64x32xf32>
    tpu.vector_store %arg6[%c0_17, %c0_18], %14 {strides = array<i32>} : memref<64x32xf32, #tpu.memory_space<vmem>>, vector<64x32xf32>,
    %c0_19 = arith.constant 0 : index
    %c0_20 = arith.constant 0 : index
    %c2 = arith.constant 2 : index
    %c0_21 = arith.constant 0 : index
    %16 = vector.load %arg1[%c0_19, %c0_20, %c2, %c0_21] : memref<1x10x10x128xbf16, #tpu.memory_space<vmem>>, vector<1x8x8x128xbf16>
    %17 = vector.shape_cast %16 : vector<1x8x8x128xbf16> to vector<8x8x128xbf16>
    %18 = vector.shape_cast %17 : vector<8x8x128xbf16> to vector<64x128xbf16>
    %c2_22 = arith.constant 2 : index
    %c0_23 = arith.constant 0 : index
    %c0_24 = arith.constant 0 : index
    %19 = vector.load %arg2[%c2_22, %c0_23, %c0_24] : memref<9x128x32xbf16, #tpu.memory_space<vmem>>, vector<1x128x32xbf16>
    %20 = vector.shape_cast %19 : vector<1x128x32xbf16> to vector<128x32xbf16>
    %cst_25 = arith.constant dense<0.000000e+00> : vector<64x32xf32>
    %21 = tpu.matmul %18, %20, %cst_25 {dimension_numbers = #tpu.dot_dimension_numbers<[1], [0], [0], [1], [0, 0, 1, 1], [], []>} : vector<64x128xbf16>, vector<128x32xbf16>, vector<64x32xf32> -> vector<64x32xf32>
    %c0_26 = arith.constant 0 : index
    %c0_27 = arith.constant 0 : index
    %22 = vector.load %arg6[%c0_26, %c0_27] : memref<64x32xf32, #tpu.memory_space<vmem>>, vector<64x32xf32>
    %23 = arith.addf %22, %21 : vector<64x32xf32>
    %c0_28 = arith.constant 0 : index
    %c0_29 = arith.constant 0 : index
    %24 = vector.load %arg6[%c0_28, %c0_29] : memref<64x32xf32, #tpu.memory_space<vmem>>, vector<64x32xf32>
    tpu.vector_store %arg6[%c0_28, %c0_29], %23 {strides = array<i32>} : memref<64x32xf32, #tpu.memory_space<vmem>>, vector<64x32xf32>,
    %c0_30 = arith.constant 0 : index
    %c1_31 = arith.constant 1 : index
    %c0_32 = arith.constant 0 : index
    %c0_33 = arith.constant 0 : index
    %25 = vector.load %arg1[%c0_30, %c1_31, %c0_32, %c0_33] : memref<1x10x10x128xbf16, #tpu.memory_space<vmem>>, vector<1x8x8x128xbf16>
    %26 = vector.shape_cast %25 : vector<1x8x8x128xbf16> to vector<8x8x128xbf16>
    %27 = vector.shape_cast %26 : vector<8x8x128xbf16> to vector<64x128xbf16>
    %c3 = arith.constant 3 : index
    %c0_34 = arith.constant 0 : index
    %c0_35 = arith.constant 0 : index
    %28 = vector.load %arg2[%c3, %c0_34, %c0_35] : memref<9x128x32xbf16, #tpu.memory_space<vmem>>, vector<1x128x32xbf16>
    %29 = vector.shape_cast %28 : vector<1x128x32xbf16> to vector<128x32xbf16>
    %cst_36 = arith.constant dense<0.000000e+00> : vector<64x32xf32>
    %30 = tpu.matmul %27, %29, %cst_36 {dimension_numbers = #tpu.dot_dimension_numbers<[1], [0], [0], [1], [0, 0, 1, 1], [], []>} : vector<64x128xbf16>, vector<128x32xbf16>, vector<64x32xf32> -> vector<64x32xf32>
    %c0_37 = arith.constant 0 : index
    %c0_38 = arith.constant 0 : index
    %31 = vector.load %arg6[%c0_37, %c0_38] : memref<64x32xf32, #tpu.memory_space<vmem>>, vector<64x32xf32>
    %32 = arith.addf %31, %30 : vector<64x32xf32>
    %c0_39 = arith.constant 0 : index
    %c0_40 = arith.constant 0 : index
    %33 = vector.load %arg6[%c0_39, %c0_40] : memref<64x32xf32, #tpu.memory_space<vmem>>, vector<64x32xf32>
    tpu.vector_store %arg6[%c0_39, %c0_40], %32 {strides = array<i32>} : memref<64x32xf32, #tpu.memory_space<vmem>>, vector<64x32xf32>,
    %c0_41 = arith.constant 0 : index
    %c1_42 = arith.constant 1 : index
    %c1_43 = arith.constant 1 : index
    %c0_44 = arith.constant 0 : index
    %34 = vector.load %arg1[%c0_41, %c1_42, %c1_43, %c0_44] : memref<1x10x10x128xbf16, #tpu.memory_space<vmem>>, vector<1x8x8x128xbf16>
    %35 = vector.shape_cast %34 : vector<1x8x8x128xbf16> to vector<8x8x128xbf16>
    %36 = vector.shape_cast %35 : vector<8x8x128xbf16> to vector<64x128xbf16>
    %c4 = arith.constant 4 : index
    %c0_45 = arith.constant 0 : index
    %c0_46 = arith.constant 0 : index
    %37 = vector.load %arg2[%c4, %c0_45, %c0_46] : memref<9x128x32xbf16, #tpu.memory_space<vmem>>, vector<1x128x32xbf16>
    %38 = vector.shape_cast %37 : vector<1x128x32xbf16> to vector<128x32xbf16>
    %cst_47 = arith.constant dense<0.000000e+00> : vector<64x32xf32>
    %39 = tpu.matmul %36, %38, %cst_47 {dimension_numbers = #tpu.dot_dimension_numbers<[1], [0], [0], [1], [0, 0, 1, 1], [], []>} : vector<64x128xbf16>, vector<128x32xbf16>, vector<64x32xf32> -> vector<64x32xf32>
    %c0_48 = arith.constant 0 : index
    %c0_49 = arith.constant 0 : index
    %40 = vector.load %arg6[%c0_48, %c0_49] : memref<64x32xf32, #tpu.memory_space<vmem>>, vector<64x32xf32>
    %41 = arith.addf %40, %39 : vector<64x32xf32>
    %c0_50 = arith.constant 0 : index
    %c0_51 = arith.constant 0 : index
    %42 = vector.load %arg6[%c0_50, %c0_51] : memref<64x32xf32, #tpu.memory_space<vmem>>, vector<64x32xf32>
    tpu.vector_store %arg6[%c0_50, %c0_51], %41 {strides = array<i32>} : memref<64x32xf32, #tpu.memory_space<vmem>>, vector<64x32xf32>,
    %c0_52 = arith.constant 0 : index
    %c1_53 = arith.constant 1 : index
    %c2_54 = arith.constant 2 : index
    %c0_55 = arith.constant 0 : index
    %43 = vector.load %arg1[%c0_52, %c1_53, %c2_54, %c0_55] : memref<1x10x10x128xbf16, #tpu.memory_space<vmem>>, vector<1x8x8x128xbf16>
    %44 = vector.shape_cast %43 : vector<1x8x8x128xbf16> to vector<8x8x128xbf16>
    %45 = vector.shape_cast %44 : vector<8x8x128xbf16> to vector<64x128xbf16>
    %c5 = arith.constant 5 : index
    %c0_56 = arith.constant 0 : index
    %c0_57 = arith.constant 0 : index
    %46 = vector.load %arg2[%c5, %c0_56, %c0_57] : memref<9x128x32xbf16, #tpu.memory_space<vmem>>, vector<1x128x32xbf16>
    %47 = vector.shape_cast %46 : vector<1x128x32xbf16> to vector<128x32xbf16>
    %cst_58 = arith.constant dense<0.000000e+00> : vector<64x32xf32>
    %48 = tpu.matmul %45, %47, %cst_58 {dimension_numbers = #tpu.dot_dimension_numbers<[1], [0], [0], [1], [0, 0, 1, 1], [], []>} : vector<64x128xbf16>, vector<128x32xbf16>, vector<64x32xf32> -> vector<64x32xf32>
    %c0_59 = arith.constant 0 : index
    %c0_60 = arith.constant 0 : index
    %49 = vector.load %arg6[%c0_59, %c0_60] : memref<64x32xf32, #tpu.memory_space<vmem>>, vector<64x32xf32>
    %50 = arith.addf %49, %48 : vector<64x32xf32>
    %c0_61 = arith.constant 0 : index
    %c0_62 = arith.constant 0 : index
    %51 = vector.load %arg6[%c0_61, %c0_62] : memref<64x32xf32, #tpu.memory_space<vmem>>, vector<64x32xf32>
    tpu.vector_store %arg6[%c0_61, %c0_62], %50 {strides = array<i32>} : memref<64x32xf32, #tpu.memory_space<vmem>>, vector<64x32xf32>,
    %c0_63 = arith.constant 0 : index
    %c2_64 = arith.constant 2 : index
    %c0_65 = arith.constant 0 : index
    %c0_66 = arith.constant 0 : index
    %52 = vector.load %arg1[%c0_63, %c2_64, %c0_65, %c0_66] : memref<1x10x10x128xbf16, #tpu.memory_space<vmem>>, vector<1x8x8x128xbf16>
    %53 = vector.shape_cast %52 : vector<1x8x8x128xbf16> to vector<8x8x128xbf16>
    %54 = vector.shape_cast %53 : vector<8x8x128xbf16> to vector<64x128xbf16>
    %c6 = arith.constant 6 : index
    %c0_67 = arith.constant 0 : index
    %c0_68 = arith.constant 0 : index
    %55 = vector.load %arg2[%c6, %c0_67, %c0_68] : memref<9x128x32xbf16, #tpu.memory_space<vmem>>, vector<1x128x32xbf16>
    %56 = vector.shape_cast %55 : vector<1x128x32xbf16> to vector<128x32xbf16>
    %cst_69 = arith.constant dense<0.000000e+00> : vector<64x32xf32>
    %57 = tpu.matmul %54, %56, %cst_69 {dimension_numbers = #tpu.dot_dimension_numbers<[1], [0], [0], [1], [0, 0, 1, 1], [], []>} : vector<64x128xbf16>, vector<128x32xbf16>, vector<64x32xf32> -> vector<64x32xf32>
    %c0_70 = arith.constant 0 : index
    %c0_71 = arith.constant 0 : index
    %58 = vector.load %arg6[%c0_70, %c0_71] : memref<64x32xf32, #tpu.memory_space<vmem>>, vector<64x32xf32>
    %59 = arith.addf %58, %57 : vector<64x32xf32>
    %c0_72 = arith.constant 0 : index
    %c0_73 = arith.constant 0 : index
    %60 = vector.load %arg6[%c0_72, %c0_73] : memref<64x32xf32, #tpu.memory_space<vmem>>, vector<64x32xf32>
    tpu.vector_store %arg6[%c0_72, %c0_73], %59 {strides = array<i32>} : memref<64x32xf32, #tpu.memory_space<vmem>>, vector<64x32xf32>,
    %c0_74 = arith.constant 0 : index
    %c2_75 = arith.constant 2 : index
    %c1_76 = arith.constant 1 : index
    %c0_77 = arith.constant 0 : index
    %61 = vector.load %arg1[%c0_74, %c2_75, %c1_76, %c0_77] : memref<1x10x10x128xbf16, #tpu.memory_space<vmem>>, vector<1x8x8x128xbf16>
    %62 = vector.shape_cast %61 : vector<1x8x8x128xbf16> to vector<8x8x128xbf16>
    %63 = vector.shape_cast %62 : vector<8x8x128xbf16> to vector<64x128xbf16>
    %c7 = arith.constant 7 : index
    %c0_78 = arith.constant 0 : index
    %c0_79 = arith.constant 0 : index
    %64 = vector.load %arg2[%c7, %c0_78, %c0_79] : memref<9x128x32xbf16, #tpu.memory_space<vmem>>, vector<1x128x32xbf16>
    %65 = vector.shape_cast %64 : vector<1x128x32xbf16> to vector<128x32xbf16>
    %cst_80 = arith.constant dense<0.000000e+00> : vector<64x32xf32>
    %66 = tpu.matmul %63, %65, %cst_80 {dimension_numbers = #tpu.dot_dimension_numbers<[1], [0], [0], [1], [0, 0, 1, 1], [], []>} : vector<64x128xbf16>, vector<128x32xbf16>, vector<64x32xf32> -> vector<64x32xf32>
    %c0_81 = arith.constant 0 : index
    %c0_82 = arith.constant 0 : index
    %67 = vector.load %arg6[%c0_81, %c0_82] : memref<64x32xf32, #tpu.memory_space<vmem>>, vector<64x32xf32>
    %68 = arith.addf %67, %66 : vector<64x32xf32>
    %c0_83 = arith.constant 0 : index
    %c0_84 = arith.constant 0 : index
    %69 = vector.load %arg6[%c0_83, %c0_84] : memref<64x32xf32, #tpu.memory_space<vmem>>, vector<64x32xf32>
    tpu.vector_store %arg6[%c0_83, %c0_84], %68 {strides = array<i32>} : memref<64x32xf32, #tpu.memory_space<vmem>>, vector<64x32xf32>,
    %c0_85 = arith.constant 0 : index
    %c2_86 = arith.constant 2 : index
    %c2_87 = arith.constant 2 : index
    %c0_88 = arith.constant 0 : index
    %70 = vector.load %arg1[%c0_85, %c2_86, %c2_87, %c0_88] : memref<1x10x10x128xbf16, #tpu.memory_space<vmem>>, vector<1x8x8x128xbf16>
    %71 = vector.shape_cast %70 : vector<1x8x8x128xbf16> to vector<8x8x128xbf16>
    %72 = vector.shape_cast %71 : vector<8x8x128xbf16> to vector<64x128xbf16>
    %c8 = arith.constant 8 : index
    %c0_89 = arith.constant 0 : index
    %c0_90 = arith.constant 0 : index
    %73 = vector.load %arg2[%c8, %c0_89, %c0_90] : memref<9x128x32xbf16, #tpu.memory_space<vmem>>, vector<1x128x32xbf16>
    %74 = vector.shape_cast %73 : vector<1x128x32xbf16> to vector<128x32xbf16>
    %cst_91 = arith.constant dense<0.000000e+00> : vector<64x32xf32>
    %75 = tpu.matmul %72, %74, %cst_91 {dimension_numbers = #tpu.dot_dimension_numbers<[1], [0], [0], [1], [0, 0, 1, 1], [], []>} : vector<64x128xbf16>, vector<128x32xbf16>, vector<64x32xf32> -> vector<64x32xf32>
    %c0_92 = arith.constant 0 : index
    %c0_93 = arith.constant 0 : index
    %76 = vector.load %arg6[%c0_92, %c0_93] : memref<64x32xf32, #tpu.memory_space<vmem>>, vector<64x32xf32>
    %77 = arith.addf %76, %75 : vector<64x32xf32>
    %c0_94 = arith.constant 0 : index
    %c0_95 = arith.constant 0 : index
    %78 = vector.load %arg6[%c0_94, %c0_95] : memref<64x32xf32, #tpu.memory_space<vmem>>, vector<64x32xf32>
    tpu.vector_store %arg6[%c0_94, %c0_95], %77 {strides = array<i32>} : memref<64x32xf32, #tpu.memory_space<vmem>>, vector<64x32xf32>,
    %c0_96 = arith.constant 0 : index
    %c0_97 = arith.constant 0 : index
    %79 = vector.load %arg6[%c0_96, %c0_97] : memref<64x32xf32, #tpu.memory_space<vmem>>, vector<64x32xf32>
    %c0_98 = arith.constant 0 : index
    %c0_99 = arith.constant 0 : index
    %80 = vector.load %arg3[%c0_98, %c0_99] : memref<1x32xf32, #tpu.memory_space<vmem>>, vector<1x32xf32>
    %81 = vector.broadcast %80 : vector<1x32xf32> to vector<64x32xf32>
    %82 = arith.mulf %79, %81 : vector<64x32xf32>
    %c0_100 = arith.constant 0 : index
    %c0_101 = arith.constant 0 : index
    %83 = vector.load %arg4[%c0_100, %c0_101] : memref<1x32xf32, #tpu.memory_space<vmem>>, vector<1x32xf32>
    %84 = vector.broadcast %83 : vector<1x32xf32> to vector<64x32xf32>
    %85 = arith.addf %82, %84 : vector<64x32xf32>
    %cst_102 = arith.constant 0.000000e+00 : f32
    %86 = vector.broadcast %cst_102 : f32 to vector<64x32xf32>
    %87 = arith.subf %86, %85 : vector<64x32xf32>
    %88 = math.exp %87 : vector<64x32xf32>
    %cst_103 = arith.constant 1.000000e+00 : f32
    %89 = vector.broadcast %cst_103 : f32 to vector<64x32xf32>
    %90 = arith.addf %89, %88 : vector<64x32xf32>
    %91 = arith.divf %85, %90 : vector<64x32xf32>
    %92 = arith.truncf %91 : vector<64x32xf32> to vector<64x32xbf16>
    %c0_104 = arith.constant 0 : index
    %c0_105 = arith.constant 0 : index
    %c0_106 = arith.constant 0 : index
    %93 = vector.load %arg5[%c0_104, %c0_105, %c0_106] : memref<1x64x32xbf16, #tpu.memory_space<vmem>>, vector<1x64x32xbf16>
    %94 = vector.shape_cast %93 : vector<1x64x32xbf16> to vector<64x32xbf16>
    %95 = vector.shape_cast %92 : vector<64x32xbf16> to vector<1x64x32xbf16>
    tpu.vector_store %arg5[%c0_104, %c0_105, %c0_106], %95 {strides = array<i32>} : memref<1x64x32xbf16, #tpu.memory_space<vmem>>, vector<1x64x32xbf16>,
    return
  }
  func.func @transform_0(%arg0: i32) -> (i32, i32, i32, i32) {
    %c0_i32 = arith.constant 0 : i32
    %c0_i32_0 = arith.constant 0 : i32
    %c0_i32_1 = arith.constant 0 : i32
    %c0_i32_2 = arith.constant 0 : i32
    return %arg0, %c0_i32, %c0_i32_0, %c0_i32_1 : i32, i32, i32, i32
  }
  func.func @transform_1(%arg0: i32) -> (i32, i32, i32) {
    %c0_i32 = arith.constant 0 : i32
    %c0_i32_0 = arith.constant 0 : i32
    %c0_i32_1 = arith.constant 0 : i32
    %c0_i32_2 = arith.constant 0 : i32
    return %c0_i32, %c0_i32_0, %c0_i32_1 : i32, i32, i32
  }
  func.func @transform_2(%arg0: i32) -> (i32, i32) {
    %c0_i32 = arith.constant 0 : i32
    %c0_i32_0 = arith.constant 0 : i32
    %c0_i32_1 = arith.constant 0 : i32
    return %c0_i32, %c0_i32_0 : i32, i32
  }
  func.func @transform_3(%arg0: i32) -> (i32, i32) {
    %c0_i32 = arith.constant 0 : i32
    %c0_i32_0 = arith.constant 0 : i32
    %c0_i32_1 = arith.constant 0 : i32
    return %c0_i32, %c0_i32_0 : i32, i32
  }
  func.func @transform_4(%arg0: i32) -> (i32, i32, i32) {
    %c0_i32 = arith.constant 0 : i32
    %c0_i32_0 = arith.constant 0 : i32
    %c0_i32_1 = arith.constant 0 : i32
    return %arg0, %c0_i32, %c0_i32_0 : i32, i32, i32
  }
}

module attributes {stable_mosaic.version = 11 : i64} {
  func.func @_ln_mlp_kernel(%arg0: i32, %arg1: i32, %arg2: memref<128x32xf32, #tpu.memory_space<vmem>>, %arg3: memref<1x32xf32, #tpu.memory_space<vmem>>, %arg4: memref<1x32xf32, #tpu.memory_space<vmem>>, %arg5: memref<32x128xbf16, #tpu.memory_space<vmem>>, %arg6: memref<1x128xf32, #tpu.memory_space<vmem>>, %arg7: memref<128x32xbf16, #tpu.memory_space<vmem>>, %arg8: memref<1x32xf32, #tpu.memory_space<vmem>>, %arg9: memref<128x32xf32, #tpu.memory_space<vmem>>, %arg10: memref<128x32xbf16, #tpu.memory_space<vmem>>, %arg11: memref<128x32xf32, #tpu.memory_space<vmem>>) attributes {dimension_semantics = [#tpu.dimension_semantics<parallel>, #tpu.dimension_semantics<arbitrary>], iteration_bounds = array<i64: 1, 1>, scalar_prefetch = 0 : i64, scratch_operands = 2 : i64, tpu.core_type = #tpu.core_type<tc>, window_params = [{transform_indices = @transform_0, window_bounds = array<i64: 128, 32>}, {pipeline_mode = #tpu.pipeline_mode<synchronous>, transform_indices = @transform_1, window_bounds = array<i64: 1, 32>}, {pipeline_mode = #tpu.pipeline_mode<synchronous>, transform_indices = @transform_2, window_bounds = array<i64: 1, 32>}, {transform_indices = @transform_3, window_bounds = array<i64: 32, 128>}, {transform_indices = @transform_4, window_bounds = array<i64: 1, 128>}, {transform_indices = @transform_5, window_bounds = array<i64: 128, 32>}, {pipeline_mode = #tpu.pipeline_mode<synchronous>, transform_indices = @transform_6, window_bounds = array<i64: 1, 32>}, {transform_indices = @transform_7, window_bounds = array<i64: 128, 32>}]} {
    %c0_i32 = arith.constant 0 : i32
    %0 = arith.cmpi eq, %arg1, %c0_i32 : i32
    %1 = arith.extui %0 : i1 to i32
    %c0_i32_0 = arith.constant 0 : i32
    %2 = arith.cmpi ne, %1, %c0_i32_0 : i32
    scf.if %2 {
      %c0_18 = arith.constant 0 : index
      %c0_19 = arith.constant 0 : index
      %26 = vector.load %arg2[%c0_18, %c0_19] : memref<128x32xf32, #tpu.memory_space<vmem>>, vector<128x32xf32>
      %c0_20 = arith.constant 0 : index
      %c0_21 = arith.constant 0 : index
      %27 = vector.load %arg3[%c0_20, %c0_21] : memref<1x32xf32, #tpu.memory_space<vmem>>, vector<1x32xf32>
      %c0_22 = arith.constant 0 : index
      %c0_23 = arith.constant 0 : index
      %28 = vector.load %arg4[%c0_22, %c0_23] : memref<1x32xf32, #tpu.memory_space<vmem>>, vector<1x32xf32>
      %cst_24 = arith.constant dense<0.000000e+00> : vector<128xf32>
      %29 = vector.multi_reduction <add>, %26, %cst_24 [1] : vector<128x32xf32> to vector<128xf32>
      %30 = vector.shape_cast %29 : vector<128xf32> to vector<128x1xf32>
      %cst_25 = arith.constant 3.200000e+01 : f32
      %31 = vector.broadcast %cst_25 : f32 to vector<128x1xf32>
      %32 = arith.divf %30, %31 : vector<128x1xf32>
      %33 = vector.broadcast %32 : vector<128x1xf32> to vector<128x32xf32>
      %34 = arith.subf %26, %33 : vector<128x32xf32>
      %35 = arith.mulf %34, %34 : vector<128x32xf32>
      %cst_26 = arith.constant dense<0.000000e+00> : vector<128xf32>
      %36 = vector.multi_reduction <add>, %35, %cst_26 [1] : vector<128x32xf32> to vector<128xf32>
      %37 = vector.shape_cast %36 : vector<128xf32> to vector<128x1xf32>
      %cst_27 = arith.constant 3.200000e+01 : f32
      %38 = vector.broadcast %cst_27 : f32 to vector<128x1xf32>
      %39 = arith.divf %37, %38 : vector<128x1xf32>
      %40 = vector.broadcast %32 : vector<128x1xf32> to vector<128x32xf32>
      %41 = arith.subf %26, %40 : vector<128x32xf32>
      %cst_28 = arith.constant 9.99999974E-6 : f32
      %42 = vector.broadcast %cst_28 : f32 to vector<128x1xf32>
      %43 = arith.addf %39, %42 : vector<128x1xf32>
      %44 = math.rsqrt %43 : vector<128x1xf32>
      %45 = vector.broadcast %44 : vector<128x1xf32> to vector<128x32xf32>
      %46 = arith.mulf %41, %45 : vector<128x32xf32>
      %47 = vector.broadcast %27 : vector<1x32xf32> to vector<128x32xf32>
      %48 = arith.mulf %46, %47 : vector<128x32xf32>
      %49 = vector.broadcast %28 : vector<1x32xf32> to vector<128x32xf32>
      %50 = arith.addf %48, %49 : vector<128x32xf32>
      %51 = arith.truncf %50 : vector<128x32xf32> to vector<128x32xbf16>
      %c0_29 = arith.constant 0 : index
      %c0_30 = arith.constant 0 : index
      %52 = vector.load %arg10[%c0_29, %c0_30] : memref<128x32xbf16, #tpu.memory_space<vmem>>, vector<128x32xbf16>
      tpu.vector_store %arg10[%c0_29, %c0_30], %51 {strides = array<i32>} : memref<128x32xbf16, #tpu.memory_space<vmem>>, vector<128x32xbf16>,
      %cst_31 = arith.constant 0.000000e+00 : f32
      %53 = vector.broadcast %cst_31 : f32 to vector<128x32xf32>
      %c0_32 = arith.constant 0 : index
      %c0_33 = arith.constant 0 : index
      %54 = vector.load %arg11[%c0_32, %c0_33] : memref<128x32xf32, #tpu.memory_space<vmem>>, vector<128x32xf32>
      tpu.vector_store %arg11[%c0_32, %c0_33], %53 {strides = array<i32>} : memref<128x32xf32, #tpu.memory_space<vmem>>, vector<128x32xf32>,
    } else {
    }
    %c0 = arith.constant 0 : index
    %c0_1 = arith.constant 0 : index
    %3 = vector.load %arg10[%c0, %c0_1] : memref<128x32xbf16, #tpu.memory_space<vmem>>, vector<128x32xbf16>
    %c0_2 = arith.constant 0 : index
    %c0_3 = arith.constant 0 : index
    %4 = vector.load %arg5[%c0_2, %c0_3] : memref<32x128xbf16, #tpu.memory_space<vmem>>, vector<32x128xbf16>
    %cst = arith.constant dense<0.000000e+00> : vector<128x128xf32>
    %5 = tpu.matmul %3, %4, %cst {dimension_numbers = #tpu.dot_dimension_numbers<[1], [0], [0], [1], [0, 0, 1, 1], [], []>} : vector<128x32xbf16>, vector<32x128xbf16>, vector<128x128xf32> -> vector<128x128xf32>
    %c0_4 = arith.constant 0 : index
    %c0_5 = arith.constant 0 : index
    %6 = vector.load %arg6[%c0_4, %c0_5] : memref<1x128xf32, #tpu.memory_space<vmem>>, vector<1x128xf32>
    %7 = vector.broadcast %6 : vector<1x128xf32> to vector<128x128xf32>
    %8 = arith.addf %5, %7 : vector<128x128xf32>
    %cst_6 = arith.constant 5.000000e-01 : f32
    %9 = vector.broadcast %cst_6 : f32 to vector<128x128xf32>
    %10 = arith.mulf %9, %8 : vector<128x128xf32>
    %cst_7 = arith.constant 0.707106769 : f32
    %11 = vector.broadcast %cst_7 : f32 to vector<128x128xf32>
    %12 = arith.mulf %8, %11 : vector<128x128xf32>
    %13 = math.erf %12 : vector<128x128xf32>
    %cst_8 = arith.constant 1.000000e+00 : f32
    %14 = vector.broadcast %cst_8 : f32 to vector<128x128xf32>
    %15 = arith.addf %14, %13 : vector<128x128xf32>
    %16 = arith.mulf %10, %15 : vector<128x128xf32>
    %c0_9 = arith.constant 0 : index
    %c0_10 = arith.constant 0 : index
    %17 = vector.load %arg11[%c0_9, %c0_10] : memref<128x32xf32, #tpu.memory_space<vmem>>, vector<128x32xf32>
    %18 = arith.truncf %16 : vector<128x128xf32> to vector<128x128xbf16>
    %c0_11 = arith.constant 0 : index
    %c0_12 = arith.constant 0 : index
    %19 = vector.load %arg7[%c0_11, %c0_12] : memref<128x32xbf16, #tpu.memory_space<vmem>>, vector<128x32xbf16>
    %cst_13 = arith.constant dense<0.000000e+00> : vector<128x32xf32>
    %20 = tpu.matmul %18, %19, %cst_13 {dimension_numbers = #tpu.dot_dimension_numbers<[1], [0], [0], [1], [0, 0, 1, 1], [], []>} : vector<128x128xbf16>, vector<128x32xbf16>, vector<128x32xf32> -> vector<128x32xf32>
    %21 = arith.addf %17, %20 : vector<128x32xf32>
    %c0_14 = arith.constant 0 : index
    %c0_15 = arith.constant 0 : index
    %22 = vector.load %arg11[%c0_14, %c0_15] : memref<128x32xf32, #tpu.memory_space<vmem>>, vector<128x32xf32>
    tpu.vector_store %arg11[%c0_14, %c0_15], %21 {strides = array<i32>} : memref<128x32xf32, #tpu.memory_space<vmem>>, vector<128x32xf32>,
    %c0_i32_16 = arith.constant 0 : i32
    %23 = arith.cmpi eq, %arg1, %c0_i32_16 : i32
    %24 = arith.extui %23 : i1 to i32
    %c0_i32_17 = arith.constant 0 : i32
    %25 = arith.cmpi ne, %24, %c0_i32_17 : i32
    scf.if %25 {
      %c0_18 = arith.constant 0 : index
      %c0_19 = arith.constant 0 : index
      %26 = vector.load %arg2[%c0_18, %c0_19] : memref<128x32xf32, #tpu.memory_space<vmem>>, vector<128x32xf32>
      %c0_20 = arith.constant 0 : index
      %c0_21 = arith.constant 0 : index
      %27 = vector.load %arg11[%c0_20, %c0_21] : memref<128x32xf32, #tpu.memory_space<vmem>>, vector<128x32xf32>
      %28 = arith.addf %26, %27 : vector<128x32xf32>
      %c0_22 = arith.constant 0 : index
      %c0_23 = arith.constant 0 : index
      %29 = vector.load %arg8[%c0_22, %c0_23] : memref<1x32xf32, #tpu.memory_space<vmem>>, vector<1x32xf32>
      %30 = vector.broadcast %29 : vector<1x32xf32> to vector<128x32xf32>
      %31 = arith.addf %28, %30 : vector<128x32xf32>
      %c0_24 = arith.constant 0 : index
      %c0_25 = arith.constant 0 : index
      %32 = vector.load %arg9[%c0_24, %c0_25] : memref<128x32xf32, #tpu.memory_space<vmem>>, vector<128x32xf32>
      tpu.vector_store %arg9[%c0_24, %c0_25], %31 {strides = array<i32>} : memref<128x32xf32, #tpu.memory_space<vmem>>, vector<128x32xf32>,
    } else {
    }
    return
  }
  func.func @transform_0(%arg0: i32, %arg1: i32) -> (i32, i32) {
    %c0_i32 = arith.constant 0 : i32
    %c0_i32_0 = arith.constant 0 : i32
    return %arg0, %c0_i32 : i32, i32
  }
  func.func @transform_1(%arg0: i32, %arg1: i32) -> (i32, i32) {
    %c0_i32 = arith.constant 0 : i32
    %c0_i32_0 = arith.constant 0 : i32
    %c0_i32_1 = arith.constant 0 : i32
    return %c0_i32, %c0_i32_0 : i32, i32
  }
  func.func @transform_2(%arg0: i32, %arg1: i32) -> (i32, i32) {
    %c0_i32 = arith.constant 0 : i32
    %c0_i32_0 = arith.constant 0 : i32
    %c0_i32_1 = arith.constant 0 : i32
    return %c0_i32, %c0_i32_0 : i32, i32
  }
  func.func @transform_3(%arg0: i32, %arg1: i32) -> (i32, i32) {
    %c0_i32 = arith.constant 0 : i32
    %c0_i32_0 = arith.constant 0 : i32
    return %c0_i32, %arg1 : i32, i32
  }
  func.func @transform_4(%arg0: i32, %arg1: i32) -> (i32, i32) {
    %c0_i32 = arith.constant 0 : i32
    %c0_i32_0 = arith.constant 0 : i32
    return %c0_i32, %arg1 : i32, i32
  }
  func.func @transform_5(%arg0: i32, %arg1: i32) -> (i32, i32) {
    %c0_i32 = arith.constant 0 : i32
    %c0_i32_0 = arith.constant 0 : i32
    return %arg1, %c0_i32 : i32, i32
  }
  func.func @transform_6(%arg0: i32, %arg1: i32) -> (i32, i32) {
    %c0_i32 = arith.constant 0 : i32
    %c0_i32_0 = arith.constant 0 : i32
    %c0_i32_1 = arith.constant 0 : i32
    return %c0_i32, %c0_i32_0 : i32, i32
  }
  func.func @transform_7(%arg0: i32, %arg1: i32) -> (i32, i32) {
    %c0_i32 = arith.constant 0 : i32
    %c0_i32_0 = arith.constant 0 : i32
    return %arg0, %c0_i32 : i32, i32
  }
}

</mosaic_0001>

<llo_original>
// kernel: normal_cell_forward.8
$region0: #{normal_cell_forward.8}
  #allocation0 [shape = 'u32[]', space=smem, size = 0x4, offset = 0x4, fixed_abs, tag = 'smem constant byte address 0x4 - core index']
  #allocation1 [shape = 'u32[144,128]{1,0:T(1,128)}', space=vmem, size = 0x12000, scoped, tag = 'internal scratch']
  %s0 = inlined_call_operand.vmem [shape: f32[2,64,32], index: 0, kind: input, shape index: {}]
  %s1 = inlined_call_operand.vmem [shape: f32[1,32], index: 1, kind: input, shape index: {}]
  %s2 = inlined_call_operand.vmem [shape: f32[1,32], index: 2, kind: input, shape index: {}]
  %s3 = inlined_call_operand.vmem [shape: bf16[32,96], index: 3, kind: input, shape index: {}]
  %s4 = inlined_call_operand.vmem [shape: f32[1,96], index: 4, kind: input, shape index: {}]
  %s5 = inlined_call_operand.vmem [shape: bf16[2,4,64,24], index: 5, kind: output, shape index: {}]
  %s6 = sld [smem:[#allocation0]]
  $region53: #{normal_cell_forward.8} parent=0
    _
  %s8 = ssub.s32 1, %s6
  %s9 = scalar_select 0, %s8, %s6
  loop: start=0, step=1, limit=4
  $region2: #{normal_cell_forward.8} parent=0 // loop_pre_header
    _
  $region3: #{normal_cell_forward.8} parent=0 // loop_header
    %s11 = sphi 0, %s15
    %p12 = scmp.ge.s32.totalorder %s11, 4
    %s18 = sphi 0, %s30
    %s19 = sphi 0, %s26
    %s20 = sphi 0, %s18
    %s21 = sphi 0, %s19
    %s22 = sphi 0, %s20
    %s23 = sphi 0, %s21
    %s35 = sphi 0, %s37
    %s38 = sphi 0, %s35
    %s39 = sphi 0, %s38
    %s55 = sphi 0, %s39
    %s59 = sphi 0, %s59
    %s61 = sphi 0, %s59
    %s62 = sphi 0, %s61
    %s76 = sphi 0, %s62
    %s80 = sphi 0, %s80
    %s82 = sphi 0, %s80
    %s83 = sphi 0, %s82
    %s97 = sphi 0, %s83
    %s101 = sphi 0, %s101
    %s103 = sphi 0, %s101
    %s104 = sphi 0, %s103
    %s118 = sphi 0, %s104
    %s122 = sphi 0, %s122
    %s124 = sphi 0, %s122
    %s125 = sphi 0, %s124
    %s139 = sphi 0, %s125
    %s147 = sphi 0, %s149
    %s150 = sphi 0, %s147
    %s151 = sphi 0, %s150
    %s167 = sphi 0, %s151
  $region4: #{normal_cell_forward.8} parent=0 // loop_header_branch
    %14 = sbr.rel (%p12) target = $region8
  $region5: #{normal_cell_forward.8} parent=0 // loop_body
    %s16 = ssub.s32 %s11, 1
    %s17 = ssub.s32 %s11, 2
    %s24 = sadd.s32 1, %s19
    %p25 = scmp.ge.s32.totalorder %s24, 1
    %s26 = scalar_select %p25, 0, %s24
    %s27 = sadd.s32 1, %s18
    %s28 = scalar_select %p25, %s27, %s18
    %p29 = scmp.ge.s32.totalorder %s28, 2
    %s30 = scalar_select %p29, 0, %s28
    %s31 = ssub.s32 %s18, %s30
    %s32 = ssub.s32 %s19, %s26
    %s33 = sor.u32 %s31, %s32
    %p34 = scmp.eq.s32.totalorder %s33, 0
    %s36 = sadd.s32 %s35, 1
    %s37 = scalar_select %p34, %s35, %s36
    %p40 = pneg %p34
    %p41 = scmp.eq.s32.totalorder %s11, 1
    %p42 = por %p40, %p41
    %p43 = scmp.ne.s32.totalorder %s35, %s38
    %p44 = scmp.eq.s32.totalorder %s11, 0
    %p45 = por %p43, %p44
    %p46 = scmp.ne.s32.totalorder %s35, %s38
    %p47 = scmp.eq.s32.totalorder %s16, 1
    %p48 = por %p46, %p47
    %p49 = scmp.ne.s32.totalorder %s38, %s39
    %p50 = scmp.eq.s32.totalorder %s16, 0
    %p51 = por %p49, %p50
    %p52 = scmp.ne.s32.totalorder %s38, %s39
    %p53 = scmp.eq.s32.totalorder %s17, 1
    %p54 = por %p52, %p53
    %p56 = scmp.ne.s32.totalorder %s39, %s55
    %p57 = scmp.eq.s32.totalorder %s17, 0
    %p58 = por %p56, %p57
    %s60 = sadd.s32 %s59, 1
    %p63 = scmp.eq.s32.totalorder %s11, 1
    %p64 = scmp.ne.s32.totalorder %s59, %s61
    %p65 = scmp.eq.s32.totalorder %s11, 0
    %p66 = por %p64, %p65
    %p67 = scmp.ne.s32.totalorder %s59, %s61
    %p68 = scmp.eq.s32.totalorder %s16, 1
    %p69 = por %p67, %p68
    %p70 = scmp.ne.s32.totalorder %s61, %s62
    %p71 = scmp.eq.s32.totalorder %s16, 0
    %p72 = por %p70, %p71
    %p73 = scmp.ne.s32.totalorder %s61, %s62
    %p74 = scmp.eq.s32.totalorder %s17, 1
    %p75 = por %p73, %p74
    %p77 = scmp.ne.s32.totalorder %s62, %s76
    %p78 = scmp.eq.s32.totalorder %s17, 0
    %p79 = por %p77, %p78
    %s81 = sadd.s32 %s80, 1
    %p84 = scmp.eq.s32.totalorder %s11, 1
    %p85 = scmp.ne.s32.totalorder %s80, %s82
    %p86 = scmp.eq.s32.totalorder %s11, 0
    %p87 = por %p85, %p86
    %p88 = scmp.ne.s32.totalorder %s80, %s82
    %p89 = scmp.eq.s32.totalorder %s16, 1
    %p90 = por %p88, %p89
    %p91 = scmp.ne.s32.totalorder %s82, %s83
    %p92 = scmp.eq.s32.totalorder %s16, 0
    %p93 = por %p91, %p92
    %p94 = scmp.ne.s32.totalorder %s82, %s83
    %p95 = scmp.eq.s32.totalorder %s17, 1
    %p96 = por %p94, %p95
    %p98 = scmp.ne.s32.totalorder %s83, %s97
    %p99 = scmp.eq.s32.totalorder %s17, 0
    %p100 = por %p98, %p99
    %s102 = sadd.s32 %s101, 1
    %p105 = scmp.eq.s32.totalorder %s11, 1
    %p106 = scmp.ne.s32.totalorder %s101, %s103
    %p107 = scmp.eq.s32.totalorder %s11, 0
    %p108 = por %p106, %p107
    %p109 = scmp.ne.s32.totalorder %s101, %s103
    %p110 = scmp.eq.s32.totalorder %s16, 1
    %p111 = por %p109, %p110
    %p112 = scmp.ne.s32.totalorder %s103, %s104
    %p113 = scmp.eq.s32.totalorder %s16, 0
    %p114 = por %p112, %p113
    %p115 = scmp.ne.s32.totalorder %s103, %s104
    %p116 = scmp.eq.s32.totalorder %s17, 1
    %p117 = por %p115, %p116
    %p119 = scmp.ne.s32.totalorder %s104, %s118
    %p120 = scmp.eq.s32.totalorder %s17, 0
    %p121 = por %p119, %p120
    %s123 = sadd.s32 %s122, 1
    %p126 = scmp.eq.s32.totalorder %s11, 1
    %p127 = scmp.ne.s32.totalorder %s122, %s124
    %p128 = scmp.eq.s32.totalorder %s11, 0
    %p129 = por %p127, %p128
    %p130 = scmp.ne.s32.totalorder %s122, %s124
    %p131 = scmp.eq.s32.totalorder %s16, 1
    %p132 = por %p130, %p131
    %p133 = scmp.ne.s32.totalorder %s124, %s125
    %p134 = scmp.eq.s32.totalorder %s16, 0
    %p135 = por %p133, %p134
    %p136 = scmp.ne.s32.totalorder %s124, %s125
    %p137 = scmp.eq.s32.totalorder %s17, 1
    %p138 = por %p136, %p137
    %p140 = scmp.ne.s32.totalorder %s125, %s139
    %p141 = scmp.eq.s32.totalorder %s17, 0
    %p142 = por %p140, %p141
    %s143 = ssub.s32 %s18, %s30
    %s144 = ssub.s32 %s19, %s26
    %s145 = sor.u32 %s143, %s144
    %p146 = scmp.eq.s32.totalorder %s145, 0
    %s148 = sadd.s32 %s147, 1
    %s149 = scalar_select %p146, %s147, %s148
    %p152 = pneg %p146
    %p153 = scmp.eq.s32.totalorder %s11, 1
    %p154 = por %p152, %p153
    %p155 = scmp.ne.s32.totalorder %s147, %s150
    %p156 = scmp.eq.s32.totalorder %s11, 0
    %p157 = por %p155, %p156
    %p158 = scmp.ne.s32.totalorder %s147, %s150
    %p159 = scmp.eq.s32.totalorder %s16, 1
    %p160 = por %p158, %p159
    %p161 = scmp.ne.s32.totalorder %s150, %s151
    %p162 = scmp.eq.s32.totalorder %s16, 0
    %p163 = por %p161, %p162
    %p164 = scmp.ne.s32.totalorder %s150, %s151
    %p165 = scmp.eq.s32.totalorder %s17, 1
    %p166 = por %p164, %p165
    %p168 = scmp.ne.s32.totalorder %s151, %s167
    %p169 = scmp.eq.s32.totalorder %s17, 0
    %p170 = por %p168, %p169
    %p171 = scmp.le.s32.totalorder 1, %s11
    %p172 = scmp.lt.s32.totalorder %s11, 3
    %p173 = pnand %p171, %p172
    %p174 = pneg %p173
    // Predicated region
    $region9: #{normal_cell_forward.8} parent=5 // pred_check
      _
    $region10: #{normal_cell_forward.8} parent=5 // pred_check_branch
      %176 = sbr.rel (%p173) target = $region12
    $region11: #{normal_cell_forward.8} parent=5 // pred_region
      %s177 = ssub.s32 %s11, 1
      // Predicated region
      $region13: #{normal_cell_forward.8} parent=11 // pred_check
        %p178 = pneg %p72
      $region14: #{normal_cell_forward.8} parent=11 // pred_check_branch
        %180 = sbr.rel (%p178) target = $region16
      $region15: #{normal_cell_forward.8} parent=11 // pred_region
        _
      $region16: #{normal_cell_forward.8} parent=11 // pred_fallthru
        _
      // Predicated region
      $region17: #{normal_cell_forward.8} parent=11 // pred_check
        %p181 = pneg %p93
      $region18: #{normal_cell_forward.8} parent=11 // pred_check_branch
        %183 = sbr.rel (%p181) target = $region20
      $region19: #{normal_cell_forward.8} parent=11 // pred_region
        _
      $region20: #{normal_cell_forward.8} parent=11 // pred_fallthru
        _
      // Predicated region
      $region21: #{normal_cell_forward.8} parent=11 // pred_check
        %p184 = pneg %p114
      $region22: #{normal_cell_forward.8} parent=11 // pred_check_branch
        %186 = sbr.rel (%p184) target = $region24
      $region23: #{normal_cell_forward.8} parent=11 // pred_region
        _
      $region24: #{normal_cell_forward.8} parent=11 // pred_fallthru
        _
      // Predicated region
      $region25: #{normal_cell_forward.8} parent=11 // pred_check
        %p187 = pneg %p135
      $region26: #{normal_cell_forward.8} parent=11 // pred_check_branch
        %189 = sbr.rel (%p187) target = $region28
      $region27: #{normal_cell_forward.8} parent=11 // pred_region
        _
      $region28: #{normal_cell_forward.8} parent=11 // pred_fallthru
        _
    $region12: #{normal_cell_forward.8} parent=5 // pred_fallthru
      _
    %p190 = scmp.lt.s32.totalorder %s11, 2
    // Predicated region
    $region29: #{normal_cell_forward.8} parent=5 // pred_check
      %p191 = pneg %p190
    $region30: #{normal_cell_forward.8} parent=5 // pred_check_branch
      %193 = sbr.rel (%p191) target = $region32
    $region31: #{normal_cell_forward.8} parent=5 // pred_region
      // Predicated region
      $region33: #{normal_cell_forward.8} parent=31 // pred_check
        %p194 = pneg %p45
      $region34: #{normal_cell_forward.8} parent=31 // pred_check_branch
        %196 = sbr.rel (%p194) target = $region36
      $region35: #{normal_cell_forward.8} parent=31 // pred_region
        %s197 = smul.u32 8, %s19
        %p198 = scmp.lt.s32.totalorder %s18, 1
        %s199 = scalar_select %p198, %s18, 1
        %p200 = scmp.lt.s32.totalorder %s197, 7
        %s201 = scalar_select %p200, %s197, 7
        %s202 = smul.addr %s199, 8
        %s203 = sadd.s32 %s201, %s202
        %s204 = smul.addr %s203, 8
        %s205 = scalar_lea.vmem %s0, %s204
        %s206 = smul.u32 8, %s19
      $region36: #{normal_cell_forward.8} parent=31 // pred_fallthru
        _
    $region32: #{normal_cell_forward.8} parent=5 // pred_fallthru
      _
    %p207 = scmp.le.s32.totalorder 1, %s11
    %p208 = scmp.lt.s32.totalorder %s11, 3
    %p209 = pnand %p207, %p208
    %p210 = pneg %p209
    // Predicated region
    $region37: #{normal_cell_forward.8} parent=5 // pred_check
      _
    $region38: #{normal_cell_forward.8} parent=5 // pred_check_branch
      %212 = sbr.rel (%p209) target = $region40
    $region39: #{normal_cell_forward.8} parent=5 // pred_region
      %s213 = ssub.s32 %s11, 1
      %s214 = smul.u32 8, %s21
      %p215 = scmp.lt.s32.totalorder %s20, 1
      %s216 = scalar_select %p215, %s20, 1
      %p217 = scmp.lt.s32.totalorder %s214, 7
      %s218 = scalar_select %p217, %s214, 7
      %s219 = smul.addr %s216, 8
      %s220 = sadd.s32 %s218, %s219
      %s221 = smul.addr %s220, 8
      %s222 = scalar_lea.vmem %s0, %s221
      %p223 = pneg %p51
      %p224 = pneg %p48
      %p225 = pneg %p72
      %p226 = pneg %p69
      %p227 = pneg %p93
      %p228 = pneg %p90
      %p229 = pneg %p114
      %p230 = pneg %p111
      %p231 = pneg %p135
      %p232 = pneg %p132
      %p233 = pneg %p163
      %p234 = pneg %p160
      %s235 = smul.u32 8, %s21
      %p236 = scmp.lt.s32.totalorder %s20, 1
      %s237 = scalar_select %p236, %s20, 1
      %p238 = scmp.lt.s32.totalorder %s235, 7
      %s239 = scalar_select %p238, %s235, 7
      %s240 = smul.addr %s237, 32
      %s241 = sadd.s32 %s239, %s240
      %s242 = smul.addr %s241, 4
      %s243 = scalar_lea.vmem %s5, %s242
      %s244 = smul.u32 8, %s21
      %p245 = scmp.lt.s32.totalorder %s20, 1
      %s246 = scalar_select %p245, %s20, 1
      %p247 = scmp.lt.s32.totalorder %s244, 7
      %s248 = scalar_select %p247, %s244, 7
      %s249 = smul.addr %s246, 8
      %s250 = sadd.s32 %s248, %s249
      %s251 = smul.addr %s250, 8
      %s252 = scalar_lea.vmem %s0, %s251
      %s253 = smul.u32 8, %s21
      %s254 = smul.u32 8, %s21
      %p255 = scmp.lt.s32.totalorder %s20, 1
      %s256 = scalar_select %p255, %s20, 1
      %p257 = scmp.lt.s32.totalorder %s254, 7
      %s258 = scalar_select %p257, %s254, 7
      %s259 = smul.addr %s256, 32
      %s260 = sadd.s32 %s258, %s259
      %s261 = smul.addr %s260, 4
      %s262 = scalar_lea.vmem %s5, %s261
      %s263 = smul.u32 8, %s21
      %v265 = vld [vmem:[%s252] sm:$0xff]
      %v266 = vld [vmem:[%s252 + $0x8] sm:$0xff]
      %v267 = vld [vmem:[%s252 + $0x10] sm:$0xff]
      %v268 = vld [vmem:[%s252 + $0x18] sm:$0xff]
      %v269 = vld [vmem:[%s252 + $0x20] sm:$0xff]
      %v270 = vld [vmem:[%s252 + $0x28] sm:$0xff]
      %v271 = vld [vmem:[%s252 + $0x30] sm:$0xff]
      %v272 = vld [vmem:[%s252 + $0x38] sm:$0xff]
      %v273 = vld [vmem:[%s1] sm:$0x1]
      %v274 = vld [vmem:[%s2] sm:$0x1]
      %vm275 = vcmask 261120
      %v276 = vsel %vm275, %v265, 0.0
      %277 = vadd.xlane.f32.xlu0 %v276
      %v278 = vpop.xlane.xlu0 %277
      %v279 = vsel %vm275, %v266, 0.0
      %280 = vadd.xlane.f32.xlu0 %v279
      %v281 = vpop.xlane.xlu0 %280
      %v282 = vsel %vm275, %v267, 0.0
      %283 = vadd.xlane.f32.xlu0 %v282
      %v284 = vpop.xlane.xlu0 %283
      %v285 = vsel %vm275, %v268, 0.0
      %286 = vadd.xlane.f32.xlu0 %v285
      %v287 = vpop.xlane.xlu0 %286
      %v288 = vsel %vm275, %v269, 0.0
      %289 = vadd.xlane.f32.xlu0 %v288
      %v290 = vpop.xlane.xlu0 %289
      %v291 = vsel %vm275, %v270, 0.0
      %292 = vadd.xlane.f32.xlu0 %v291
      %v293 = vpop.xlane.xlu0 %292
      %v294 = vsel %vm275, %v271, 0.0
      %295 = vadd.xlane.f32.xlu0 %v294
      %v296 = vpop.xlane.xlu0 %295
      %v297 = vsel %vm275, %v272, 0.0
      %298 = vadd.xlane.f32.xlu0 %v297
      %v299 = vpop.xlane.xlu0 %298
      %v300 = vrcp.pop 32.0
      %v301 = vmul.f32 %v278, %v300
      %v302 = vmul.f32 %v281, %v300
      %v303 = vmul.f32 %v284, %v300
      %v304 = vmul.f32 %v287, %v300
      %v305 = vmul.f32 %v290, %v300
      %v306 = vmul.f32 %v293, %v300
      %v307 = vmul.f32 %v296, %v300
      %v308 = vmul.f32 %v299, %v300
      %v309 = vsub.f32 %v265, %v301
      %v310 = vsub.f32 %v266, %v302
      %v311 = vsub.f32 %v267, %v303
      %v312 = vsub.f32 %v268, %v304
      %v313 = vsub.f32 %v269, %v305
      %v314 = vsub.f32 %v270, %v306
      %v315 = vsub.f32 %v271, %v307
      %v316 = vsub.f32 %v272, %v308
      %v317 = vmul.f32 %v309, %v309
      %v318 = vmul.f32 %v310, %v310
      %v319 = vmul.f32 %v311, %v311
      %v320 = vmul.f32 %v312, %v312
      %v321 = vmul.f32 %v313, %v313
      %v322 = vmul.f32 %v314, %v314
      %v323 = vmul.f32 %v315, %v315
      %v324 = vmul.f32 %v316, %v316
      %v325 = vsel %vm275, %v317, 0.0
      %326 = vadd.xlane.f32.xlu0 %v325
      %v327 = vpop.xlane.xlu0 %326
      %v328 = vsel %vm275, %v318, 0.0
      %329 = vadd.xlane.f32.xlu0 %v328
      %v330 = vpop.xlane.xlu0 %329
      %v331 = vsel %vm275, %v319, 0.0
      %332 = vadd.xlane.f32.xlu0 %v331
      %v333 = vpop.xlane.xlu0 %332
      %v334 = vsel %vm275, %v320, 0.0
      %335 = vadd.xlane.f32.xlu0 %v334
      %v336 = vpop.xlane.xlu0 %335
      %v337 = vsel %vm275, %v321, 0.0
      %338 = vadd.xlane.f32.xlu0 %v337
      %v339 = vpop.xlane.xlu0 %338
      %v340 = vsel %vm275, %v322, 0.0
      %341 = vadd.xlane.f32.xlu0 %v340
      %v342 = vpop.xlane.xlu0 %341
      %v343 = vsel %vm275, %v323, 0.0
      %344 = vadd.xlane.f32.xlu0 %v343
      %v345 = vpop.xlane.xlu0 %344
      %v346 = vsel %vm275, %v324, 0.0
      %347 = vadd.xlane.f32.xlu0 %v346
      %v348 = vpop.xlane.xlu0 %347
      %v349 = vmul.f32 %v327, %v300
      %v350 = vmul.f32 %v330, %v300
      %v351 = vmul.f32 %v333, %v300
      %v352 = vmul.f32 %v336, %v300
      %v353 = vmul.f32 %v339, %v300
      %v354 = vmul.f32 %v342, %v300
      %v355 = vmul.f32 %v345, %v300
      %v356 = vmul.f32 %v348, %v300
      %v357 = vadd.f32 %v349, 1e-05
      %v358 = vadd.f32 %v350, 1e-05
      %v359 = vadd.f32 %v351, 1e-05
      %v360 = vadd.f32 %v352, 1e-05
      %v361 = vadd.f32 %v353, 1e-05
      %v362 = vadd.f32 %v354, 1e-05
      %v363 = vadd.f32 %v355, 1e-05
      %v364 = vadd.f32 %v356, 1e-05
      %v365 = vrsqrt.pop %v357
      %v366 = vrsqrt.pop %v358
      %v367 = vrsqrt.pop %v359
      %v368 = vrsqrt.pop %v360
      %v369 = vrsqrt.pop %v361
      %v370 = vrsqrt.pop %v362
      %v371 = vrsqrt.pop %v363
      %v372 = vrsqrt.pop %v364
      %v373 = vmul.f32 %v309, %v365
      %v374 = vmul.f32 %v310, %v366
      %v375 = vmul.f32 %v311, %v367
      %v376 = vmul.f32 %v312, %v368
      %v377 = vmul.f32 %v313, %v369
      %v378 = vmul.f32 %v314, %v370
      %v379 = vmul.f32 %v315, %v371
      %v380 = vmul.f32 %v316, %v372
      %v382 = vlaneseq
      %v383 = vshrl.u32 %v382, 7
      %v384 = vsub.s32 0, %v383
      %v385 = vrot.slane %v273, %v384
      %v387 = vmul.f32 %v373, %v385
      %v388 = vmul.f32 %v374, %v385
      %v389 = vmul.f32 %v375, %v385
      %v390 = vmul.f32 %v376, %v385
      %v391 = vmul.f32 %v377, %v385
      %v392 = vmul.f32 %v378, %v385
      %v393 = vmul.f32 %v379, %v385
      %v394 = vmul.f32 %v380, %v385
      %v396 = vlaneseq
      %v397 = vshrl.u32 %v396, 7
      %v398 = vsub.s32 0, %v397
      %v399 = vrot.slane %v274, %v398
      %v401 = vadd.f32 %v387, %v399
      %v402 = vadd.f32 %v388, %v399
      %v403 = vadd.f32 %v389, %v399
      %v404 = vadd.f32 %v390, %v399
      %v405 = vadd.f32 %v391, %v399
      %v406 = vadd.f32 %v392, %v399
      %v407 = vadd.f32 %v393, %v399
      %v408 = vadd.f32 %v394, %v399
      %v409 = vpack.c.bf16 %v402, %v401
      %v410 = vpack.c.bf16 %v404, %v403
      %v411 = vpack.c.bf16 %v406, %v405
      %v412 = vpack.c.bf16 %v408, %v407
      %v413 = vld [vmem:[%s3] sm:$0xf]
      %v414 = vld [vmem:[%s3 + $0x4] sm:$0xf]
      %v415 = vld [vmem:[%s3 + $0x8] sm:$0xf]
      %v416 = vld [vmem:[%s3 + $0xc] sm:$0xf]
      %v417 = vld [vmem:[%s4] sm:$0x1]
      %v419 = vlaneseq
      %v420 = vshrl.u32 %v419, 7
      %v421 = vsub.s32 0, %v420
      %v422 = vrot.slane %v417, %v421
      %v428 = vunpack.c.l.b16 %v413
      %v429 = vunpack.c.l.b16 %v414
      %v430 = vunpack.c.l.b16 %v415
      %v431 = vunpack.c.l.b16 %v416
      %v432 = vpack.c.b16 %v429, %v428
      %v433 = vpack.c.b16 %v431, %v430
      %v437 = vsel %vm275, %v409, 0
      %v440 = vsel %vm275, %v410, 0
      %v443 = vsel %vm275, %v411, 0
      %v446 = vsel %vm275, %v412, 0
      %448 = vmatprep.subr.bf16.mxu0 0
      %449 = vmatpush1.bf16.msra.mxu0 %v432
      %450 = vmatprep.subr.bf16.mxu0 0
      %451 = vmatpush1.bf16.msra.mxu0 %v433
      %452 = vmatprep.subr.bf16.mxu0 0
      %453 = vmatpush1.bf16.msra.mxu0 0
      %454 = vmatprep.subr.bf16.mxu0 0
      %455 = vmatpush1.bf16.msra.mxu0 0
      %456 = vmatprep.subr.bf16.mxu0 0
      %457 = vmatpush1.bf16.msra.mxu0 0
      %458 = vmatprep.subr.bf16.mxu0 0
      %459 = vmatpush1.bf16.msra.mxu0 0
      %460 = vmatprep.subr.bf16.mxu0 0
      %461 = vmatpush1.bf16.msra.mxu0 0
      %462 = vmatprep.subr.bf16.mxu0 0
      %463 = vmatpush1.bf16.msra.mxu0 0
      %464 = vmatprep.subr.bf16.mxu0 0
      %465 = vmatpush1.bf16.msra.mxu0 0
      %466 = vmatprep.subr.bf16.mxu0 0
      %467 = vmatpush1.bf16.msra.mxu0 0
      %468 = vmatprep.subr.bf16.mxu0 0
      %469 = vmatpush1.bf16.msra.mxu0 0
      %470 = vmatprep.subr.bf16.mxu0 0
      %471 = vmatpush1.bf16.msra.mxu0 0
      %472 = vmatprep.subr.bf16.mxu0 0
      %473 = vmatpush1.bf16.msra.mxu0 0
      %474 = vmatprep.subr.bf16.mxu0 0
      %475 = vmatpush1.bf16.msra.mxu0 0
      %476 = vmatprep.subr.bf16.mxu0 0
      %477 = vmatpush1.bf16.msra.mxu0 0
      %478 = vmatprep.subr.bf16.mxu0 0
      %479 = vmatpush1.bf16.msra.mxu0 0
      %480 = vmatprep.mubr.bf16.mxu0 0
      %481 = vmatmul.mubr.bf16.gmra.mrb[0].mxu0 %v437
      %v482 = vpop.f32.mrb[0].mxu0
      %v483 = vadd.f32 %v422, %v482
      %v484 = vpop.f32.mrb[0].mxu0
      %v485 = vpop.f32.mrb[0].mxu0
      %v486 = vadd.f32 %v422, %v485
      %v487 = vpop.f32.mrb[0].mxu0
      %488 = vmatprep.mubr.bf16.mxu0 0
      %489 = vmatmul.mubr.bf16.gmra.mrb[0].mxu0 %v440
      %v490 = vpop.f32.mrb[0].mxu0
      %v491 = vadd.f32 %v422, %v490
      %v492 = vpop.f32.mrb[0].mxu0
      %v493 = vpop.f32.mrb[0].mxu0
      %v494 = vadd.f32 %v422, %v493
      %v495 = vpop.f32.mrb[0].mxu0
      %496 = vmatprep.mubr.bf16.mxu0 0
      %497 = vmatmul.mubr.bf16.gmra.mrb[0].mxu0 %v443
      %v498 = vpop.f32.mrb[0].mxu0
      %v499 = vadd.f32 %v422, %v498
      %v500 = vpop.f32.mrb[0].mxu0
      %v501 = vpop.f32.mrb[0].mxu0
      %v502 = vadd.f32 %v422, %v501
      %v503 = vpop.f32.mrb[0].mxu0
      %504 = vmatprep.mubr.bf16.mxu0 0
      %505 = vmatmul.mubr.bf16.gmra.mrb[0].mxu0 %v446
      %v506 = vpop.f32.mrb[0].mxu0
      %v507 = vadd.f32 %v422, %v506
      %v508 = vpop.f32.mrb[0].mxu0
      %v509 = vpop.f32.mrb[0].mxu0
      %v510 = vadd.f32 %v422, %v509
      %v511 = vpop.f32.mrb[0].mxu0
      %512 = vdwg.mxu0
      %v513 = vpack.c.bf16 %v486, %v483
      %v514 = vpack.c.bf16 %v494, %v491
      %v515 = vpack.c.bf16 %v502, %v499
      %v516 = vpack.c.bf16 %v510, %v507
      %v521 = vunpack.c.l.b16 %v513
      %v522 = vunpack.c.h.b16 %v513
      %v523 = vunpack.c.l.b16 %v514
      %v524 = vunpack.c.h.b16 %v514
      %v525 = vunpack.c.l.b16 %v515
      %v526 = vunpack.c.h.b16 %v515
      %v527 = vunpack.c.l.b16 %v516
      %v528 = vunpack.c.h.b16 %v516
      %v529 = vpack.c.b16 %v521, %v521
      %v530 = vpack.c.b16 %v522, %v522
      %v531 = vpack.c.b16 %v523, %v523
      %v532 = vpack.c.b16 %v524, %v524
      %v533 = vpack.c.b16 %v525, %v525
      %v534 = vpack.c.b16 %v526, %v526
      %v535 = vpack.c.b16 %v527, %v527
      %v536 = vpack.c.b16 %v528, %v528
      %vm545 = vcmask 191488
      %546 = vst.msk [vmem:[%s262] sm:$0xf] %vm545, %v529
      %547 = vst.msk [vmem:[%s262 + $0x4] sm:$0xf] %vm545, %v530
      %548 = vst.msk [vmem:[%s262 + $0x8] sm:$0xf] %vm545, %v531
      %549 = vst.msk [vmem:[%s262 + $0xc] sm:$0xf] %vm545, %v532
      %550 = vst.msk [vmem:[%s262 + $0x10] sm:$0xf] %vm545, %v533
      %551 = vst.msk [vmem:[%s262 + $0x14] sm:$0xf] %vm545, %v534
      %552 = vst.msk [vmem:[%s262 + $0x18] sm:$0xf] %vm545, %v535
      %553 = vst.msk [vmem:[%s262 + $0x1c] sm:$0xf] %vm545, %v536
      %554 = vrot.lane.b32.xlu0 %v529, 104
      %v555 = vpop.permute.xlu0 %554
      %556 = vrot.lane.b32.xlu0 %v530, 104
      %v557 = vpop.permute.xlu0 %556
      %558 = vrot.lane.b32.xlu0 %v531, 104
      %v559 = vpop.permute.xlu0 %558
      %560 = vrot.lane.b32.xlu0 %v532, 104
      %v561 = vpop.permute.xlu0 %560
      %562 = vrot.lane.b32.xlu0 %v533, 104
      %v563 = vpop.permute.xlu0 %562
      %564 = vrot.lane.b32.xlu0 %v534, 104
      %v565 = vpop.permute.xlu0 %564
      %566 = vrot.lane.b32.xlu0 %v535, 104
      %v567 = vpop.permute.xlu0 %566
      %568 = vrot.lane.b32.xlu0 %v536, 104
      %v569 = vpop.permute.xlu0 %568
      %s578 = scalar_lea.vmem %s262, 32
      %579 = vst.msk [vmem:[%s578] sm:$0xf] %vm545, %v555
      %580 = vst.msk [vmem:[%s578 + $0x4] sm:$0xf] %vm545, %v557
      %581 = vst.msk [vmem:[%s578 + $0x8] sm:$0xf] %vm545, %v559
      %582 = vst.msk [vmem:[%s578 + $0xc] sm:$0xf] %vm545, %v561
      %583 = vst.msk [vmem:[%s578 + $0x10] sm:$0xf] %vm545, %v563
      %584 = vst.msk [vmem:[%s578 + $0x14] sm:$0xf] %vm545, %v565
      %585 = vst.msk [vmem:[%s578 + $0x18] sm:$0xf] %vm545, %v567
      %586 = vst.msk [vmem:[%s578 + $0x1c] sm:$0xf] %vm545, %v569
      %587 = vrot.lane.b32.xlu0 %v529, 80
      %v588 = vpop.permute.xlu0 %587
      %589 = vrot.lane.b32.xlu0 %v530, 80
      %v590 = vpop.permute.xlu0 %589
      %591 = vrot.lane.b32.xlu0 %v531, 80
      %v592 = vpop.permute.xlu0 %591
      %593 = vrot.lane.b32.xlu0 %v532, 80
      %v594 = vpop.permute.xlu0 %593
      %595 = vrot.lane.b32.xlu0 %v533, 80
      %v596 = vpop.permute.xlu0 %595
      %597 = vrot.lane.b32.xlu0 %v534, 80
      %v598 = vpop.permute.xlu0 %597
      %599 = vrot.lane.b32.xlu0 %v535, 80
      %v600 = vpop.permute.xlu0 %599
      %601 = vrot.lane.b32.xlu0 %v536, 80
      %v602 = vpop.permute.xlu0 %601
      %s611 = scalar_lea.vmem %s262, 64
      %612 = vst.msk [vmem:[%s611] sm:$0xf] %vm545, %v588
      %613 = vst.msk [vmem:[%s611 + $0x4] sm:$0xf] %vm545, %v590
      %614 = vst.msk [vmem:[%s611 + $0x8] sm:$0xf] %vm545, %v592
      %615 = vst.msk [vmem:[%s611 + $0xc] sm:$0xf] %vm545, %v594
      %616 = vst.msk [vmem:[%s611 + $0x10] sm:$0xf] %vm545, %v596
      %617 = vst.msk [vmem:[%s611 + $0x14] sm:$0xf] %vm545, %v598
      %618 = vst.msk [vmem:[%s611 + $0x18] sm:$0xf] %vm545, %v600
      %619 = vst.msk [vmem:[%s611 + $0x1c] sm:$0xf] %vm545, %v602
      %620 = vrot.lane.b32.xlu0 %v529, 56
      %v621 = vpop.permute.xlu0 %620
      %622 = vrot.lane.b32.xlu0 %v530, 56
      %v623 = vpop.permute.xlu0 %622
      %624 = vrot.lane.b32.xlu0 %v531, 56
      %v625 = vpop.permute.xlu0 %624
      %626 = vrot.lane.b32.xlu0 %v532, 56
      %v627 = vpop.permute.xlu0 %626
      %628 = vrot.lane.b32.xlu0 %v533, 56
      %v629 = vpop.permute.xlu0 %628
      %630 = vrot.lane.b32.xlu0 %v534, 56
      %v631 = vpop.permute.xlu0 %630
      %632 = vrot.lane.b32.xlu0 %v535, 56
      %v633 = vpop.permute.xlu0 %632
      %634 = vrot.lane.b32.xlu0 %v536, 56
      %v635 = vpop.permute.xlu0 %634
      %s644 = scalar_lea.vmem %s262, 96
      %645 = vst.msk [vmem:[%s644] sm:$0xf] %vm545, %v621
      %646 = vst.msk [vmem:[%s644 + $0x4] sm:$0xf] %vm545, %v623
      %647 = vst.msk [vmem:[%s644 + $0x8] sm:$0xf] %vm545, %v625
      %648 = vst.msk [vmem:[%s644 + $0xc] sm:$0xf] %vm545, %v627
      %649 = vst.msk [vmem:[%s644 + $0x10] sm:$0xf] %vm545, %v629
      %650 = vst.msk [vmem:[%s644 + $0x14] sm:$0xf] %vm545, %v631
      %651 = vst.msk [vmem:[%s644 + $0x18] sm:$0xf] %vm545, %v633
      %652 = vst.msk [vmem:[%s644 + $0x1c] sm:$0xf] %vm545, %v635
      %s653 = smul.u32 8, %s21
      %p654 = scmp.lt.s32.totalorder %s20, 1
      %s655 = scalar_select %p654, %s20, 1
      %p656 = scmp.lt.s32.totalorder %s653, 7
      %s657 = scalar_select %p656, %s653, 7
      %s658 = smul.addr %s655, 32
      %s659 = sadd.s32 %s657, %s658
      %s660 = smul.addr %s659, 4
      %s661 = scalar_lea.vmem %s5, %s660
      // Predicated region
      $region41: #{normal_cell_forward.8} parent=39 // pred_check
        %p662 = pneg %p160
      $region42: #{normal_cell_forward.8} parent=39 // pred_check_branch
        %664 = sbr.rel (%p662) target = $region44
      $region43: #{normal_cell_forward.8} parent=39 // pred_region
        %s665 = smul.u32 8, %s21
      $region44: #{normal_cell_forward.8} parent=39 // pred_fallthru
        _
    $region40: #{normal_cell_forward.8} parent=5 // pred_fallthru
      _
    %p666 = scmp.le.s32.totalorder 2, %s11
    // Predicated region
    $region45: #{normal_cell_forward.8} parent=5 // pred_check
      %p667 = pneg %p666
    $region46: #{normal_cell_forward.8} parent=5 // pred_check_branch
      %669 = sbr.rel (%p667) target = $region48
    $region47: #{normal_cell_forward.8} parent=5 // pred_region
      %s670 = ssub.s32 %s11, 2
      // Predicated region
      $region49: #{normal_cell_forward.8} parent=47 // pred_check
        %p671 = pneg %p166
      $region50: #{normal_cell_forward.8} parent=47 // pred_check_branch
        %673 = sbr.rel (%p671) target = $region52
      $region51: #{normal_cell_forward.8} parent=47 // pred_region
        %s674 = smul.u32 8, %s23
        %p675 = scmp.lt.s32.totalorder %s22, 1
        %s676 = scalar_select %p675, %s22, 1
        %p677 = scmp.lt.s32.totalorder %s674, 7
        %s678 = scalar_select %p677, %s674, 7
        %s679 = smul.addr %s676, 32
        %s680 = sadd.s32 %s678, %s679
        %s681 = smul.addr %s680, 4
        %s682 = scalar_lea.vmem %s5, %s681
      $region52: #{normal_cell_forward.8} parent=47 // pred_fallthru
        _
    $region48: #{normal_cell_forward.8} parent=5 // pred_fallthru
      _
  $region6: #{normal_cell_forward.8} parent=0 // loop_footer
    %s15 = sadd.s32 1, %s11
  $region7: #{normal_cell_forward.8} parent=0 // loop_footer_branch
    %10 = sbr.rel target = $region3
  $region8: #{normal_cell_forward.8} parent=0 // loop_exit
    _

// kernel: normal_cell_forward.9
$region0: #{normal_cell_forward.9}
  #allocation0 [shape = 'u32[]', space=smem, size = 0x4, offset = 0x4, fixed_abs, tag = 'smem constant byte address 0x4 - core index']
  #allocation1 [shape = 'u32[144,128]{1,0:T(1,128)}', space=vmem, size = 0x12000, scoped, tag = 'internal scratch']
  #allocation2 [shape = 'bf16[4,64,8]{2,1,0:T(16,128)(2,1)}', space=vmem, size = 0x10000, scoped, tag = 'scratch operand']
  %s0 = inlined_call_operand.vmem [shape: bf16[2,4,64,24], index: 0, kind: input, shape index: {}]
  %s1 = inlined_call_operand.vmem [shape: bf16[2,4,64,16], index: 1, kind: input, shape index: {}]
  %s2 = inlined_call_operand.vmem [shape: bf16[64,16], index: 2, kind: input, shape index: {}]
  %s3 = inlined_call_operand.vmem [shape: bf16[32,32], index: 3, kind: input, shape index: {}]
  %s4 = inlined_call_operand.vmem [shape: f32[1,32], index: 4, kind: input, shape index: {}]
  %s5 = inlined_call_operand.vmem [shape: f32[2,64,32], index: 5, kind: input, shape index: {}]
  %s6 = inlined_call_operand.vmem [shape: f32[2,64,32], index: 6, kind: output, shape index: {}]
  %s7 = sld [smem:[#allocation0]]
  $region61: #{normal_cell_forward.9} parent=0
    _
  %s9 = ssub.s32 1, %s7
  %s10 = scalar_select 0, %s9, %s7
  loop: start=0, step=1, limit=10
  $region2: #{normal_cell_forward.9} parent=0 // loop_pre_header
    _
  $region3: #{normal_cell_forward.9} parent=0 // loop_header
    %s12 = sphi 0, %s16
    %p13 = scmp.ge.s32.totalorder %s12, 10
    %s19 = sphi 0, %s31
    %s20 = sphi 0, %s27
    %s21 = sphi 0, %s19
    %s22 = sphi 0, %s20
    %s23 = sphi 0, %s21
    %s24 = sphi 0, %s22
    %s36 = sphi 0, %s38
    %s39 = sphi 0, %s36
    %s40 = sphi 0, %s39
    %s56 = sphi 0, %s40
    %s64 = sphi 0, %s66
    %s67 = sphi 0, %s64
    %s68 = sphi 0, %s67
    %s84 = sphi 0, %s68
    %s88 = sphi 0, %s88
    %s90 = sphi 0, %s88
    %s91 = sphi 0, %s90
    %s105 = sphi 0, %s91
    %s109 = sphi 0, %s109
    %s111 = sphi 0, %s109
    %s112 = sphi 0, %s111
    %s126 = sphi 0, %s112
    %s130 = sphi 0, %s130
    %s132 = sphi 0, %s130
    %s133 = sphi 0, %s132
    %s147 = sphi 0, %s133
    %s153 = sphi 0, %s155
    %s156 = sphi 0, %s153
    %s157 = sphi 0, %s156
    %s173 = sphi 0, %s157
    %s179 = sphi 0, %s181
    %s182 = sphi 0, %s179
    %s183 = sphi 0, %s182
    %s199 = sphi 0, %s183
  $region4: #{normal_cell_forward.9} parent=0 // loop_header_branch
    %15 = sbr.rel (%p13) target = $region8
  $region5: #{normal_cell_forward.9} parent=0 // loop_body
    %s17 = ssub.s32 %s12, 1
    %s18 = ssub.s32 %s12, 2
    %s25 = sadd.s32 1, %s20
    %p26 = scmp.ge.s32.totalorder %s25, 4
    %s27 = scalar_select %p26, 0, %s25
    %s28 = sadd.s32 1, %s19
    %s29 = scalar_select %p26, %s28, %s19
    %p30 = scmp.ge.s32.totalorder %s29, 2
    %s31 = scalar_select %p30, 0, %s29
    %s32 = ssub.s32 %s19, %s31
    %s33 = ssub.s32 %s20, %s27
    %s34 = sor.u32 %s32, %s33
    %p35 = scmp.eq.s32.totalorder %s34, 0
    %s37 = sadd.s32 %s36, 1
    %s38 = scalar_select %p35, %s36, %s37
    %p41 = pneg %p35
    %p42 = scmp.eq.s32.totalorder %s12, 7
    %p43 = por %p41, %p42
    %p44 = scmp.ne.s32.totalorder %s36, %s39
    %p45 = scmp.eq.s32.totalorder %s12, 0
    %p46 = por %p44, %p45
    %p47 = scmp.ne.s32.totalorder %s36, %s39
    %p48 = scmp.eq.s32.totalorder %s17, 7
    %p49 = por %p47, %p48
    %p50 = scmp.ne.s32.totalorder %s39, %s40
    %p51 = scmp.eq.s32.totalorder %s17, 0
    %p52 = por %p50, %p51
    %p53 = scmp.ne.s32.totalorder %s39, %s40
    %p54 = scmp.eq.s32.totalorder %s18, 7
    %p55 = por %p53, %p54
    %p57 = scmp.ne.s32.totalorder %s40, %s56
    %p58 = scmp.eq.s32.totalorder %s18, 0
    %p59 = por %p57, %p58
    %s60 = ssub.s32 %s19, %s31
    %s61 = ssub.s32 %s20, %s27
    %s62 = sor.u32 %s60, %s61
    %p63 = scmp.eq.s32.totalorder %s62, 0
    %s65 = sadd.s32 %s64, 1
    %s66 = scalar_select %p63, %s64, %s65
    %p69 = pneg %p63
    %p70 = scmp.eq.s32.totalorder %s12, 7
    %p71 = por %p69, %p70
    %p72 = scmp.ne.s32.totalorder %s64, %s67
    %p73 = scmp.eq.s32.totalorder %s12, 0
    %p74 = por %p72, %p73
    %p75 = scmp.ne.s32.totalorder %s64, %s67
    %p76 = scmp.eq.s32.totalorder %s17, 7
    %p77 = por %p75, %p76
    %p78 = scmp.ne.s32.totalorder %s67, %s68
    %p79 = scmp.eq.s32.totalorder %s17, 0
    %p80 = por %p78, %p79
    %p81 = scmp.ne.s32.totalorder %s67, %s68
    %p82 = scmp.eq.s32.totalorder %s18, 7
    %p83 = por %p81, %p82
    %p85 = scmp.ne.s32.totalorder %s68, %s84
    %p86 = scmp.eq.s32.totalorder %s18, 0
    %p87 = por %p85, %p86
    %s89 = sadd.s32 %s88, 1
    %p92 = scmp.eq.s32.totalorder %s12, 7
    %p93 = scmp.ne.s32.totalorder %s88, %s90
    %p94 = scmp.eq.s32.totalorder %s12, 0
    %p95 = por %p93, %p94
    %p96 = scmp.ne.s32.totalorder %s88, %s90
    %p97 = scmp.eq.s32.totalorder %s17, 7
    %p98 = por %p96, %p97
    %p99 = scmp.ne.s32.totalorder %s90, %s91
    %p100 = scmp.eq.s32.totalorder %s17, 0
    %p101 = por %p99, %p100
    %p102 = scmp.ne.s32.totalorder %s90, %s91
    %p103 = scmp.eq.s32.totalorder %s18, 7
    %p104 = por %p102, %p103
    %p106 = scmp.ne.s32.totalorder %s91, %s105
    %p107 = scmp.eq.s32.totalorder %s18, 0
    %p108 = por %p106, %p107
    %s110 = sadd.s32 %s109, 1
    %p113 = scmp.eq.s32.totalorder %s12, 7
    %p114 = scmp.ne.s32.totalorder %s109, %s111
    %p115 = scmp.eq.s32.totalorder %s12, 0
    %p116 = por %p114, %p115
    %p117 = scmp.ne.s32.totalorder %s109, %s111
    %p118 = scmp.eq.s32.totalorder %s17, 7
    %p119 = por %p117, %p118
    %p120 = scmp.ne.s32.totalorder %s111, %s112
    %p121 = scmp.eq.s32.totalorder %s17, 0
    %p122 = por %p120, %p121
    %p123 = scmp.ne.s32.totalorder %s111, %s112
    %p124 = scmp.eq.s32.totalorder %s18, 7
    %p125 = por %p123, %p124
    %p127 = scmp.ne.s32.totalorder %s112, %s126
    %p128 = scmp.eq.s32.totalorder %s18, 0
    %p129 = por %p127, %p128
    %s131 = sadd.s32 %s130, 1
    %p134 = scmp.eq.s32.totalorder %s12, 7
    %p135 = scmp.ne.s32.totalorder %s130, %s132
    %p136 = scmp.eq.s32.totalorder %s12, 0
    %p137 = por %p135, %p136
    %p138 = scmp.ne.s32.totalorder %s130, %s132
    %p139 = scmp.eq.s32.totalorder %s17, 7
    %p140 = por %p138, %p139
    %p141 = scmp.ne.s32.totalorder %s132, %s133
    %p142 = scmp.eq.s32.totalorder %s17, 0
    %p143 = por %p141, %p142
    %p144 = scmp.ne.s32.totalorder %s132, %s133
    %p145 = scmp.eq.s32.totalorder %s18, 7
    %p146 = por %p144, %p145
    %p148 = scmp.ne.s32.totalorder %s133, %s147
    %p149 = scmp.eq.s32.totalorder %s18, 0
    %p150 = por %p148, %p149
    %s151 = ssub.s32 %s19, %s31
    %p152 = scmp.eq.s32.totalorder %s151, 0
    %s154 = sadd.s32 %s153, 1
    %s155 = scalar_select %p152, %s153, %s154
    %p158 = pneg %p152
    %p159 = scmp.eq.s32.totalorder %s12, 7
    %p160 = por %p158, %p159
    %p161 = scmp.ne.s32.totalorder %s153, %s156
    %p162 = scmp.eq.s32.totalorder %s12, 0
    %p163 = por %p161, %p162
    %p164 = scmp.ne.s32.totalorder %s153, %s156
    %p165 = scmp.eq.s32.totalorder %s17, 7
    %p166 = por %p164, %p165
    %p167 = scmp.ne.s32.totalorder %s156, %s157
    %p168 = scmp.eq.s32.totalorder %s17, 0
    %p169 = por %p167, %p168
    %p170 = scmp.ne.s32.totalorder %s156, %s157
    %p171 = scmp.eq.s32.totalorder %s18, 7
    %p172 = por %p170, %p171
    %p174 = scmp.ne.s32.totalorder %s157, %s173
    %p175 = scmp.eq.s32.totalorder %s18, 0
    %p176 = por %p174, %p175
    %s177 = ssub.s32 %s19, %s31
    %p178 = scmp.eq.s32.totalorder %s177, 0
    %s180 = sadd.s32 %s179, 1
    %s181 = scalar_select %p178, %s179, %s180
    %p184 = pneg %p178
    %p185 = scmp.eq.s32.totalorder %s12, 7
    %p186 = por %p184, %p185
    %p187 = scmp.ne.s32.totalorder %s179, %s182
    %p188 = scmp.eq.s32.totalorder %s12, 0
    %p189 = por %p187, %p188
    %p190 = scmp.ne.s32.totalorder %s179, %s182
    %p191 = scmp.eq.s32.totalorder %s17, 7
    %p192 = por %p190, %p191
    %p193 = scmp.ne.s32.totalorder %s182, %s183
    %p194 = scmp.eq.s32.totalorder %s17, 0
    %p195 = por %p193, %p194
    %p196 = scmp.ne.s32.totalorder %s182, %s183
    %p197 = scmp.eq.s32.totalorder %s18, 7
    %p198 = por %p196, %p197
    %p200 = scmp.ne.s32.totalorder %s183, %s199
    %p201 = scmp.eq.s32.totalorder %s18, 0
    %p202 = por %p200, %p201
    %p203 = scmp.le.s32.totalorder 1, %s12
    %p204 = scmp.lt.s32.totalorder %s12, 9
    %p205 = pnand %p203, %p204
    %p206 = pneg %p205
    // Predicated region
    $region9: #{normal_cell_forward.9} parent=5 // pred_check
      _
    $region10: #{normal_cell_forward.9} parent=5 // pred_check_branch
      %208 = sbr.rel (%p205) target = $region12
    $region11: #{normal_cell_forward.9} parent=5 // pred_region
      %s209 = ssub.s32 %s12, 1
      // Predicated region
      $region13: #{normal_cell_forward.9} parent=11 // pred_check
        %p210 = pneg %p101
      $region14: #{normal_cell_forward.9} parent=11 // pred_check_branch
        %212 = sbr.rel (%p210) target = $region16
      $region15: #{normal_cell_forward.9} parent=11 // pred_region
        _
      $region16: #{normal_cell_forward.9} parent=11 // pred_fallthru
        _
      // Predicated region
      $region17: #{normal_cell_forward.9} parent=11 // pred_check
        %p213 = pneg %p122
      $region18: #{normal_cell_forward.9} parent=11 // pred_check_branch
        %215 = sbr.rel (%p213) target = $region20
      $region19: #{normal_cell_forward.9} parent=11 // pred_region
        _
      $region20: #{normal_cell_forward.9} parent=11 // pred_fallthru
        _
      // Predicated region
      $region21: #{normal_cell_forward.9} parent=11 // pred_check
        %p216 = pneg %p143
      $region22: #{normal_cell_forward.9} parent=11 // pred_check_branch
        %218 = sbr.rel (%p216) target = $region24
      $region23: #{normal_cell_forward.9} parent=11 // pred_region
        _
      $region24: #{normal_cell_forward.9} parent=11 // pred_fallthru
        _
    $region12: #{normal_cell_forward.9} parent=5 // pred_fallthru
      _
    %p219 = scmp.lt.s32.totalorder %s12, 8
    // Predicated region
    $region25: #{normal_cell_forward.9} parent=5 // pred_check
      %p220 = pneg %p219
    $region26: #{normal_cell_forward.9} parent=5 // pred_check_branch
      %222 = sbr.rel (%p220) target = $region28
    $region27: #{normal_cell_forward.9} parent=5 // pred_region
      // Predicated region
      $region29: #{normal_cell_forward.9} parent=27 // pred_check
        %p223 = pneg %p46
      $region30: #{normal_cell_forward.9} parent=27 // pred_check_branch
        %225 = sbr.rel (%p223) target = $region32
      $region31: #{normal_cell_forward.9} parent=27 // pred_region
        %p226 = scmp.lt.s32.totalorder %s19, 1
        %s227 = scalar_select %p226, %s19, 1
        %p228 = scmp.lt.s32.totalorder %s20, 3
        %s229 = scalar_select %p228, %s20, 3
        %s230 = smul.addr %s229, 8
        %s231 = smul.addr %s227, 32
        %s232 = sadd.s32 %s230, %s231
        %s233 = smul.addr %s232, 4
        %s234 = scalar_lea.vmem %s0, %s233
      $region32: #{normal_cell_forward.9} parent=27 // pred_fallthru
        _
      // Predicated region
      $region33: #{normal_cell_forward.9} parent=27 // pred_check
        %p235 = pneg %p74
      $region34: #{normal_cell_forward.9} parent=27 // pred_check_branch
        %237 = sbr.rel (%p235) target = $region36
      $region35: #{normal_cell_forward.9} parent=27 // pred_region
        %p238 = scmp.lt.s32.totalorder %s19, 1
        %s239 = scalar_select %p238, %s19, 1
        %p240 = scmp.lt.s32.totalorder %s20, 3
        %s241 = scalar_select %p240, %s20, 3
        %s242 = smul.addr %s241, 8
        %s243 = smul.addr %s239, 32
        %s244 = sadd.s32 %s242, %s243
        %s245 = smul.addr %s244, 4
        %s246 = scalar_lea.vmem %s1, %s245
      $region36: #{normal_cell_forward.9} parent=27 // pred_fallthru
        _
      // Predicated region
      $region37: #{normal_cell_forward.9} parent=27 // pred_check
        %p247 = pneg %p163
      $region38: #{normal_cell_forward.9} parent=27 // pred_check_branch
        %249 = sbr.rel (%p247) target = $region40
      $region39: #{normal_cell_forward.9} parent=27 // pred_region
        %p250 = scmp.lt.s32.totalorder %s19, 1
        %s251 = scalar_select %p250, %s19, 1
        %s252 = smul.addr %s251, 8
        %s253 = smul.addr %s252, 8
        %s254 = scalar_lea.vmem %s5, %s253
      $region40: #{normal_cell_forward.9} parent=27 // pred_fallthru
        _
    $region28: #{normal_cell_forward.9} parent=5 // pred_fallthru
      _
    %p255 = scmp.le.s32.totalorder 1, %s12
    %p256 = scmp.lt.s32.totalorder %s12, 9
    %p257 = pnand %p255, %p256
    %p258 = pneg %p257
    // Predicated region
    $region41: #{normal_cell_forward.9} parent=5 // pred_check
      _
    $region42: #{normal_cell_forward.9} parent=5 // pred_check_branch
      %260 = sbr.rel (%p257) target = $region44
    $region43: #{normal_cell_forward.9} parent=5 // pred_region
      %s261 = ssub.s32 %s12, 1
      %p262 = scmp.lt.s32.totalorder %s21, 1
      %s263 = scalar_select %p262, %s21, 1
      %p264 = scmp.lt.s32.totalorder %s22, 3
      %s265 = scalar_select %p264, %s22, 3
      %s266 = smul.addr %s265, 8
      %s267 = smul.addr %s263, 32
      %s268 = sadd.s32 %s266, %s267
      %s269 = smul.addr %s268, 4
      %s270 = scalar_lea.vmem %s0, %s269
      %p271 = pneg %p52
      %p272 = pneg %p49
      %p273 = scmp.lt.s32.totalorder %s21, 1
      %s274 = scalar_select %p273, %s21, 1
      %p275 = scmp.lt.s32.totalorder %s22, 3
      %s276 = scalar_select %p275, %s22, 3
      %s277 = smul.addr %s276, 8
      %s278 = smul.addr %s274, 32
      %s279 = sadd.s32 %s277, %s278
      %s280 = smul.addr %s279, 4
      %s281 = scalar_lea.vmem %s1, %s280
      %p282 = pneg %p80
      %p283 = pneg %p77
      %p284 = pneg %p101
      %p285 = pneg %p98
      %p286 = pneg %p122
      %p287 = pneg %p119
      %p288 = pneg %p143
      %p289 = pneg %p140
      %p290 = scmp.lt.s32.totalorder %s21, 1
      %s291 = scalar_select %p290, %s21, 1
      %s292 = smul.addr %s291, 8
      %s293 = smul.addr %s292, 8
      %s294 = scalar_lea.vmem %s5, %s293
      %p295 = pneg %p169
      %p296 = pneg %p166
      %p297 = pneg %p195
      %p298 = pneg %p192
      %p299 = scmp.lt.s32.totalorder %s21, 1
      %s300 = scalar_select %p299, %s21, 1
      %s301 = smul.addr %s300, 8
      %s302 = smul.addr %s301, 8
      %s303 = scalar_lea.vmem %s6, %s302
      %p304 = scmp.lt.s32.totalorder %s21, 1
      %s305 = scalar_select %p304, %s21, 1
      %p306 = scmp.lt.s32.totalorder %s22, 3
      %s307 = scalar_select %p306, %s22, 3
      %s308 = smul.addr %s307, 8
      %s309 = smul.addr %s305, 32
      %s310 = sadd.s32 %s308, %s309
      %s311 = smul.addr %s310, 4
      %s312 = scalar_lea.vmem %s0, %s311
      %p313 = scmp.lt.s32.totalorder %s21, 1
      %s314 = scalar_select %p313, %s21, 1
      %p315 = scmp.lt.s32.totalorder %s22, 3
      %s316 = scalar_select %p315, %s22, 3
      %s317 = smul.addr %s316, 8
      %s318 = smul.addr %s314, 32
      %s319 = sadd.s32 %s317, %s318
      %s320 = smul.addr %s319, 4
      %s321 = scalar_lea.vmem %s1, %s320
      %p322 = scmp.lt.s32.totalorder %s21, 1
      %s323 = scalar_select %p322, %s21, 1
      %s324 = smul.addr %s323, 8
      %s325 = smul.addr %s324, 8
      %s326 = scalar_lea.vmem %s5, %s325
      %p327 = scmp.lt.s32.totalorder %s21, 1
      %s328 = scalar_select %p327, %s21, 1
      %s329 = smul.addr %s328, 8
      %s330 = smul.addr %s329, 8
      %s331 = scalar_lea.vmem %s6, %s330
      %v333 = vld [vmem:[%s312] sm:$0xf]
      %v334 = vld [vmem:[%s312 + $0x4] sm:$0xf]
      %v335 = vld [vmem:[%s312 + $0x8] sm:$0xf]
      %v336 = vld [vmem:[%s312 + $0xc] sm:$0xf]
      %v337 = vld [vmem:[%s312 + $0x10] sm:$0xf]
      %v338 = vld [vmem:[%s312 + $0x14] sm:$0xf]
      %v339 = vld [vmem:[%s312 + $0x18] sm:$0xf]
      %v340 = vld [vmem:[%s312 + $0x1c] sm:$0xf]
      %v341 = vld [vmem:[%s321] sm:$0xf]
      %v342 = vld [vmem:[%s321 + $0x4] sm:$0xf]
      %v343 = vld [vmem:[%s321 + $0x8] sm:$0xf]
      %v344 = vld [vmem:[%s321 + $0xc] sm:$0xf]
      %v345 = vld [vmem:[%s321 + $0x10] sm:$0xf]
      %v346 = vld [vmem:[%s321 + $0x14] sm:$0xf]
      %v347 = vld [vmem:[%s321 + $0x18] sm:$0xf]
      %v348 = vld [vmem:[%s321 + $0x1c] sm:$0xf]
      %v349 = vld [vmem:[%s312] sm:$0xf]
      %v350 = vld [vmem:[%s312 + $0x4] sm:$0xf]
      %v351 = vld [vmem:[%s312 + $0x8] sm:$0xf]
      %v352 = vld [vmem:[%s312 + $0xc] sm:$0xf]
      %v353 = vld [vmem:[%s312 + $0x10] sm:$0xf]
      %v354 = vld [vmem:[%s312 + $0x14] sm:$0xf]
      %v355 = vld [vmem:[%s312 + $0x18] sm:$0xf]
      %v356 = vld [vmem:[%s312 + $0x1c] sm:$0xf]
      %v357 = vld [vmem:[%s2] sm:$0xf]
      %v358 = vld [vmem:[%s2 + $0x4] sm:$0xf]
      %v359 = vld [vmem:[%s2 + $0x8] sm:$0xf]
      %v360 = vld [vmem:[%s2 + $0xc] sm:$0xf]
      %v361 = vld [vmem:[%s2 + $0x10] sm:$0xf]
      %v362 = vld [vmem:[%s2 + $0x14] sm:$0xf]
      %v363 = vld [vmem:[%s2 + $0x18] sm:$0xf]
      %v364 = vld [vmem:[%s2 + $0x1c] sm:$0xf]
      %v373 = vunpack.c.l.b16 %v341
      %v374 = vunpack.c.l.b16 %v342
      %v375 = vunpack.c.l.b16 %v343
      %v376 = vunpack.c.l.b16 %v344
      %v377 = vunpack.c.l.b16 %v345
      %v378 = vunpack.c.l.b16 %v346
      %v379 = vunpack.c.l.b16 %v347
      %v380 = vunpack.c.l.b16 %v348
      %v381 = vpack.c.b16 %v374, %v373
      %v382 = vpack.c.b16 %v376, %v375
      %v383 = vpack.c.b16 %v378, %v377
      %v384 = vpack.c.b16 %v380, %v379
      %v393 = vunpack.c.l.b16 %v357
      %v394 = vunpack.c.l.b16 %v358
      %v395 = vunpack.c.l.b16 %v359
      %v396 = vunpack.c.l.b16 %v360
      %v397 = vunpack.c.l.b16 %v361
      %v398 = vunpack.c.l.b16 %v362
      %v399 = vunpack.c.l.b16 %v363
      %v400 = vunpack.c.l.b16 %v364
      %v401 = vpack.c.b16 %v394, %v393
      %v402 = vpack.c.b16 %v396, %v395
      %v403 = vpack.c.b16 %v398, %v397
      %v404 = vpack.c.b16 %v400, %v399
      %vm405 = vcmask 130048
      %v407 = vsel %vm405, %v381, 0
      %v410 = vsel %vm405, %v382, 0
      %v413 = vsel %vm405, %v383, 0
      %v416 = vsel %vm405, %v384, 0
      %v419 = vsel %vm405, %v401, 0
      %v422 = vsel %vm405, %v402, 0
      %v425 = vsel %vm405, %v403, 0
      %v428 = vsel %vm405, %v404, 0
      %430 = vmatprep.subr.bf16.mxu0 0
      %431 = vmatpush1.bf16.xpose.msra.mxu0 %v419
      %432 = vmatprep.subr.bf16.mxu0 0
      %433 = vmatpush1.bf16.xpose.msra.mxu0 %v422
      %434 = vmatprep.subr.bf16.mxu0 0
      %435 = vmatpush1.bf16.xpose.msra.mxu0 %v425
      %436 = vmatprep.subr.bf16.mxu0 0
      %437 = vmatpush1.bf16.xpose.msra.mxu0 %v428
      %438 = vmatprep.subr.bf16.mxu0 0
      %439 = vmatpush1.bf16.xpose.msra.mxu0 0
      %440 = vmatprep.subr.bf16.mxu0 0
      %441 = vmatpush1.bf16.xpose.msra.mxu0 0
      %442 = vmatprep.subr.bf16.mxu0 0
      %443 = vmatpush1.bf16.xpose.msra.mxu0 0
      %444 = vmatprep.subr.bf16.mxu0 0
      %445 = vmatpush1.bf16.xpose.msra.mxu0 0
      %446 = vmatprep.subr.bf16.mxu0 0
      %447 = vmatpush1.bf16.xpose.msra.mxu0 0
      %448 = vmatprep.subr.bf16.mxu0 0
      %449 = vmatpush1.bf16.xpose.msra.mxu0 0
      %450 = vmatprep.subr.bf16.mxu0 0
      %451 = vmatpush1.bf16.xpose.msra.mxu0 0
      %452 = vmatprep.subr.bf16.mxu0 0
      %453 = vmatpush1.bf16.xpose.msra.mxu0 0
      %454 = vmatprep.subr.bf16.mxu0 0
      %455 = vmatpush1.bf16.xpose.msra.mxu0 0
      %456 = vmatprep.subr.bf16.mxu0 0
      %457 = vmatpush1.bf16.xpose.msra.mxu0 0
      %458 = vmatprep.subr.bf16.mxu0 0
      %459 = vmatpush1.bf16.xpose.msra.mxu0 0
      %460 = vmatprep.subr.bf16.mxu0 0
      %461 = vmatpush1.bf16.xpose.msra.mxu0 0
      %462 = vmatprep.mubr.bf16.mxu0 0
      %463 = vmatmul.mubr.bf16.gmra.mrb[0].mxu0 %v407
      %v464 = vpop.f32.mrb[0].mxu0
      %v465 = vadd.f32 0.0, %v464
      %v466 = vpop.f32.mrb[0].mxu0
      %v467 = vpop.f32.mrb[0].mxu0
      %v468 = vadd.f32 0.0, %v467
      %v469 = vpop.f32.mrb[0].mxu0
      %470 = vmatprep.mubr.bf16.mxu0 0
      %471 = vmatmul.mubr.bf16.gmra.mrb[0].mxu0 %v410
      %v472 = vpop.f32.mrb[0].mxu0
      %v473 = vadd.f32 0.0, %v472
      %v474 = vpop.f32.mrb[0].mxu0
      %v475 = vpop.f32.mrb[0].mxu0
      %v476 = vadd.f32 0.0, %v475
      %v477 = vpop.f32.mrb[0].mxu0
      %478 = vmatprep.mubr.bf16.mxu0 0
      %479 = vmatmul.mubr.bf16.gmra.mrb[0].mxu0 %v413
      %v480 = vpop.f32.mrb[0].mxu0
      %v481 = vadd.f32 0.0, %v480
      %v482 = vpop.f32.mrb[0].mxu0
      %v483 = vpop.f32.mrb[0].mxu0
      %v484 = vadd.f32 0.0, %v483
      %v485 = vpop.f32.mrb[0].mxu0
      %486 = vmatprep.mubr.bf16.mxu0 0
      %487 = vmatmul.mubr.bf16.gmra.mrb[0].mxu0 %v416
      %v488 = vpop.f32.mrb[0].mxu0
      %v489 = vadd.f32 0.0, %v488
      %v490 = vpop.f32.mrb[0].mxu0
      %v491 = vpop.f32.mrb[0].mxu0
      %v492 = vadd.f32 0.0, %v491
      %v493 = vpop.f32.mrb[0].mxu0
      %494 = vdwg.mxu0
      %v503 = vunpack.c.l.b16 %v333
      %v504 = vunpack.c.l.b16 %v334
      %v505 = vunpack.c.l.b16 %v335
      %v506 = vunpack.c.l.b16 %v336
      %v507 = vunpack.c.l.b16 %v337
      %v508 = vunpack.c.l.b16 %v338
      %v509 = vunpack.c.l.b16 %v339
      %v510 = vunpack.c.l.b16 %v340
      %v511 = vpack.c.b16 %v504, %v503
      %v512 = vpack.c.b16 %v506, %v505
      %v513 = vpack.c.b16 %v508, %v507
      %v514 = vpack.c.b16 %v510, %v509
      %v523 = vunpack.c.l.b16 %v349
      %v524 = vunpack.c.l.b16 %v350
      %v525 = vunpack.c.l.b16 %v351
      %v526 = vunpack.c.l.b16 %v352
      %v527 = vunpack.c.l.b16 %v353
      %v528 = vunpack.c.l.b16 %v354
      %v529 = vunpack.c.l.b16 %v355
      %v530 = vunpack.c.l.b16 %v356
      %v531 = vpack.c.b16 %v524, %v523
      %v532 = vpack.c.b16 %v526, %v525
      %v533 = vpack.c.b16 %v528, %v527
      %v534 = vpack.c.b16 %v530, %v529
      %535 = vrot.lane.b32.xlu0 %v531, 120
      %v536 = vpop.permute.xlu0 %535
      %537 = vrot.lane.b32.xlu0 %v532, 120
      %v538 = vpop.permute.xlu0 %537
      %539 = vrot.lane.b32.xlu0 %v533, 120
      %v540 = vpop.permute.xlu0 %539
      %541 = vrot.lane.b32.xlu0 %v534, 120
      %v542 = vpop.permute.xlu0 %541
      %vm543 = vcmask 64512
      %v545 = vsel %vm543, %v511, 0
      %v548 = vsel %vm543, %v512, 0
      %v551 = vsel %vm543, %v513, 0
      %v554 = vsel %vm543, %v514, 0
      %v557 = vsel %vm543, %v536, 0
      %v560 = vsel %vm543, %v538, 0
      %v563 = vsel %vm543, %v540, 0
      %v566 = vsel %vm543, %v542, 0
      %568 = vmatprep.subr.bf16.mxu0 0
      %569 = vmatpush1.bf16.xpose.msra.mxu0 %v557
      %570 = vmatprep.subr.bf16.mxu0 0
      %571 = vmatpush1.bf16.xpose.msra.mxu0 %v560
      %572 = vmatprep.subr.bf16.mxu0 0
      %573 = vmatpush1.bf16.xpose.msra.mxu0 %v563
      %574 = vmatprep.subr.bf16.mxu0 0
      %575 = vmatpush1.bf16.xpose.msra.mxu0 %v566
      %576 = vmatprep.subr.bf16.mxu0 0
      %577 = vmatpush1.bf16.xpose.msra.mxu0 0
      %578 = vmatprep.subr.bf16.mxu0 0
      %579 = vmatpush1.bf16.xpose.msra.mxu0 0
      %580 = vmatprep.subr.bf16.mxu0 0
      %581 = vmatpush1.bf16.xpose.msra.mxu0 0
      %582 = vmatprep.subr.bf16.mxu0 0
      %583 = vmatpush1.bf16.xpose.msra.mxu0 0
      %584 = vmatprep.subr.bf16.mxu0 0
      %585 = vmatpush1.bf16.xpose.msra.mxu0 0
      %586 = vmatprep.subr.bf16.mxu0 0
      %587 = vmatpush1.bf16.xpose.msra.mxu0 0
      %588 = vmatprep.subr.bf16.mxu0 0
      %589 = vmatpush1.bf16.xpose.msra.mxu0 0
      %590 = vmatprep.subr.bf16.mxu0 0
      %591 = vmatpush1.bf16.xpose.msra.mxu0 0
      %592 = vmatprep.subr.bf16.mxu0 0
      %593 = vmatpush1.bf16.xpose.msra.mxu0 0
      %594 = vmatprep.subr.bf16.mxu0 0
      %595 = vmatpush1.bf16.xpose.msra.mxu0 0
      %596 = vmatprep.subr.bf16.mxu0 0
      %597 = vmatpush1.bf16.xpose.msra.mxu0 0
      %598 = vmatprep.subr.bf16.mxu0 0
      %599 = vmatpush1.bf16.xpose.msra.mxu0 0
      %600 = vmatprep.mubr.bf16.mxu0 0
      %601 = vmatmul.mubr.bf16.gmra.mrb[0].mxu0 %v545
      %v602 = vpop.f32.mrb[0].mxu0
      %v603 = vadd.f32 %v465, %v602
      %v604 = vpop.f32.mrb[0].mxu0
      %v605 = vpop.f32.mrb[0].mxu0
      %v606 = vadd.f32 %v468, %v605
      %v607 = vpop.f32.mrb[0].mxu0
      %608 = vmatprep.mubr.bf16.mxu0 0
      %609 = vmatmul.mubr.bf16.gmra.mrb[0].mxu0 %v548
      %v610 = vpop.f32.mrb[0].mxu0
      %v611 = vadd.f32 %v473, %v610
      %v612 = vpop.f32.mrb[0].mxu0
      %v613 = vpop.f32.mrb[0].mxu0
      %v614 = vadd.f32 %v476, %v613
      %v615 = vpop.f32.mrb[0].mxu0
      %616 = vmatprep.mubr.bf16.mxu0 0
      %617 = vmatmul.mubr.bf16.gmra.mrb[0].mxu0 %v551
      %v618 = vpop.f32.mrb[0].mxu0
      %v619 = vadd.f32 %v481, %v618
      %v620 = vpop.f32.mrb[0].mxu0
      %v621 = vpop.f32.mrb[0].mxu0
      %v622 = vadd.f32 %v484, %v621
      %v623 = vpop.f32.mrb[0].mxu0
      %624 = vmatprep.mubr.bf16.mxu0 0
      %625 = vmatmul.mubr.bf16.gmra.mrb[0].mxu0 %v554
      %v626 = vpop.f32.mrb[0].mxu0
      %v627 = vadd.f32 %v489, %v626
      %v628 = vpop.f32.mrb[0].mxu0
      %v629 = vpop.f32.mrb[0].mxu0
      %v630 = vadd.f32 %v492, %v629
      %v631 = vpop.f32.mrb[0].mxu0
      %632 = vdwg.mxu0
      %vm633 = vcmask 523264
      %v634 = vsel %vm633, %v603, -inf
      %635 = vmax.xlane.f32.xlu0 %v634
      %v636 = vpop.xlane.xlu0 %635
      %v637 = vsel %vm633, %v606, -inf
      %638 = vmax.xlane.f32.xlu0 %v637
      %v639 = vpop.xlane.xlu0 %638
      %v640 = vsel %vm633, %v611, -inf
      %641 = vmax.xlane.f32.xlu0 %v640
      %v642 = vpop.xlane.xlu0 %641
      %v643 = vsel %vm633, %v614, -inf
      %644 = vmax.xlane.f32.xlu0 %v643
      %v645 = vpop.xlane.xlu0 %644
      %v646 = vsel %vm633, %v619, -inf
      %647 = vmax.xlane.f32.xlu0 %v646
      %v648 = vpop.xlane.xlu0 %647
      %v649 = vsel %vm633, %v622, -inf
      %650 = vmax.xlane.f32.xlu0 %v649
      %v651 = vpop.xlane.xlu0 %650
      %v652 = vsel %vm633, %v627, -inf
      %653 = vmax.xlane.f32.xlu0 %v652
      %v654 = vpop.xlane.xlu0 %653
      %v655 = vsel %vm633, %v630, -inf
      %656 = vmax.xlane.f32.xlu0 %v655
      %v657 = vpop.xlane.xlu0 %656
      %v658 = vsub.f32 -inf, %v636
      %v659 = vsub.f32 -inf, %v639
      %v660 = vsub.f32 -inf, %v642
      %v661 = vsub.f32 -inf, %v645
      %v662 = vsub.f32 -inf, %v648
      %v663 = vsub.f32 -inf, %v651
      %v664 = vsub.f32 -inf, %v654
      %v665 = vsub.f32 -inf, %v657
      %v666 = vmul.f32 %v658, 1.442695
      %v667 = vpow.pop %v666
      %v668 = vmul.f32 %v659, 1.442695
      %v669 = vpow.pop %v668
      %v670 = vmul.f32 %v660, 1.442695
      %v671 = vpow.pop %v670
      %v672 = vmul.f32 %v661, 1.442695
      %v673 = vpow.pop %v672
      %v674 = vmul.f32 %v662, 1.442695
      %v675 = vpow.pop %v674
      %v676 = vmul.f32 %v663, 1.442695
      %v677 = vpow.pop %v676
      %v678 = vmul.f32 %v664, 1.442695
      %v679 = vpow.pop %v678
      %v680 = vmul.f32 %v665, 1.442695
      %v681 = vpow.pop %v680
      %v682 = vsub.f32 %v603, %v636
      %v683 = vsub.f32 %v606, %v639
      %v684 = vsub.f32 %v611, %v642
      %v685 = vsub.f32 %v614, %v645
      %v686 = vsub.f32 %v619, %v648
      %v687 = vsub.f32 %v622, %v651
      %v688 = vsub.f32 %v627, %v654
      %v689 = vsub.f32 %v630, %v657
      %v690 = vmul.f32 %v682, 1.442695
      %v691 = vpow.pop %v690
      %v692 = vmul.f32 %v683, 1.442695
      %v693 = vpow.pop %v692
      %v694 = vmul.f32 %v684, 1.442695
      %v695 = vpow.pop %v694
      %v696 = vmul.f32 %v685, 1.442695
      %v697 = vpow.pop %v696
      %v698 = vmul.f32 %v686, 1.442695
      %v699 = vpow.pop %v698
      %v700 = vmul.f32 %v687, 1.442695
      %v701 = vpow.pop %v700
      %v702 = vmul.f32 %v688, 1.442695
      %v703 = vpow.pop %v702
      %v704 = vmul.f32 %v689, 1.442695
      %v705 = vpow.pop %v704
      %v706 = vmul.f32 %v667, 0.0
      %v707 = vmul.f32 %v669, 0.0
      %v708 = vmul.f32 %v671, 0.0
      %v709 = vmul.f32 %v673, 0.0
      %v710 = vmul.f32 %v675, 0.0
      %v711 = vmul.f32 %v677, 0.0
      %v712 = vmul.f32 %v679, 0.0
      %v713 = vmul.f32 %v681, 0.0
      %v714 = vsel %vm633, %v691, 0.0
      %715 = vadd.xlane.f32.xlu0 %v714
      %v716 = vpop.xlane.xlu0 %715
      %v717 = vsel %vm633, %v693, 0.0
      %718 = vadd.xlane.f32.xlu0 %v717
      %v719 = vpop.xlane.xlu0 %718
      %v720 = vsel %vm633, %v695, 0.0
      %721 = vadd.xlane.f32.xlu0 %v720
      %v722 = vpop.xlane.xlu0 %721
      %v723 = vsel %vm633, %v697, 0.0
      %724 = vadd.xlane.f32.xlu0 %v723
      %v725 = vpop.xlane.xlu0 %724
      %v726 = vsel %vm633, %v699, 0.0
      %727 = vadd.xlane.f32.xlu0 %v726
      %v728 = vpop.xlane.xlu0 %727
      %v729 = vsel %vm633, %v701, 0.0
      %730 = vadd.xlane.f32.xlu0 %v729
      %v731 = vpop.xlane.xlu0 %730
      %v732 = vsel %vm633, %v703, 0.0
      %733 = vadd.xlane.f32.xlu0 %v732
      %v734 = vpop.xlane.xlu0 %733
      %v735 = vsel %vm633, %v705, 0.0
      %736 = vadd.xlane.f32.xlu0 %v735
      %v737 = vpop.xlane.xlu0 %736
      %v738 = vadd.f32 %v706, %v716
      %v739 = vadd.f32 %v707, %v719
      %v740 = vadd.f32 %v708, %v722
      %v741 = vadd.f32 %v709, %v725
      %v742 = vadd.f32 %v710, %v728
      %v743 = vadd.f32 %v711, %v731
      %v744 = vadd.f32 %v712, %v734
      %v745 = vadd.f32 %v713, %v737
      %v746 = vpack.c.bf16 %v693, %v691
      %v747 = vpack.c.bf16 %v697, %v695
      %v748 = vpack.c.bf16 %v701, %v699
      %v749 = vpack.c.bf16 %v705, %v703
      %750 = vrot.lane.b32.xlu0 %v531, 112
      %v751 = vpop.permute.xlu0 %750
      %752 = vrot.lane.b32.xlu0 %v532, 112
      %v753 = vpop.permute.xlu0 %752
      %754 = vrot.lane.b32.xlu0 %v533, 112
      %v755 = vpop.permute.xlu0 %754
      %756 = vrot.lane.b32.xlu0 %v534, 112
      %v757 = vpop.permute.xlu0 %756
      %v763 = vsel %vm633, %v746, 0
      %v766 = vsel %vm633, %v747, 0
      %v769 = vsel %vm633, %v748, 0
      %v772 = vsel %vm633, %v749, 0
      %774 = vmatprep.subr.bf16.mxu0 0
      %775 = vmatpush1.bf16.msra.mxu0 %v751
      %776 = vmatprep.subr.bf16.mxu0 0
      %777 = vmatpush1.bf16.msra.mxu0 %v753
      %778 = vmatprep.subr.bf16.mxu0 0
      %779 = vmatpush1.bf16.msra.mxu0 %v755
      %780 = vmatprep.subr.bf16.mxu0 0
      %781 = vmatpush1.bf16.msra.mxu0 %v757
      %782 = vmatprep.subr.bf16.mxu0 0
      %783 = vmatpush1.bf16.msra.mxu0 0
      %784 = vmatprep.subr.bf16.mxu0 0
      %785 = vmatpush1.bf16.msra.mxu0 0
      %786 = vmatprep.subr.bf16.mxu0 0
      %787 = vmatpush1.bf16.msra.mxu0 0
      %788 = vmatprep.subr.bf16.mxu0 0
      %789 = vmatpush1.bf16.msra.mxu0 0
      %790 = vmatprep.subr.bf16.mxu0 0
      %791 = vmatpush1.bf16.msra.mxu0 0
      %792 = vmatprep.subr.bf16.mxu0 0
      %793 = vmatpush1.bf16.msra.mxu0 0
      %794 = vmatprep.subr.bf16.mxu0 0
      %795 = vmatpush1.bf16.msra.mxu0 0
      %796 = vmatprep.subr.bf16.mxu0 0
      %797 = vmatpush1.bf16.msra.mxu0 0
      %798 = vmatprep.subr.bf16.mxu0 0
      %799 = vmatpush1.bf16.msra.mxu0 0
      %800 = vmatprep.subr.bf16.mxu0 0
      %801 = vmatpush1.bf16.msra.mxu0 0
      %802 = vmatprep.subr.bf16.mxu0 0
      %803 = vmatpush1.bf16.msra.mxu0 0
      %804 = vmatprep.subr.bf16.mxu0 0
      %805 = vmatpush1.bf16.msra.mxu0 0
      %806 = vmatprep.mubr.bf16.mxu0 0
      %807 = vmatmul.mubr.bf16.gmra.mrb[0].mxu0 %v763
      %v808 = vpop.f32.mrb[0].mxu0
      %v809 = vadd.f32 0.0, %v808
      %v810 = vpop.f32.mrb[0].mxu0
      %v811 = vpop.f32.mrb[0].mxu0
      %v812 = vadd.f32 0.0, %v811
      %v813 = vpop.f32.mrb[0].mxu0
      %814 = vmatprep.mubr.bf16.mxu0 0
      %815 = vmatmul.mubr.bf16.gmra.mrb[0].mxu0 %v766
      %v816 = vpop.f32.mrb[0].mxu0
      %v817 = vadd.f32 0.0, %v816
      %v818 = vpop.f32.mrb[0].mxu0
      %v819 = vpop.f32.mrb[0].mxu0
      %v820 = vadd.f32 0.0, %v819
      %v821 = vpop.f32.mrb[0].mxu0
      %822 = vmatprep.mubr.bf16.mxu0 0
      %823 = vmatmul.mubr.bf16.gmra.mrb[0].mxu0 %v769
      %v824 = vpop.f32.mrb[0].mxu0
      %v825 = vadd.f32 0.0, %v824
      %v826 = vpop.f32.mrb[0].mxu0
      %v827 = vpop.f32.mrb[0].mxu0
      %v828 = vadd.f32 0.0, %v827
      %v829 = vpop.f32.mrb[0].mxu0
      %830 = vmatprep.mubr.bf16.mxu0 0
      %831 = vmatmul.mubr.bf16.gmra.mrb[0].mxu0 %v772
      %v832 = vpop.f32.mrb[0].mxu0
      %v833 = vadd.f32 0.0, %v832
      %v834 = vpop.f32.mrb[0].mxu0
      %v835 = vpop.f32.mrb[0].mxu0
      %v836 = vadd.f32 0.0, %v835
      %v837 = vpop.f32.mrb[0].mxu0
      %838 = vdwg.mxu0
      %v839 = vadd.f32 %v706, %v809
      %v840 = vadd.f32 %v707, %v812
      %v841 = vadd.f32 %v708, %v817
      %v842 = vadd.f32 %v709, %v820
      %v843 = vadd.f32 %v710, %v825
      %v844 = vadd.f32 %v711, %v828
      %v845 = vadd.f32 %v712, %v833
      %v846 = vadd.f32 %v713, %v836
      %v847 = vrcp.pop %v738
      %v848 = vmul.f32 %v839, %v847
      %v849 = vrcp.pop %v739
      %v850 = vmul.f32 %v840, %v849
      %v851 = vrcp.pop %v740
      %v852 = vmul.f32 %v841, %v851
      %v853 = vrcp.pop %v741
      %v854 = vmul.f32 %v842, %v853
      %v855 = vrcp.pop %v742
      %v856 = vmul.f32 %v843, %v855
      %v857 = vrcp.pop %v743
      %v858 = vmul.f32 %v844, %v857
      %v859 = vrcp.pop %v744
      %v860 = vmul.f32 %v845, %v859
      %v861 = vrcp.pop %v745
      %v862 = vmul.f32 %v846, %v861
      %v863 = vpack.c.bf16 %v850, %v848
      %v864 = vpack.c.bf16 %v854, %v852
      %v865 = vpack.c.bf16 %v858, %v856
      %v866 = vpack.c.bf16 %v862, %v860
      %s867 = smul.u32 %s22, 4
      %s868 = smul.addr %s867, 8
      %s869 = scalar_lea.vmem [#allocation2], %s868
      %870 = vst.msk [vmem:[%s869] sm:$0xff] %vm543, %v863
      %871 = vst.msk [vmem:[%s869 + $0x8] sm:$0xff] %vm543, %v864
      %872 = vst.msk [vmem:[%s869 + $0x10] sm:$0xff] %vm543, %v865
      %873 = vst.msk [vmem:[%s869 + $0x18] sm:$0xff] %vm543, %v866
      %p874 = scmp.eq.s32.totalorder %s22, 3
      // Predicated region
      $region45: #{normal_cell_forward.9} parent=43 // pred_check
        %p875 = pneg %p874
      $region46: #{normal_cell_forward.9} parent=43 // pred_check_branch
        %877 = sbr.rel (%p875) target = $region48
      $region47: #{normal_cell_forward.9} parent=43 // pred_region
        %v878 = vld [vmem:[#allocation2] sm:$0xff]
        %v879 = vld [vmem:[#allocation2 + $0x8] sm:$0xff]
        %v880 = vld [vmem:[#allocation2 + $0x10] sm:$0xff]
        %v881 = vld [vmem:[#allocation2 + $0x18] sm:$0xff]
        %s882 = scalar_lea.vmem [#allocation2], 32
        %v883 = vld [vmem:[%s882] sm:$0xff]
        %v884 = vld [vmem:[%s882 + $0x8] sm:$0xff]
        %v885 = vld [vmem:[%s882 + $0x10] sm:$0xff]
        %v886 = vld [vmem:[%s882 + $0x18] sm:$0xff]
        %s887 = scalar_lea.vmem [#allocation2], 64
        %v888 = vld [vmem:[%s887] sm:$0xff]
        %v889 = vld [vmem:[%s887 + $0x8] sm:$0xff]
        %v890 = vld [vmem:[%s887 + $0x10] sm:$0xff]
        %v891 = vld [vmem:[%s887 + $0x18] sm:$0xff]
        %s892 = scalar_lea.vmem [#allocation2], 96
        %v893 = vld [vmem:[%s892] sm:$0xff]
        %v894 = vld [vmem:[%s892 + $0x8] sm:$0xff]
        %v895 = vld [vmem:[%s892 + $0x10] sm:$0xff]
        %v896 = vld [vmem:[%s892 + $0x18] sm:$0xff]
        %901 = vrot.lane.b32.xlu0 %v883, 8
        %v902 = vpop.permute.xlu0 %901
        %903 = vrot.lane.b32.xlu0 %v884, 8
        %v904 = vpop.permute.xlu0 %903
        %905 = vrot.lane.b32.xlu0 %v885, 8
        %v906 = vpop.permute.xlu0 %905
        %907 = vrot.lane.b32.xlu0 %v886, 8
        %v908 = vpop.permute.xlu0 %907
        %913 = vrot.lane.b32.xlu0 %v888, 16
        %v914 = vpop.permute.xlu0 %913
        %915 = vrot.lane.b32.xlu0 %v889, 16
        %v916 = vpop.permute.xlu0 %915
        %917 = vrot.lane.b32.xlu0 %v890, 16
        %v918 = vpop.permute.xlu0 %917
        %919 = vrot.lane.b32.xlu0 %v891, 16
        %v920 = vpop.permute.xlu0 %919
        %925 = vrot.lane.b32.xlu0 %v893, 24
        %v926 = vpop.permute.xlu0 %925
        %927 = vrot.lane.b32.xlu0 %v894, 24
        %v928 = vpop.permute.xlu0 %927
        %929 = vrot.lane.b32.xlu0 %v895, 24
        %v930 = vpop.permute.xlu0 %929
        %931 = vrot.lane.b32.xlu0 %v896, 24
        %v932 = vpop.permute.xlu0 %931
        %v935 = vsel %vm543, %v878, %v902
        %v938 = vsel %vm543, %v879, %v904
        %v941 = vsel %vm543, %v880, %v906
        %v944 = vsel %vm543, %v881, %v908
        %v946 = vsel %vm405, %v935, %v914
        %v948 = vsel %vm405, %v938, %v916
        %v950 = vsel %vm405, %v941, %v918
        %v952 = vsel %vm405, %v944, %v920
        %vm953 = vcmask 195584
        %v955 = vsel %vm953, %v946, %v926
        %v957 = vsel %vm953, %v948, %v928
        %v959 = vsel %vm953, %v950, %v930
        %v961 = vsel %vm953, %v952, %v932
        %v962 = vld [vmem:[%s3] sm:$0xf]
        %v963 = vld [vmem:[%s3 + $0x4] sm:$0xf]
        %v964 = vld [vmem:[%s3 + $0x8] sm:$0xf]
        %v965 = vld [vmem:[%s3 + $0xc] sm:$0xf]
        %v970 = vunpack.c.l.b16 %v962
        %v971 = vunpack.c.l.b16 %v963
        %v972 = vunpack.c.l.b16 %v964
        %v973 = vunpack.c.l.b16 %v965
        %v974 = vpack.c.b16 %v971, %v970
        %v975 = vpack.c.b16 %v973, %v972
        %vm978 = vcmask 261120
        %v979 = vsel %vm978, %v955, 0
        %v981 = vsel %vm978, %v957, 0
        %v983 = vsel %vm978, %v959, 0
        %v985 = vsel %vm978, %v961, 0
        %987 = vmatprep.subr.bf16.mxu0 0
        %988 = vmatpush1.bf16.msra.mxu0 %v974
        %989 = vmatprep.subr.bf16.mxu0 0
        %990 = vmatpush1.bf16.msra.mxu0 %v975
        %991 = vmatprep.subr.bf16.mxu0 0
        %992 = vmatpush1.bf16.msra.mxu0 0
        %993 = vmatprep.subr.bf16.mxu0 0
        %994 = vmatpush1.bf16.msra.mxu0 0
        %995 = vmatprep.subr.bf16.mxu0 0
        %996 = vmatpush1.bf16.msra.mxu0 0
        %997 = vmatprep.subr.bf16.mxu0 0
        %998 = vmatpush1.bf16.msra.mxu0 0
        %999 = vmatprep.subr.bf16.mxu0 0
        %1000 = vmatpush1.bf16.msra.mxu0 0
        %1001 = vmatprep.subr.bf16.mxu0 0
        %1002 = vmatpush1.bf16.msra.mxu0 0
        %1003 = vmatprep.subr.bf16.mxu0 0
        %1004 = vmatpush1.bf16.msra.mxu0 0
        %1005 = vmatprep.subr.bf16.mxu0 0
        %1006 = vmatpush1.bf16.msra.mxu0 0
        %1007 = vmatprep.subr.bf16.mxu0 0
        %1008 = vmatpush1.bf16.msra.mxu0 0
        %1009 = vmatprep.subr.bf16.mxu0 0
        %1010 = vmatpush1.bf16.msra.mxu0 0
        %1011 = vmatprep.subr.bf16.mxu0 0
        %1012 = vmatpush1.bf16.msra.mxu0 0
        %1013 = vmatprep.subr.bf16.mxu0 0
        %1014 = vmatpush1.bf16.msra.mxu0 0
        %1015 = vmatprep.subr.bf16.mxu0 0
        %1016 = vmatpush1.bf16.msra.mxu0 0
        %1017 = vmatprep.subr.bf16.mxu0 0
        %1018 = vmatpush1.bf16.msra.mxu0 0
        %1019 = vmatprep.mubr.bf16.mxu0 0
        %1020 = vmatmul.mubr.bf16.gmra.mrb[0].mxu0 %v979
        %v1021 = vpop.f32.mrb[0].mxu0
        %v1022 = vadd.f32 0.0, %v1021
        %v1023 = vpop.f32.mrb[0].mxu0
        %v1024 = vpop.f32.mrb[0].mxu0
        %v1025 = vadd.f32 0.0, %v1024
        %v1026 = vpop.f32.mrb[0].mxu0
        %1027 = vmatprep.mubr.bf16.mxu0 0
        %1028 = vmatmul.mubr.bf16.gmra.mrb[0].mxu0 %v981
        %v1029 = vpop.f32.mrb[0].mxu0
        %v1030 = vadd.f32 0.0, %v1029
        %v1031 = vpop.f32.mrb[0].mxu0
        %v1032 = vpop.f32.mrb[0].mxu0
        %v1033 = vadd.f32 0.0, %v1032
        %v1034 = vpop.f32.mrb[0].mxu0
        %1035 = vmatprep.mubr.bf16.mxu0 0
        %1036 = vmatmul.mubr.bf16.gmra.mrb[0].mxu0 %v983
        %v1037 = vpop.f32.mrb[0].mxu0
        %v1038 = vadd.f32 0.0, %v1037
        %v1039 = vpop.f32.mrb[0].mxu0
        %v1040 = vpop.f32.mrb[0].mxu0
        %v1041 = vadd.f32 0.0, %v1040
        %v1042 = vpop.f32.mrb[0].mxu0
        %1043 = vmatprep.mubr.bf16.mxu0 0
        %1044 = vmatmul.mubr.bf16.gmra.mrb[0].mxu0 %v985
        %v1045 = vpop.f32.mrb[0].mxu0
        %v1046 = vadd.f32 0.0, %v1045
        %v1047 = vpop.f32.mrb[0].mxu0
        %v1048 = vpop.f32.mrb[0].mxu0
        %v1049 = vadd.f32 0.0, %v1048
        %v1050 = vpop.f32.mrb[0].mxu0
        %1051 = vdwg.mxu0
        %v1052 = vld [vmem:[%s326] sm:$0xff]
        %v1053 = vld [vmem:[%s326 + $0x8] sm:$0xff]
        %v1054 = vld [vmem:[%s326 + $0x10] sm:$0xff]
        %v1055 = vld [vmem:[%s326 + $0x18] sm:$0xff]
        %v1056 = vld [vmem:[%s326 + $0x20] sm:$0xff]
        %v1057 = vld [vmem:[%s326 + $0x28] sm:$0xff]
        %v1058 = vld [vmem:[%s326 + $0x30] sm:$0xff]
        %v1059 = vld [vmem:[%s326 + $0x38] sm:$0xff]
        %v1060 = vadd.f32 %v1052, %v1022
        %v1061 = vadd.f32 %v1053, %v1025
        %v1062 = vadd.f32 %v1054, %v1030
        %v1063 = vadd.f32 %v1055, %v1033
        %v1064 = vadd.f32 %v1056, %v1038
        %v1065 = vadd.f32 %v1057, %v1041
        %v1066 = vadd.f32 %v1058, %v1046
        %v1067 = vadd.f32 %v1059, %v1049
        %v1068 = vld [vmem:[%s4] sm:$0x1]
        %v1070 = vlaneseq
        %v1071 = vshrl.u32 %v1070, 7
        %v1072 = vsub.s32 0, %v1071
        %v1073 = vrot.slane %v1068, %v1072
        %v1075 = vadd.f32 %v1060, %v1073
        %v1076 = vadd.f32 %v1061, %v1073
        %v1077 = vadd.f32 %v1062, %v1073
        %v1078 = vadd.f32 %v1063, %v1073
        %v1079 = vadd.f32 %v1064, %v1073
        %v1080 = vadd.f32 %v1065, %v1073
        %v1081 = vadd.f32 %v1066, %v1073
        %v1082 = vadd.f32 %v1067, %v1073
        %1083 = vst.msk [vmem:[%s331] sm:$0xff] %vm978, %v1075
        %1084 = vst.msk [vmem:[%s331 + $0x8] sm:$0xff] %vm978, %v1076
        %1085 = vst.msk [vmem:[%s331 + $0x10] sm:$0xff] %vm978, %v1077
        %1086 = vst.msk [vmem:[%s331 + $0x18] sm:$0xff] %vm978, %v1078
        %1087 = vst.msk [vmem:[%s331 + $0x20] sm:$0xff] %vm978, %v1079
        %1088 = vst.msk [vmem:[%s331 + $0x28] sm:$0xff] %vm978, %v1080
        %1089 = vst.msk [vmem:[%s331 + $0x30] sm:$0xff] %vm978, %v1081
        %1090 = vst.msk [vmem:[%s331 + $0x38] sm:$0xff] %vm978, %v1082
      $region48: #{normal_cell_forward.9} parent=43 // pred_fallthru
        _
      %p1091 = scmp.lt.s32.totalorder %s21, 1
      %s1092 = scalar_select %p1091, %s21, 1
      %s1093 = smul.addr %s1092, 8
      %s1094 = smul.addr %s1093, 8
      %s1095 = scalar_lea.vmem %s6, %s1094
      // Predicated region
      $region49: #{normal_cell_forward.9} parent=43 // pred_check
        %p1096 = pneg %p192
      $region50: #{normal_cell_forward.9} parent=43 // pred_check_branch
        %1098 = sbr.rel (%p1096) target = $region52
      $region51: #{normal_cell_forward.9} parent=43 // pred_region
        _
      $region52: #{normal_cell_forward.9} parent=43 // pred_fallthru
        _
    $region44: #{normal_cell_forward.9} parent=5 // pred_fallthru
      _
    %p1099 = scmp.le.s32.totalorder 2, %s12
    // Predicated region
    $region53: #{normal_cell_forward.9} parent=5 // pred_check
      %p1100 = pneg %p1099
    $region54: #{normal_cell_forward.9} parent=5 // pred_check_branch
      %1102 = sbr.rel (%p1100) target = $region56
    $region55: #{normal_cell_forward.9} parent=5 // pred_region
      %s1103 = ssub.s32 %s12, 2
      // Predicated region
      $region57: #{normal_cell_forward.9} parent=55 // pred_check
        %p1104 = pneg %p198
      $region58: #{normal_cell_forward.9} parent=55 // pred_check_branch
        %1106 = sbr.rel (%p1104) target = $region60
      $region59: #{normal_cell_forward.9} parent=55 // pred_region
        %p1107 = scmp.lt.s32.totalorder %s23, 1
        %s1108 = scalar_select %p1107, %s23, 1
        %s1109 = smul.addr %s1108, 8
        %s1110 = smul.addr %s1109, 8
        %s1111 = scalar_lea.vmem %s6, %s1110
      $region60: #{normal_cell_forward.9} parent=55 // pred_fallthru
        _
    $region56: #{normal_cell_forward.9} parent=5 // pred_fallthru
      _
  $region6: #{normal_cell_forward.9} parent=0 // loop_footer
    %s16 = sadd.s32 1, %s12
  $region7: #{normal_cell_forward.9} parent=0 // loop_footer_branch
    %11 = sbr.rel target = $region3
  $region8: #{normal_cell_forward.9} parent=0 // loop_exit
    _

// kernel: normal_cell_forward.6
$region0: #{normal_cell_forward.6}
  #allocation0 [shape = 'u32[]', space=smem, size = 0x4, offset = 0x4, fixed_abs, tag = 'smem constant byte address 0x4 - core index']
  #allocation1 [shape = 'u32[144,128]{1,0:T(1,128)}', space=vmem, size = 0x12000, scoped, tag = 'internal scratch']
  #allocation2 [shape = 'f32[64,128]{1,0:T(8,128)}', space=vmem, size = 0x8000, scoped, tag = 'scratch operand']
  %s0 = inlined_call_operand.vmem [shape: bf16[2,10,10,32], index: 0, kind: input, shape index: {}]
  %s1 = inlined_call_operand.vmem [shape: bf16[9,32,128], index: 1, kind: input, shape index: {}]
  %s2 = inlined_call_operand.vmem [shape: f32[1,128], index: 2, kind: input, shape index: {}]
  %s3 = inlined_call_operand.vmem [shape: f32[1,128], index: 3, kind: input, shape index: {}]
  %s4 = inlined_call_operand.vmem [shape: bf16[2,64,128], index: 4, kind: output, shape index: {}]
  %s5 = sld [smem:[#allocation0]]
  $region49: #{normal_cell_forward.6} parent=0
    _
  %s7 = ssub.s32 1, %s5
  %s8 = scalar_select 0, %s7, %s5
  loop: start=0, step=1, limit=4
  $region2: #{normal_cell_forward.6} parent=0 // loop_pre_header
    _
  $region3: #{normal_cell_forward.6} parent=0 // loop_header
    %s10 = sphi 0, %s14
    %p11 = scmp.ge.s32.totalorder %s10, 4
    %s20 = sphi 0, %s22
    %s23 = sphi 0, %s20
    %s24 = sphi 0, %s23
    %s40 = sphi 0, %s24
    %s44 = sphi 0, %s44
    %s46 = sphi 0, %s44
    %s47 = sphi 0, %s46
    %s61 = sphi 0, %s47
    %s65 = sphi 0, %s65
    %s67 = sphi 0, %s65
    %s68 = sphi 0, %s67
    %s82 = sphi 0, %s68
    %s86 = sphi 0, %s86
    %s88 = sphi 0, %s86
    %s89 = sphi 0, %s88
    %s103 = sphi 0, %s89
    %s109 = sphi 0, %s111
    %s112 = sphi 0, %s109
    %s113 = sphi 0, %s112
    %s129 = sphi 0, %s113
  $region4: #{normal_cell_forward.6} parent=0 // loop_header_branch
    %13 = sbr.rel (%p11) target = $region8
  $region5: #{normal_cell_forward.6} parent=0 // loop_body
    %s15 = ssub.s32 %s10, 1
    %s16 = ssub.s32 %s10, 2
    %s17 = sadd.s32 %s10, 1
    %s18 = ssub.s32 %s10, %s17
    %p19 = scmp.eq.s32.totalorder %s18, 0
    %s21 = sadd.s32 %s20, 1
    %s22 = scalar_select %p19, %s20, %s21
    %p25 = pneg %p19
    %p26 = scmp.eq.s32.totalorder %s10, 1
    %p27 = por %p25, %p26
    %p28 = scmp.ne.s32.totalorder %s20, %s23
    %p29 = scmp.eq.s32.totalorder %s10, 0
    %p30 = por %p28, %p29
    %p31 = scmp.ne.s32.totalorder %s20, %s23
    %p32 = scmp.eq.s32.totalorder %s15, 1
    %p33 = por %p31, %p32
    %p34 = scmp.ne.s32.totalorder %s23, %s24
    %p35 = scmp.eq.s32.totalorder %s15, 0
    %p36 = por %p34, %p35
    %p37 = scmp.ne.s32.totalorder %s23, %s24
    %p38 = scmp.eq.s32.totalorder %s16, 1
    %p39 = por %p37, %p38
    %p41 = scmp.ne.s32.totalorder %s24, %s40
    %p42 = scmp.eq.s32.totalorder %s16, 0
    %p43 = por %p41, %p42
    %s45 = sadd.s32 %s44, 1
    %p48 = scmp.eq.s32.totalorder %s10, 1
    %p49 = scmp.ne.s32.totalorder %s44, %s46
    %p50 = scmp.eq.s32.totalorder %s10, 0
    %p51 = por %p49, %p50
    %p52 = scmp.ne.s32.totalorder %s44, %s46
    %p53 = scmp.eq.s32.totalorder %s15, 1
    %p54 = por %p52, %p53
    %p55 = scmp.ne.s32.totalorder %s46, %s47
    %p56 = scmp.eq.s32.totalorder %s15, 0
    %p57 = por %p55, %p56
    %p58 = scmp.ne.s32.totalorder %s46, %s47
    %p59 = scmp.eq.s32.totalorder %s16, 1
    %p60 = por %p58, %p59
    %p62 = scmp.ne.s32.totalorder %s47, %s61
    %p63 = scmp.eq.s32.totalorder %s16, 0
    %p64 = por %p62, %p63
    %s66 = sadd.s32 %s65, 1
    %p69 = scmp.eq.s32.totalorder %s10, 1
    %p70 = scmp.ne.s32.totalorder %s65, %s67
    %p71 = scmp.eq.s32.totalorder %s10, 0
    %p72 = por %p70, %p71
    %p73 = scmp.ne.s32.totalorder %s65, %s67
    %p74 = scmp.eq.s32.totalorder %s15, 1
    %p75 = por %p73, %p74
    %p76 = scmp.ne.s32.totalorder %s67, %s68
    %p77 = scmp.eq.s32.totalorder %s15, 0
    %p78 = por %p76, %p77
    %p79 = scmp.ne.s32.totalorder %s67, %s68
    %p80 = scmp.eq.s32.totalorder %s16, 1
    %p81 = por %p79, %p80
    %p83 = scmp.ne.s32.totalorder %s68, %s82
    %p84 = scmp.eq.s32.totalorder %s16, 0
    %p85 = por %p83, %p84
    %s87 = sadd.s32 %s86, 1
    %p90 = scmp.eq.s32.totalorder %s10, 1
    %p91 = scmp.ne.s32.totalorder %s86, %s88
    %p92 = scmp.eq.s32.totalorder %s10, 0
    %p93 = por %p91, %p92
    %p94 = scmp.ne.s32.totalorder %s86, %s88
    %p95 = scmp.eq.s32.totalorder %s15, 1
    %p96 = por %p94, %p95
    %p97 = scmp.ne.s32.totalorder %s88, %s89
    %p98 = scmp.eq.s32.totalorder %s15, 0
    %p99 = por %p97, %p98
    %p100 = scmp.ne.s32.totalorder %s88, %s89
    %p101 = scmp.eq.s32.totalorder %s16, 1
    %p102 = por %p100, %p101
    %p104 = scmp.ne.s32.totalorder %s89, %s103
    %p105 = scmp.eq.s32.totalorder %s16, 0
    %p106 = por %p104, %p105
    %s107 = ssub.s32 %s10, %s17
    %p108 = scmp.eq.s32.totalorder %s107, 0
    %s110 = sadd.s32 %s109, 1
    %s111 = scalar_select %p108, %s109, %s110
    %p114 = pneg %p108
    %p115 = scmp.eq.s32.totalorder %s10, 1
    %p116 = por %p114, %p115
    %p117 = scmp.ne.s32.totalorder %s109, %s112
    %p118 = scmp.eq.s32.totalorder %s10, 0
    %p119 = por %p117, %p118
    %p120 = scmp.ne.s32.totalorder %s109, %s112
    %p121 = scmp.eq.s32.totalorder %s15, 1
    %p122 = por %p120, %p121
    %p123 = scmp.ne.s32.totalorder %s112, %s113
    %p124 = scmp.eq.s32.totalorder %s15, 0
    %p125 = por %p123, %p124
    %p126 = scmp.ne.s32.totalorder %s112, %s113
    %p127 = scmp.eq.s32.totalorder %s16, 1
    %p128 = por %p126, %p127
    %p130 = scmp.ne.s32.totalorder %s113, %s129
    %p131 = scmp.eq.s32.totalorder %s16, 0
    %p132 = por %p130, %p131
    %p133 = scmp.le.s32.totalorder 1, %s10
    %p134 = scmp.lt.s32.totalorder %s10, 3
    %p135 = pnand %p133, %p134
    %p136 = pneg %p135
    // Predicated region
    $region9: #{normal_cell_forward.6} parent=5 // pred_check
      _
    $region10: #{normal_cell_forward.6} parent=5 // pred_check_branch
      %138 = sbr.rel (%p135) target = $region12
    $region11: #{normal_cell_forward.6} parent=5 // pred_region
      %s139 = ssub.s32 %s10, 1
      // Predicated region
      $region13: #{normal_cell_forward.6} parent=11 // pred_check
        %p140 = pneg %p57
      $region14: #{normal_cell_forward.6} parent=11 // pred_check_branch
        %142 = sbr.rel (%p140) target = $region16
      $region15: #{normal_cell_forward.6} parent=11 // pred_region
        _
      $region16: #{normal_cell_forward.6} parent=11 // pred_fallthru
        _
      // Predicated region
      $region17: #{normal_cell_forward.6} parent=11 // pred_check
        %p143 = pneg %p78
      $region18: #{normal_cell_forward.6} parent=11 // pred_check_branch
        %145 = sbr.rel (%p143) target = $region20
      $region19: #{normal_cell_forward.6} parent=11 // pred_region
        _
      $region20: #{normal_cell_forward.6} parent=11 // pred_fallthru
        _
      // Predicated region
      $region21: #{normal_cell_forward.6} parent=11 // pred_check
        %p146 = pneg %p99
      $region22: #{normal_cell_forward.6} parent=11 // pred_check_branch
        %148 = sbr.rel (%p146) target = $region24
      $region23: #{normal_cell_forward.6} parent=11 // pred_region
        _
      $region24: #{normal_cell_forward.6} parent=11 // pred_fallthru
        _
    $region12: #{normal_cell_forward.6} parent=5 // pred_fallthru
      _
    %p149 = scmp.lt.s32.totalorder %s10, 2
    // Predicated region
    $region25: #{normal_cell_forward.6} parent=5 // pred_check
      %p150 = pneg %p149
    $region26: #{normal_cell_forward.6} parent=5 // pred_check_branch
      %152 = sbr.rel (%p150) target = $region28
    $region27: #{normal_cell_forward.6} parent=5 // pred_region
      // Predicated region
      $region29: #{normal_cell_forward.6} parent=27 // pred_check
        %p153 = pneg %p30
      $region30: #{normal_cell_forward.6} parent=27 // pred_check_branch
        %155 = sbr.rel (%p153) target = $region32
      $region31: #{normal_cell_forward.6} parent=27 // pred_region
        %p156 = scmp.lt.s32.totalorder %s10, 1
        %s157 = scalar_select %p156, %s10, 1
        %s158 = smul.addr %s157, 20
        %s159 = smul.addr %s158, 4
        %s160 = scalar_lea.vmem %s0, %s159
      $region32: #{normal_cell_forward.6} parent=27 // pred_fallthru
        _
    $region28: #{normal_cell_forward.6} parent=5 // pred_fallthru
      _
    %p161 = scmp.le.s32.totalorder 1, %s10
    %p162 = scmp.lt.s32.totalorder %s10, 3
    %p163 = pnand %p161, %p162
    %p164 = pneg %p163
    // Predicated region
    $region33: #{normal_cell_forward.6} parent=5 // pred_check
      _
    $region34: #{normal_cell_forward.6} parent=5 // pred_check_branch
      %166 = sbr.rel (%p163) target = $region36
    $region35: #{normal_cell_forward.6} parent=5 // pred_region
      %s167 = ssub.s32 %s10, 1
      %p168 = scmp.lt.s32.totalorder %s15, 1
      %s169 = scalar_select %p168, %s15, 1
      %s170 = smul.addr %s169, 20
      %s171 = smul.addr %s170, 4
      %s172 = scalar_lea.vmem %s0, %s171
      %p173 = pneg %p36
      %p174 = pneg %p33
      %p175 = pneg %p57
      %p176 = pneg %p54
      %p177 = pneg %p78
      %p178 = pneg %p75
      %p179 = pneg %p99
      %p180 = pneg %p96
      %p181 = pneg %p125
      %p182 = pneg %p122
      %p183 = scmp.lt.s32.totalorder %s15, 1
      %s184 = scalar_select %p183, %s15, 1
      %s185 = smul.addr %s184, 8
      %s186 = smul.addr %s185, 4
      %s187 = scalar_lea.vmem %s4, %s186
      %p188 = scmp.lt.s32.totalorder %s15, 1
      %s189 = scalar_select %p188, %s15, 1
      %s190 = smul.addr %s189, 20
      %s191 = smul.addr %s190, 4
      %s192 = scalar_lea.vmem %s0, %s191
      %p193 = scmp.lt.s32.totalorder %s15, 1
      %s194 = scalar_select %p193, %s15, 1
      %s195 = smul.addr %s194, 8
      %s196 = smul.addr %s195, 4
      %s197 = scalar_lea.vmem %s4, %s196
      %v199 = vld [vmem:[%s192] sm:$0xf]
      %v200 = vld [vmem:[%s192 + $0x8] sm:$0xf]
      %v201 = vld [vmem:[%s192 + $0x10] sm:$0xf]
      %v202 = vld [vmem:[%s192 + $0x18] sm:$0xf]
      %v203 = vld [vmem:[%s192 + $0x20] sm:$0xf]
      %v204 = vld [vmem:[%s192 + $0x28] sm:$0xf]
      %v205 = vld [vmem:[%s192 + $0x30] sm:$0xf]
      %v206 = vld [vmem:[%s192 + $0x38] sm:$0xf]
      %v207 = vld [vmem:[%s1] sm:$0xf]
      %v208 = vld [vmem:[%s1 + $0x4] sm:$0xf]
      %v209 = vld [vmem:[%s1 + $0x8] sm:$0xf]
      %v210 = vld [vmem:[%s1 + $0xc] sm:$0xf]
      %v219 = vunpack.c.l.b16 %v199
      %v220 = vunpack.c.l.b16 %v200
      %v221 = vunpack.c.l.b16 %v201
      %v222 = vunpack.c.l.b16 %v202
      %v223 = vunpack.c.l.b16 %v203
      %v224 = vunpack.c.l.b16 %v204
      %v225 = vunpack.c.l.b16 %v205
      %v226 = vunpack.c.l.b16 %v206
      %v227 = vpack.c.b16 %v220, %v219
      %v228 = vpack.c.b16 %v222, %v221
      %v229 = vpack.c.b16 %v224, %v223
      %v230 = vpack.c.b16 %v226, %v225
      %v235 = vunpack.c.l.b16 %v207
      %v236 = vunpack.c.l.b16 %v208
      %v237 = vunpack.c.l.b16 %v209
      %v238 = vunpack.c.l.b16 %v210
      %v239 = vpack.c.b16 %v236, %v235
      %v240 = vpack.c.b16 %v238, %v237
      %vm243 = vcmask 261120
      %v245 = vsel %vm243, %v227, 0
      %v248 = vsel %vm243, %v228, 0
      %v251 = vsel %vm243, %v229, 0
      %v254 = vsel %vm243, %v230, 0
      %256 = vmatprep.subr.bf16.mxu0 0
      %257 = vmatpush1.bf16.msra.mxu0 %v239
      %258 = vmatprep.subr.bf16.mxu0 0
      %259 = vmatpush1.bf16.msra.mxu0 %v240
      %260 = vmatprep.subr.bf16.mxu0 0
      %261 = vmatpush1.bf16.msra.mxu0 0
      %262 = vmatprep.subr.bf16.mxu0 0
      %263 = vmatpush1.bf16.msra.mxu0 0
      %264 = vmatprep.subr.bf16.mxu0 0
      %265 = vmatpush1.bf16.msra.mxu0 0
      %266 = vmatprep.subr.bf16.mxu0 0
      %267 = vmatpush1.bf16.msra.mxu0 0
      %268 = vmatprep.subr.bf16.mxu0 0
      %269 = vmatpush1.bf16.msra.mxu0 0
      %270 = vmatprep.subr.bf16.mxu0 0
      %271 = vmatpush1.bf16.msra.mxu0 0
      %272 = vmatprep.subr.bf16.mxu0 0
      %273 = vmatpush1.bf16.msra.mxu0 0
      %274 = vmatprep.subr.bf16.mxu0 0
      %275 = vmatpush1.bf16.msra.mxu0 0
      %276 = vmatprep.subr.bf16.mxu0 0
      %277 = vmatpush1.bf16.msra.mxu0 0
      %278 = vmatprep.subr.bf16.mxu0 0
      %279 = vmatpush1.bf16.msra.mxu0 0
      %280 = vmatprep.subr.bf16.mxu0 0
      %281 = vmatpush1.bf16.msra.mxu0 0
      %282 = vmatprep.subr.bf16.mxu0 0
      %283 = vmatpush1.bf16.msra.mxu0 0
      %284 = vmatprep.subr.bf16.mxu0 0
      %285 = vmatpush1.bf16.msra.mxu0 0
      %286 = vmatprep.subr.bf16.mxu0 0
      %287 = vmatpush1.bf16.msra.mxu0 0
      %288 = vmatprep.mubr.bf16.mxu0 0
      %289 = vmatmul.mubr.bf16.gmra.mrb[0].mxu0 %v245
      %v290 = vpop.f32.mrb[0].mxu0
      %v291 = vadd.f32 0.0, %v290
      %v292 = vpop.f32.mrb[0].mxu0
      %v293 = vpop.f32.mrb[0].mxu0
      %v294 = vadd.f32 0.0, %v293
      %v295 = vpop.f32.mrb[0].mxu0
      %296 = vmatprep.mubr.bf16.mxu0 0
      %297 = vmatmul.mubr.bf16.gmra.mrb[0].mxu0 %v248
      %v298 = vpop.f32.mrb[0].mxu0
      %v299 = vadd.f32 0.0, %v298
      %v300 = vpop.f32.mrb[0].mxu0
      %v301 = vpop.f32.mrb[0].mxu0
      %v302 = vadd.f32 0.0, %v301
      %v303 = vpop.f32.mrb[0].mxu0
      %304 = vmatprep.mubr.bf16.mxu0 0
      %305 = vmatmul.mubr.bf16.gmra.mrb[0].mxu0 %v251
      %v306 = vpop.f32.mrb[0].mxu0
      %v307 = vadd.f32 0.0, %v306
      %v308 = vpop.f32.mrb[0].mxu0
      %v309 = vpop.f32.mrb[0].mxu0
      %v310 = vadd.f32 0.0, %v309
      %v311 = vpop.f32.mrb[0].mxu0
      %312 = vmatprep.mubr.bf16.mxu0 0
      %313 = vmatmul.mubr.bf16.gmra.mrb[0].mxu0 %v254
      %v314 = vpop.f32.mrb[0].mxu0
      %v315 = vadd.f32 0.0, %v314
      %v316 = vpop.f32.mrb[0].mxu0
      %v317 = vpop.f32.mrb[0].mxu0
      %v318 = vadd.f32 0.0, %v317
      %v319 = vpop.f32.mrb[0].mxu0
      %320 = vdwg.mxu0
      %321 = vst [vmem:[#allocation2] sm:$0xff] %v291
      %322 = vst [vmem:[#allocation2 + $0x8] sm:$0xff] %v294
      %323 = vst [vmem:[#allocation2 + $0x10] sm:$0xff] %v299
      %324 = vst [vmem:[#allocation2 + $0x18] sm:$0xff] %v302
      %325 = vst [vmem:[#allocation2 + $0x20] sm:$0xff] %v307
      %326 = vst [vmem:[#allocation2 + $0x28] sm:$0xff] %v310
      %327 = vst [vmem:[#allocation2 + $0x30] sm:$0xff] %v315
      %328 = vst [vmem:[#allocation2 + $0x38] sm:$0xff] %v318
      %v329 = vld [vmem:[%s192] sm:$0xf]
      %v330 = vld [vmem:[%s192 + $0x4] sm:$0x1]
      %v331 = vld [vmem:[%s192 + $0x8] sm:$0xf]
      %v332 = vld [vmem:[%s192 + $0xc] sm:$0x1]
      %v333 = vld [vmem:[%s192 + $0x10] sm:$0xf]
      %v334 = vld [vmem:[%s192 + $0x14] sm:$0x1]
      %v335 = vld [vmem:[%s192 + $0x18] sm:$0xf]
      %v336 = vld [vmem:[%s192 + $0x1c] sm:$0x1]
      %v337 = vld [vmem:[%s192 + $0x20] sm:$0xf]
      %v338 = vld [vmem:[%s192 + $0x24] sm:$0x1]
      %v339 = vld [vmem:[%s192 + $0x28] sm:$0xf]
      %v340 = vld [vmem:[%s192 + $0x2c] sm:$0x1]
      %v341 = vld [vmem:[%s192 + $0x30] sm:$0xf]
      %v342 = vld [vmem:[%s192 + $0x34] sm:$0x1]
      %v343 = vld [vmem:[%s192 + $0x38] sm:$0xf]
      %v344 = vld [vmem:[%s192 + $0x3c] sm:$0x1]
      %vm345 = vsmask.f32 3328
      %vm346 = vsmask.f32 7440
      %vm347 = vmor %vm345, %vm346
      %v349 = vshrl.u32 %v329, 16
      %v351 = vrot.slane %v349, 4
      %v352 = vshll.u32 %v329, 16
      %v354 = vrot.slane %v352, 5
      %v355 = vor.u32 %v351, %v354
      %v356 = vrot.slane %v355, 4
      %v358 = vshll.u32 %v330, 16
      %v360 = vrot.slane %v358, 5
      %v361 = vsel %vm347, %v356, %v360
      %v363 = vshrl.u32 %v331, 16
      %v365 = vrot.slane %v363, 4
      %v366 = vshll.u32 %v331, 16
      %v368 = vrot.slane %v366, 5
      %v369 = vor.u32 %v365, %v368
      %v370 = vrot.slane %v369, 4
      %v372 = vshll.u32 %v332, 16
      %v374 = vrot.slane %v372, 5
      %v375 = vsel %vm347, %v370, %v374
      %v377 = vshrl.u32 %v333, 16
      %v379 = vrot.slane %v377, 4
      %v380 = vshll.u32 %v333, 16
      %v382 = vrot.slane %v380, 5
      %v383 = vor.u32 %v379, %v382
      %v384 = vrot.slane %v383, 4
      %v386 = vshll.u32 %v334, 16
      %v388 = vrot.slane %v386, 5
      %v389 = vsel %vm347, %v384, %v388
      %v391 = vshrl.u32 %v335, 16
      %v393 = vrot.slane %v391, 4
      %v394 = vshll.u32 %v335, 16
      %v396 = vrot.slane %v394, 5
      %v397 = vor.u32 %v393, %v396
      %v398 = vrot.slane %v397, 4
      %v400 = vshll.u32 %v336, 16
      %v402 = vrot.slane %v400, 5
      %v403 = vsel %vm347, %v398, %v402
      %v405 = vshrl.u32 %v337, 16
      %v407 = vrot.slane %v405, 4
      %v408 = vshll.u32 %v337, 16
      %v410 = vrot.slane %v408, 5
      %v411 = vor.u32 %v407, %v410
      %v412 = vrot.slane %v411, 4
      %v414 = vshll.u32 %v338, 16
      %v416 = vrot.slane %v414, 5
      %v417 = vsel %vm347, %v412, %v416
      %v419 = vshrl.u32 %v339, 16
      %v421 = vrot.slane %v419, 4
      %v422 = vshll.u32 %v339, 16
      %v424 = vrot.slane %v422, 5
      %v425 = vor.u32 %v421, %v424
      %v426 = vrot.slane %v425, 4
      %v428 = vshll.u32 %v340, 16
      %v430 = vrot.slane %v428, 5
      %v431 = vsel %vm347, %v426, %v430
      %v433 = vshrl.u32 %v341, 16
      %v435 = vrot.slane %v433, 4
      %v436 = vshll.u32 %v341, 16
      %v438 = vrot.slane %v436, 5
      %v439 = vor.u32 %v435, %v438
      %v440 = vrot.slane %v439, 4
      %v442 = vshll.u32 %v342, 16
      %v444 = vrot.slane %v442, 5
      %v445 = vsel %vm347, %v440, %v444
      %v447 = vshrl.u32 %v343, 16
      %v449 = vrot.slane %v447, 4
      %v450 = vshll.u32 %v343, 16
      %v452 = vrot.slane %v450, 5
      %v453 = vor.u32 %v449, %v452
      %v454 = vrot.slane %v453, 4
      %v456 = vshll.u32 %v344, 16
      %v458 = vrot.slane %v456, 5
      %v459 = vsel %vm347, %v454, %v458
      %s460 = scalar_lea.vmem %s1, 16
      %v461 = vld [vmem:[%s460] sm:$0xf]
      %v462 = vld [vmem:[%s460 + $0x4] sm:$0xf]
      %v463 = vld [vmem:[%s460 + $0x8] sm:$0xf]
      %v464 = vld [vmem:[%s460 + $0xc] sm:$0xf]
      %v465 = vunpack.c.l.b16 %v361
      %v466 = vunpack.c.l.b16 %v375
      %v467 = vunpack.c.l.b16 %v389
      %v468 = vunpack.c.l.b16 %v403
      %v469 = vunpack.c.l.b16 %v417
      %v470 = vunpack.c.l.b16 %v431
      %v471 = vunpack.c.l.b16 %v445
      %v472 = vunpack.c.l.b16 %v459
      %v473 = vpack.c.b16 %v466, %v465
      %v474 = vpack.c.b16 %v468, %v467
      %v475 = vpack.c.b16 %v470, %v469
      %v476 = vpack.c.b16 %v472, %v471
      %v481 = vunpack.c.l.b16 %v461
      %v482 = vunpack.c.l.b16 %v462
      %v483 = vunpack.c.l.b16 %v463
      %v484 = vunpack.c.l.b16 %v464
      %v485 = vpack.c.b16 %v482, %v481
      %v486 = vpack.c.b16 %v484, %v483
      %v490 = vsel %vm243, %v473, 0
      %v493 = vsel %vm243, %v474, 0
      %v496 = vsel %vm243, %v475, 0
      %v499 = vsel %vm243, %v476, 0
      %501 = vmatprep.subr.bf16.mxu0 0
      %502 = vmatpush1.bf16.msra.mxu0 %v485
      %503 = vmatprep.subr.bf16.mxu0 0
      %504 = vmatpush1.bf16.msra.mxu0 %v486
      %505 = vmatprep.subr.bf16.mxu0 0
      %506 = vmatpush1.bf16.msra.mxu0 0
      %507 = vmatprep.subr.bf16.mxu0 0
      %508 = vmatpush1.bf16.msra.mxu0 0
      %509 = vmatprep.subr.bf16.mxu0 0
      %510 = vmatpush1.bf16.msra.mxu0 0
      %511 = vmatprep.subr.bf16.mxu0 0
      %512 = vmatpush1.bf16.msra.mxu0 0
      %513 = vmatprep.subr.bf16.mxu0 0
      %514 = vmatpush1.bf16.msra.mxu0 0
      %515 = vmatprep.subr.bf16.mxu0 0
      %516 = vmatpush1.bf16.msra.mxu0 0
      %517 = vmatprep.subr.bf16.mxu0 0
      %518 = vmatpush1.bf16.msra.mxu0 0
      %519 = vmatprep.subr.bf16.mxu0 0
      %520 = vmatpush1.bf16.msra.mxu0 0
      %521 = vmatprep.subr.bf16.mxu0 0
      %522 = vmatpush1.bf16.msra.mxu0 0
      %523 = vmatprep.subr.bf16.mxu0 0
      %524 = vmatpush1.bf16.msra.mxu0 0
      %525 = vmatprep.subr.bf16.mxu0 0
      %526 = vmatpush1.bf16.msra.mxu0 0
      %527 = vmatprep.subr.bf16.mxu0 0
      %528 = vmatpush1.bf16.msra.mxu0 0
      %529 = vmatprep.subr.bf16.mxu0 0
      %530 = vmatpush1.bf16.msra.mxu0 0
      %531 = vmatprep.subr.bf16.mxu0 0
      %532 = vmatpush1.bf16.msra.mxu0 0
      %533 = vmatprep.mubr.bf16.mxu0 0
      %534 = vmatmul.mubr.bf16.gmra.mrb[0].mxu0 %v490
      %v535 = vpop.f32.mrb[0].mxu0
      %v536 = vadd.f32 0.0, %v535
      %v537 = vpop.f32.mrb[0].mxu0
      %v538 = vpop.f32.mrb[0].mxu0
      %v539 = vadd.f32 0.0, %v538
      %v540 = vpop.f32.mrb[0].mxu0
      %541 = vmatprep.mubr.bf16.mxu0 0
      %542 = vmatmul.mubr.bf16.gmra.mrb[0].mxu0 %v493
      %v543 = vpop.f32.mrb[0].mxu0
      %v544 = vadd.f32 0.0, %v543
      %v545 = vpop.f32.mrb[0].mxu0
      %v546 = vpop.f32.mrb[0].mxu0
      %v547 = vadd.f32 0.0, %v546
      %v548 = vpop.f32.mrb[0].mxu0
      %549 = vmatprep.mubr.bf16.mxu0 0
      %550 = vmatmul.mubr.bf16.gmra.mrb[0].mxu0 %v496
      %v551 = vpop.f32.mrb[0].mxu0
      %v552 = vadd.f32 0.0, %v551
      %v553 = vpop.f32.mrb[0].mxu0
      %v554 = vpop.f32.mrb[0].mxu0
      %v555 = vadd.f32 0.0, %v554
      %v556 = vpop.f32.mrb[0].mxu0
      %557 = vmatprep.mubr.bf16.mxu0 0
      %558 = vmatmul.mubr.bf16.gmra.mrb[0].mxu0 %v499
      %v559 = vpop.f32.mrb[0].mxu0
      %v560 = vadd.f32 0.0, %v559
      %v561 = vpop.f32.mrb[0].mxu0
      %v562 = vpop.f32.mrb[0].mxu0
      %v563 = vadd.f32 0.0, %v562
      %v564 = vpop.f32.mrb[0].mxu0
      %565 = vdwg.mxu0
      %v566 = vld [vmem:[#allocation2] sm:$0xff]
      %v567 = vld [vmem:[#allocation2 + $0x8] sm:$0xff]
      %v568 = vld [vmem:[#allocation2 + $0x10] sm:$0xff]
      %v569 = vld [vmem:[#allocation2 + $0x18] sm:$0xff]
      %v570 = vld [vmem:[#allocation2 + $0x20] sm:$0xff]
      %v571 = vld [vmem:[#allocation2 + $0x28] sm:$0xff]
      %v572 = vld [vmem:[#allocation2 + $0x30] sm:$0xff]
      %v573 = vld [vmem:[#allocation2 + $0x38] sm:$0xff]
      %v574 = vadd.f32 %v566, %v536
      %v575 = vadd.f32 %v567, %v539
      %v576 = vadd.f32 %v568, %v544
      %v577 = vadd.f32 %v569, %v547
      %v578 = vadd.f32 %v570, %v552
      %v579 = vadd.f32 %v571, %v555
      %v580 = vadd.f32 %v572, %v560
      %v581 = vadd.f32 %v573, %v563
      %582 = vst [vmem:[#allocation2] sm:$0xff] %v574
      %583 = vst [vmem:[#allocation2 + $0x8] sm:$0xff] %v575
      %584 = vst [vmem:[#allocation2 + $0x10] sm:$0xff] %v576
      %585 = vst [vmem:[#allocation2 + $0x18] sm:$0xff] %v577
      %586 = vst [vmem:[#allocation2 + $0x20] sm:$0xff] %v578
      %587 = vst [vmem:[#allocation2 + $0x28] sm:$0xff] %v579
      %588 = vst [vmem:[#allocation2 + $0x30] sm:$0xff] %v580
      %589 = vst [vmem:[#allocation2 + $0x38] sm:$0xff] %v581
      %v590 = vld [vmem:[%s192] sm:$0xe]
      %v591 = vld [vmem:[%s192 + $0x4] sm:$0x1]
      %v592 = vld [vmem:[%s192 + $0x8] sm:$0xe]
      %v593 = vld [vmem:[%s192 + $0xc] sm:$0x1]
      %v594 = vld [vmem:[%s192 + $0x10] sm:$0xe]
      %v595 = vld [vmem:[%s192 + $0x14] sm:$0x1]
      %v596 = vld [vmem:[%s192 + $0x18] sm:$0xe]
      %v597 = vld [vmem:[%s192 + $0x1c] sm:$0x1]
      %v598 = vld [vmem:[%s192 + $0x20] sm:$0xe]
      %v599 = vld [vmem:[%s192 + $0x24] sm:$0x1]
      %v600 = vld [vmem:[%s192 + $0x28] sm:$0xe]
      %v601 = vld [vmem:[%s192 + $0x2c] sm:$0x1]
      %v602 = vld [vmem:[%s192 + $0x30] sm:$0xe]
      %v603 = vld [vmem:[%s192 + $0x34] sm:$0x1]
      %v604 = vld [vmem:[%s192 + $0x38] sm:$0xe]
      %v605 = vld [vmem:[%s192 + $0x3c] sm:$0x1]
      %vm622 = vcmask 1042432
      %vm623 = vcmask 1046532
      %vm624 = vmor %vm622, %vm623
      %v625 = vrot.slane %v590, 5
      %v626 = vrot.slane %v625, 4
      %v627 = vrot.slane %v591, 5
      %v628 = vsel %vm624, %v626, %v627
      %v629 = vrot.slane %v592, 5
      %v630 = vrot.slane %v629, 4
      %v631 = vrot.slane %v593, 5
      %v632 = vsel %vm624, %v630, %v631
      %v633 = vrot.slane %v594, 5
      %v634 = vrot.slane %v633, 4
      %v635 = vrot.slane %v595, 5
      %v636 = vsel %vm624, %v634, %v635
      %v637 = vrot.slane %v596, 5
      %v638 = vrot.slane %v637, 4
      %v639 = vrot.slane %v597, 5
      %v640 = vsel %vm624, %v638, %v639
      %v641 = vrot.slane %v598, 5
      %v642 = vrot.slane %v641, 4
      %v643 = vrot.slane %v599, 5
      %v644 = vsel %vm624, %v642, %v643
      %v645 = vrot.slane %v600, 5
      %v646 = vrot.slane %v645, 4
      %v647 = vrot.slane %v601, 5
      %v648 = vsel %vm624, %v646, %v647
      %v649 = vrot.slane %v602, 5
      %v650 = vrot.slane %v649, 4
      %v651 = vrot.slane %v603, 5
      %v652 = vsel %vm624, %v650, %v651
      %v653 = vrot.slane %v604, 5
      %v654 = vrot.slane %v653, 4
      %v655 = vrot.slane %v605, 5
      %v656 = vsel %vm624, %v654, %v655
      %s657 = scalar_lea.vmem %s1, 32
      %v658 = vld [vmem:[%s657] sm:$0xf]
      %v659 = vld [vmem:[%s657 + $0x4] sm:$0xf]
      %v660 = vld [vmem:[%s657 + $0x8] sm:$0xf]
      %v661 = vld [vmem:[%s657 + $0xc] sm:$0xf]
      %v662 = vunpack.c.l.b16 %v628
      %v663 = vunpack.c.l.b16 %v632
      %v664 = vunpack.c.l.b16 %v636
      %v665 = vunpack.c.l.b16 %v640
      %v666 = vunpack.c.l.b16 %v644
      %v667 = vunpack.c.l.b16 %v648
      %v668 = vunpack.c.l.b16 %v652
      %v669 = vunpack.c.l.b16 %v656
      %v670 = vpack.c.b16 %v663, %v662
      %v671 = vpack.c.b16 %v665, %v664
      %v672 = vpack.c.b16 %v667, %v666
      %v673 = vpack.c.b16 %v669, %v668
      %v678 = vunpack.c.l.b16 %v658
      %v679 = vunpack.c.l.b16 %v659
      %v680 = vunpack.c.l.b16 %v660
      %v681 = vunpack.c.l.b16 %v661
      %v682 = vpack.c.b16 %v679, %v678
      %v683 = vpack.c.b16 %v681, %v680
      %v687 = vsel %vm243, %v670, 0
      %v690 = vsel %vm243, %v671, 0
      %v693 = vsel %vm243, %v672, 0
      %v696 = vsel %vm243, %v673, 0
      %698 = vmatprep.subr.bf16.mxu0 0
      %699 = vmatpush1.bf16.msra.mxu0 %v682
      %700 = vmatprep.subr.bf16.mxu0 0
      %701 = vmatpush1.bf16.msra.mxu0 %v683
      %702 = vmatprep.subr.bf16.mxu0 0
      %703 = vmatpush1.bf16.msra.mxu0 0
      %704 = vmatprep.subr.bf16.mxu0 0
      %705 = vmatpush1.bf16.msra.mxu0 0
      %706 = vmatprep.subr.bf16.mxu0 0
      %707 = vmatpush1.bf16.msra.mxu0 0
      %708 = vmatprep.subr.bf16.mxu0 0
      %709 = vmatpush1.bf16.msra.mxu0 0
      %710 = vmatprep.subr.bf16.mxu0 0
      %711 = vmatpush1.bf16.msra.mxu0 0
      %712 = vmatprep.subr.bf16.mxu0 0
      %713 = vmatpush1.bf16.msra.mxu0 0
      %714 = vmatprep.subr.bf16.mxu0 0
      %715 = vmatpush1.bf16.msra.mxu0 0
      %716 = vmatprep.subr.bf16.mxu0 0
      %717 = vmatpush1.bf16.msra.mxu0 0
      %718 = vmatprep.subr.bf16.mxu0 0
      %719 = vmatpush1.bf16.msra.mxu0 0
      %720 = vmatprep.subr.bf16.mxu0 0
      %721 = vmatpush1.bf16.msra.mxu0 0
      %722 = vmatprep.subr.bf16.mxu0 0
      %723 = vmatpush1.bf16.msra.mxu0 0
      %724 = vmatprep.subr.bf16.mxu0 0
      %725 = vmatpush1.bf16.msra.mxu0 0
      %726 = vmatprep.subr.bf16.mxu0 0
      %727 = vmatpush1.bf16.msra.mxu0 0
      %728 = vmatprep.subr.bf16.mxu0 0
      %729 = vmatpush1.bf16.msra.mxu0 0
      %730 = vmatprep.mubr.bf16.mxu0 0
      %731 = vmatmul.mubr.bf16.gmra.mrb[0].mxu0 %v687
      %v732 = vpop.f32.mrb[0].mxu0
      %v733 = vadd.f32 0.0, %v732
      %v734 = vpop.f32.mrb[0].mxu0
      %v735 = vpop.f32.mrb[0].mxu0
      %v736 = vadd.f32 0.0, %v735
      %v737 = vpop.f32.mrb[0].mxu0
      %738 = vmatprep.mubr.bf16.mxu0 0
      %739 = vmatmul.mubr.bf16.gmra.mrb[0].mxu0 %v690
      %v740 = vpop.f32.mrb[0].mxu0
      %v741 = vadd.f32 0.0, %v740
      %v742 = vpop.f32.mrb[0].mxu0
      %v743 = vpop.f32.mrb[0].mxu0
      %v744 = vadd.f32 0.0, %v743
      %v745 = vpop.f32.mrb[0].mxu0
      %746 = vmatprep.mubr.bf16.mxu0 0
      %747 = vmatmul.mubr.bf16.gmra.mrb[0].mxu0 %v693
      %v748 = vpop.f32.mrb[0].mxu0
      %v749 = vadd.f32 0.0, %v748
      %v750 = vpop.f32.mrb[0].mxu0
      %v751 = vpop.f32.mrb[0].mxu0
      %v752 = vadd.f32 0.0, %v751
      %v753 = vpop.f32.mrb[0].mxu0
      %754 = vmatprep.mubr.bf16.mxu0 0
      %755 = vmatmul.mubr.bf16.gmra.mrb[0].mxu0 %v696
      %v756 = vpop.f32.mrb[0].mxu0
      %v757 = vadd.f32 0.0, %v756
      %v758 = vpop.f32.mrb[0].mxu0
      %v759 = vpop.f32.mrb[0].mxu0
      %v760 = vadd.f32 0.0, %v759
      %v761 = vpop.f32.mrb[0].mxu0
      %762 = vdwg.mxu0
      %v763 = vld [vmem:[#allocation2] sm:$0xff]
      %v764 = vld [vmem:[#allocation2 + $0x8] sm:$0xff]
      %v765 = vld [vmem:[#allocation2 + $0x10] sm:$0xff]
      %v766 = vld [vmem:[#allocation2 + $0x18] sm:$0xff]
      %v767 = vld [vmem:[#allocation2 + $0x20] sm:$0xff]
      %v768 = vld [vmem:[#allocation2 + $0x28] sm:$0xff]
      %v769 = vld [vmem:[#allocation2 + $0x30] sm:$0xff]
      %v770 = vld [vmem:[#allocation2 + $0x38] sm:$0xff]
      %v771 = vadd.f32 %v763, %v733
      %v772 = vadd.f32 %v764, %v736
      %v773 = vadd.f32 %v765, %v741
      %v774 = vadd.f32 %v766, %v744
      %v775 = vadd.f32 %v767, %v749
      %v776 = vadd.f32 %v768, %v752
      %v777 = vadd.f32 %v769, %v757
      %v778 = vadd.f32 %v770, %v760
      %779 = vst [vmem:[#allocation2] sm:$0xff] %v771
      %780 = vst [vmem:[#allocation2 + $0x8] sm:$0xff] %v772
      %781 = vst [vmem:[#allocation2 + $0x10] sm:$0xff] %v773
      %782 = vst [vmem:[#allocation2 + $0x18] sm:$0xff] %v774
      %783 = vst [vmem:[#allocation2 + $0x20] sm:$0xff] %v775
      %784 = vst [vmem:[#allocation2 + $0x28] sm:$0xff] %v776
      %785 = vst [vmem:[#allocation2 + $0x30] sm:$0xff] %v777
      %786 = vst [vmem:[#allocation2 + $0x38] sm:$0xff] %v778
      %s787 = scalar_lea.vmem %s192, 8
      %v788 = vld [vmem:[%s787] sm:$0xf]
      %v789 = vld [vmem:[%s787 + $0x8] sm:$0xf]
      %v790 = vld [vmem:[%s787 + $0x10] sm:$0xf]
      %v791 = vld [vmem:[%s787 + $0x18] sm:$0xf]
      %v792 = vld [vmem:[%s787 + $0x20] sm:$0xf]
      %v793 = vld [vmem:[%s787 + $0x28] sm:$0xf]
      %v794 = vld [vmem:[%s787 + $0x30] sm:$0xf]
      %v795 = vld [vmem:[%s787 + $0x38] sm:$0xf]
      %s796 = scalar_lea.vmem %s1, 48
      %v797 = vld [vmem:[%s796] sm:$0xf]
      %v798 = vld [vmem:[%s796 + $0x4] sm:$0xf]
      %v799 = vld [vmem:[%s796 + $0x8] sm:$0xf]
      %v800 = vld [vmem:[%s796 + $0xc] sm:$0xf]
      %v809 = vunpack.c.l.b16 %v788
      %v810 = vunpack.c.l.b16 %v789
      %v811 = vunpack.c.l.b16 %v790
      %v812 = vunpack.c.l.b16 %v791
      %v813 = vunpack.c.l.b16 %v792
      %v814 = vunpack.c.l.b16 %v793
      %v815 = vunpack.c.l.b16 %v794
      %v816 = vunpack.c.l.b16 %v795
      %v817 = vpack.c.b16 %v810, %v809
      %v818 = vpack.c.b16 %v812, %v811
      %v819 = vpack.c.b16 %v814, %v813
      %v820 = vpack.c.b16 %v816, %v815
      %v825 = vunpack.c.l.b16 %v797
      %v826 = vunpack.c.l.b16 %v798
      %v827 = vunpack.c.l.b16 %v799
      %v828 = vunpack.c.l.b16 %v800
      %v829 = vpack.c.b16 %v826, %v825
      %v830 = vpack.c.b16 %v828, %v827
      %v834 = vsel %vm243, %v817, 0
      %v837 = vsel %vm243, %v818, 0
      %v840 = vsel %vm243, %v819, 0
      %v843 = vsel %vm243, %v820, 0
      %845 = vmatprep.subr.bf16.mxu0 0
      %846 = vmatpush1.bf16.msra.mxu0 %v829
      %847 = vmatprep.subr.bf16.mxu0 0
      %848 = vmatpush1.bf16.msra.mxu0 %v830
      %849 = vmatprep.subr.bf16.mxu0 0
      %850 = vmatpush1.bf16.msra.mxu0 0
      %851 = vmatprep.subr.bf16.mxu0 0
      %852 = vmatpush1.bf16.msra.mxu0 0
      %853 = vmatprep.subr.bf16.mxu0 0
      %854 = vmatpush1.bf16.msra.mxu0 0
      %855 = vmatprep.subr.bf16.mxu0 0
      %856 = vmatpush1.bf16.msra.mxu0 0
      %857 = vmatprep.subr.bf16.mxu0 0
      %858 = vmatpush1.bf16.msra.mxu0 0
      %859 = vmatprep.subr.bf16.mxu0 0
      %860 = vmatpush1.bf16.msra.mxu0 0
      %861 = vmatprep.subr.bf16.mxu0 0
      %862 = vmatpush1.bf16.msra.mxu0 0
      %863 = vmatprep.subr.bf16.mxu0 0
      %864 = vmatpush1.bf16.msra.mxu0 0
      %865 = vmatprep.subr.bf16.mxu0 0
      %866 = vmatpush1.bf16.msra.mxu0 0
      %867 = vmatprep.subr.bf16.mxu0 0
      %868 = vmatpush1.bf16.msra.mxu0 0
      %869 = vmatprep.subr.bf16.mxu0 0
      %870 = vmatpush1.bf16.msra.mxu0 0
      %871 = vmatprep.subr.bf16.mxu0 0
      %872 = vmatpush1.bf16.msra.mxu0 0
      %873 = vmatprep.subr.bf16.mxu0 0
      %874 = vmatpush1.bf16.msra.mxu0 0
      %875 = vmatprep.subr.bf16.mxu0 0
      %876 = vmatpush1.bf16.msra.mxu0 0
      %877 = vmatprep.mubr.bf16.mxu0 0
      %878 = vmatmul.mubr.bf16.gmra.mrb[0].mxu0 %v834
      %v879 = vpop.f32.mrb[0].mxu0
      %v880 = vadd.f32 0.0, %v879
      %v881 = vpop.f32.mrb[0].mxu0
      %v882 = vpop.f32.mrb[0].mxu0
      %v883 = vadd.f32 0.0, %v882
      %v884 = vpop.f32.mrb[0].mxu0
      %885 = vmatprep.mubr.bf16.mxu0 0
      %886 = vmatmul.mubr.bf16.gmra.mrb[0].mxu0 %v837
      %v887 = vpop.f32.mrb[0].mxu0
      %v888 = vadd.f32 0.0, %v887
      %v889 = vpop.f32.mrb[0].mxu0
      %v890 = vpop.f32.mrb[0].mxu0
      %v891 = vadd.f32 0.0, %v890
      %v892 = vpop.f32.mrb[0].mxu0
      %893 = vmatprep.mubr.bf16.mxu0 0
      %894 = vmatmul.mubr.bf16.gmra.mrb[0].mxu0 %v840
      %v895 = vpop.f32.mrb[0].mxu0
      %v896 = vadd.f32 0.0, %v895
      %v897 = vpop.f32.mrb[0].mxu0
      %v898 = vpop.f32.mrb[0].mxu0
      %v899 = vadd.f32 0.0, %v898
      %v900 = vpop.f32.mrb[0].mxu0
      %901 = vmatprep.mubr.bf16.mxu0 0
      %902 = vmatmul.mubr.bf16.gmra.mrb[0].mxu0 %v843
      %v903 = vpop.f32.mrb[0].mxu0
      %v904 = vadd.f32 0.0, %v903
      %v905 = vpop.f32.mrb[0].mxu0
      %v906 = vpop.f32.mrb[0].mxu0
      %v907 = vadd.f32 0.0, %v906
      %v908 = vpop.f32.mrb[0].mxu0
      %909 = vdwg.mxu0
      %v910 = vld [vmem:[#allocation2] sm:$0xff]
      %v911 = vld [vmem:[#allocation2 + $0x8] sm:$0xff]
      %v912 = vld [vmem:[#allocation2 + $0x10] sm:$0xff]
      %v913 = vld [vmem:[#allocation2 + $0x18] sm:$0xff]
      %v914 = vld [vmem:[#allocation2 + $0x20] sm:$0xff]
      %v915 = vld [vmem:[#allocation2 + $0x28] sm:$0xff]
      %v916 = vld [vmem:[#allocation2 + $0x30] sm:$0xff]
      %v917 = vld [vmem:[#allocation2 + $0x38] sm:$0xff]
      %v918 = vadd.f32 %v910, %v880
      %v919 = vadd.f32 %v911, %v883
      %v920 = vadd.f32 %v912, %v888
      %v921 = vadd.f32 %v913, %v891
      %v922 = vadd.f32 %v914, %v896
      %v923 = vadd.f32 %v915, %v899
      %v924 = vadd.f32 %v916, %v904
      %v925 = vadd.f32 %v917, %v907
      %926 = vst [vmem:[#allocation2] sm:$0xff] %v918
      %927 = vst [vmem:[#allocation2 + $0x8] sm:$0xff] %v919
      %928 = vst [vmem:[#allocation2 + $0x10] sm:$0xff] %v920
      %929 = vst [vmem:[#allocation2 + $0x18] sm:$0xff] %v921
      %930 = vst [vmem:[#allocation2 + $0x20] sm:$0xff] %v922
      %931 = vst [vmem:[#allocation2 + $0x28] sm:$0xff] %v923
      %932 = vst [vmem:[#allocation2 + $0x30] sm:$0xff] %v924
      %933 = vst [vmem:[#allocation2 + $0x38] sm:$0xff] %v925
      %v934 = vld [vmem:[%s787] sm:$0xf]
      %v935 = vld [vmem:[%s787 + $0x4] sm:$0x1]
      %v936 = vld [vmem:[%s787 + $0x8] sm:$0xf]
      %v937 = vld [vmem:[%s787 + $0xc] sm:$0x1]
      %v938 = vld [vmem:[%s787 + $0x10] sm:$0xf]
      %v939 = vld [vmem:[%s787 + $0x14] sm:$0x1]
      %v940 = vld [vmem:[%s787 + $0x18] sm:$0xf]
      %v941 = vld [vmem:[%s787 + $0x1c] sm:$0x1]
      %v942 = vld [vmem:[%s787 + $0x20] sm:$0xf]
      %v943 = vld [vmem:[%s787 + $0x24] sm:$0x1]
      %v944 = vld [vmem:[%s787 + $0x28] sm:$0xf]
      %v945 = vld [vmem:[%s787 + $0x2c] sm:$0x1]
      %v946 = vld [vmem:[%s787 + $0x30] sm:$0xf]
      %v947 = vld [vmem:[%s787 + $0x34] sm:$0x1]
      %v948 = vld [vmem:[%s787 + $0x38] sm:$0xf]
      %v949 = vld [vmem:[%s787 + $0x3c] sm:$0x1]
      %v951 = vshrl.u32 %v934, 16
      %v953 = vrot.slane %v951, 4
      %v954 = vshll.u32 %v934, 16
      %v956 = vrot.slane %v954, 5
      %v957 = vor.u32 %v953, %v956
      %v958 = vrot.slane %v957, 4
      %v960 = vshll.u32 %v935, 16
      %v962 = vrot.slane %v960, 5
      %v963 = vsel %vm347, %v958, %v962
      %v965 = vshrl.u32 %v936, 16
      %v967 = vrot.slane %v965, 4
      %v968 = vshll.u32 %v936, 16
      %v970 = vrot.slane %v968, 5
      %v971 = vor.u32 %v967, %v970
      %v972 = vrot.slane %v971, 4
      %v974 = vshll.u32 %v937, 16
      %v976 = vrot.slane %v974, 5
      %v977 = vsel %vm347, %v972, %v976
      %v979 = vshrl.u32 %v938, 16
      %v981 = vrot.slane %v979, 4
      %v982 = vshll.u32 %v938, 16
      %v984 = vrot.slane %v982, 5
      %v985 = vor.u32 %v981, %v984
      %v986 = vrot.slane %v985, 4
      %v988 = vshll.u32 %v939, 16
      %v990 = vrot.slane %v988, 5
      %v991 = vsel %vm347, %v986, %v990
      %v993 = vshrl.u32 %v940, 16
      %v995 = vrot.slane %v993, 4
      %v996 = vshll.u32 %v940, 16
      %v998 = vrot.slane %v996, 5
      %v999 = vor.u32 %v995, %v998
      %v1000 = vrot.slane %v999, 4
      %v1002 = vshll.u32 %v941, 16
      %v1004 = vrot.slane %v1002, 5
      %v1005 = vsel %vm347, %v1000, %v1004
      %v1007 = vshrl.u32 %v942, 16
      %v1009 = vrot.slane %v1007, 4
      %v1010 = vshll.u32 %v942, 16
      %v1012 = vrot.slane %v1010, 5
      %v1013 = vor.u32 %v1009, %v1012
      %v1014 = vrot.slane %v1013, 4
      %v1016 = vshll.u32 %v943, 16
      %v1018 = vrot.slane %v1016, 5
      %v1019 = vsel %vm347, %v1014, %v1018
      %v1021 = vshrl.u32 %v944, 16
      %v1023 = vrot.slane %v1021, 4
      %v1024 = vshll.u32 %v944, 16
      %v1026 = vrot.slane %v1024, 5
      %v1027 = vor.u32 %v1023, %v1026
      %v1028 = vrot.slane %v1027, 4
      %v1030 = vshll.u32 %v945, 16
      %v1032 = vrot.slane %v1030, 5
      %v1033 = vsel %vm347, %v1028, %v1032
      %v1035 = vshrl.u32 %v946, 16
      %v1037 = vrot.slane %v1035, 4
      %v1038 = vshll.u32 %v946, 16
      %v1040 = vrot.slane %v1038, 5
      %v1041 = vor.u32 %v1037, %v1040
      %v1042 = vrot.slane %v1041, 4
      %v1044 = vshll.u32 %v947, 16
      %v1046 = vrot.slane %v1044, 5
      %v1047 = vsel %vm347, %v1042, %v1046
      %v1049 = vshrl.u32 %v948, 16
      %v1051 = vrot.slane %v1049, 4
      %v1052 = vshll.u32 %v948, 16
      %v1054 = vrot.slane %v1052, 5
      %v1055 = vor.u32 %v1051, %v1054
      %v1056 = vrot.slane %v1055, 4
      %v1058 = vshll.u32 %v949, 16
      %v1060 = vrot.slane %v1058, 5
      %v1061 = vsel %vm347, %v1056, %v1060
      %s1062 = scalar_lea.vmem %s1, 64
      %v1063 = vld [vmem:[%s1062] sm:$0xf]
      %v1064 = vld [vmem:[%s1062 + $0x4] sm:$0xf]
      %v1065 = vld [vmem:[%s1062 + $0x8] sm:$0xf]
      %v1066 = vld [vmem:[%s1062 + $0xc] sm:$0xf]
      %v1067 = vunpack.c.l.b16 %v963
      %v1068 = vunpack.c.l.b16 %v977
      %v1069 = vunpack.c.l.b16 %v991
      %v1070 = vunpack.c.l.b16 %v1005
      %v1071 = vunpack.c.l.b16 %v1019
      %v1072 = vunpack.c.l.b16 %v1033
      %v1073 = vunpack.c.l.b16 %v1047
      %v1074 = vunpack.c.l.b16 %v1061
      %v1075 = vpack.c.b16 %v1068, %v1067
      %v1076 = vpack.c.b16 %v1070, %v1069
      %v1077 = vpack.c.b16 %v1072, %v1071
      %v1078 = vpack.c.b16 %v1074, %v1073
      %v1083 = vunpack.c.l.b16 %v1063
      %v1084 = vunpack.c.l.b16 %v1064
      %v1085 = vunpack.c.l.b16 %v1065
      %v1086 = vunpack.c.l.b16 %v1066
      %v1087 = vpack.c.b16 %v1084, %v1083
      %v1088 = vpack.c.b16 %v1086, %v1085
      %v1092 = vsel %vm243, %v1075, 0
      %v1095 = vsel %vm243, %v1076, 0
      %v1098 = vsel %vm243, %v1077, 0
      %v1101 = vsel %vm243, %v1078, 0
      %1103 = vmatprep.subr.bf16.mxu0 0
      %1104 = vmatpush1.bf16.msra.mxu0 %v1087
      %1105 = vmatprep.subr.bf16.mxu0 0
      %1106 = vmatpush1.bf16.msra.mxu0 %v1088
      %1107 = vmatprep.subr.bf16.mxu0 0
      %1108 = vmatpush1.bf16.msra.mxu0 0
      %1109 = vmatprep.subr.bf16.mxu0 0
      %1110 = vmatpush1.bf16.msra.mxu0 0
      %1111 = vmatprep.subr.bf16.mxu0 0
      %1112 = vmatpush1.bf16.msra.mxu0 0
      %1113 = vmatprep.subr.bf16.mxu0 0
      %1114 = vmatpush1.bf16.msra.mxu0 0
      %1115 = vmatprep.subr.bf16.mxu0 0
      %1116 = vmatpush1.bf16.msra.mxu0 0
      %1117 = vmatprep.subr.bf16.mxu0 0
      %1118 = vmatpush1.bf16.msra.mxu0 0
      %1119 = vmatprep.subr.bf16.mxu0 0
      %1120 = vmatpush1.bf16.msra.mxu0 0
      %1121 = vmatprep.subr.bf16.mxu0 0
      %1122 = vmatpush1.bf16.msra.mxu0 0
      %1123 = vmatprep.subr.bf16.mxu0 0
      %1124 = vmatpush1.bf16.msra.mxu0 0
      %1125 = vmatprep.subr.bf16.mxu0 0
      %1126 = vmatpush1.bf16.msra.mxu0 0
      %1127 = vmatprep.subr.bf16.mxu0 0
      %1128 = vmatpush1.bf16.msra.mxu0 0
      %1129 = vmatprep.subr.bf16.mxu0 0
      %1130 = vmatpush1.bf16.msra.mxu0 0
      %1131 = vmatprep.subr.bf16.mxu0 0
      %1132 = vmatpush1.bf16.msra.mxu0 0
      %1133 = vmatprep.subr.bf16.mxu0 0
      %1134 = vmatpush1.bf16.msra.mxu0 0
      %1135 = vmatprep.mubr.bf16.mxu0 0
      %1136 = vmatmul.mubr.bf16.gmra.mrb[0].mxu0 %v1092
      %v1137 = vpop.f32.mrb[0].mxu0
      %v1138 = vadd.f32 0.0, %v1137
      %v1139 = vpop.f32.mrb[0].mxu0
      %v1140 = vpop.f32.mrb[0].mxu0
      %v1141 = vadd.f32 0.0, %v1140
      %v1142 = vpop.f32.mrb[0].mxu0
      %1143 = vmatprep.mubr.bf16.mxu0 0
      %1144 = vmatmul.mubr.bf16.gmra.mrb[0].mxu0 %v1095
      %v1145 = vpop.f32.mrb[0].mxu0
      %v1146 = vadd.f32 0.0, %v1145
      %v1147 = vpop.f32.mrb[0].mxu0
      %v1148 = vpop.f32.mrb[0].mxu0
      %v1149 = vadd.f32 0.0, %v1148
      %v1150 = vpop.f32.mrb[0].mxu0
      %1151 = vmatprep.mubr.bf16.mxu0 0
      %1152 = vmatmul.mubr.bf16.gmra.mrb[0].mxu0 %v1098
      %v1153 = vpop.f32.mrb[0].mxu0
      %v1154 = vadd.f32 0.0, %v1153
      %v1155 = vpop.f32.mrb[0].mxu0
      %v1156 = vpop.f32.mrb[0].mxu0
      %v1157 = vadd.f32 0.0, %v1156
      %v1158 = vpop.f32.mrb[0].mxu0
      %1159 = vmatprep.mubr.bf16.mxu0 0
      %1160 = vmatmul.mubr.bf16.gmra.mrb[0].mxu0 %v1101
      %v1161 = vpop.f32.mrb[0].mxu0
      %v1162 = vadd.f32 0.0, %v1161
      %v1163 = vpop.f32.mrb[0].mxu0
      %v1164 = vpop.f32.mrb[0].mxu0
      %v1165 = vadd.f32 0.0, %v1164
      %v1166 = vpop.f32.mrb[0].mxu0
      %1167 = vdwg.mxu0
      %v1168 = vld [vmem:[#allocation2] sm:$0xff]
      %v1169 = vld [vmem:[#allocation2 + $0x8] sm:$0xff]
      %v1170 = vld [vmem:[#allocation2 + $0x10] sm:$0xff]
      %v1171 = vld [vmem:[#allocation2 + $0x18] sm:$0xff]
      %v1172 = vld [vmem:[#allocation2 + $0x20] sm:$0xff]
      %v1173 = vld [vmem:[#allocation2 + $0x28] sm:$0xff]
      %v1174 = vld [vmem:[#allocation2 + $0x30] sm:$0xff]
      %v1175 = vld [vmem:[#allocation2 + $0x38] sm:$0xff]
      %v1176 = vadd.f32 %v1168, %v1138
      %v1177 = vadd.f32 %v1169, %v1141
      %v1178 = vadd.f32 %v1170, %v1146
      %v1179 = vadd.f32 %v1171, %v1149
      %v1180 = vadd.f32 %v1172, %v1154
      %v1181 = vadd.f32 %v1173, %v1157
      %v1182 = vadd.f32 %v1174, %v1162
      %v1183 = vadd.f32 %v1175, %v1165
      %1184 = vst [vmem:[#allocation2] sm:$0xff] %v1176
      %1185 = vst [vmem:[#allocation2 + $0x8] sm:$0xff] %v1177
      %1186 = vst [vmem:[#allocation2 + $0x10] sm:$0xff] %v1178
      %1187 = vst [vmem:[#allocation2 + $0x18] sm:$0xff] %v1179
      %1188 = vst [vmem:[#allocation2 + $0x20] sm:$0xff] %v1180
      %1189 = vst [vmem:[#allocation2 + $0x28] sm:$0xff] %v1181
      %1190 = vst [vmem:[#allocation2 + $0x30] sm:$0xff] %v1182
      %1191 = vst [vmem:[#allocation2 + $0x38] sm:$0xff] %v1183
      %v1192 = vld [vmem:[%s787] sm:$0xe]
      %v1193 = vld [vmem:[%s787 + $0x4] sm:$0x1]
      %v1194 = vld [vmem:[%s787 + $0x8] sm:$0xe]
      %v1195 = vld [vmem:[%s787 + $0xc] sm:$0x1]
      %v1196 = vld [vmem:[%s787 + $0x10] sm:$0xe]
      %v1197 = vld [vmem:[%s787 + $0x14] sm:$0x1]
      %v1198 = vld [vmem:[%s787 + $0x18] sm:$0xe]
      %v1199 = vld [vmem:[%s787 + $0x1c] sm:$0x1]
      %v1200 = vld [vmem:[%s787 + $0x20] sm:$0xe]
      %v1201 = vld [vmem:[%s787 + $0x24] sm:$0x1]
      %v1202 = vld [vmem:[%s787 + $0x28] sm:$0xe]
      %v1203 = vld [vmem:[%s787 + $0x2c] sm:$0x1]
      %v1204 = vld [vmem:[%s787 + $0x30] sm:$0xe]
      %v1205 = vld [vmem:[%s787 + $0x34] sm:$0x1]
      %v1206 = vld [vmem:[%s787 + $0x38] sm:$0xe]
      %v1207 = vld [vmem:[%s787 + $0x3c] sm:$0x1]
      %v1224 = vrot.slane %v1192, 5
      %v1225 = vrot.slane %v1224, 4
      %v1226 = vrot.slane %v1193, 5
      %v1227 = vsel %vm624, %v1225, %v1226
      %v1228 = vrot.slane %v1194, 5
      %v1229 = vrot.slane %v1228, 4
      %v1230 = vrot.slane %v1195, 5
      %v1231 = vsel %vm624, %v1229, %v1230
      %v1232 = vrot.slane %v1196, 5
      %v1233 = vrot.slane %v1232, 4
      %v1234 = vrot.slane %v1197, 5
      %v1235 = vsel %vm624, %v1233, %v1234
      %v1236 = vrot.slane %v1198, 5
      %v1237 = vrot.slane %v1236, 4
      %v1238 = vrot.slane %v1199, 5
      %v1239 = vsel %vm624, %v1237, %v1238
      %v1240 = vrot.slane %v1200, 5
      %v1241 = vrot.slane %v1240, 4
      %v1242 = vrot.slane %v1201, 5
      %v1243 = vsel %vm624, %v1241, %v1242
      %v1244 = vrot.slane %v1202, 5
      %v1245 = vrot.slane %v1244, 4
      %v1246 = vrot.slane %v1203, 5
      %v1247 = vsel %vm624, %v1245, %v1246
      %v1248 = vrot.slane %v1204, 5
      %v1249 = vrot.slane %v1248, 4
      %v1250 = vrot.slane %v1205, 5
      %v1251 = vsel %vm624, %v1249, %v1250
      %v1252 = vrot.slane %v1206, 5
      %v1253 = vrot.slane %v1252, 4
      %v1254 = vrot.slane %v1207, 5
      %v1255 = vsel %vm624, %v1253, %v1254
      %s1256 = scalar_lea.vmem %s1, 80
      %v1257 = vld [vmem:[%s1256] sm:$0xf]
      %v1258 = vld [vmem:[%s1256 + $0x4] sm:$0xf]
      %v1259 = vld [vmem:[%s1256 + $0x8] sm:$0xf]
      %v1260 = vld [vmem:[%s1256 + $0xc] sm:$0xf]
      %v1261 = vunpack.c.l.b16 %v1227
      %v1262 = vunpack.c.l.b16 %v1231
      %v1263 = vunpack.c.l.b16 %v1235
      %v1264 = vunpack.c.l.b16 %v1239
      %v1265 = vunpack.c.l.b16 %v1243
      %v1266 = vunpack.c.l.b16 %v1247
      %v1267 = vunpack.c.l.b16 %v1251
      %v1268 = vunpack.c.l.b16 %v1255
      %v1269 = vpack.c.b16 %v1262, %v1261
      %v1270 = vpack.c.b16 %v1264, %v1263
      %v1271 = vpack.c.b16 %v1266, %v1265
      %v1272 = vpack.c.b16 %v1268, %v1267
      %v1277 = vunpack.c.l.b16 %v1257
      %v1278 = vunpack.c.l.b16 %v1258
      %v1279 = vunpack.c.l.b16 %v1259
      %v1280 = vunpack.c.l.b16 %v1260
      %v1281 = vpack.c.b16 %v1278, %v1277
      %v1282 = vpack.c.b16 %v1280, %v1279
      %v1286 = vsel %vm243, %v1269, 0
      %v1289 = vsel %vm243, %v1270, 0
      %v1292 = vsel %vm243, %v1271, 0
      %v1295 = vsel %vm243, %v1272, 0
      %1297 = vmatprep.subr.bf16.mxu0 0
      %1298 = vmatpush1.bf16.msra.mxu0 %v1281
      %1299 = vmatprep.subr.bf16.mxu0 0
      %1300 = vmatpush1.bf16.msra.mxu0 %v1282
      %1301 = vmatprep.subr.bf16.mxu0 0
      %1302 = vmatpush1.bf16.msra.mxu0 0
      %1303 = vmatprep.subr.bf16.mxu0 0
      %1304 = vmatpush1.bf16.msra.mxu0 0
      %1305 = vmatprep.subr.bf16.mxu0 0
      %1306 = vmatpush1.bf16.msra.mxu0 0
      %1307 = vmatprep.subr.bf16.mxu0 0
      %1308 = vmatpush1.bf16.msra.mxu0 0
      %1309 = vmatprep.subr.bf16.mxu0 0
      %1310 = vmatpush1.bf16.msra.mxu0 0
      %1311 = vmatprep.subr.bf16.mxu0 0
      %1312 = vmatpush1.bf16.msra.mxu0 0
      %1313 = vmatprep.subr.bf16.mxu0 0
      %1314 = vmatpush1.bf16.msra.mxu0 0
      %1315 = vmatprep.subr.bf16.mxu0 0
      %1316 = vmatpush1.bf16.msra.mxu0 0
      %1317 = vmatprep.subr.bf16.mxu0 0
      %1318 = vmatpush1.bf16.msra.mxu0 0
      %1319 = vmatprep.subr.bf16.mxu0 0
      %1320 = vmatpush1.bf16.msra.mxu0 0
      %1321 = vmatprep.subr.bf16.mxu0 0
      %1322 = vmatpush1.bf16.msra.mxu0 0
      %1323 = vmatprep.subr.bf16.mxu0 0
      %1324 = vmatpush1.bf16.msra.mxu0 0
      %1325 = vmatprep.subr.bf16.mxu0 0
      %1326 = vmatpush1.bf16.msra.mxu0 0
      %1327 = vmatprep.subr.bf16.mxu0 0
      %1328 = vmatpush1.bf16.msra.mxu0 0
      %1329 = vmatprep.mubr.bf16.mxu0 0
      %1330 = vmatmul.mubr.bf16.gmra.mrb[0].mxu0 %v1286
      %v1331 = vpop.f32.mrb[0].mxu0
      %v1332 = vadd.f32 0.0, %v1331
      %v1333 = vpop.f32.mrb[0].mxu0
      %v1334 = vpop.f32.mrb[0].mxu0
      %v1335 = vadd.f32 0.0, %v1334
      %v1336 = vpop.f32.mrb[0].mxu0
      %1337 = vmatprep.mubr.bf16.mxu0 0
      %1338 = vmatmul.mubr.bf16.gmra.mrb[0].mxu0 %v1289
      %v1339 = vpop.f32.mrb[0].mxu0
      %v1340 = vadd.f32 0.0, %v1339
      %v1341 = vpop.f32.mrb[0].mxu0
      %v1342 = vpop.f32.mrb[0].mxu0
      %v1343 = vadd.f32 0.0, %v1342
      %v1344 = vpop.f32.mrb[0].mxu0
      %1345 = vmatprep.mubr.bf16.mxu0 0
      %1346 = vmatmul.mubr.bf16.gmra.mrb[0].mxu0 %v1292
      %v1347 = vpop.f32.mrb[0].mxu0
      %v1348 = vadd.f32 0.0, %v1347
      %v1349 = vpop.f32.mrb[0].mxu0
      %v1350 = vpop.f32.mrb[0].mxu0
      %v1351 = vadd.f32 0.0, %v1350
      %v1352 = vpop.f32.mrb[0].mxu0
      %1353 = vmatprep.mubr.bf16.mxu0 0
      %1354 = vmatmul.mubr.bf16.gmra.mrb[0].mxu0 %v1295
      %v1355 = vpop.f32.mrb[0].mxu0
      %v1356 = vadd.f32 0.0, %v1355
      %v1357 = vpop.f32.mrb[0].mxu0
      %v1358 = vpop.f32.mrb[0].mxu0
      %v1359 = vadd.f32 0.0, %v1358
      %v1360 = vpop.f32.mrb[0].mxu0
      %1361 = vdwg.mxu0
      %v1362 = vld [vmem:[#allocation2] sm:$0xff]
      %v1363 = vld [vmem:[#allocation2 + $0x8] sm:$0xff]
      %v1364 = vld [vmem:[#allocation2 + $0x10] sm:$0xff]
      %v1365 = vld [vmem:[#allocation2 + $0x18] sm:$0xff]
      %v1366 = vld [vmem:[#allocation2 + $0x20] sm:$0xff]
      %v1367 = vld [vmem:[#allocation2 + $0x28] sm:$0xff]
      %v1368 = vld [vmem:[#allocation2 + $0x30] sm:$0xff]
      %v1369 = vld [vmem:[#allocation2 + $0x38] sm:$0xff]
      %v1370 = vadd.f32 %v1362, %v1332
      %v1371 = vadd.f32 %v1363, %v1335
      %v1372 = vadd.f32 %v1364, %v1340
      %v1373 = vadd.f32 %v1365, %v1343
      %v1374 = vadd.f32 %v1366, %v1348
      %v1375 = vadd.f32 %v1367, %v1351
      %v1376 = vadd.f32 %v1368, %v1356
      %v1377 = vadd.f32 %v1369, %v1359
      %1378 = vst [vmem:[#allocation2] sm:$0xff] %v1370
      %1379 = vst [vmem:[#allocation2 + $0x8] sm:$0xff] %v1371
      %1380 = vst [vmem:[#allocation2 + $0x10] sm:$0xff] %v1372
      %1381 = vst [vmem:[#allocation2 + $0x18] sm:$0xff] %v1373
      %1382 = vst [vmem:[#allocation2 + $0x20] sm:$0xff] %v1374
      %1383 = vst [vmem:[#allocation2 + $0x28] sm:$0xff] %v1375
      %1384 = vst [vmem:[#allocation2 + $0x30] sm:$0xff] %v1376
      %1385 = vst [vmem:[#allocation2 + $0x38] sm:$0xff] %v1377
      %s1386 = scalar_lea.vmem %s192, 16
      %v1387 = vld [vmem:[%s1386] sm:$0xf]
      %v1388 = vld [vmem:[%s1386 + $0x8] sm:$0xf]
      %v1389 = vld [vmem:[%s1386 + $0x10] sm:$0xf]
      %v1390 = vld [vmem:[%s1386 + $0x18] sm:$0xf]
      %v1391 = vld [vmem:[%s1386 + $0x20] sm:$0xf]
      %v1392 = vld [vmem:[%s1386 + $0x28] sm:$0xf]
      %v1393 = vld [vmem:[%s1386 + $0x30] sm:$0xf]
      %v1394 = vld [vmem:[%s1386 + $0x38] sm:$0xf]
      %s1395 = scalar_lea.vmem %s1, 96
      %v1396 = vld [vmem:[%s1395] sm:$0xf]
      %v1397 = vld [vmem:[%s1395 + $0x4] sm:$0xf]
      %v1398 = vld [vmem:[%s1395 + $0x8] sm:$0xf]
      %v1399 = vld [vmem:[%s1395 + $0xc] sm:$0xf]
      %v1408 = vunpack.c.l.b16 %v1387
      %v1409 = vunpack.c.l.b16 %v1388
      %v1410 = vunpack.c.l.b16 %v1389
      %v1411 = vunpack.c.l.b16 %v1390
      %v1412 = vunpack.c.l.b16 %v1391
      %v1413 = vunpack.c.l.b16 %v1392
      %v1414 = vunpack.c.l.b16 %v1393
      %v1415 = vunpack.c.l.b16 %v1394
      %v1416 = vpack.c.b16 %v1409, %v1408
      %v1417 = vpack.c.b16 %v1411, %v1410
      %v1418 = vpack.c.b16 %v1413, %v1412
      %v1419 = vpack.c.b16 %v1415, %v1414
      %v1424 = vunpack.c.l.b16 %v1396
      %v1425 = vunpack.c.l.b16 %v1397
      %v1426 = vunpack.c.l.b16 %v1398
      %v1427 = vunpack.c.l.b16 %v1399
      %v1428 = vpack.c.b16 %v1425, %v1424
      %v1429 = vpack.c.b16 %v1427, %v1426
      %v1433 = vsel %vm243, %v1416, 0
      %v1436 = vsel %vm243, %v1417, 0
      %v1439 = vsel %vm243, %v1418, 0
      %v1442 = vsel %vm243, %v1419, 0
      %1444 = vmatprep.subr.bf16.mxu0 0
      %1445 = vmatpush1.bf16.msra.mxu0 %v1428
      %1446 = vmatprep.subr.bf16.mxu0 0
      %1447 = vmatpush1.bf16.msra.mxu0 %v1429
      %1448 = vmatprep.subr.bf16.mxu0 0
      %1449 = vmatpush1.bf16.msra.mxu0 0
      %1450 = vmatprep.subr.bf16.mxu0 0
      %1451 = vmatpush1.bf16.msra.mxu0 0
      %1452 = vmatprep.subr.bf16.mxu0 0
      %1453 = vmatpush1.bf16.msra.mxu0 0
      %1454 = vmatprep.subr.bf16.mxu0 0
      %1455 = vmatpush1.bf16.msra.mxu0 0
      %1456 = vmatprep.subr.bf16.mxu0 0
      %1457 = vmatpush1.bf16.msra.mxu0 0
      %1458 = vmatprep.subr.bf16.mxu0 0
      %1459 = vmatpush1.bf16.msra.mxu0 0
      %1460 = vmatprep.subr.bf16.mxu0 0
      %1461 = vmatpush1.bf16.msra.mxu0 0
      %1462 = vmatprep.subr.bf16.mxu0 0
      %1463 = vmatpush1.bf16.msra.mxu0 0
      %1464 = vmatprep.subr.bf16.mxu0 0
      %1465 = vmatpush1.bf16.msra.mxu0 0
      %1466 = vmatprep.subr.bf16.mxu0 0
      %1467 = vmatpush1.bf16.msra.mxu0 0
      %1468 = vmatprep.subr.bf16.mxu0 0
      %1469 = vmatpush1.bf16.msra.mxu0 0
      %1470 = vmatprep.subr.bf16.mxu0 0
      %1471 = vmatpush1.bf16.msra.mxu0 0
      %1472 = vmatprep.subr.bf16.mxu0 0
      %1473 = vmatpush1.bf16.msra.mxu0 0
      %1474 = vmatprep.subr.bf16.mxu0 0
      %1475 = vmatpush1.bf16.msra.mxu0 0
      %1476 = vmatprep.mubr.bf16.mxu0 0
      %1477 = vmatmul.mubr.bf16.gmra.mrb[0].mxu0 %v1433
      %v1478 = vpop.f32.mrb[0].mxu0
      %v1479 = vadd.f32 0.0, %v1478
      %v1480 = vpop.f32.mrb[0].mxu0
      %v1481 = vpop.f32.mrb[0].mxu0
      %v1482 = vadd.f32 0.0, %v1481
      %v1483 = vpop.f32.mrb[0].mxu0
      %1484 = vmatprep.mubr.bf16.mxu0 0
      %1485 = vmatmul.mubr.bf16.gmra.mrb[0].mxu0 %v1436
      %v1486 = vpop.f32.mrb[0].mxu0
      %v1487 = vadd.f32 0.0, %v1486
      %v1488 = vpop.f32.mrb[0].mxu0
      %v1489 = vpop.f32.mrb[0].mxu0
      %v1490 = vadd.f32 0.0, %v1489
      %v1491 = vpop.f32.mrb[0].mxu0
      %1492 = vmatprep.mubr.bf16.mxu0 0
      %1493 = vmatmul.mubr.bf16.gmra.mrb[0].mxu0 %v1439
      %v1494 = vpop.f32.mrb[0].mxu0
      %v1495 = vadd.f32 0.0, %v1494
      %v1496 = vpop.f32.mrb[0].mxu0
      %v1497 = vpop.f32.mrb[0].mxu0
      %v1498 = vadd.f32 0.0, %v1497
      %v1499 = vpop.f32.mrb[0].mxu0
      %1500 = vmatprep.mubr.bf16.mxu0 0
      %1501 = vmatmul.mubr.bf16.gmra.mrb[0].mxu0 %v1442
      %v1502 = vpop.f32.mrb[0].mxu0
      %v1503 = vadd.f32 0.0, %v1502
      %v1504 = vpop.f32.mrb[0].mxu0
      %v1505 = vpop.f32.mrb[0].mxu0
      %v1506 = vadd.f32 0.0, %v1505
      %v1507 = vpop.f32.mrb[0].mxu0
      %1508 = vdwg.mxu0
      %v1509 = vld [vmem:[#allocation2] sm:$0xff]
      %v1510 = vld [vmem:[#allocation2 + $0x8] sm:$0xff]
      %v1511 = vld [vmem:[#allocation2 + $0x10] sm:$0xff]
      %v1512 = vld [vmem:[#allocation2 + $0x18] sm:$0xff]
      %v1513 = vld [vmem:[#allocation2 + $0x20] sm:$0xff]
      %v1514 = vld [vmem:[#allocation2 + $0x28] sm:$0xff]
      %v1515 = vld [vmem:[#allocation2 + $0x30] sm:$0xff]
      %v1516 = vld [vmem:[#allocation2 + $0x38] sm:$0xff]
      %v1517 = vadd.f32 %v1509, %v1479
      %v1518 = vadd.f32 %v1510, %v1482
      %v1519 = vadd.f32 %v1511, %v1487
      %v1520 = vadd.f32 %v1512, %v1490
      %v1521 = vadd.f32 %v1513, %v1495
      %v1522 = vadd.f32 %v1514, %v1498
      %v1523 = vadd.f32 %v1515, %v1503
      %v1524 = vadd.f32 %v1516, %v1506
      %1525 = vst [vmem:[#allocation2] sm:$0xff] %v1517
      %1526 = vst [vmem:[#allocation2 + $0x8] sm:$0xff] %v1518
      %1527 = vst [vmem:[#allocation2 + $0x10] sm:$0xff] %v1519
      %1528 = vst [vmem:[#allocation2 + $0x18] sm:$0xff] %v1520
      %1529 = vst [vmem:[#allocation2 + $0x20] sm:$0xff] %v1521
      %1530 = vst [vmem:[#allocation2 + $0x28] sm:$0xff] %v1522
      %1531 = vst [vmem:[#allocation2 + $0x30] sm:$0xff] %v1523
      %1532 = vst [vmem:[#allocation2 + $0x38] sm:$0xff] %v1524
      %v1533 = vld [vmem:[%s1386] sm:$0xf]
      %v1534 = vld [vmem:[%s1386 + $0x4] sm:$0x1]
      %v1535 = vld [vmem:[%s1386 + $0x8] sm:$0xf]
      %v1536 = vld [vmem:[%s1386 + $0xc] sm:$0x1]
      %v1537 = vld [vmem:[%s1386 + $0x10] sm:$0xf]
      %v1538 = vld [vmem:[%s1386 + $0x14] sm:$0x1]
      %v1539 = vld [vmem:[%s1386 + $0x18] sm:$0xf]
      %v1540 = vld [vmem:[%s1386 + $0x1c] sm:$0x1]
      %v1541 = vld [vmem:[%s1386 + $0x20] sm:$0xf]
      %v1542 = vld [vmem:[%s1386 + $0x24] sm:$0x1]
      %v1543 = vld [vmem:[%s1386 + $0x28] sm:$0xf]
      %v1544 = vld [vmem:[%s1386 + $0x2c] sm:$0x1]
      %v1545 = vld [vmem:[%s1386 + $0x30] sm:$0xf]
      %v1546 = vld [vmem:[%s1386 + $0x34] sm:$0x1]
      %v1547 = vld [vmem:[%s1386 + $0x38] sm:$0xf]
      %v1548 = vld [vmem:[%s1386 + $0x3c] sm:$0x1]
      %v1550 = vshrl.u32 %v1533, 16
      %v1552 = vrot.slane %v1550, 4
      %v1553 = vshll.u32 %v1533, 16
      %v1555 = vrot.slane %v1553, 5
      %v1556 = vor.u32 %v1552, %v1555
      %v1557 = vrot.slane %v1556, 4
      %v1559 = vshll.u32 %v1534, 16
      %v1561 = vrot.slane %v1559, 5
      %v1562 = vsel %vm347, %v1557, %v1561
      %v1564 = vshrl.u32 %v1535, 16
      %v1566 = vrot.slane %v1564, 4
      %v1567 = vshll.u32 %v1535, 16
      %v1569 = vrot.slane %v1567, 5
      %v1570 = vor.u32 %v1566, %v1569
      %v1571 = vrot.slane %v1570, 4
      %v1573 = vshll.u32 %v1536, 16
      %v1575 = vrot.slane %v1573, 5
      %v1576 = vsel %vm347, %v1571, %v1575
      %v1578 = vshrl.u32 %v1537, 16
      %v1580 = vrot.slane %v1578, 4
      %v1581 = vshll.u32 %v1537, 16
      %v1583 = vrot.slane %v1581, 5
      %v1584 = vor.u32 %v1580, %v1583
      %v1585 = vrot.slane %v1584, 4
      %v1587 = vshll.u32 %v1538, 16
      %v1589 = vrot.slane %v1587, 5
      %v1590 = vsel %vm347, %v1585, %v1589
      %v1592 = vshrl.u32 %v1539, 16
      %v1594 = vrot.slane %v1592, 4
      %v1595 = vshll.u32 %v1539, 16
      %v1597 = vrot.slane %v1595, 5
      %v1598 = vor.u32 %v1594, %v1597
      %v1599 = vrot.slane %v1598, 4
      %v1601 = vshll.u32 %v1540, 16
      %v1603 = vrot.slane %v1601, 5
      %v1604 = vsel %vm347, %v1599, %v1603
      %v1606 = vshrl.u32 %v1541, 16
      %v1608 = vrot.slane %v1606, 4
      %v1609 = vshll.u32 %v1541, 16
      %v1611 = vrot.slane %v1609, 5
      %v1612 = vor.u32 %v1608, %v1611
      %v1613 = vrot.slane %v1612, 4
      %v1615 = vshll.u32 %v1542, 16
      %v1617 = vrot.slane %v1615, 5
      %v1618 = vsel %vm347, %v1613, %v1617
      %v1620 = vshrl.u32 %v1543, 16
      %v1622 = vrot.slane %v1620, 4
      %v1623 = vshll.u32 %v1543, 16
      %v1625 = vrot.slane %v1623, 5
      %v1626 = vor.u32 %v1622, %v1625
      %v1627 = vrot.slane %v1626, 4
      %v1629 = vshll.u32 %v1544, 16
      %v1631 = vrot.slane %v1629, 5
      %v1632 = vsel %vm347, %v1627, %v1631
      %v1634 = vshrl.u32 %v1545, 16
      %v1636 = vrot.slane %v1634, 4
      %v1637 = vshll.u32 %v1545, 16
      %v1639 = vrot.slane %v1637, 5
      %v1640 = vor.u32 %v1636, %v1639
      %v1641 = vrot.slane %v1640, 4
      %v1643 = vshll.u32 %v1546, 16
      %v1645 = vrot.slane %v1643, 5
      %v1646 = vsel %vm347, %v1641, %v1645
      %v1648 = vshrl.u32 %v1547, 16
      %v1650 = vrot.slane %v1648, 4
      %v1651 = vshll.u32 %v1547, 16
      %v1653 = vrot.slane %v1651, 5
      %v1654 = vor.u32 %v1650, %v1653
      %v1655 = vrot.slane %v1654, 4
      %v1657 = vshll.u32 %v1548, 16
      %v1659 = vrot.slane %v1657, 5
      %v1660 = vsel %vm347, %v1655, %v1659
      %s1661 = scalar_lea.vmem %s1, 112
      %v1662 = vld [vmem:[%s1661] sm:$0xf]
      %v1663 = vld [vmem:[%s1661 + $0x4] sm:$0xf]
      %v1664 = vld [vmem:[%s1661 + $0x8] sm:$0xf]
      %v1665 = vld [vmem:[%s1661 + $0xc] sm:$0xf]
      %v1666 = vunpack.c.l.b16 %v1562
      %v1667 = vunpack.c.l.b16 %v1576
      %v1668 = vunpack.c.l.b16 %v1590
      %v1669 = vunpack.c.l.b16 %v1604
      %v1670 = vunpack.c.l.b16 %v1618
      %v1671 = vunpack.c.l.b16 %v1632
      %v1672 = vunpack.c.l.b16 %v1646
      %v1673 = vunpack.c.l.b16 %v1660
      %v1674 = vpack.c.b16 %v1667, %v1666
      %v1675 = vpack.c.b16 %v1669, %v1668
      %v1676 = vpack.c.b16 %v1671, %v1670
      %v1677 = vpack.c.b16 %v1673, %v1672
      %v1682 = vunpack.c.l.b16 %v1662
      %v1683 = vunpack.c.l.b16 %v1663
      %v1684 = vunpack.c.l.b16 %v1664
      %v1685 = vunpack.c.l.b16 %v1665
      %v1686 = vpack.c.b16 %v1683, %v1682
      %v1687 = vpack.c.b16 %v1685, %v1684
      %v1691 = vsel %vm243, %v1674, 0
      %v1694 = vsel %vm243, %v1675, 0
      %v1697 = vsel %vm243, %v1676, 0
      %v1700 = vsel %vm243, %v1677, 0
      %1702 = vmatprep.subr.bf16.mxu0 0
      %1703 = vmatpush1.bf16.msra.mxu0 %v1686
      %1704 = vmatprep.subr.bf16.mxu0 0
      %1705 = vmatpush1.bf16.msra.mxu0 %v1687
      %1706 = vmatprep.subr.bf16.mxu0 0
      %1707 = vmatpush1.bf16.msra.mxu0 0
      %1708 = vmatprep.subr.bf16.mxu0 0
      %1709 = vmatpush1.bf16.msra.mxu0 0
      %1710 = vmatprep.subr.bf16.mxu0 0
      %1711 = vmatpush1.bf16.msra.mxu0 0
      %1712 = vmatprep.subr.bf16.mxu0 0
      %1713 = vmatpush1.bf16.msra.mxu0 0
      %1714 = vmatprep.subr.bf16.mxu0 0
      %1715 = vmatpush1.bf16.msra.mxu0 0
      %1716 = vmatprep.subr.bf16.mxu0 0
      %1717 = vmatpush1.bf16.msra.mxu0 0
      %1718 = vmatprep.subr.bf16.mxu0 0
      %1719 = vmatpush1.bf16.msra.mxu0 0
      %1720 = vmatprep.subr.bf16.mxu0 0
      %1721 = vmatpush1.bf16.msra.mxu0 0
      %1722 = vmatprep.subr.bf16.mxu0 0
      %1723 = vmatpush1.bf16.msra.mxu0 0
      %1724 = vmatprep.subr.bf16.mxu0 0
      %1725 = vmatpush1.bf16.msra.mxu0 0
      %1726 = vmatprep.subr.bf16.mxu0 0
      %1727 = vmatpush1.bf16.msra.mxu0 0
      %1728 = vmatprep.subr.bf16.mxu0 0
      %1729 = vmatpush1.bf16.msra.mxu0 0
      %1730 = vmatprep.subr.bf16.mxu0 0
      %1731 = vmatpush1.bf16.msra.mxu0 0
      %1732 = vmatprep.subr.bf16.mxu0 0
      %1733 = vmatpush1.bf16.msra.mxu0 0
      %1734 = vmatprep.mubr.bf16.mxu0 0
      %1735 = vmatmul.mubr.bf16.gmra.mrb[0].mxu0 %v1691
      %v1736 = vpop.f32.mrb[0].mxu0
      %v1737 = vadd.f32 0.0, %v1736
      %v1738 = vpop.f32.mrb[0].mxu0
      %v1739 = vpop.f32.mrb[0].mxu0
      %v1740 = vadd.f32 0.0, %v1739
      %v1741 = vpop.f32.mrb[0].mxu0
      %1742 = vmatprep.mubr.bf16.mxu0 0
      %1743 = vmatmul.mubr.bf16.gmra.mrb[0].mxu0 %v1694
      %v1744 = vpop.f32.mrb[0].mxu0
      %v1745 = vadd.f32 0.0, %v1744
      %v1746 = vpop.f32.mrb[0].mxu0
      %v1747 = vpop.f32.mrb[0].mxu0
      %v1748 = vadd.f32 0.0, %v1747
      %v1749 = vpop.f32.mrb[0].mxu0
      %1750 = vmatprep.mubr.bf16.mxu0 0
      %1751 = vmatmul.mubr.bf16.gmra.mrb[0].mxu0 %v1697
      %v1752 = vpop.f32.mrb[0].mxu0
      %v1753 = vadd.f32 0.0, %v1752
      %v1754 = vpop.f32.mrb[0].mxu0
      %v1755 = vpop.f32.mrb[0].mxu0
      %v1756 = vadd.f32 0.0, %v1755
      %v1757 = vpop.f32.mrb[0].mxu0
      %1758 = vmatprep.mubr.bf16.mxu0 0
      %1759 = vmatmul.mubr.bf16.gmra.mrb[0].mxu0 %v1700
      %v1760 = vpop.f32.mrb[0].mxu0
      %v1761 = vadd.f32 0.0, %v1760
      %v1762 = vpop.f32.mrb[0].mxu0
      %v1763 = vpop.f32.mrb[0].mxu0
      %v1764 = vadd.f32 0.0, %v1763
      %v1765 = vpop.f32.mrb[0].mxu0
      %1766 = vdwg.mxu0
      %v1767 = vld [vmem:[#allocation2] sm:$0xff]
      %v1768 = vld [vmem:[#allocation2 + $0x8] sm:$0xff]
      %v1769 = vld [vmem:[#allocation2 + $0x10] sm:$0xff]
      %v1770 = vld [vmem:[#allocation2 + $0x18] sm:$0xff]
      %v1771 = vld [vmem:[#allocation2 + $0x20] sm:$0xff]
      %v1772 = vld [vmem:[#allocation2 + $0x28] sm:$0xff]
      %v1773 = vld [vmem:[#allocation2 + $0x30] sm:$0xff]
      %v1774 = vld [vmem:[#allocation2 + $0x38] sm:$0xff]
      %v1775 = vadd.f32 %v1767, %v1737
      %v1776 = vadd.f32 %v1768, %v1740
      %v1777 = vadd.f32 %v1769, %v1745
      %v1778 = vadd.f32 %v1770, %v1748
      %v1779 = vadd.f32 %v1771, %v1753
      %v1780 = vadd.f32 %v1772, %v1756
      %v1781 = vadd.f32 %v1773, %v1761
      %v1782 = vadd.f32 %v1774, %v1764
      %1783 = vst [vmem:[#allocation2] sm:$0xff] %v1775
      %1784 = vst [vmem:[#allocation2 + $0x8] sm:$0xff] %v1776
      %1785 = vst [vmem:[#allocation2 + $0x10] sm:$0xff] %v1777
      %1786 = vst [vmem:[#allocation2 + $0x18] sm:$0xff] %v1778
      %1787 = vst [vmem:[#allocation2 + $0x20] sm:$0xff] %v1779
      %1788 = vst [vmem:[#allocation2 + $0x28] sm:$0xff] %v1780
      %1789 = vst [vmem:[#allocation2 + $0x30] sm:$0xff] %v1781
      %1790 = vst [vmem:[#allocation2 + $0x38] sm:$0xff] %v1782
      %v1791 = vld [vmem:[%s1386] sm:$0xe]
      %v1792 = vld [vmem:[%s1386 + $0x4] sm:$0x1]
      %v1793 = vld [vmem:[%s1386 + $0x8] sm:$0xe]
      %v1794 = vld [vmem:[%s1386 + $0xc] sm:$0x1]
      %v1795 = vld [vmem:[%s1386 + $0x10] sm:$0xe]
      %v1796 = vld [vmem:[%s1386 + $0x14] sm:$0x1]
      %v1797 = vld [vmem:[%s1386 + $0x18] sm:$0xe]
      %v1798 = vld [vmem:[%s1386 + $0x1c] sm:$0x1]
      %v1799 = vld [vmem:[%s1386 + $0x20] sm:$0xe]
      %v1800 = vld [vmem:[%s1386 + $0x24] sm:$0x1]
      %v1801 = vld [vmem:[%s1386 + $0x28] sm:$0xe]
      %v1802 = vld [vmem:[%s1386 + $0x2c] sm:$0x1]
      %v1803 = vld [vmem:[%s1386 + $0x30] sm:$0xe]
      %v1804 = vld [vmem:[%s1386 + $0x34] sm:$0x1]
      %v1805 = vld [vmem:[%s1386 + $0x38] sm:$0xe]
      %v1806 = vld [vmem:[%s1386 + $0x3c] sm:$0x1]
      %v1823 = vrot.slane %v1791, 5
      %v1824 = vrot.slane %v1823, 4
      %v1825 = vrot.slane %v1792, 5
      %v1826 = vsel %vm624, %v1824, %v1825
      %v1827 = vrot.slane %v1793, 5
      %v1828 = vrot.slane %v1827, 4
      %v1829 = vrot.slane %v1794, 5
      %v1830 = vsel %vm624, %v1828, %v1829
      %v1831 = vrot.slane %v1795, 5
      %v1832 = vrot.slane %v1831, 4
      %v1833 = vrot.slane %v1796, 5
      %v1834 = vsel %vm624, %v1832, %v1833
      %v1835 = vrot.slane %v1797, 5
      %v1836 = vrot.slane %v1835, 4
      %v1837 = vrot.slane %v1798, 5
      %v1838 = vsel %vm624, %v1836, %v1837
      %v1839 = vrot.slane %v1799, 5
      %v1840 = vrot.slane %v1839, 4
      %v1841 = vrot.slane %v1800, 5
      %v1842 = vsel %vm624, %v1840, %v1841
      %v1843 = vrot.slane %v1801, 5
      %v1844 = vrot.slane %v1843, 4
      %v1845 = vrot.slane %v1802, 5
      %v1846 = vsel %vm624, %v1844, %v1845
      %v1847 = vrot.slane %v1803, 5
      %v1848 = vrot.slane %v1847, 4
      %v1849 = vrot.slane %v1804, 5
      %v1850 = vsel %vm624, %v1848, %v1849
      %v1851 = vrot.slane %v1805, 5
      %v1852 = vrot.slane %v1851, 4
      %v1853 = vrot.slane %v1806, 5
      %v1854 = vsel %vm624, %v1852, %v1853
      %s1855 = scalar_lea.vmem %s1, 128
      %v1856 = vld [vmem:[%s1855] sm:$0xf]
      %v1857 = vld [vmem:[%s1855 + $0x4] sm:$0xf]
      %v1858 = vld [vmem:[%s1855 + $0x8] sm:$0xf]
      %v1859 = vld [vmem:[%s1855 + $0xc] sm:$0xf]
      %v1860 = vunpack.c.l.b16 %v1826
      %v1861 = vunpack.c.l.b16 %v1830
      %v1862 = vunpack.c.l.b16 %v1834
      %v1863 = vunpack.c.l.b16 %v1838
      %v1864 = vunpack.c.l.b16 %v1842
      %v1865 = vunpack.c.l.b16 %v1846
      %v1866 = vunpack.c.l.b16 %v1850
      %v1867 = vunpack.c.l.b16 %v1854
      %v1868 = vpack.c.b16 %v1861, %v1860
      %v1869 = vpack.c.b16 %v1863, %v1862
      %v1870 = vpack.c.b16 %v1865, %v1864
      %v1871 = vpack.c.b16 %v1867, %v1866
      %v1876 = vunpack.c.l.b16 %v1856
      %v1877 = vunpack.c.l.b16 %v1857
      %v1878 = vunpack.c.l.b16 %v1858
      %v1879 = vunpack.c.l.b16 %v1859
      %v1880 = vpack.c.b16 %v1877, %v1876
      %v1881 = vpack.c.b16 %v1879, %v1878
      %v1885 = vsel %vm243, %v1868, 0
      %v1888 = vsel %vm243, %v1869, 0
      %v1891 = vsel %vm243, %v1870, 0
      %v1894 = vsel %vm243, %v1871, 0
      %1896 = vmatprep.subr.bf16.mxu0 0
      %1897 = vmatpush1.bf16.msra.mxu0 %v1880
      %1898 = vmatprep.subr.bf16.mxu0 0
      %1899 = vmatpush1.bf16.msra.mxu0 %v1881
      %1900 = vmatprep.subr.bf16.mxu0 0
      %1901 = vmatpush1.bf16.msra.mxu0 0
      %1902 = vmatprep.subr.bf16.mxu0 0
      %1903 = vmatpush1.bf16.msra.mxu0 0
      %1904 = vmatprep.subr.bf16.mxu0 0
      %1905 = vmatpush1.bf16.msra.mxu0 0
      %1906 = vmatprep.subr.bf16.mxu0 0
      %1907 = vmatpush1.bf16.msra.mxu0 0
      %1908 = vmatprep.subr.bf16.mxu0 0
      %1909 = vmatpush1.bf16.msra.mxu0 0
      %1910 = vmatprep.subr.bf16.mxu0 0
      %1911 = vmatpush1.bf16.msra.mxu0 0
      %1912 = vmatprep.subr.bf16.mxu0 0
      %1913 = vmatpush1.bf16.msra.mxu0 0
      %1914 = vmatprep.subr.bf16.mxu0 0
      %1915 = vmatpush1.bf16.msra.mxu0 0
      %1916 = vmatprep.subr.bf16.mxu0 0
      %1917 = vmatpush1.bf16.msra.mxu0 0
      %1918 = vmatprep.subr.bf16.mxu0 0
      %1919 = vmatpush1.bf16.msra.mxu0 0
      %1920 = vmatprep.subr.bf16.mxu0 0
      %1921 = vmatpush1.bf16.msra.mxu0 0
      %1922 = vmatprep.subr.bf16.mxu0 0
      %1923 = vmatpush1.bf16.msra.mxu0 0
      %1924 = vmatprep.subr.bf16.mxu0 0
      %1925 = vmatpush1.bf16.msra.mxu0 0
      %1926 = vmatprep.subr.bf16.mxu0 0
      %1927 = vmatpush1.bf16.msra.mxu0 0
      %1928 = vmatprep.mubr.bf16.mxu0 0
      %1929 = vmatmul.mubr.bf16.gmra.mrb[0].mxu0 %v1885
      %v1930 = vpop.f32.mrb[0].mxu0
      %v1931 = vadd.f32 0.0, %v1930
      %v1932 = vpop.f32.mrb[0].mxu0
      %v1933 = vpop.f32.mrb[0].mxu0
      %v1934 = vadd.f32 0.0, %v1933
      %v1935 = vpop.f32.mrb[0].mxu0
      %1936 = vmatprep.mubr.bf16.mxu0 0
      %1937 = vmatmul.mubr.bf16.gmra.mrb[0].mxu0 %v1888
      %v1938 = vpop.f32.mrb[0].mxu0
      %v1939 = vadd.f32 0.0, %v1938
      %v1940 = vpop.f32.mrb[0].mxu0
      %v1941 = vpop.f32.mrb[0].mxu0
      %v1942 = vadd.f32 0.0, %v1941
      %v1943 = vpop.f32.mrb[0].mxu0
      %1944 = vmatprep.mubr.bf16.mxu0 0
      %1945 = vmatmul.mubr.bf16.gmra.mrb[0].mxu0 %v1891
      %v1946 = vpop.f32.mrb[0].mxu0
      %v1947 = vadd.f32 0.0, %v1946
      %v1948 = vpop.f32.mrb[0].mxu0
      %v1949 = vpop.f32.mrb[0].mxu0
      %v1950 = vadd.f32 0.0, %v1949
      %v1951 = vpop.f32.mrb[0].mxu0
      %1952 = vmatprep.mubr.bf16.mxu0 0
      %1953 = vmatmul.mubr.bf16.gmra.mrb[0].mxu0 %v1894
      %v1954 = vpop.f32.mrb[0].mxu0
      %v1955 = vadd.f32 0.0, %v1954
      %v1956 = vpop.f32.mrb[0].mxu0
      %v1957 = vpop.f32.mrb[0].mxu0
      %v1958 = vadd.f32 0.0, %v1957
      %v1959 = vpop.f32.mrb[0].mxu0
      %1960 = vdwg.mxu0
      %v1961 = vld [vmem:[#allocation2] sm:$0xff]
      %v1962 = vld [vmem:[#allocation2 + $0x8] sm:$0xff]
      %v1963 = vld [vmem:[#allocation2 + $0x10] sm:$0xff]
      %v1964 = vld [vmem:[#allocation2 + $0x18] sm:$0xff]
      %v1965 = vld [vmem:[#allocation2 + $0x20] sm:$0xff]
      %v1966 = vld [vmem:[#allocation2 + $0x28] sm:$0xff]
      %v1967 = vld [vmem:[#allocation2 + $0x30] sm:$0xff]
      %v1968 = vld [vmem:[#allocation2 + $0x38] sm:$0xff]
      %v1969 = vadd.f32 %v1961, %v1931
      %v1970 = vadd.f32 %v1962, %v1934
      %v1971 = vadd.f32 %v1963, %v1939
      %v1972 = vadd.f32 %v1964, %v1942
      %v1973 = vadd.f32 %v1965, %v1947
      %v1974 = vadd.f32 %v1966, %v1950
      %v1975 = vadd.f32 %v1967, %v1955
      %v1976 = vadd.f32 %v1968, %v1958
      %1977 = vst [vmem:[#allocation2] sm:$0xff] %v1969
      %1978 = vst [vmem:[#allocation2 + $0x8] sm:$0xff] %v1970
      %1979 = vst [vmem:[#allocation2 + $0x10] sm:$0xff] %v1971
      %1980 = vst [vmem:[#allocation2 + $0x18] sm:$0xff] %v1972
      %1981 = vst [vmem:[#allocation2 + $0x20] sm:$0xff] %v1973
      %1982 = vst [vmem:[#allocation2 + $0x28] sm:$0xff] %v1974
      %1983 = vst [vmem:[#allocation2 + $0x30] sm:$0xff] %v1975
      %1984 = vst [vmem:[#allocation2 + $0x38] sm:$0xff] %v1976
      %v1985 = vld [vmem:[#allocation2] sm:$0xff]
      %v1986 = vld [vmem:[#allocation2 + $0x8] sm:$0xff]
      %v1987 = vld [vmem:[#allocation2 + $0x10] sm:$0xff]
      %v1988 = vld [vmem:[#allocation2 + $0x18] sm:$0xff]
      %v1989 = vld [vmem:[#allocation2 + $0x20] sm:$0xff]
      %v1990 = vld [vmem:[#allocation2 + $0x28] sm:$0xff]
      %v1991 = vld [vmem:[#allocation2 + $0x30] sm:$0xff]
      %v1992 = vld [vmem:[#allocation2 + $0x38] sm:$0xff]
      %v1993 = vld [vmem:[%s2] sm:$0x1]
      %v1995 = vlaneseq
      %v1996 = vshrl.u32 %v1995, 7
      %v1997 = vsub.s32 0, %v1996
      %v1998 = vrot.slane %v1993, %v1997
      %v2000 = vmul.f32 %v1985, %v1998
      %v2001 = vmul.f32 %v1986, %v1998
      %v2002 = vmul.f32 %v1987, %v1998
      %v2003 = vmul.f32 %v1988, %v1998
      %v2004 = vmul.f32 %v1989, %v1998
      %v2005 = vmul.f32 %v1990, %v1998
      %v2006 = vmul.f32 %v1991, %v1998
      %v2007 = vmul.f32 %v1992, %v1998
      %v2008 = vld [vmem:[%s3] sm:$0x1]
      %v2010 = vlaneseq
      %v2011 = vshrl.u32 %v2010, 7
      %v2012 = vsub.s32 0, %v2011
      %v2013 = vrot.slane %v2008, %v2012
      %v2015 = vadd.f32 %v2000, %v2013
      %v2016 = vadd.f32 %v2001, %v2013
      %v2017 = vadd.f32 %v2002, %v2013
      %v2018 = vadd.f32 %v2003, %v2013
      %v2019 = vadd.f32 %v2004, %v2013
      %v2020 = vadd.f32 %v2005, %v2013
      %v2021 = vadd.f32 %v2006, %v2013
      %v2022 = vadd.f32 %v2007, %v2013
      %v2023 = vsub.f32 0.0, %v2015
      %v2024 = vsub.f32 0.0, %v2016
      %v2025 = vsub.f32 0.0, %v2017
      %v2026 = vsub.f32 0.0, %v2018
      %v2027 = vsub.f32 0.0, %v2019
      %v2028 = vsub.f32 0.0, %v2020
      %v2029 = vsub.f32 0.0, %v2021
      %v2030 = vsub.f32 0.0, %v2022
      %v2031 = vmul.f32 %v2023, 1.442695
      %v2032 = vpow.pop %v2031
      %v2033 = vmul.f32 %v2024, 1.442695
      %v2034 = vpow.pop %v2033
      %v2035 = vmul.f32 %v2025, 1.442695
      %v2036 = vpow.pop %v2035
      %v2037 = vmul.f32 %v2026, 1.442695
      %v2038 = vpow.pop %v2037
      %v2039 = vmul.f32 %v2027, 1.442695
      %v2040 = vpow.pop %v2039
      %v2041 = vmul.f32 %v2028, 1.442695
      %v2042 = vpow.pop %v2041
      %v2043 = vmul.f32 %v2029, 1.442695
      %v2044 = vpow.pop %v2043
      %v2045 = vmul.f32 %v2030, 1.442695
      %v2046 = vpow.pop %v2045
      %v2047 = vadd.f32 %v2032, 1.0
      %v2048 = vadd.f32 %v2034, 1.0
      %v2049 = vadd.f32 %v2036, 1.0
      %v2050 = vadd.f32 %v2038, 1.0
      %v2051 = vadd.f32 %v2040, 1.0
      %v2052 = vadd.f32 %v2042, 1.0
      %v2053 = vadd.f32 %v2044, 1.0
      %v2054 = vadd.f32 %v2046, 1.0
      %v2055 = vrcp.pop %v2047
      %v2056 = vmul.f32 %v2015, %v2055
      %v2057 = vrcp.pop %v2048
      %v2058 = vmul.f32 %v2016, %v2057
      %v2059 = vrcp.pop %v2049
      %v2060 = vmul.f32 %v2017, %v2059
      %v2061 = vrcp.pop %v2050
      %v2062 = vmul.f32 %v2018, %v2061
      %v2063 = vrcp.pop %v2051
      %v2064 = vmul.f32 %v2019, %v2063
      %v2065 = vrcp.pop %v2052
      %v2066 = vmul.f32 %v2020, %v2065
      %v2067 = vrcp.pop %v2053
      %v2068 = vmul.f32 %v2021, %v2067
      %v2069 = vrcp.pop %v2054
      %v2070 = vmul.f32 %v2022, %v2069
      %v2071 = vpack.c.bf16 %v2058, %v2056
      %v2072 = vpack.c.bf16 %v2062, %v2060
      %v2073 = vpack.c.bf16 %v2066, %v2064
      %v2074 = vpack.c.bf16 %v2070, %v2068
      %v2079 = vunpack.c.l.b16 %v2071
      %v2080 = vunpack.c.h.b16 %v2071
      %v2081 = vunpack.c.l.b16 %v2072
      %v2082 = vunpack.c.h.b16 %v2072
      %v2083 = vunpack.c.l.b16 %v2073
      %v2084 = vunpack.c.h.b16 %v2073
      %v2085 = vunpack.c.l.b16 %v2074
      %v2086 = vunpack.c.h.b16 %v2074
      %v2087 = vpack.c.b16 %v2079, %v2079
      %v2088 = vpack.c.b16 %v2080, %v2080
      %v2089 = vpack.c.b16 %v2081, %v2081
      %v2090 = vpack.c.b16 %v2082, %v2082
      %v2091 = vpack.c.b16 %v2083, %v2083
      %v2092 = vpack.c.b16 %v2084, %v2084
      %v2093 = vpack.c.b16 %v2085, %v2085
      %v2094 = vpack.c.b16 %v2086, %v2086
      %2103 = vst [vmem:[%s197] sm:$0xf] %v2087
      %2104 = vst [vmem:[%s197 + $0x4] sm:$0xf] %v2088
      %2105 = vst [vmem:[%s197 + $0x8] sm:$0xf] %v2089
      %2106 = vst [vmem:[%s197 + $0xc] sm:$0xf] %v2090
      %2107 = vst [vmem:[%s197 + $0x10] sm:$0xf] %v2091
      %2108 = vst [vmem:[%s197 + $0x14] sm:$0xf] %v2092
      %2109 = vst [vmem:[%s197 + $0x18] sm:$0xf] %v2093
      %2110 = vst [vmem:[%s197 + $0x1c] sm:$0xf] %v2094
      %p2111 = scmp.lt.s32.totalorder %s15, 1
      %s2112 = scalar_select %p2111, %s15, 1
      %s2113 = smul.addr %s2112, 8
      %s2114 = smul.addr %s2113, 4
      %s2115 = scalar_lea.vmem %s4, %s2114
      // Predicated region
      $region37: #{normal_cell_forward.6} parent=35 // pred_check
        %p2116 = pneg %p122
      $region38: #{normal_cell_forward.6} parent=35 // pred_check_branch
        %2118 = sbr.rel (%p2116) target = $region40
      $region39: #{normal_cell_forward.6} parent=35 // pred_region
        _
      $region40: #{normal_cell_forward.6} parent=35 // pred_fallthru
        _
    $region36: #{normal_cell_forward.6} parent=5 // pred_fallthru
      _
    %p2119 = scmp.le.s32.totalorder 2, %s10
    // Predicated region
    $region41: #{normal_cell_forward.6} parent=5 // pred_check
      %p2120 = pneg %p2119
    $region42: #{normal_cell_forward.6} parent=5 // pred_check_branch
      %2122 = sbr.rel (%p2120) target = $region44
    $region43: #{normal_cell_forward.6} parent=5 // pred_region
      %s2123 = ssub.s32 %s10, 2
      // Predicated region
      $region45: #{normal_cell_forward.6} parent=43 // pred_check
        %p2124 = pneg %p128
      $region46: #{normal_cell_forward.6} parent=43 // pred_check_branch
        %2126 = sbr.rel (%p2124) target = $region48
      $region47: #{normal_cell_forward.6} parent=43 // pred_region
        %p2127 = scmp.lt.s32.totalorder %s16, 1
        %s2128 = scalar_select %p2127, %s16, 1
        %s2129 = smul.addr %s2128, 8
        %s2130 = smul.addr %s2129, 4
        %s2131 = scalar_lea.vmem %s4, %s2130
      $region48: #{normal_cell_forward.6} parent=43 // pred_fallthru
        _
    $region44: #{normal_cell_forward.6} parent=5 // pred_fallthru
      _
  $region6: #{normal_cell_forward.6} parent=0 // loop_footer
    %s14 = sadd.s32 1, %s10
  $region7: #{normal_cell_forward.6} parent=0 // loop_footer_branch
    %9 = sbr.rel target = $region3
  $region8: #{normal_cell_forward.6} parent=0 // loop_exit
    _

// kernel: normal_cell_forward.11
$region0: #{normal_cell_forward.11}
  #allocation0 [shape = 'u32[]', space=smem, size = 0x4, offset = 0x4, fixed_abs, tag = 'smem constant byte address 0x4 - core index']
  #allocation1 [shape = 'u32[144,128]{1,0:T(1,128)}', space=vmem, size = 0x12000, scoped, tag = 'internal scratch']
  #allocation2 [shape = 'bf16[128,32]{1,0:T(16,128)(2,1)}', space=vmem, size = 0x8000, scoped, tag = 'scratch operand']
  #allocation3 [shape = 'f32[128,32]{1,0:T(8,128)}', space=vmem, size = 0x10000, scoped, tag = 'scratch operand']
  %s0 = inlined_call_operand.vmem [shape: f32[128,32], index: 0, kind: input, shape index: {}]
  %s1 = inlined_call_operand.vmem [shape: f32[1,32], index: 1, kind: input, shape index: {}]
  %s2 = inlined_call_operand.vmem [shape: f32[1,32], index: 2, kind: input, shape index: {}]
  %s3 = inlined_call_operand.vmem [shape: bf16[32,128], index: 3, kind: input, shape index: {}]
  %s4 = inlined_call_operand.vmem [shape: f32[1,128], index: 4, kind: input, shape index: {}]
  %s5 = inlined_call_operand.vmem [shape: bf16[128,32], index: 5, kind: input, shape index: {}]
  %s6 = inlined_call_operand.vmem [shape: f32[1,32], index: 6, kind: input, shape index: {}]
  %s7 = inlined_call_operand.vmem [shape: f32[128,32], index: 7, kind: output, shape index: {}]
  %s8 = sld [smem:[#allocation0]]
  $region46: #{normal_cell_forward.11} parent=0
    _
  %s10 = ssub.s32 1, %s8
  %s11 = scalar_select 0, %s10, %s8
  // Predicated region
  $region2: #{normal_cell_forward.11} parent=0 // pred_check
    _
  $region3: #{normal_cell_forward.11} parent=0 // pred_check_branch
    %13 = sbr.rel (0) target = $region5
  $region4: #{normal_cell_forward.11} parent=0 // pred_region
    _
  $region5: #{normal_cell_forward.11} parent=0 // pred_fallthru
    _
  // Predicated region
  $region6: #{normal_cell_forward.11} parent=0 // pred_check
    _
  $region7: #{normal_cell_forward.11} parent=0 // pred_check_branch
    %15 = sbr.rel (0) target = $region9
  $region8: #{normal_cell_forward.11} parent=0 // pred_region
    _
  $region9: #{normal_cell_forward.11} parent=0 // pred_fallthru
    _
  // Predicated region
  $region10: #{normal_cell_forward.11} parent=0 // pred_check
    _
  $region11: #{normal_cell_forward.11} parent=0 // pred_check_branch
    %17 = sbr.rel (0) target = $region13
  $region12: #{normal_cell_forward.11} parent=0 // pred_region
    _
  $region13: #{normal_cell_forward.11} parent=0 // pred_fallthru
    _
  // Predicated region
  $region14: #{normal_cell_forward.11} parent=0 // pred_check
    _
  $region15: #{normal_cell_forward.11} parent=0 // pred_check_branch
    %19 = sbr.rel (0) target = $region17
  $region16: #{normal_cell_forward.11} parent=0 // pred_region
    _
  $region17: #{normal_cell_forward.11} parent=0 // pred_fallthru
    _
  // Predicated region
  $region18: #{normal_cell_forward.11} parent=0 // pred_check
    _
  $region19: #{normal_cell_forward.11} parent=0 // pred_check_branch
    %21 = sbr.rel (0) target = $region21
  $region20: #{normal_cell_forward.11} parent=0 // pred_region
    _
  $region21: #{normal_cell_forward.11} parent=0 // pred_fallthru
    _
  // Predicated region
  $region22: #{normal_cell_forward.11} parent=0 // pred_check
    _
  $region23: #{normal_cell_forward.11} parent=0 // pred_check_branch
    %23 = sbr.rel (0) target = $region25
  $region24: #{normal_cell_forward.11} parent=0 // pred_region
    _
  $region25: #{normal_cell_forward.11} parent=0 // pred_fallthru
    _
  // Predicated region
  $region26: #{normal_cell_forward.11} parent=0 // pred_check
    _
  $region27: #{normal_cell_forward.11} parent=0 // pred_check_branch
    %25 = sbr.rel (0) target = $region29
  $region28: #{normal_cell_forward.11} parent=0 // pred_region
    _
  $region29: #{normal_cell_forward.11} parent=0 // pred_fallthru
    _
  %p27 = scmp.eq.s32.totalorder 0, 0
  // Predicated region
  $region30: #{normal_cell_forward.11} parent=0 // pred_check
    %p28 = pneg %p27
  $region31: #{normal_cell_forward.11} parent=0 // pred_check_branch
    %30 = sbr.rel (%p28) target = $region33
  $region32: #{normal_cell_forward.11} parent=0 // pred_region
    %v31 = vld [vmem:[%s0] sm:$0xff]
    %v32 = vld [vmem:[%s0 + $0x8] sm:$0xff]
    %v33 = vld [vmem:[%s0 + $0x10] sm:$0xff]
    %v34 = vld [vmem:[%s0 + $0x18] sm:$0xff]
    %v35 = vld [vmem:[%s0 + $0x20] sm:$0xff]
    %v36 = vld [vmem:[%s0 + $0x28] sm:$0xff]
    %v37 = vld [vmem:[%s0 + $0x30] sm:$0xff]
    %v38 = vld [vmem:[%s0 + $0x38] sm:$0xff]
    %v39 = vld [vmem:[%s0 + $0x40] sm:$0xff]
    %v40 = vld [vmem:[%s0 + $0x48] sm:$0xff]
    %v41 = vld [vmem:[%s0 + $0x50] sm:$0xff]
    %v42 = vld [vmem:[%s0 + $0x58] sm:$0xff]
    %v43 = vld [vmem:[%s0 + $0x60] sm:$0xff]
    %v44 = vld [vmem:[%s0 + $0x68] sm:$0xff]
    %v45 = vld [vmem:[%s0 + $0x70] sm:$0xff]
    %v46 = vld [vmem:[%s0 + $0x78] sm:$0xff]
    %v47 = vld [vmem:[%s1] sm:$0x1]
    %v48 = vld [vmem:[%s2] sm:$0x1]
    %vm49 = vcmask 261120
    %v50 = vsel %vm49, %v31, 0.0
    %51 = vadd.xlane.f32.xlu0 %v50
    %v52 = vpop.xlane.xlu0 %51
    %v53 = vsel %vm49, %v32, 0.0
    %54 = vadd.xlane.f32.xlu0 %v53
    %v55 = vpop.xlane.xlu0 %54
    %v56 = vsel %vm49, %v33, 0.0
    %57 = vadd.xlane.f32.xlu0 %v56
    %v58 = vpop.xlane.xlu0 %57
    %v59 = vsel %vm49, %v34, 0.0
    %60 = vadd.xlane.f32.xlu0 %v59
    %v61 = vpop.xlane.xlu0 %60
    %v62 = vsel %vm49, %v35, 0.0
    %63 = vadd.xlane.f32.xlu0 %v62
    %v64 = vpop.xlane.xlu0 %63
    %v65 = vsel %vm49, %v36, 0.0
    %66 = vadd.xlane.f32.xlu0 %v65
    %v67 = vpop.xlane.xlu0 %66
    %v68 = vsel %vm49, %v37, 0.0
    %69 = vadd.xlane.f32.xlu0 %v68
    %v70 = vpop.xlane.xlu0 %69
    %v71 = vsel %vm49, %v38, 0.0
    %72 = vadd.xlane.f32.xlu0 %v71
    %v73 = vpop.xlane.xlu0 %72
    %v74 = vsel %vm49, %v39, 0.0
    %75 = vadd.xlane.f32.xlu0 %v74
    %v76 = vpop.xlane.xlu0 %75
    %v77 = vsel %vm49, %v40, 0.0
    %78 = vadd.xlane.f32.xlu0 %v77
    %v79 = vpop.xlane.xlu0 %78
    %v80 = vsel %vm49, %v41, 0.0
    %81 = vadd.xlane.f32.xlu0 %v80
    %v82 = vpop.xlane.xlu0 %81
    %v83 = vsel %vm49, %v42, 0.0
    %84 = vadd.xlane.f32.xlu0 %v83
    %v85 = vpop.xlane.xlu0 %84
    %v86 = vsel %vm49, %v43, 0.0
    %87 = vadd.xlane.f32.xlu0 %v86
    %v88 = vpop.xlane.xlu0 %87
    %v89 = vsel %vm49, %v44, 0.0
    %90 = vadd.xlane.f32.xlu0 %v89
    %v91 = vpop.xlane.xlu0 %90
    %v92 = vsel %vm49, %v45, 0.0
    %93 = vadd.xlane.f32.xlu0 %v92
    %v94 = vpop.xlane.xlu0 %93
    %v95 = vsel %vm49, %v46, 0.0
    %96 = vadd.xlane.f32.xlu0 %v95
    %v97 = vpop.xlane.xlu0 %96
    %v98 = vrcp.pop 32.0
    %v99 = vmul.f32 %v52, %v98
    %v100 = vmul.f32 %v55, %v98
    %v101 = vmul.f32 %v58, %v98
    %v102 = vmul.f32 %v61, %v98
    %v103 = vmul.f32 %v64, %v98
    %v104 = vmul.f32 %v67, %v98
    %v105 = vmul.f32 %v70, %v98
    %v106 = vmul.f32 %v73, %v98
    %v107 = vmul.f32 %v76, %v98
    %v108 = vmul.f32 %v79, %v98
    %v109 = vmul.f32 %v82, %v98
    %v110 = vmul.f32 %v85, %v98
    %v111 = vmul.f32 %v88, %v98
    %v112 = vmul.f32 %v91, %v98
    %v113 = vmul.f32 %v94, %v98
    %v114 = vmul.f32 %v97, %v98
    %v115 = vsub.f32 %v31, %v99
    %v116 = vsub.f32 %v32, %v100
    %v117 = vsub.f32 %v33, %v101
    %v118 = vsub.f32 %v34, %v102
    %v119 = vsub.f32 %v35, %v103
    %v120 = vsub.f32 %v36, %v104
    %v121 = vsub.f32 %v37, %v105
    %v122 = vsub.f32 %v38, %v106
    %v123 = vsub.f32 %v39, %v107
    %v124 = vsub.f32 %v40, %v108
    %v125 = vsub.f32 %v41, %v109
    %v126 = vsub.f32 %v42, %v110
    %v127 = vsub.f32 %v43, %v111
    %v128 = vsub.f32 %v44, %v112
    %v129 = vsub.f32 %v45, %v113
    %v130 = vsub.f32 %v46, %v114
    %v131 = vmul.f32 %v115, %v115
    %v132 = vmul.f32 %v116, %v116
    %v133 = vmul.f32 %v117, %v117
    %v134 = vmul.f32 %v118, %v118
    %v135 = vmul.f32 %v119, %v119
    %v136 = vmul.f32 %v120, %v120
    %v137 = vmul.f32 %v121, %v121
    %v138 = vmul.f32 %v122, %v122
    %v139 = vmul.f32 %v123, %v123
    %v140 = vmul.f32 %v124, %v124
    %v141 = vmul.f32 %v125, %v125
    %v142 = vmul.f32 %v126, %v126
    %v143 = vmul.f32 %v127, %v127
    %v144 = vmul.f32 %v128, %v128
    %v145 = vmul.f32 %v129, %v129
    %v146 = vmul.f32 %v130, %v130
    %v147 = vsel %vm49, %v131, 0.0
    %148 = vadd.xlane.f32.xlu0 %v147
    %v149 = vpop.xlane.xlu0 %148
    %v150 = vsel %vm49, %v132, 0.0
    %151 = vadd.xlane.f32.xlu0 %v150
    %v152 = vpop.xlane.xlu0 %151
    %v153 = vsel %vm49, %v133, 0.0
    %154 = vadd.xlane.f32.xlu0 %v153
    %v155 = vpop.xlane.xlu0 %154
    %v156 = vsel %vm49, %v134, 0.0
    %157 = vadd.xlane.f32.xlu0 %v156
    %v158 = vpop.xlane.xlu0 %157
    %v159 = vsel %vm49, %v135, 0.0
    %160 = vadd.xlane.f32.xlu0 %v159
    %v161 = vpop.xlane.xlu0 %160
    %v162 = vsel %vm49, %v136, 0.0
    %163 = vadd.xlane.f32.xlu0 %v162
    %v164 = vpop.xlane.xlu0 %163
    %v165 = vsel %vm49, %v137, 0.0
    %166 = vadd.xlane.f32.xlu0 %v165
    %v167 = vpop.xlane.xlu0 %166
    %v168 = vsel %vm49, %v138, 0.0
    %169 = vadd.xlane.f32.xlu0 %v168
    %v170 = vpop.xlane.xlu0 %169
    %v171 = vsel %vm49, %v139, 0.0
    %172 = vadd.xlane.f32.xlu0 %v171
    %v173 = vpop.xlane.xlu0 %172
    %v174 = vsel %vm49, %v140, 0.0
    %175 = vadd.xlane.f32.xlu0 %v174
    %v176 = vpop.xlane.xlu0 %175
    %v177 = vsel %vm49, %v141, 0.0
    %178 = vadd.xlane.f32.xlu0 %v177
    %v179 = vpop.xlane.xlu0 %178
    %v180 = vsel %vm49, %v142, 0.0
    %181 = vadd.xlane.f32.xlu0 %v180
    %v182 = vpop.xlane.xlu0 %181
    %v183 = vsel %vm49, %v143, 0.0
    %184 = vadd.xlane.f32.xlu0 %v183
    %v185 = vpop.xlane.xlu0 %184
    %v186 = vsel %vm49, %v144, 0.0
    %187 = vadd.xlane.f32.xlu0 %v186
    %v188 = vpop.xlane.xlu0 %187
    %v189 = vsel %vm49, %v145, 0.0
    %190 = vadd.xlane.f32.xlu0 %v189
    %v191 = vpop.xlane.xlu0 %190
    %v192 = vsel %vm49, %v146, 0.0
    %193 = vadd.xlane.f32.xlu0 %v192
    %v194 = vpop.xlane.xlu0 %193
    %v195 = vmul.f32 %v149, %v98
    %v196 = vmul.f32 %v152, %v98
    %v197 = vmul.f32 %v155, %v98
    %v198 = vmul.f32 %v158, %v98
    %v199 = vmul.f32 %v161, %v98
    %v200 = vmul.f32 %v164, %v98
    %v201 = vmul.f32 %v167, %v98
    %v202 = vmul.f32 %v170, %v98
    %v203 = vmul.f32 %v173, %v98
    %v204 = vmul.f32 %v176, %v98
    %v205 = vmul.f32 %v179, %v98
    %v206 = vmul.f32 %v182, %v98
    %v207 = vmul.f32 %v185, %v98
    %v208 = vmul.f32 %v188, %v98
    %v209 = vmul.f32 %v191, %v98
    %v210 = vmul.f32 %v194, %v98
    %v211 = vadd.f32 %v195, 1e-05
    %v212 = vadd.f32 %v196, 1e-05
    %v213 = vadd.f32 %v197, 1e-05
    %v214 = vadd.f32 %v198, 1e-05
    %v215 = vadd.f32 %v199, 1e-05
    %v216 = vadd.f32 %v200, 1e-05
    %v217 = vadd.f32 %v201, 1e-05
    %v218 = vadd.f32 %v202, 1e-05
    %v219 = vadd.f32 %v203, 1e-05
    %v220 = vadd.f32 %v204, 1e-05
    %v221 = vadd.f32 %v205, 1e-05
    %v222 = vadd.f32 %v206, 1e-05
    %v223 = vadd.f32 %v207, 1e-05
    %v224 = vadd.f32 %v208, 1e-05
    %v225 = vadd.f32 %v209, 1e-05
    %v226 = vadd.f32 %v210, 1e-05
    %v227 = vrsqrt.pop %v211
    %v228 = vrsqrt.pop %v212
    %v229 = vrsqrt.pop %v213
    %v230 = vrsqrt.pop %v214
    %v231 = vrsqrt.pop %v215
    %v232 = vrsqrt.pop %v216
    %v233 = vrsqrt.pop %v217
    %v234 = vrsqrt.pop %v218
    %v235 = vrsqrt.pop %v219
    %v236 = vrsqrt.pop %v220
    %v237 = vrsqrt.pop %v221
    %v238 = vrsqrt.pop %v222
    %v239 = vrsqrt.pop %v223
    %v240 = vrsqrt.pop %v224
    %v241 = vrsqrt.pop %v225
    %v242 = vrsqrt.pop %v226
    %v243 = vmul.f32 %v115, %v227
    %v244 = vmul.f32 %v116, %v228
    %v245 = vmul.f32 %v117, %v229
    %v246 = vmul.f32 %v118, %v230
    %v247 = vmul.f32 %v119, %v231
    %v248 = vmul.f32 %v120, %v232
    %v249 = vmul.f32 %v121, %v233
    %v250 = vmul.f32 %v122, %v234
    %v251 = vmul.f32 %v123, %v235
    %v252 = vmul.f32 %v124, %v236
    %v253 = vmul.f32 %v125, %v237
    %v254 = vmul.f32 %v126, %v238
    %v255 = vmul.f32 %v127, %v239
    %v256 = vmul.f32 %v128, %v240
    %v257 = vmul.f32 %v129, %v241
    %v258 = vmul.f32 %v130, %v242
    %v260 = vlaneseq
    %v261 = vshrl.u32 %v260, 7
    %v262 = vsub.s32 0, %v261
    %v263 = vrot.slane %v47, %v262
    %v265 = vmul.f32 %v243, %v263
    %v266 = vmul.f32 %v244, %v263
    %v267 = vmul.f32 %v245, %v263
    %v268 = vmul.f32 %v246, %v263
    %v269 = vmul.f32 %v247, %v263
    %v270 = vmul.f32 %v248, %v263
    %v271 = vmul.f32 %v249, %v263
    %v272 = vmul.f32 %v250, %v263
    %v273 = vmul.f32 %v251, %v263
    %v274 = vmul.f32 %v252, %v263
    %v275 = vmul.f32 %v253, %v263
    %v276 = vmul.f32 %v254, %v263
    %v277 = vmul.f32 %v255, %v263
    %v278 = vmul.f32 %v256, %v263
    %v279 = vmul.f32 %v257, %v263
    %v280 = vmul.f32 %v258, %v263
    %v282 = vlaneseq
    %v283 = vshrl.u32 %v282, 7
    %v284 = vsub.s32 0, %v283
    %v285 = vrot.slane %v48, %v284
    %v287 = vadd.f32 %v265, %v285
    %v288 = vadd.f32 %v266, %v285
    %v289 = vadd.f32 %v267, %v285
    %v290 = vadd.f32 %v268, %v285
    %v291 = vadd.f32 %v269, %v285
    %v292 = vadd.f32 %v270, %v285
    %v293 = vadd.f32 %v271, %v285
    %v294 = vadd.f32 %v272, %v285
    %v295 = vadd.f32 %v273, %v285
    %v296 = vadd.f32 %v274, %v285
    %v297 = vadd.f32 %v275, %v285
    %v298 = vadd.f32 %v276, %v285
    %v299 = vadd.f32 %v277, %v285
    %v300 = vadd.f32 %v278, %v285
    %v301 = vadd.f32 %v279, %v285
    %v302 = vadd.f32 %v280, %v285
    %v303 = vpack.c.bf16 %v288, %v287
    %v304 = vpack.c.bf16 %v290, %v289
    %v305 = vpack.c.bf16 %v292, %v291
    %v306 = vpack.c.bf16 %v294, %v293
    %v307 = vpack.c.bf16 %v296, %v295
    %v308 = vpack.c.bf16 %v298, %v297
    %v309 = vpack.c.bf16 %v300, %v299
    %v310 = vpack.c.bf16 %v302, %v301
    %311 = vst.msk [vmem:[#allocation2] sm:$0xff] %vm49, %v303
    %312 = vst.msk [vmem:[#allocation2 + $0x8] sm:$0xff] %vm49, %v304
    %313 = vst.msk [vmem:[#allocation2 + $0x10] sm:$0xff] %vm49, %v305
    %314 = vst.msk [vmem:[#allocation2 + $0x18] sm:$0xff] %vm49, %v306
    %315 = vst.msk [vmem:[#allocation2 + $0x20] sm:$0xff] %vm49, %v307
    %316 = vst.msk [vmem:[#allocation2 + $0x28] sm:$0xff] %vm49, %v308
    %317 = vst.msk [vmem:[#allocation2 + $0x30] sm:$0xff] %vm49, %v309
    %318 = vst.msk [vmem:[#allocation2 + $0x38] sm:$0xff] %vm49, %v310
    %319 = vst.msk [vmem:[#allocation3] sm:$0xff] %vm49, 0.0
    %320 = vst.msk [vmem:[#allocation3 + $0x8] sm:$0xff] %vm49, 0.0
    %321 = vst.msk [vmem:[#allocation3 + $0x10] sm:$0xff] %vm49, 0.0
    %322 = vst.msk [vmem:[#allocation3 + $0x18] sm:$0xff] %vm49, 0.0
    %323 = vst.msk [vmem:[#allocation3 + $0x20] sm:$0xff] %vm49, 0.0
    %324 = vst.msk [vmem:[#allocation3 + $0x28] sm:$0xff] %vm49, 0.0
    %325 = vst.msk [vmem:[#allocation3 + $0x30] sm:$0xff] %vm49, 0.0
    %326 = vst.msk [vmem:[#allocation3 + $0x38] sm:$0xff] %vm49, 0.0
    %327 = vst.msk [vmem:[#allocation3 + $0x40] sm:$0xff] %vm49, 0.0
    %328 = vst.msk [vmem:[#allocation3 + $0x48] sm:$0xff] %vm49, 0.0
    %329 = vst.msk [vmem:[#allocation3 + $0x50] sm:$0xff] %vm49, 0.0
    %330 = vst.msk [vmem:[#allocation3 + $0x58] sm:$0xff] %vm49, 0.0
    %331 = vst.msk [vmem:[#allocation3 + $0x60] sm:$0xff] %vm49, 0.0
    %332 = vst.msk [vmem:[#allocation3 + $0x68] sm:$0xff] %vm49, 0.0
    %333 = vst.msk [vmem:[#allocation3 + $0x70] sm:$0xff] %vm49, 0.0
    %334 = vst.msk [vmem:[#allocation3 + $0x78] sm:$0xff] %vm49, 0.0
  $region33: #{normal_cell_forward.11} parent=0 // pred_fallthru
    _
  %v335 = vld [vmem:[#allocation2] sm:$0xff]
  %v336 = vld [vmem:[#allocation2 + $0x8] sm:$0xff]
  %v337 = vld [vmem:[#allocation2 + $0x10] sm:$0xff]
  %v338 = vld [vmem:[#allocation2 + $0x18] sm:$0xff]
  %v339 = vld [vmem:[#allocation2 + $0x20] sm:$0xff]
  %v340 = vld [vmem:[#allocation2 + $0x28] sm:$0xff]
  %v341 = vld [vmem:[#allocation2 + $0x30] sm:$0xff]
  %v342 = vld [vmem:[#allocation2 + $0x38] sm:$0xff]
  %v343 = vld [vmem:[%s3] sm:$0xf]
  %v344 = vld [vmem:[%s3 + $0x4] sm:$0xf]
  %v345 = vld [vmem:[%s3 + $0x8] sm:$0xf]
  %v346 = vld [vmem:[%s3 + $0xc] sm:$0xf]
  %v347 = vld [vmem:[%s4] sm:$0x1]
  %v349 = vlaneseq
  %v350 = vshrl.u32 %v349, 7
  %v351 = vsub.s32 0, %v350
  %v352 = vrot.slane %v347, %v351
  %v358 = vunpack.c.l.b16 %v343
  %v359 = vunpack.c.l.b16 %v344
  %v360 = vunpack.c.l.b16 %v345
  %v361 = vunpack.c.l.b16 %v346
  %v362 = vpack.c.b16 %v359, %v358
  %v363 = vpack.c.b16 %v361, %v360
  %vm366 = vcmask 261120
  %v368 = vsel %vm366, %v335, 0
  %v371 = vsel %vm366, %v336, 0
  %v374 = vsel %vm366, %v337, 0
  %v377 = vsel %vm366, %v338, 0
  %v380 = vsel %vm366, %v339, 0
  %v383 = vsel %vm366, %v340, 0
  %v386 = vsel %vm366, %v341, 0
  %v389 = vsel %vm366, %v342, 0
  %391 = vmatprep.subr.bf16.mxu0 0
  %392 = vmatpush1.bf16.msra.mxu0 %v362
  %393 = vmatprep.subr.bf16.mxu0 0
  %394 = vmatpush1.bf16.msra.mxu0 %v363
  %395 = vmatprep.subr.bf16.mxu0 0
  %396 = vmatpush1.bf16.msra.mxu0 0
  %397 = vmatprep.subr.bf16.mxu0 0
  %398 = vmatpush1.bf16.msra.mxu0 0
  %399 = vmatprep.subr.bf16.mxu0 0
  %400 = vmatpush1.bf16.msra.mxu0 0
  %401 = vmatprep.subr.bf16.mxu0 0
  %402 = vmatpush1.bf16.msra.mxu0 0
  %403 = vmatprep.subr.bf16.mxu0 0
  %404 = vmatpush1.bf16.msra.mxu0 0
  %405 = vmatprep.subr.bf16.mxu0 0
  %406 = vmatpush1.bf16.msra.mxu0 0
  %407 = vmatprep.subr.bf16.mxu0 0
  %408 = vmatpush1.bf16.msra.mxu0 0
  %409 = vmatprep.subr.bf16.mxu0 0
  %410 = vmatpush1.bf16.msra.mxu0 0
  %411 = vmatprep.subr.bf16.mxu0 0
  %412 = vmatpush1.bf16.msra.mxu0 0
  %413 = vmatprep.subr.bf16.mxu0 0
  %414 = vmatpush1.bf16.msra.mxu0 0
  %415 = vmatprep.subr.bf16.mxu0 0
  %416 = vmatpush1.bf16.msra.mxu0 0
  %417 = vmatprep.subr.bf16.mxu0 0
  %418 = vmatpush1.bf16.msra.mxu0 0
  %419 = vmatprep.subr.bf16.mxu0 0
  %420 = vmatpush1.bf16.msra.mxu0 0
  %421 = vmatprep.subr.bf16.mxu0 0
  %422 = vmatpush1.bf16.msra.mxu0 0
  %423 = vmatprep.mubr.bf16.mxu0 0
  %424 = vmatmul.mubr.bf16.gmra.mrb[0].mxu0 %v368
  %v425 = vpop.f32.mrb[0].mxu0
  %v426 = vadd.f32 %v352, %v425
  %v427 = vpop.f32.mrb[0].mxu0
  %v428 = vpop.f32.mrb[0].mxu0
  %v429 = vadd.f32 %v352, %v428
  %v430 = vpop.f32.mrb[0].mxu0
  %431 = vmatprep.mubr.bf16.mxu0 0
  %432 = vmatmul.mubr.bf16.gmra.mrb[0].mxu0 %v371
  %v433 = vpop.f32.mrb[0].mxu0
  %v434 = vadd.f32 %v352, %v433
  %v435 = vpop.f32.mrb[0].mxu0
  %v436 = vpop.f32.mrb[0].mxu0
  %v437 = vadd.f32 %v352, %v436
  %v438 = vpop.f32.mrb[0].mxu0
  %439 = vmatprep.mubr.bf16.mxu0 0
  %440 = vmatmul.mubr.bf16.gmra.mrb[0].mxu0 %v374
  %v441 = vpop.f32.mrb[0].mxu0
  %v442 = vadd.f32 %v352, %v441
  %v443 = vpop.f32.mrb[0].mxu0
  %v444 = vpop.f32.mrb[0].mxu0
  %v445 = vadd.f32 %v352, %v444
  %v446 = vpop.f32.mrb[0].mxu0
  %447 = vmatprep.mubr.bf16.mxu0 0
  %448 = vmatmul.mubr.bf16.gmra.mrb[0].mxu0 %v377
  %v449 = vpop.f32.mrb[0].mxu0
  %v450 = vadd.f32 %v352, %v449
  %v451 = vpop.f32.mrb[0].mxu0
  %v452 = vpop.f32.mrb[0].mxu0
  %v453 = vadd.f32 %v352, %v452
  %v454 = vpop.f32.mrb[0].mxu0
  %455 = vmatprep.mubr.bf16.mxu0 0
  %456 = vmatmul.mubr.bf16.gmra.mrb[0].mxu0 %v380
  %v457 = vpop.f32.mrb[0].mxu0
  %v458 = vadd.f32 %v352, %v457
  %v459 = vpop.f32.mrb[0].mxu0
  %v460 = vpop.f32.mrb[0].mxu0
  %v461 = vadd.f32 %v352, %v460
  %v462 = vpop.f32.mrb[0].mxu0
  %463 = vmatprep.mubr.bf16.mxu0 0
  %464 = vmatmul.mubr.bf16.gmra.mrb[0].mxu0 %v383
  %v465 = vpop.f32.mrb[0].mxu0
  %v466 = vadd.f32 %v352, %v465
  %v467 = vpop.f32.mrb[0].mxu0
  %v468 = vpop.f32.mrb[0].mxu0
  %v469 = vadd.f32 %v352, %v468
  %v470 = vpop.f32.mrb[0].mxu0
  %471 = vmatprep.mubr.bf16.mxu0 0
  %472 = vmatmul.mubr.bf16.gmra.mrb[0].mxu0 %v386
  %v473 = vpop.f32.mrb[0].mxu0
  %v474 = vadd.f32 %v352, %v473
  %v475 = vpop.f32.mrb[0].mxu0
  %v476 = vpop.f32.mrb[0].mxu0
  %v477 = vadd.f32 %v352, %v476
  %v478 = vpop.f32.mrb[0].mxu0
  %479 = vmatprep.mubr.bf16.mxu0 0
  %480 = vmatmul.mubr.bf16.gmra.mrb[0].mxu0 %v389
  %v481 = vpop.f32.mrb[0].mxu0
  %v482 = vadd.f32 %v352, %v481
  %v483 = vpop.f32.mrb[0].mxu0
  %v484 = vpop.f32.mrb[0].mxu0
  %v485 = vadd.f32 %v352, %v484
  %v486 = vpop.f32.mrb[0].mxu0
  %487 = vdwg.mxu0
  %v488 = vmul.f32 %v426, 0.5
  %v489 = vmul.f32 %v429, 0.5
  %v490 = vmul.f32 %v434, 0.5
  %v491 = vmul.f32 %v437, 0.5
  %v492 = vmul.f32 %v442, 0.5
  %v493 = vmul.f32 %v445, 0.5
  %v494 = vmul.f32 %v450, 0.5
  %v495 = vmul.f32 %v453, 0.5
  %v496 = vmul.f32 %v458, 0.5
  %v497 = vmul.f32 %v461, 0.5
  %v498 = vmul.f32 %v466, 0.5
  %v499 = vmul.f32 %v469, 0.5
  %v500 = vmul.f32 %v474, 0.5
  %v501 = vmul.f32 %v477, 0.5
  %v502 = vmul.f32 %v482, 0.5
  %v503 = vmul.f32 %v485, 0.5
  %v504 = vmul.f32 %v426, 0.70710677
  %v505 = vmul.f32 %v429, 0.70710677
  %v506 = vmul.f32 %v434, 0.70710677
  %v507 = vmul.f32 %v437, 0.70710677
  %v508 = vmul.f32 %v442, 0.70710677
  %v509 = vmul.f32 %v445, 0.70710677
  %v510 = vmul.f32 %v450, 0.70710677
  %v511 = vmul.f32 %v453, 0.70710677
  %v512 = vmul.f32 %v458, 0.70710677
  %v513 = vmul.f32 %v461, 0.70710677
  %v514 = vmul.f32 %v466, 0.70710677
  %v515 = vmul.f32 %v469, 0.70710677
  %v516 = vmul.f32 %v474, 0.70710677
  %v517 = vmul.f32 %v477, 0.70710677
  %v518 = vmul.f32 %v482, 0.70710677
  %v519 = vmul.f32 %v485, 0.70710677
  %v520 = verf.f32.pop %v504
  %v521 = verf.f32.pop %v505
  %v522 = verf.f32.pop %v506
  %v523 = verf.f32.pop %v507
  %v524 = verf.f32.pop %v508
  %v525 = verf.f32.pop %v509
  %v526 = verf.f32.pop %v510
  %v527 = verf.f32.pop %v511
  %v528 = verf.f32.pop %v512
  %v529 = verf.f32.pop %v513
  %v530 = verf.f32.pop %v514
  %v531 = verf.f32.pop %v515
  %v532 = verf.f32.pop %v516
  %v533 = verf.f32.pop %v517
  %v534 = verf.f32.pop %v518
  %v535 = verf.f32.pop %v519
  %v536 = vadd.f32 %v520, 1.0
  %v537 = vadd.f32 %v521, 1.0
  %v538 = vadd.f32 %v522, 1.0
  %v539 = vadd.f32 %v523, 1.0
  %v540 = vadd.f32 %v524, 1.0
  %v541 = vadd.f32 %v525, 1.0
  %v542 = vadd.f32 %v526, 1.0
  %v543 = vadd.f32 %v527, 1.0
  %v544 = vadd.f32 %v528, 1.0
  %v545 = vadd.f32 %v529, 1.0
  %v546 = vadd.f32 %v530, 1.0
  %v547 = vadd.f32 %v531, 1.0
  %v548 = vadd.f32 %v532, 1.0
  %v549 = vadd.f32 %v533, 1.0
  %v550 = vadd.f32 %v534, 1.0
  %v551 = vadd.f32 %v535, 1.0
  %v552 = vmul.f32 %v488, %v536
  %v553 = vmul.f32 %v489, %v537
  %v554 = vmul.f32 %v490, %v538
  %v555 = vmul.f32 %v491, %v539
  %v556 = vmul.f32 %v492, %v540
  %v557 = vmul.f32 %v493, %v541
  %v558 = vmul.f32 %v494, %v542
  %v559 = vmul.f32 %v495, %v543
  %v560 = vmul.f32 %v496, %v544
  %v561 = vmul.f32 %v497, %v545
  %v562 = vmul.f32 %v498, %v546
  %v563 = vmul.f32 %v499, %v547
  %v564 = vmul.f32 %v500, %v548
  %v565 = vmul.f32 %v501, %v549
  %v566 = vmul.f32 %v502, %v550
  %v567 = vmul.f32 %v503, %v551
  %v568 = vld [vmem:[#allocation3] sm:$0xff]
  %v569 = vld [vmem:[#allocation3 + $0x8] sm:$0xff]
  %v570 = vld [vmem:[#allocation3 + $0x10] sm:$0xff]
  %v571 = vld [vmem:[#allocation3 + $0x18] sm:$0xff]
  %v572 = vld [vmem:[#allocation3 + $0x20] sm:$0xff]
  %v573 = vld [vmem:[#allocation3 + $0x28] sm:$0xff]
  %v574 = vld [vmem:[#allocation3 + $0x30] sm:$0xff]
  %v575 = vld [vmem:[#allocation3 + $0x38] sm:$0xff]
  %v576 = vld [vmem:[#allocation3 + $0x40] sm:$0xff]
  %v577 = vld [vmem:[#allocation3 + $0x48] sm:$0xff]
  %v578 = vld [vmem:[#allocation3 + $0x50] sm:$0xff]
  %v579 = vld [vmem:[#allocation3 + $0x58] sm:$0xff]
  %v580 = vld [vmem:[#allocation3 + $0x60] sm:$0xff]
  %v581 = vld [vmem:[#allocation3 + $0x68] sm:$0xff]
  %v582 = vld [vmem:[#allocation3 + $0x70] sm:$0xff]
  %v583 = vld [vmem:[#allocation3 + $0x78] sm:$0xff]
  %v584 = vpack.c.bf16 %v553, %v552
  %v585 = vpack.c.bf16 %v555, %v554
  %v586 = vpack.c.bf16 %v557, %v556
  %v587 = vpack.c.bf16 %v559, %v558
  %v588 = vpack.c.bf16 %v561, %v560
  %v589 = vpack.c.bf16 %v563, %v562
  %v590 = vpack.c.bf16 %v565, %v564
  %v591 = vpack.c.bf16 %v567, %v566
  %v592 = vld [vmem:[%s5] sm:$0xf]
  %v593 = vld [vmem:[%s5 + $0x4] sm:$0xf]
  %v594 = vld [vmem:[%s5 + $0x8] sm:$0xf]
  %v595 = vld [vmem:[%s5 + $0xc] sm:$0xf]
  %v596 = vld [vmem:[%s5 + $0x10] sm:$0xf]
  %v597 = vld [vmem:[%s5 + $0x14] sm:$0xf]
  %v598 = vld [vmem:[%s5 + $0x18] sm:$0xf]
  %v599 = vld [vmem:[%s5 + $0x1c] sm:$0xf]
  %v600 = vld [vmem:[%s5 + $0x20] sm:$0xf]
  %v601 = vld [vmem:[%s5 + $0x24] sm:$0xf]
  %v602 = vld [vmem:[%s5 + $0x28] sm:$0xf]
  %v603 = vld [vmem:[%s5 + $0x2c] sm:$0xf]
  %v604 = vld [vmem:[%s5 + $0x30] sm:$0xf]
  %v605 = vld [vmem:[%s5 + $0x34] sm:$0xf]
  %v606 = vld [vmem:[%s5 + $0x38] sm:$0xf]
  %v607 = vld [vmem:[%s5 + $0x3c] sm:$0xf]
  %v624 = vunpack.c.l.b16 %v592
  %v625 = vunpack.c.l.b16 %v593
  %v626 = vunpack.c.l.b16 %v594
  %v627 = vunpack.c.l.b16 %v595
  %v628 = vunpack.c.l.b16 %v596
  %v629 = vunpack.c.l.b16 %v597
  %v630 = vunpack.c.l.b16 %v598
  %v631 = vunpack.c.l.b16 %v599
  %v632 = vunpack.c.l.b16 %v600
  %v633 = vunpack.c.l.b16 %v601
  %v634 = vunpack.c.l.b16 %v602
  %v635 = vunpack.c.l.b16 %v603
  %v636 = vunpack.c.l.b16 %v604
  %v637 = vunpack.c.l.b16 %v605
  %v638 = vunpack.c.l.b16 %v606
  %v639 = vunpack.c.l.b16 %v607
  %v640 = vpack.c.b16 %v625, %v624
  %v641 = vpack.c.b16 %v627, %v626
  %v642 = vpack.c.b16 %v629, %v628
  %v643 = vpack.c.b16 %v631, %v630
  %v644 = vpack.c.b16 %v633, %v632
  %v645 = vpack.c.b16 %v635, %v634
  %v646 = vpack.c.b16 %v637, %v636
  %v647 = vpack.c.b16 %v639, %v638
  %656 = vmatprep.subr.bf16.mxu0 0
  %657 = vmatpush1.bf16.msra.mxu0 %v640
  %658 = vmatprep.subr.bf16.mxu0 0
  %659 = vmatpush1.bf16.msra.mxu0 %v641
  %660 = vmatprep.subr.bf16.mxu0 0
  %661 = vmatpush1.bf16.msra.mxu0 %v642
  %662 = vmatprep.subr.bf16.mxu0 0
  %663 = vmatpush1.bf16.msra.mxu0 %v643
  %664 = vmatprep.subr.bf16.mxu0 0
  %665 = vmatpush1.bf16.msra.mxu0 %v644
  %666 = vmatprep.subr.bf16.mxu0 0
  %667 = vmatpush1.bf16.msra.mxu0 %v645
  %668 = vmatprep.subr.bf16.mxu0 0
  %669 = vmatpush1.bf16.msra.mxu0 %v646
  %670 = vmatprep.subr.bf16.mxu0 0
  %671 = vmatpush1.bf16.msra.mxu0 %v647
  %672 = vmatprep.subr.bf16.mxu0 0
  %673 = vmatpush1.bf16.msra.mxu0 0
  %674 = vmatprep.subr.bf16.mxu0 0
  %675 = vmatpush1.bf16.msra.mxu0 0
  %676 = vmatprep.subr.bf16.mxu0 0
  %677 = vmatpush1.bf16.msra.mxu0 0
  %678 = vmatprep.subr.bf16.mxu0 0
  %679 = vmatpush1.bf16.msra.mxu0 0
  %680 = vmatprep.subr.bf16.mxu0 0
  %681 = vmatpush1.bf16.msra.mxu0 0
  %682 = vmatprep.subr.bf16.mxu0 0
  %683 = vmatpush1.bf16.msra.mxu0 0
  %684 = vmatprep.subr.bf16.mxu0 0
  %685 = vmatpush1.bf16.msra.mxu0 0
  %686 = vmatprep.subr.bf16.mxu0 0
  %687 = vmatpush1.bf16.msra.mxu0 0
  %688 = vmatprep.mubr.bf16.mxu0 0
  %689 = vmatmul.mubr.bf16.gmra.mrb[0].mxu0 %v584
  %v690 = vpop.f32.mrb[0].mxu0
  %v691 = vadd.f32 0.0, %v690
  %v692 = vpop.f32.mrb[0].mxu0
  %v693 = vpop.f32.mrb[0].mxu0
  %v694 = vadd.f32 0.0, %v693
  %v695 = vpop.f32.mrb[0].mxu0
  %696 = vmatprep.mubr.bf16.mxu0 0
  %697 = vmatmul.mubr.bf16.gmra.mrb[0].mxu0 %v585
  %v698 = vpop.f32.mrb[0].mxu0
  %v699 = vadd.f32 0.0, %v698
  %v700 = vpop.f32.mrb[0].mxu0
  %v701 = vpop.f32.mrb[0].mxu0
  %v702 = vadd.f32 0.0, %v701
  %v703 = vpop.f32.mrb[0].mxu0
  %704 = vmatprep.mubr.bf16.mxu0 0
  %705 = vmatmul.mubr.bf16.gmra.mrb[0].mxu0 %v586
  %v706 = vpop.f32.mrb[0].mxu0
  %v707 = vadd.f32 0.0, %v706
  %v708 = vpop.f32.mrb[0].mxu0
  %v709 = vpop.f32.mrb[0].mxu0
  %v710 = vadd.f32 0.0, %v709
  %v711 = vpop.f32.mrb[0].mxu0
  %712 = vmatprep.mubr.bf16.mxu0 0
  %713 = vmatmul.mubr.bf16.gmra.mrb[0].mxu0 %v587
  %v714 = vpop.f32.mrb[0].mxu0
  %v715 = vadd.f32 0.0, %v714
  %v716 = vpop.f32.mrb[0].mxu0
  %v717 = vpop.f32.mrb[0].mxu0
  %v718 = vadd.f32 0.0, %v717
  %v719 = vpop.f32.mrb[0].mxu0
  %720 = vmatprep.mubr.bf16.mxu0 0
  %721 = vmatmul.mubr.bf16.gmra.mrb[0].mxu0 %v588
  %v722 = vpop.f32.mrb[0].mxu0
  %v723 = vadd.f32 0.0, %v722
  %v724 = vpop.f32.mrb[0].mxu0
  %v725 = vpop.f32.mrb[0].mxu0
  %v726 = vadd.f32 0.0, %v725
  %v727 = vpop.f32.mrb[0].mxu0
  %728 = vmatprep.mubr.bf16.mxu0 0
  %729 = vmatmul.mubr.bf16.gmra.mrb[0].mxu0 %v589
  %v730 = vpop.f32.mrb[0].mxu0
  %v731 = vadd.f32 0.0, %v730
  %v732 = vpop.f32.mrb[0].mxu0
  %v733 = vpop.f32.mrb[0].mxu0
  %v734 = vadd.f32 0.0, %v733
  %v735 = vpop.f32.mrb[0].mxu0
  %736 = vmatprep.mubr.bf16.mxu0 0
  %737 = vmatmul.mubr.bf16.gmra.mrb[0].mxu0 %v590
  %v738 = vpop.f32.mrb[0].mxu0
  %v739 = vadd.f32 0.0, %v738
  %v740 = vpop.f32.mrb[0].mxu0
  %v741 = vpop.f32.mrb[0].mxu0
  %v742 = vadd.f32 0.0, %v741
  %v743 = vpop.f32.mrb[0].mxu0
  %744 = vmatprep.mubr.bf16.mxu0 0
  %745 = vmatmul.mubr.bf16.gmra.mrb[0].mxu0 %v591
  %v746 = vpop.f32.mrb[0].mxu0
  %v747 = vadd.f32 0.0, %v746
  %v748 = vpop.f32.mrb[0].mxu0
  %v749 = vpop.f32.mrb[0].mxu0
  %v750 = vadd.f32 0.0, %v749
  %v751 = vpop.f32.mrb[0].mxu0
  %752 = vdwg.mxu0
  %v753 = vadd.f32 %v568, %v691
  %v754 = vadd.f32 %v569, %v694
  %v755 = vadd.f32 %v570, %v699
  %v756 = vadd.f32 %v571, %v702
  %v757 = vadd.f32 %v572, %v707
  %v758 = vadd.f32 %v573, %v710
  %v759 = vadd.f32 %v574, %v715
  %v760 = vadd.f32 %v575, %v718
  %v761 = vadd.f32 %v576, %v723
  %v762 = vadd.f32 %v577, %v726
  %v763 = vadd.f32 %v578, %v731
  %v764 = vadd.f32 %v579, %v734
  %v765 = vadd.f32 %v580, %v739
  %v766 = vadd.f32 %v581, %v742
  %v767 = vadd.f32 %v582, %v747
  %v768 = vadd.f32 %v583, %v750
  %769 = vst.msk [vmem:[#allocation3] sm:$0xff] %vm366, %v753
  %770 = vst.msk [vmem:[#allocation3 + $0x8] sm:$0xff] %vm366, %v754
  %771 = vst.msk [vmem:[#allocation3 + $0x10] sm:$0xff] %vm366, %v755
  %772 = vst.msk [vmem:[#allocation3 + $0x18] sm:$0xff] %vm366, %v756
  %773 = vst.msk [vmem:[#allocation3 + $0x20] sm:$0xff] %vm366, %v757
  %774 = vst.msk [vmem:[#allocation3 + $0x28] sm:$0xff] %vm366, %v758
  %775 = vst.msk [vmem:[#allocation3 + $0x30] sm:$0xff] %vm366, %v759
  %776 = vst.msk [vmem:[#allocation3 + $0x38] sm:$0xff] %vm366, %v760
  %777 = vst.msk [vmem:[#allocation3 + $0x40] sm:$0xff] %vm366, %v761
  %778 = vst.msk [vmem:[#allocation3 + $0x48] sm:$0xff] %vm366, %v762
  %779 = vst.msk [vmem:[#allocation3 + $0x50] sm:$0xff] %vm366, %v763
  %780 = vst.msk [vmem:[#allocation3 + $0x58] sm:$0xff] %vm366, %v764
  %781 = vst.msk [vmem:[#allocation3 + $0x60] sm:$0xff] %vm366, %v765
  %782 = vst.msk [vmem:[#allocation3 + $0x68] sm:$0xff] %vm366, %v766
  %783 = vst.msk [vmem:[#allocation3 + $0x70] sm:$0xff] %vm366, %v767
  %784 = vst.msk [vmem:[#allocation3 + $0x78] sm:$0xff] %vm366, %v768
  // Predicated region
  $region34: #{normal_cell_forward.11} parent=0 // pred_check
    %p785 = pneg %p27
  $region35: #{normal_cell_forward.11} parent=0 // pred_check_branch
    %787 = sbr.rel (%p785) target = $region37
  $region36: #{normal_cell_forward.11} parent=0 // pred_region
    %v788 = vld [vmem:[%s0] sm:$0xff]
    %v789 = vld [vmem:[%s0 + $0x8] sm:$0xff]
    %v790 = vld [vmem:[%s0 + $0x10] sm:$0xff]
    %v791 = vld [vmem:[%s0 + $0x18] sm:$0xff]
    %v792 = vld [vmem:[%s0 + $0x20] sm:$0xff]
    %v793 = vld [vmem:[%s0 + $0x28] sm:$0xff]
    %v794 = vld [vmem:[%s0 + $0x30] sm:$0xff]
    %v795 = vld [vmem:[%s0 + $0x38] sm:$0xff]
    %v796 = vld [vmem:[%s0 + $0x40] sm:$0xff]
    %v797 = vld [vmem:[%s0 + $0x48] sm:$0xff]
    %v798 = vld [vmem:[%s0 + $0x50] sm:$0xff]
    %v799 = vld [vmem:[%s0 + $0x58] sm:$0xff]
    %v800 = vld [vmem:[%s0 + $0x60] sm:$0xff]
    %v801 = vld [vmem:[%s0 + $0x68] sm:$0xff]
    %v802 = vld [vmem:[%s0 + $0x70] sm:$0xff]
    %v803 = vld [vmem:[%s0 + $0x78] sm:$0xff]
    %v804 = vld [vmem:[#allocation3] sm:$0xff]
    %v805 = vld [vmem:[#allocation3 + $0x8] sm:$0xff]
    %v806 = vld [vmem:[#allocation3 + $0x10] sm:$0xff]
    %v807 = vld [vmem:[#allocation3 + $0x18] sm:$0xff]
    %v808 = vld [vmem:[#allocation3 + $0x20] sm:$0xff]
    %v809 = vld [vmem:[#allocation3 + $0x28] sm:$0xff]
    %v810 = vld [vmem:[#allocation3 + $0x30] sm:$0xff]
    %v811 = vld [vmem:[#allocation3 + $0x38] sm:$0xff]
    %v812 = vld [vmem:[#allocation3 + $0x40] sm:$0xff]
    %v813 = vld [vmem:[#allocation3 + $0x48] sm:$0xff]
    %v814 = vld [vmem:[#allocation3 + $0x50] sm:$0xff]
    %v815 = vld [vmem:[#allocation3 + $0x58] sm:$0xff]
    %v816 = vld [vmem:[#allocation3 + $0x60] sm:$0xff]
    %v817 = vld [vmem:[#allocation3 + $0x68] sm:$0xff]
    %v818 = vld [vmem:[#allocation3 + $0x70] sm:$0xff]
    %v819 = vld [vmem:[#allocation3 + $0x78] sm:$0xff]
    %v820 = vadd.f32 %v788, %v804
    %v821 = vadd.f32 %v789, %v805
    %v822 = vadd.f32 %v790, %v806
    %v823 = vadd.f32 %v791, %v807
    %v824 = vadd.f32 %v792, %v808
    %v825 = vadd.f32 %v793, %v809
    %v826 = vadd.f32 %v794, %v810
    %v827 = vadd.f32 %v795, %v811
    %v828 = vadd.f32 %v796, %v812
    %v829 = vadd.f32 %v797, %v813
    %v830 = vadd.f32 %v798, %v814
    %v831 = vadd.f32 %v799, %v815
    %v832 = vadd.f32 %v800, %v816
    %v833 = vadd.f32 %v801, %v817
    %v834 = vadd.f32 %v802, %v818
    %v835 = vadd.f32 %v803, %v819
    %v836 = vld [vmem:[%s6] sm:$0x1]
    %v838 = vlaneseq
    %v839 = vshrl.u32 %v838, 7
    %v840 = vsub.s32 0, %v839
    %v841 = vrot.slane %v836, %v840
    %v843 = vadd.f32 %v820, %v841
    %v844 = vadd.f32 %v821, %v841
    %v845 = vadd.f32 %v822, %v841
    %v846 = vadd.f32 %v823, %v841
    %v847 = vadd.f32 %v824, %v841
    %v848 = vadd.f32 %v825, %v841
    %v849 = vadd.f32 %v826, %v841
    %v850 = vadd.f32 %v827, %v841
    %v851 = vadd.f32 %v828, %v841
    %v852 = vadd.f32 %v829, %v841
    %v853 = vadd.f32 %v830, %v841
    %v854 = vadd.f32 %v831, %v841
    %v855 = vadd.f32 %v832, %v841
    %v856 = vadd.f32 %v833, %v841
    %v857 = vadd.f32 %v834, %v841
    %v858 = vadd.f32 %v835, %v841
    %859 = vst.msk [vmem:[%s7] sm:$0xff] %vm366, %v843
    %860 = vst.msk [vmem:[%s7 + $0x8] sm:$0xff] %vm366, %v844
    %861 = vst.msk [vmem:[%s7 + $0x10] sm:$0xff] %vm366, %v845
    %862 = vst.msk [vmem:[%s7 + $0x18] sm:$0xff] %vm366, %v846
    %863 = vst.msk [vmem:[%s7 + $0x20] sm:$0xff] %vm366, %v847
    %864 = vst.msk [vmem:[%s7 + $0x28] sm:$0xff] %vm366, %v848
    %865 = vst.msk [vmem:[%s7 + $0x30] sm:$0xff] %vm366, %v849
    %866 = vst.msk [vmem:[%s7 + $0x38] sm:$0xff] %vm366, %v850
    %867 = vst.msk [vmem:[%s7 + $0x40] sm:$0xff] %vm366, %v851
    %868 = vst.msk [vmem:[%s7 + $0x48] sm:$0xff] %vm366, %v852
    %869 = vst.msk [vmem:[%s7 + $0x50] sm:$0xff] %vm366, %v853
    %870 = vst.msk [vmem:[%s7 + $0x58] sm:$0xff] %vm366, %v854
    %871 = vst.msk [vmem:[%s7 + $0x60] sm:$0xff] %vm366, %v855
    %872 = vst.msk [vmem:[%s7 + $0x68] sm:$0xff] %vm366, %v856
    %873 = vst.msk [vmem:[%s7 + $0x70] sm:$0xff] %vm366, %v857
    %874 = vst.msk [vmem:[%s7 + $0x78] sm:$0xff] %vm366, %v858
  $region37: #{normal_cell_forward.11} parent=0 // pred_fallthru
    _
  // Predicated region
  $region38: #{normal_cell_forward.11} parent=0 // pred_check
    _
  $region39: #{normal_cell_forward.11} parent=0 // pred_check_branch
    %876 = sbr.rel (0) target = $region41
  $region40: #{normal_cell_forward.11} parent=0 // pred_region
    _
  $region41: #{normal_cell_forward.11} parent=0 // pred_fallthru
    _
  // Predicated region
  $region42: #{normal_cell_forward.11} parent=0 // pred_check
    _
  $region43: #{normal_cell_forward.11} parent=0 // pred_check_branch
    %878 = sbr.rel (0) target = $region45
  $region44: #{normal_cell_forward.11} parent=0 // pred_region
    _
  $region45: #{normal_cell_forward.11} parent=0 // pred_fallthru
    _

// kernel: normal_cell_forward.10
$region0: #{normal_cell_forward.10}
  #allocation0 [shape = 'u32[]', space=smem, size = 0x4, offset = 0x4, fixed_abs, tag = 'smem constant byte address 0x4 - core index']
  #allocation1 [shape = 'u32[144,128]{1,0:T(1,128)}', space=vmem, size = 0x12000, scoped, tag = 'internal scratch']
  #allocation2 [shape = 'f32[64,32]{1,0:T(8,128)}', space=vmem, size = 0x8000, scoped, tag = 'scratch operand']
  %s0 = inlined_call_operand.vmem [shape: bf16[2,10,10,32], index: 0, kind: input, shape index: {}]
  %s1 = inlined_call_operand.vmem [shape: bf16[9,32,32], index: 1, kind: input, shape index: {}]
  %s2 = inlined_call_operand.vmem [shape: f32[1,32], index: 2, kind: input, shape index: {}]
  %s3 = inlined_call_operand.vmem [shape: f32[1,32], index: 3, kind: input, shape index: {}]
  %s4 = inlined_call_operand.vmem [shape: f32[2,64,32], index: 4, kind: input, shape index: {}]
  %s5 = inlined_call_operand.vmem [shape: f32[2,64,32], index: 5, kind: output, shape index: {}]
  %s6 = sld [smem:[#allocation0]]
  $region53: #{normal_cell_forward.10} parent=0
    _
  %s8 = ssub.s32 1, %s6
  %s9 = scalar_select 0, %s8, %s6
  loop: start=0, step=1, limit=4
  $region2: #{normal_cell_forward.10} parent=0 // loop_pre_header
    _
  $region3: #{normal_cell_forward.10} parent=0 // loop_header
    %s11 = sphi 0, %s15
    %p12 = scmp.ge.s32.totalorder %s11, 4
    %s21 = sphi 0, %s23
    %s24 = sphi 0, %s21
    %s25 = sphi 0, %s24
    %s41 = sphi 0, %s25
    %s45 = sphi 0, %s45
    %s47 = sphi 0, %s45
    %s48 = sphi 0, %s47
    %s62 = sphi 0, %s48
    %s66 = sphi 0, %s66
    %s68 = sphi 0, %s66
    %s69 = sphi 0, %s68
    %s83 = sphi 0, %s69
    %s87 = sphi 0, %s87
    %s89 = sphi 0, %s87
    %s90 = sphi 0, %s89
    %s104 = sphi 0, %s90
    %s110 = sphi 0, %s112
    %s113 = sphi 0, %s110
    %s114 = sphi 0, %s113
    %s130 = sphi 0, %s114
    %s136 = sphi 0, %s138
    %s139 = sphi 0, %s136
    %s140 = sphi 0, %s139
    %s156 = sphi 0, %s140
  $region4: #{normal_cell_forward.10} parent=0 // loop_header_branch
    %14 = sbr.rel (%p12) target = $region8
  $region5: #{normal_cell_forward.10} parent=0 // loop_body
    %s16 = ssub.s32 %s11, 1
    %s17 = ssub.s32 %s11, 2
    %s18 = sadd.s32 %s11, 1
    %s19 = ssub.s32 %s11, %s18
    %p20 = scmp.eq.s32.totalorder %s19, 0
    %s22 = sadd.s32 %s21, 1
    %s23 = scalar_select %p20, %s21, %s22
    %p26 = pneg %p20
    %p27 = scmp.eq.s32.totalorder %s11, 1
    %p28 = por %p26, %p27
    %p29 = scmp.ne.s32.totalorder %s21, %s24
    %p30 = scmp.eq.s32.totalorder %s11, 0
    %p31 = por %p29, %p30
    %p32 = scmp.ne.s32.totalorder %s21, %s24
    %p33 = scmp.eq.s32.totalorder %s16, 1
    %p34 = por %p32, %p33
    %p35 = scmp.ne.s32.totalorder %s24, %s25
    %p36 = scmp.eq.s32.totalorder %s16, 0
    %p37 = por %p35, %p36
    %p38 = scmp.ne.s32.totalorder %s24, %s25
    %p39 = scmp.eq.s32.totalorder %s17, 1
    %p40 = por %p38, %p39
    %p42 = scmp.ne.s32.totalorder %s25, %s41
    %p43 = scmp.eq.s32.totalorder %s17, 0
    %p44 = por %p42, %p43
    %s46 = sadd.s32 %s45, 1
    %p49 = scmp.eq.s32.totalorder %s11, 1
    %p50 = scmp.ne.s32.totalorder %s45, %s47
    %p51 = scmp.eq.s32.totalorder %s11, 0
    %p52 = por %p50, %p51
    %p53 = scmp.ne.s32.totalorder %s45, %s47
    %p54 = scmp.eq.s32.totalorder %s16, 1
    %p55 = por %p53, %p54
    %p56 = scmp.ne.s32.totalorder %s47, %s48
    %p57 = scmp.eq.s32.totalorder %s16, 0
    %p58 = por %p56, %p57
    %p59 = scmp.ne.s32.totalorder %s47, %s48
    %p60 = scmp.eq.s32.totalorder %s17, 1
    %p61 = por %p59, %p60
    %p63 = scmp.ne.s32.totalorder %s48, %s62
    %p64 = scmp.eq.s32.totalorder %s17, 0
    %p65 = por %p63, %p64
    %s67 = sadd.s32 %s66, 1
    %p70 = scmp.eq.s32.totalorder %s11, 1
    %p71 = scmp.ne.s32.totalorder %s66, %s68
    %p72 = scmp.eq.s32.totalorder %s11, 0
    %p73 = por %p71, %p72
    %p74 = scmp.ne.s32.totalorder %s66, %s68
    %p75 = scmp.eq.s32.totalorder %s16, 1
    %p76 = por %p74, %p75
    %p77 = scmp.ne.s32.totalorder %s68, %s69
    %p78 = scmp.eq.s32.totalorder %s16, 0
    %p79 = por %p77, %p78
    %p80 = scmp.ne.s32.totalorder %s68, %s69
    %p81 = scmp.eq.s32.totalorder %s17, 1
    %p82 = por %p80, %p81
    %p84 = scmp.ne.s32.totalorder %s69, %s83
    %p85 = scmp.eq.s32.totalorder %s17, 0
    %p86 = por %p84, %p85
    %s88 = sadd.s32 %s87, 1
    %p91 = scmp.eq.s32.totalorder %s11, 1
    %p92 = scmp.ne.s32.totalorder %s87, %s89
    %p93 = scmp.eq.s32.totalorder %s11, 0
    %p94 = por %p92, %p93
    %p95 = scmp.ne.s32.totalorder %s87, %s89
    %p96 = scmp.eq.s32.totalorder %s16, 1
    %p97 = por %p95, %p96
    %p98 = scmp.ne.s32.totalorder %s89, %s90
    %p99 = scmp.eq.s32.totalorder %s16, 0
    %p100 = por %p98, %p99
    %p101 = scmp.ne.s32.totalorder %s89, %s90
    %p102 = scmp.eq.s32.totalorder %s17, 1
    %p103 = por %p101, %p102
    %p105 = scmp.ne.s32.totalorder %s90, %s104
    %p106 = scmp.eq.s32.totalorder %s17, 0
    %p107 = por %p105, %p106
    %s108 = ssub.s32 %s11, %s18
    %p109 = scmp.eq.s32.totalorder %s108, 0
    %s111 = sadd.s32 %s110, 1
    %s112 = scalar_select %p109, %s110, %s111
    %p115 = pneg %p109
    %p116 = scmp.eq.s32.totalorder %s11, 1
    %p117 = por %p115, %p116
    %p118 = scmp.ne.s32.totalorder %s110, %s113
    %p119 = scmp.eq.s32.totalorder %s11, 0
    %p120 = por %p118, %p119
    %p121 = scmp.ne.s32.totalorder %s110, %s113
    %p122 = scmp.eq.s32.totalorder %s16, 1
    %p123 = por %p121, %p122
    %p124 = scmp.ne.s32.totalorder %s113, %s114
    %p125 = scmp.eq.s32.totalorder %s16, 0
    %p126 = por %p124, %p125
    %p127 = scmp.ne.s32.totalorder %s113, %s114
    %p128 = scmp.eq.s32.totalorder %s17, 1
    %p129 = por %p127, %p128
    %p131 = scmp.ne.s32.totalorder %s114, %s130
    %p132 = scmp.eq.s32.totalorder %s17, 0
    %p133 = por %p131, %p132
    %s134 = ssub.s32 %s11, %s18
    %p135 = scmp.eq.s32.totalorder %s134, 0
    %s137 = sadd.s32 %s136, 1
    %s138 = scalar_select %p135, %s136, %s137
    %p141 = pneg %p135
    %p142 = scmp.eq.s32.totalorder %s11, 1
    %p143 = por %p141, %p142
    %p144 = scmp.ne.s32.totalorder %s136, %s139
    %p145 = scmp.eq.s32.totalorder %s11, 0
    %p146 = por %p144, %p145
    %p147 = scmp.ne.s32.totalorder %s136, %s139
    %p148 = scmp.eq.s32.totalorder %s16, 1
    %p149 = por %p147, %p148
    %p150 = scmp.ne.s32.totalorder %s139, %s140
    %p151 = scmp.eq.s32.totalorder %s16, 0
    %p152 = por %p150, %p151
    %p153 = scmp.ne.s32.totalorder %s139, %s140
    %p154 = scmp.eq.s32.totalorder %s17, 1
    %p155 = por %p153, %p154
    %p157 = scmp.ne.s32.totalorder %s140, %s156
    %p158 = scmp.eq.s32.totalorder %s17, 0
    %p159 = por %p157, %p158
    %p160 = scmp.le.s32.totalorder 1, %s11
    %p161 = scmp.lt.s32.totalorder %s11, 3
    %p162 = pnand %p160, %p161
    %p163 = pneg %p162
    // Predicated region
    $region9: #{normal_cell_forward.10} parent=5 // pred_check
      _
    $region10: #{normal_cell_forward.10} parent=5 // pred_check_branch
      %165 = sbr.rel (%p162) target = $region12
    $region11: #{normal_cell_forward.10} parent=5 // pred_region
      %s166 = ssub.s32 %s11, 1
      // Predicated region
      $region13: #{normal_cell_forward.10} parent=11 // pred_check
        %p167 = pneg %p58
      $region14: #{normal_cell_forward.10} parent=11 // pred_check_branch
        %169 = sbr.rel (%p167) target = $region16
      $region15: #{normal_cell_forward.10} parent=11 // pred_region
        _
      $region16: #{normal_cell_forward.10} parent=11 // pred_fallthru
        _
      // Predicated region
      $region17: #{normal_cell_forward.10} parent=11 // pred_check
        %p170 = pneg %p79
      $region18: #{normal_cell_forward.10} parent=11 // pred_check_branch
        %172 = sbr.rel (%p170) target = $region20
      $region19: #{normal_cell_forward.10} parent=11 // pred_region
        _
      $region20: #{normal_cell_forward.10} parent=11 // pred_fallthru
        _
      // Predicated region
      $region21: #{normal_cell_forward.10} parent=11 // pred_check
        %p173 = pneg %p100
      $region22: #{normal_cell_forward.10} parent=11 // pred_check_branch
        %175 = sbr.rel (%p173) target = $region24
      $region23: #{normal_cell_forward.10} parent=11 // pred_region
        _
      $region24: #{normal_cell_forward.10} parent=11 // pred_fallthru
        _
    $region12: #{normal_cell_forward.10} parent=5 // pred_fallthru
      _
    %p176 = scmp.lt.s32.totalorder %s11, 2
    // Predicated region
    $region25: #{normal_cell_forward.10} parent=5 // pred_check
      %p177 = pneg %p176
    $region26: #{normal_cell_forward.10} parent=5 // pred_check_branch
      %179 = sbr.rel (%p177) target = $region28
    $region27: #{normal_cell_forward.10} parent=5 // pred_region
      // Predicated region
      $region29: #{normal_cell_forward.10} parent=27 // pred_check
        %p180 = pneg %p31
      $region30: #{normal_cell_forward.10} parent=27 // pred_check_branch
        %182 = sbr.rel (%p180) target = $region32
      $region31: #{normal_cell_forward.10} parent=27 // pred_region
        %p183 = scmp.lt.s32.totalorder %s11, 1
        %s184 = scalar_select %p183, %s11, 1
        %s185 = smul.addr %s184, 20
        %s186 = smul.addr %s185, 4
        %s187 = scalar_lea.vmem %s0, %s186
      $region32: #{normal_cell_forward.10} parent=27 // pred_fallthru
        _
      // Predicated region
      $region33: #{normal_cell_forward.10} parent=27 // pred_check
        %p188 = pneg %p120
      $region34: #{normal_cell_forward.10} parent=27 // pred_check_branch
        %190 = sbr.rel (%p188) target = $region36
      $region35: #{normal_cell_forward.10} parent=27 // pred_region
        %p191 = scmp.lt.s32.totalorder %s11, 1
        %s192 = scalar_select %p191, %s11, 1
        %s193 = smul.addr %s192, 8
        %s194 = smul.addr %s193, 8
        %s195 = scalar_lea.vmem %s4, %s194
      $region36: #{normal_cell_forward.10} parent=27 // pred_fallthru
        _
    $region28: #{normal_cell_forward.10} parent=5 // pred_fallthru
      _
    %p196 = scmp.le.s32.totalorder 1, %s11
    %p197 = scmp.lt.s32.totalorder %s11, 3
    %p198 = pnand %p196, %p197
    %p199 = pneg %p198
    // Predicated region
    $region37: #{normal_cell_forward.10} parent=5 // pred_check
      _
    $region38: #{normal_cell_forward.10} parent=5 // pred_check_branch
      %201 = sbr.rel (%p198) target = $region40
    $region39: #{normal_cell_forward.10} parent=5 // pred_region
      %s202 = ssub.s32 %s11, 1
      %p203 = scmp.lt.s32.totalorder %s16, 1
      %s204 = scalar_select %p203, %s16, 1
      %s205 = smul.addr %s204, 20
      %s206 = smul.addr %s205, 4
      %s207 = scalar_lea.vmem %s0, %s206
      %p208 = pneg %p37
      %p209 = pneg %p34
      %p210 = pneg %p58
      %p211 = pneg %p55
      %p212 = pneg %p79
      %p213 = pneg %p76
      %p214 = pneg %p100
      %p215 = pneg %p97
      %p216 = scmp.lt.s32.totalorder %s16, 1
      %s217 = scalar_select %p216, %s16, 1
      %s218 = smul.addr %s217, 8
      %s219 = smul.addr %s218, 8
      %s220 = scalar_lea.vmem %s4, %s219
      %p221 = pneg %p126
      %p222 = pneg %p123
      %p223 = pneg %p152
      %p224 = pneg %p149
      %p225 = scmp.lt.s32.totalorder %s16, 1
      %s226 = scalar_select %p225, %s16, 1
      %s227 = smul.addr %s226, 8
      %s228 = smul.addr %s227, 8
      %s229 = scalar_lea.vmem %s5, %s228
      %p230 = scmp.lt.s32.totalorder %s16, 1
      %s231 = scalar_select %p230, %s16, 1
      %s232 = smul.addr %s231, 20
      %s233 = smul.addr %s232, 4
      %s234 = scalar_lea.vmem %s0, %s233
      %p235 = scmp.lt.s32.totalorder %s16, 1
      %s236 = scalar_select %p235, %s16, 1
      %s237 = smul.addr %s236, 8
      %s238 = smul.addr %s237, 8
      %s239 = scalar_lea.vmem %s4, %s238
      %p240 = scmp.lt.s32.totalorder %s16, 1
      %s241 = scalar_select %p240, %s16, 1
      %s242 = smul.addr %s241, 8
      %s243 = smul.addr %s242, 8
      %s244 = scalar_lea.vmem %s5, %s243
      %v246 = vld [vmem:[%s234] sm:$0xf]
      %v247 = vld [vmem:[%s234 + $0x8] sm:$0xf]
      %v248 = vld [vmem:[%s234 + $0x10] sm:$0xf]
      %v249 = vld [vmem:[%s234 + $0x18] sm:$0xf]
      %v250 = vld [vmem:[%s234 + $0x20] sm:$0xf]
      %v251 = vld [vmem:[%s234 + $0x28] sm:$0xf]
      %v252 = vld [vmem:[%s234 + $0x30] sm:$0xf]
      %v253 = vld [vmem:[%s234 + $0x38] sm:$0xf]
      %v254 = vld [vmem:[%s1] sm:$0xf]
      %v255 = vld [vmem:[%s1 + $0x4] sm:$0xf]
      %v256 = vld [vmem:[%s1 + $0x8] sm:$0xf]
      %v257 = vld [vmem:[%s1 + $0xc] sm:$0xf]
      %v266 = vunpack.c.l.b16 %v246
      %v267 = vunpack.c.l.b16 %v247
      %v268 = vunpack.c.l.b16 %v248
      %v269 = vunpack.c.l.b16 %v249
      %v270 = vunpack.c.l.b16 %v250
      %v271 = vunpack.c.l.b16 %v251
      %v272 = vunpack.c.l.b16 %v252
      %v273 = vunpack.c.l.b16 %v253
      %v274 = vpack.c.b16 %v267, %v266
      %v275 = vpack.c.b16 %v269, %v268
      %v276 = vpack.c.b16 %v271, %v270
      %v277 = vpack.c.b16 %v273, %v272
      %v282 = vunpack.c.l.b16 %v254
      %v283 = vunpack.c.l.b16 %v255
      %v284 = vunpack.c.l.b16 %v256
      %v285 = vunpack.c.l.b16 %v257
      %v286 = vpack.c.b16 %v283, %v282
      %v287 = vpack.c.b16 %v285, %v284
      %vm290 = vcmask 261120
      %v292 = vsel %vm290, %v274, 0
      %v295 = vsel %vm290, %v275, 0
      %v298 = vsel %vm290, %v276, 0
      %v301 = vsel %vm290, %v277, 0
      %303 = vmatprep.subr.bf16.mxu0 0
      %304 = vmatpush1.bf16.msra.mxu0 %v286
      %305 = vmatprep.subr.bf16.mxu0 0
      %306 = vmatpush1.bf16.msra.mxu0 %v287
      %307 = vmatprep.subr.bf16.mxu0 0
      %308 = vmatpush1.bf16.msra.mxu0 0
      %309 = vmatprep.subr.bf16.mxu0 0
      %310 = vmatpush1.bf16.msra.mxu0 0
      %311 = vmatprep.subr.bf16.mxu0 0
      %312 = vmatpush1.bf16.msra.mxu0 0
      %313 = vmatprep.subr.bf16.mxu0 0
      %314 = vmatpush1.bf16.msra.mxu0 0
      %315 = vmatprep.subr.bf16.mxu0 0
      %316 = vmatpush1.bf16.msra.mxu0 0
      %317 = vmatprep.subr.bf16.mxu0 0
      %318 = vmatpush1.bf16.msra.mxu0 0
      %319 = vmatprep.subr.bf16.mxu0 0
      %320 = vmatpush1.bf16.msra.mxu0 0
      %321 = vmatprep.subr.bf16.mxu0 0
      %322 = vmatpush1.bf16.msra.mxu0 0
      %323 = vmatprep.subr.bf16.mxu0 0
      %324 = vmatpush1.bf16.msra.mxu0 0
      %325 = vmatprep.subr.bf16.mxu0 0
      %326 = vmatpush1.bf16.msra.mxu0 0
      %327 = vmatprep.subr.bf16.mxu0 0
      %328 = vmatpush1.bf16.msra.mxu0 0
      %329 = vmatprep.subr.bf16.mxu0 0
      %330 = vmatpush1.bf16.msra.mxu0 0
      %331 = vmatprep.subr.bf16.mxu0 0
      %332 = vmatpush1.bf16.msra.mxu0 0
      %333 = vmatprep.subr.bf16.mxu0 0
      %334 = vmatpush1.bf16.msra.mxu0 0
      %335 = vmatprep.mubr.bf16.mxu0 0
      %336 = vmatmul.mubr.bf16.gmra.mrb[0].mxu0 %v292
      %v337 = vpop.f32.mrb[0].mxu0
      %v338 = vadd.f32 0.0, %v337
      %v339 = vpop.f32.mrb[0].mxu0
      %v340 = vpop.f32.mrb[0].mxu0
      %v341 = vadd.f32 0.0, %v340
      %v342 = vpop.f32.mrb[0].mxu0
      %343 = vmatprep.mubr.bf16.mxu0 0
      %344 = vmatmul.mubr.bf16.gmra.mrb[0].mxu0 %v295
      %v345 = vpop.f32.mrb[0].mxu0
      %v346 = vadd.f32 0.0, %v345
      %v347 = vpop.f32.mrb[0].mxu0
      %v348 = vpop.f32.mrb[0].mxu0
      %v349 = vadd.f32 0.0, %v348
      %v350 = vpop.f32.mrb[0].mxu0
      %351 = vmatprep.mubr.bf16.mxu0 0
      %352 = vmatmul.mubr.bf16.gmra.mrb[0].mxu0 %v298
      %v353 = vpop.f32.mrb[0].mxu0
      %v354 = vadd.f32 0.0, %v353
      %v355 = vpop.f32.mrb[0].mxu0
      %v356 = vpop.f32.mrb[0].mxu0
      %v357 = vadd.f32 0.0, %v356
      %v358 = vpop.f32.mrb[0].mxu0
      %359 = vmatprep.mubr.bf16.mxu0 0
      %360 = vmatmul.mubr.bf16.gmra.mrb[0].mxu0 %v301
      %v361 = vpop.f32.mrb[0].mxu0
      %v362 = vadd.f32 0.0, %v361
      %v363 = vpop.f32.mrb[0].mxu0
      %v364 = vpop.f32.mrb[0].mxu0
      %v365 = vadd.f32 0.0, %v364
      %v366 = vpop.f32.mrb[0].mxu0
      %367 = vdwg.mxu0
      %368 = vst.msk [vmem:[#allocation2] sm:$0xff] %vm290, %v338
      %369 = vst.msk [vmem:[#allocation2 + $0x8] sm:$0xff] %vm290, %v341
      %370 = vst.msk [vmem:[#allocation2 + $0x10] sm:$0xff] %vm290, %v346
      %371 = vst.msk [vmem:[#allocation2 + $0x18] sm:$0xff] %vm290, %v349
      %372 = vst.msk [vmem:[#allocation2 + $0x20] sm:$0xff] %vm290, %v354
      %373 = vst.msk [vmem:[#allocation2 + $0x28] sm:$0xff] %vm290, %v357
      %374 = vst.msk [vmem:[#allocation2 + $0x30] sm:$0xff] %vm290, %v362
      %375 = vst.msk [vmem:[#allocation2 + $0x38] sm:$0xff] %vm290, %v365
      %v376 = vld [vmem:[%s234] sm:$0xf]
      %v377 = vld [vmem:[%s234 + $0x4] sm:$0x1]
      %v378 = vld [vmem:[%s234 + $0x8] sm:$0xf]
      %v379 = vld [vmem:[%s234 + $0xc] sm:$0x1]
      %v380 = vld [vmem:[%s234 + $0x10] sm:$0xf]
      %v381 = vld [vmem:[%s234 + $0x14] sm:$0x1]
      %v382 = vld [vmem:[%s234 + $0x18] sm:$0xf]
      %v383 = vld [vmem:[%s234 + $0x1c] sm:$0x1]
      %v384 = vld [vmem:[%s234 + $0x20] sm:$0xf]
      %v385 = vld [vmem:[%s234 + $0x24] sm:$0x1]
      %v386 = vld [vmem:[%s234 + $0x28] sm:$0xf]
      %v387 = vld [vmem:[%s234 + $0x2c] sm:$0x1]
      %v388 = vld [vmem:[%s234 + $0x30] sm:$0xf]
      %v389 = vld [vmem:[%s234 + $0x34] sm:$0x1]
      %v390 = vld [vmem:[%s234 + $0x38] sm:$0xf]
      %v391 = vld [vmem:[%s234 + $0x3c] sm:$0x1]
      %vm392 = vsmask.f32 3328
      %vm393 = vsmask.f32 7440
      %vm394 = vmor %vm392, %vm393
      %v396 = vshrl.u32 %v376, 16
      %v398 = vrot.slane %v396, 4
      %v399 = vshll.u32 %v376, 16
      %v401 = vrot.slane %v399, 5
      %v402 = vor.u32 %v398, %v401
      %v403 = vrot.slane %v402, 4
      %v405 = vshll.u32 %v377, 16
      %v407 = vrot.slane %v405, 5
      %v408 = vsel %vm394, %v403, %v407
      %v410 = vshrl.u32 %v378, 16
      %v412 = vrot.slane %v410, 4
      %v413 = vshll.u32 %v378, 16
      %v415 = vrot.slane %v413, 5
      %v416 = vor.u32 %v412, %v415
      %v417 = vrot.slane %v416, 4
      %v419 = vshll.u32 %v379, 16
      %v421 = vrot.slane %v419, 5
      %v422 = vsel %vm394, %v417, %v421
      %v424 = vshrl.u32 %v380, 16
      %v426 = vrot.slane %v424, 4
      %v427 = vshll.u32 %v380, 16
      %v429 = vrot.slane %v427, 5
      %v430 = vor.u32 %v426, %v429
      %v431 = vrot.slane %v430, 4
      %v433 = vshll.u32 %v381, 16
      %v435 = vrot.slane %v433, 5
      %v436 = vsel %vm394, %v431, %v435
      %v438 = vshrl.u32 %v382, 16
      %v440 = vrot.slane %v438, 4
      %v441 = vshll.u32 %v382, 16
      %v443 = vrot.slane %v441, 5
      %v444 = vor.u32 %v440, %v443
      %v445 = vrot.slane %v444, 4
      %v447 = vshll.u32 %v383, 16
      %v449 = vrot.slane %v447, 5
      %v450 = vsel %vm394, %v445, %v449
      %v452 = vshrl.u32 %v384, 16
      %v454 = vrot.slane %v452, 4
      %v455 = vshll.u32 %v384, 16
      %v457 = vrot.slane %v455, 5
      %v458 = vor.u32 %v454, %v457
      %v459 = vrot.slane %v458, 4
      %v461 = vshll.u32 %v385, 16
      %v463 = vrot.slane %v461, 5
      %v464 = vsel %vm394, %v459, %v463
      %v466 = vshrl.u32 %v386, 16
      %v468 = vrot.slane %v466, 4
      %v469 = vshll.u32 %v386, 16
      %v471 = vrot.slane %v469, 5
      %v472 = vor.u32 %v468, %v471
      %v473 = vrot.slane %v472, 4
      %v475 = vshll.u32 %v387, 16
      %v477 = vrot.slane %v475, 5
      %v478 = vsel %vm394, %v473, %v477
      %v480 = vshrl.u32 %v388, 16
      %v482 = vrot.slane %v480, 4
      %v483 = vshll.u32 %v388, 16
      %v485 = vrot.slane %v483, 5
      %v486 = vor.u32 %v482, %v485
      %v487 = vrot.slane %v486, 4
      %v489 = vshll.u32 %v389, 16
      %v491 = vrot.slane %v489, 5
      %v492 = vsel %vm394, %v487, %v491
      %v494 = vshrl.u32 %v390, 16
      %v496 = vrot.slane %v494, 4
      %v497 = vshll.u32 %v390, 16
      %v499 = vrot.slane %v497, 5
      %v500 = vor.u32 %v496, %v499
      %v501 = vrot.slane %v500, 4
      %v503 = vshll.u32 %v391, 16
      %v505 = vrot.slane %v503, 5
      %v506 = vsel %vm394, %v501, %v505
      %s507 = scalar_lea.vmem %s1, 16
      %v508 = vld [vmem:[%s507] sm:$0xf]
      %v509 = vld [vmem:[%s507 + $0x4] sm:$0xf]
      %v510 = vld [vmem:[%s507 + $0x8] sm:$0xf]
      %v511 = vld [vmem:[%s507 + $0xc] sm:$0xf]
      %v512 = vunpack.c.l.b16 %v408
      %v513 = vunpack.c.l.b16 %v422
      %v514 = vunpack.c.l.b16 %v436
      %v515 = vunpack.c.l.b16 %v450
      %v516 = vunpack.c.l.b16 %v464
      %v517 = vunpack.c.l.b16 %v478
      %v518 = vunpack.c.l.b16 %v492
      %v519 = vunpack.c.l.b16 %v506
      %v520 = vpack.c.b16 %v513, %v512
      %v521 = vpack.c.b16 %v515, %v514
      %v522 = vpack.c.b16 %v517, %v516
      %v523 = vpack.c.b16 %v519, %v518
      %v528 = vunpack.c.l.b16 %v508
      %v529 = vunpack.c.l.b16 %v509
      %v530 = vunpack.c.l.b16 %v510
      %v531 = vunpack.c.l.b16 %v511
      %v532 = vpack.c.b16 %v529, %v528
      %v533 = vpack.c.b16 %v531, %v530
      %v537 = vsel %vm290, %v520, 0
      %v540 = vsel %vm290, %v521, 0
      %v543 = vsel %vm290, %v522, 0
      %v546 = vsel %vm290, %v523, 0
      %548 = vmatprep.subr.bf16.mxu0 0
      %549 = vmatpush1.bf16.msra.mxu0 %v532
      %550 = vmatprep.subr.bf16.mxu0 0
      %551 = vmatpush1.bf16.msra.mxu0 %v533
      %552 = vmatprep.subr.bf16.mxu0 0
      %553 = vmatpush1.bf16.msra.mxu0 0
      %554 = vmatprep.subr.bf16.mxu0 0
      %555 = vmatpush1.bf16.msra.mxu0 0
      %556 = vmatprep.subr.bf16.mxu0 0
      %557 = vmatpush1.bf16.msra.mxu0 0
      %558 = vmatprep.subr.bf16.mxu0 0
      %559 = vmatpush1.bf16.msra.mxu0 0
      %560 = vmatprep.subr.bf16.mxu0 0
      %561 = vmatpush1.bf16.msra.mxu0 0
      %562 = vmatprep.subr.bf16.mxu0 0
      %563 = vmatpush1.bf16.msra.mxu0 0
      %564 = vmatprep.subr.bf16.mxu0 0
      %565 = vmatpush1.bf16.msra.mxu0 0
      %566 = vmatprep.subr.bf16.mxu0 0
      %567 = vmatpush1.bf16.msra.mxu0 0
      %568 = vmatprep.subr.bf16.mxu0 0
      %569 = vmatpush1.bf16.msra.mxu0 0
      %570 = vmatprep.subr.bf16.mxu0 0
      %571 = vmatpush1.bf16.msra.mxu0 0
      %572 = vmatprep.subr.bf16.mxu0 0
      %573 = vmatpush1.bf16.msra.mxu0 0
      %574 = vmatprep.subr.bf16.mxu0 0
      %575 = vmatpush1.bf16.msra.mxu0 0
      %576 = vmatprep.subr.bf16.mxu0 0
      %577 = vmatpush1.bf16.msra.mxu0 0
      %578 = vmatprep.subr.bf16.mxu0 0
      %579 = vmatpush1.bf16.msra.mxu0 0
      %580 = vmatprep.mubr.bf16.mxu0 0
      %581 = vmatmul.mubr.bf16.gmra.mrb[0].mxu0 %v537
      %v582 = vpop.f32.mrb[0].mxu0
      %v583 = vadd.f32 0.0, %v582
      %v584 = vpop.f32.mrb[0].mxu0
      %v585 = vpop.f32.mrb[0].mxu0
      %v586 = vadd.f32 0.0, %v585
      %v587 = vpop.f32.mrb[0].mxu0
      %588 = vmatprep.mubr.bf16.mxu0 0
      %589 = vmatmul.mubr.bf16.gmra.mrb[0].mxu0 %v540
      %v590 = vpop.f32.mrb[0].mxu0
      %v591 = vadd.f32 0.0, %v590
      %v592 = vpop.f32.mrb[0].mxu0
      %v593 = vpop.f32.mrb[0].mxu0
      %v594 = vadd.f32 0.0, %v593
      %v595 = vpop.f32.mrb[0].mxu0
      %596 = vmatprep.mubr.bf16.mxu0 0
      %597 = vmatmul.mubr.bf16.gmra.mrb[0].mxu0 %v543
      %v598 = vpop.f32.mrb[0].mxu0
      %v599 = vadd.f32 0.0, %v598
      %v600 = vpop.f32.mrb[0].mxu0
      %v601 = vpop.f32.mrb[0].mxu0
      %v602 = vadd.f32 0.0, %v601
      %v603 = vpop.f32.mrb[0].mxu0
      %604 = vmatprep.mubr.bf16.mxu0 0
      %605 = vmatmul.mubr.bf16.gmra.mrb[0].mxu0 %v546
      %v606 = vpop.f32.mrb[0].mxu0
      %v607 = vadd.f32 0.0, %v606
      %v608 = vpop.f32.mrb[0].mxu0
      %v609 = vpop.f32.mrb[0].mxu0
      %v610 = vadd.f32 0.0, %v609
      %v611 = vpop.f32.mrb[0].mxu0
      %612 = vdwg.mxu0
      %v613 = vld [vmem:[#allocation2] sm:$0xff]
      %v614 = vld [vmem:[#allocation2 + $0x8] sm:$0xff]
      %v615 = vld [vmem:[#allocation2 + $0x10] sm:$0xff]
      %v616 = vld [vmem:[#allocation2 + $0x18] sm:$0xff]
      %v617 = vld [vmem:[#allocation2 + $0x20] sm:$0xff]
      %v618 = vld [vmem:[#allocation2 + $0x28] sm:$0xff]
      %v619 = vld [vmem:[#allocation2 + $0x30] sm:$0xff]
      %v620 = vld [vmem:[#allocation2 + $0x38] sm:$0xff]
      %v621 = vadd.f32 %v613, %v583
      %v622 = vadd.f32 %v614, %v586
      %v623 = vadd.f32 %v615, %v591
      %v624 = vadd.f32 %v616, %v594
      %v625 = vadd.f32 %v617, %v599
      %v626 = vadd.f32 %v618, %v602
      %v627 = vadd.f32 %v619, %v607
      %v628 = vadd.f32 %v620, %v610
      %629 = vst.msk [vmem:[#allocation2] sm:$0xff] %vm290, %v621
      %630 = vst.msk [vmem:[#allocation2 + $0x8] sm:$0xff] %vm290, %v622
      %631 = vst.msk [vmem:[#allocation2 + $0x10] sm:$0xff] %vm290, %v623
      %632 = vst.msk [vmem:[#allocation2 + $0x18] sm:$0xff] %vm290, %v624
      %633 = vst.msk [vmem:[#allocation2 + $0x20] sm:$0xff] %vm290, %v625
      %634 = vst.msk [vmem:[#allocation2 + $0x28] sm:$0xff] %vm290, %v626
      %635 = vst.msk [vmem:[#allocation2 + $0x30] sm:$0xff] %vm290, %v627
      %636 = vst.msk [vmem:[#allocation2 + $0x38] sm:$0xff] %vm290, %v628
      %v637 = vld [vmem:[%s234] sm:$0xe]
      %v638 = vld [vmem:[%s234 + $0x4] sm:$0x1]
      %v639 = vld [vmem:[%s234 + $0x8] sm:$0xe]
      %v640 = vld [vmem:[%s234 + $0xc] sm:$0x1]
      %v641 = vld [vmem:[%s234 + $0x10] sm:$0xe]
      %v642 = vld [vmem:[%s234 + $0x14] sm:$0x1]
      %v643 = vld [vmem:[%s234 + $0x18] sm:$0xe]
      %v644 = vld [vmem:[%s234 + $0x1c] sm:$0x1]
      %v645 = vld [vmem:[%s234 + $0x20] sm:$0xe]
      %v646 = vld [vmem:[%s234 + $0x24] sm:$0x1]
      %v647 = vld [vmem:[%s234 + $0x28] sm:$0xe]
      %v648 = vld [vmem:[%s234 + $0x2c] sm:$0x1]
      %v649 = vld [vmem:[%s234 + $0x30] sm:$0xe]
      %v650 = vld [vmem:[%s234 + $0x34] sm:$0x1]
      %v651 = vld [vmem:[%s234 + $0x38] sm:$0xe]
      %v652 = vld [vmem:[%s234 + $0x3c] sm:$0x1]
      %vm669 = vcmask 1042432
      %vm670 = vcmask 1046532
      %vm671 = vmor %vm669, %vm670
      %v672 = vrot.slane %v637, 5
      %v673 = vrot.slane %v672, 4
      %v674 = vrot.slane %v638, 5
      %v675 = vsel %vm671, %v673, %v674
      %v676 = vrot.slane %v639, 5
      %v677 = vrot.slane %v676, 4
      %v678 = vrot.slane %v640, 5
      %v679 = vsel %vm671, %v677, %v678
      %v680 = vrot.slane %v641, 5
      %v681 = vrot.slane %v680, 4
      %v682 = vrot.slane %v642, 5
      %v683 = vsel %vm671, %v681, %v682
      %v684 = vrot.slane %v643, 5
      %v685 = vrot.slane %v684, 4
      %v686 = vrot.slane %v644, 5
      %v687 = vsel %vm671, %v685, %v686
      %v688 = vrot.slane %v645, 5
      %v689 = vrot.slane %v688, 4
      %v690 = vrot.slane %v646, 5
      %v691 = vsel %vm671, %v689, %v690
      %v692 = vrot.slane %v647, 5
      %v693 = vrot.slane %v692, 4
      %v694 = vrot.slane %v648, 5
      %v695 = vsel %vm671, %v693, %v694
      %v696 = vrot.slane %v649, 5
      %v697 = vrot.slane %v696, 4
      %v698 = vrot.slane %v650, 5
      %v699 = vsel %vm671, %v697, %v698
      %v700 = vrot.slane %v651, 5
      %v701 = vrot.slane %v700, 4
      %v702 = vrot.slane %v652, 5
      %v703 = vsel %vm671, %v701, %v702
      %s704 = scalar_lea.vmem %s1, 32
      %v705 = vld [vmem:[%s704] sm:$0xf]
      %v706 = vld [vmem:[%s704 + $0x4] sm:$0xf]
      %v707 = vld [vmem:[%s704 + $0x8] sm:$0xf]
      %v708 = vld [vmem:[%s704 + $0xc] sm:$0xf]
      %v709 = vunpack.c.l.b16 %v675
      %v710 = vunpack.c.l.b16 %v679
      %v711 = vunpack.c.l.b16 %v683
      %v712 = vunpack.c.l.b16 %v687
      %v713 = vunpack.c.l.b16 %v691
      %v714 = vunpack.c.l.b16 %v695
      %v715 = vunpack.c.l.b16 %v699
      %v716 = vunpack.c.l.b16 %v703
      %v717 = vpack.c.b16 %v710, %v709
      %v718 = vpack.c.b16 %v712, %v711
      %v719 = vpack.c.b16 %v714, %v713
      %v720 = vpack.c.b16 %v716, %v715
      %v725 = vunpack.c.l.b16 %v705
      %v726 = vunpack.c.l.b16 %v706
      %v727 = vunpack.c.l.b16 %v707
      %v728 = vunpack.c.l.b16 %v708
      %v729 = vpack.c.b16 %v726, %v725
      %v730 = vpack.c.b16 %v728, %v727
      %v734 = vsel %vm290, %v717, 0
      %v737 = vsel %vm290, %v718, 0
      %v740 = vsel %vm290, %v719, 0
      %v743 = vsel %vm290, %v720, 0
      %745 = vmatprep.subr.bf16.mxu0 0
      %746 = vmatpush1.bf16.msra.mxu0 %v729
      %747 = vmatprep.subr.bf16.mxu0 0
      %748 = vmatpush1.bf16.msra.mxu0 %v730
      %749 = vmatprep.subr.bf16.mxu0 0
      %750 = vmatpush1.bf16.msra.mxu0 0
      %751 = vmatprep.subr.bf16.mxu0 0
      %752 = vmatpush1.bf16.msra.mxu0 0
      %753 = vmatprep.subr.bf16.mxu0 0
      %754 = vmatpush1.bf16.msra.mxu0 0
      %755 = vmatprep.subr.bf16.mxu0 0
      %756 = vmatpush1.bf16.msra.mxu0 0
      %757 = vmatprep.subr.bf16.mxu0 0
      %758 = vmatpush1.bf16.msra.mxu0 0
      %759 = vmatprep.subr.bf16.mxu0 0
      %760 = vmatpush1.bf16.msra.mxu0 0
      %761 = vmatprep.subr.bf16.mxu0 0
      %762 = vmatpush1.bf16.msra.mxu0 0
      %763 = vmatprep.subr.bf16.mxu0 0
      %764 = vmatpush1.bf16.msra.mxu0 0
      %765 = vmatprep.subr.bf16.mxu0 0
      %766 = vmatpush1.bf16.msra.mxu0 0
      %767 = vmatprep.subr.bf16.mxu0 0
      %768 = vmatpush1.bf16.msra.mxu0 0
      %769 = vmatprep.subr.bf16.mxu0 0
      %770 = vmatpush1.bf16.msra.mxu0 0
      %771 = vmatprep.subr.bf16.mxu0 0
      %772 = vmatpush1.bf16.msra.mxu0 0
      %773 = vmatprep.subr.bf16.mxu0 0
      %774 = vmatpush1.bf16.msra.mxu0 0
      %775 = vmatprep.subr.bf16.mxu0 0
      %776 = vmatpush1.bf16.msra.mxu0 0
      %777 = vmatprep.mubr.bf16.mxu0 0
      %778 = vmatmul.mubr.bf16.gmra.mrb[0].mxu0 %v734
      %v779 = vpop.f32.mrb[0].mxu0
      %v780 = vadd.f32 0.0, %v779
      %v781 = vpop.f32.mrb[0].mxu0
      %v782 = vpop.f32.mrb[0].mxu0
      %v783 = vadd.f32 0.0, %v782
      %v784 = vpop.f32.mrb[0].mxu0
      %785 = vmatprep.mubr.bf16.mxu0 0
      %786 = vmatmul.mubr.bf16.gmra.mrb[0].mxu0 %v737
      %v787 = vpop.f32.mrb[0].mxu0
      %v788 = vadd.f32 0.0, %v787
      %v789 = vpop.f32.mrb[0].mxu0
      %v790 = vpop.f32.mrb[0].mxu0
      %v791 = vadd.f32 0.0, %v790
      %v792 = vpop.f32.mrb[0].mxu0
      %793 = vmatprep.mubr.bf16.mxu0 0
      %794 = vmatmul.mubr.bf16.gmra.mrb[0].mxu0 %v740
      %v795 = vpop.f32.mrb[0].mxu0
      %v796 = vadd.f32 0.0, %v795
      %v797 = vpop.f32.mrb[0].mxu0
      %v798 = vpop.f32.mrb[0].mxu0
      %v799 = vadd.f32 0.0, %v798
      %v800 = vpop.f32.mrb[0].mxu0
      %801 = vmatprep.mubr.bf16.mxu0 0
      %802 = vmatmul.mubr.bf16.gmra.mrb[0].mxu0 %v743
      %v803 = vpop.f32.mrb[0].mxu0
      %v804 = vadd.f32 0.0, %v803
      %v805 = vpop.f32.mrb[0].mxu0
      %v806 = vpop.f32.mrb[0].mxu0
      %v807 = vadd.f32 0.0, %v806
      %v808 = vpop.f32.mrb[0].mxu0
      %809 = vdwg.mxu0
      %v810 = vld [vmem:[#allocation2] sm:$0xff]
      %v811 = vld [vmem:[#allocation2 + $0x8] sm:$0xff]
      %v812 = vld [vmem:[#allocation2 + $0x10] sm:$0xff]
      %v813 = vld [vmem:[#allocation2 + $0x18] sm:$0xff]
      %v814 = vld [vmem:[#allocation2 + $0x20] sm:$0xff]
      %v815 = vld [vmem:[#allocation2 + $0x28] sm:$0xff]
      %v816 = vld [vmem:[#allocation2 + $0x30] sm:$0xff]
      %v817 = vld [vmem:[#allocation2 + $0x38] sm:$0xff]
      %v818 = vadd.f32 %v810, %v780
      %v819 = vadd.f32 %v811, %v783
      %v820 = vadd.f32 %v812, %v788
      %v821 = vadd.f32 %v813, %v791
      %v822 = vadd.f32 %v814, %v796
      %v823 = vadd.f32 %v815, %v799
      %v824 = vadd.f32 %v816, %v804
      %v825 = vadd.f32 %v817, %v807
      %826 = vst.msk [vmem:[#allocation2] sm:$0xff] %vm290, %v818
      %827 = vst.msk [vmem:[#allocation2 + $0x8] sm:$0xff] %vm290, %v819
      %828 = vst.msk [vmem:[#allocation2 + $0x10] sm:$0xff] %vm290, %v820
      %829 = vst.msk [vmem:[#allocation2 + $0x18] sm:$0xff] %vm290, %v821
      %830 = vst.msk [vmem:[#allocation2 + $0x20] sm:$0xff] %vm290, %v822
      %831 = vst.msk [vmem:[#allocation2 + $0x28] sm:$0xff] %vm290, %v823
      %832 = vst.msk [vmem:[#allocation2 + $0x30] sm:$0xff] %vm290, %v824
      %833 = vst.msk [vmem:[#allocation2 + $0x38] sm:$0xff] %vm290, %v825
      %s834 = scalar_lea.vmem %s234, 8
      %v835 = vld [vmem:[%s834] sm:$0xf]
      %v836 = vld [vmem:[%s834 + $0x8] sm:$0xf]
      %v837 = vld [vmem:[%s834 + $0x10] sm:$0xf]
      %v838 = vld [vmem:[%s834 + $0x18] sm:$0xf]
      %v839 = vld [vmem:[%s834 + $0x20] sm:$0xf]
      %v840 = vld [vmem:[%s834 + $0x28] sm:$0xf]
      %v841 = vld [vmem:[%s834 + $0x30] sm:$0xf]
      %v842 = vld [vmem:[%s834 + $0x38] sm:$0xf]
      %s843 = scalar_lea.vmem %s1, 48
      %v844 = vld [vmem:[%s843] sm:$0xf]
      %v845 = vld [vmem:[%s843 + $0x4] sm:$0xf]
      %v846 = vld [vmem:[%s843 + $0x8] sm:$0xf]
      %v847 = vld [vmem:[%s843 + $0xc] sm:$0xf]
      %v856 = vunpack.c.l.b16 %v835
      %v857 = vunpack.c.l.b16 %v836
      %v858 = vunpack.c.l.b16 %v837
      %v859 = vunpack.c.l.b16 %v838
      %v860 = vunpack.c.l.b16 %v839
      %v861 = vunpack.c.l.b16 %v840
      %v862 = vunpack.c.l.b16 %v841
      %v863 = vunpack.c.l.b16 %v842
      %v864 = vpack.c.b16 %v857, %v856
      %v865 = vpack.c.b16 %v859, %v858
      %v866 = vpack.c.b16 %v861, %v860
      %v867 = vpack.c.b16 %v863, %v862
      %v872 = vunpack.c.l.b16 %v844
      %v873 = vunpack.c.l.b16 %v845
      %v874 = vunpack.c.l.b16 %v846
      %v875 = vunpack.c.l.b16 %v847
      %v876 = vpack.c.b16 %v873, %v872
      %v877 = vpack.c.b16 %v875, %v874
      %v881 = vsel %vm290, %v864, 0
      %v884 = vsel %vm290, %v865, 0
      %v887 = vsel %vm290, %v866, 0
      %v890 = vsel %vm290, %v867, 0
      %892 = vmatprep.subr.bf16.mxu0 0
      %893 = vmatpush1.bf16.msra.mxu0 %v876
      %894 = vmatprep.subr.bf16.mxu0 0
      %895 = vmatpush1.bf16.msra.mxu0 %v877
      %896 = vmatprep.subr.bf16.mxu0 0
      %897 = vmatpush1.bf16.msra.mxu0 0
      %898 = vmatprep.subr.bf16.mxu0 0
      %899 = vmatpush1.bf16.msra.mxu0 0
      %900 = vmatprep.subr.bf16.mxu0 0
      %901 = vmatpush1.bf16.msra.mxu0 0
      %902 = vmatprep.subr.bf16.mxu0 0
      %903 = vmatpush1.bf16.msra.mxu0 0
      %904 = vmatprep.subr.bf16.mxu0 0
      %905 = vmatpush1.bf16.msra.mxu0 0
      %906 = vmatprep.subr.bf16.mxu0 0
      %907 = vmatpush1.bf16.msra.mxu0 0
      %908 = vmatprep.subr.bf16.mxu0 0
      %909 = vmatpush1.bf16.msra.mxu0 0
      %910 = vmatprep.subr.bf16.mxu0 0
      %911 = vmatpush1.bf16.msra.mxu0 0
      %912 = vmatprep.subr.bf16.mxu0 0
      %913 = vmatpush1.bf16.msra.mxu0 0
      %914 = vmatprep.subr.bf16.mxu0 0
      %915 = vmatpush1.bf16.msra.mxu0 0
      %916 = vmatprep.subr.bf16.mxu0 0
      %917 = vmatpush1.bf16.msra.mxu0 0
      %918 = vmatprep.subr.bf16.mxu0 0
      %919 = vmatpush1.bf16.msra.mxu0 0
      %920 = vmatprep.subr.bf16.mxu0 0
      %921 = vmatpush1.bf16.msra.mxu0 0
      %922 = vmatprep.subr.bf16.mxu0 0
      %923 = vmatpush1.bf16.msra.mxu0 0
      %924 = vmatprep.mubr.bf16.mxu0 0
      %925 = vmatmul.mubr.bf16.gmra.mrb[0].mxu0 %v881
      %v926 = vpop.f32.mrb[0].mxu0
      %v927 = vadd.f32 0.0, %v926
      %v928 = vpop.f32.mrb[0].mxu0
      %v929 = vpop.f32.mrb[0].mxu0
      %v930 = vadd.f32 0.0, %v929
      %v931 = vpop.f32.mrb[0].mxu0
      %932 = vmatprep.mubr.bf16.mxu0 0
      %933 = vmatmul.mubr.bf16.gmra.mrb[0].mxu0 %v884
      %v934 = vpop.f32.mrb[0].mxu0
      %v935 = vadd.f32 0.0, %v934
      %v936 = vpop.f32.mrb[0].mxu0
      %v937 = vpop.f32.mrb[0].mxu0
      %v938 = vadd.f32 0.0, %v937
      %v939 = vpop.f32.mrb[0].mxu0
      %940 = vmatprep.mubr.bf16.mxu0 0
      %941 = vmatmul.mubr.bf16.gmra.mrb[0].mxu0 %v887
      %v942 = vpop.f32.mrb[0].mxu0
      %v943 = vadd.f32 0.0, %v942
      %v944 = vpop.f32.mrb[0].mxu0
      %v945 = vpop.f32.mrb[0].mxu0
      %v946 = vadd.f32 0.0, %v945
      %v947 = vpop.f32.mrb[0].mxu0
      %948 = vmatprep.mubr.bf16.mxu0 0
      %949 = vmatmul.mubr.bf16.gmra.mrb[0].mxu0 %v890
      %v950 = vpop.f32.mrb[0].mxu0
      %v951 = vadd.f32 0.0, %v950
      %v952 = vpop.f32.mrb[0].mxu0
      %v953 = vpop.f32.mrb[0].mxu0
      %v954 = vadd.f32 0.0, %v953
      %v955 = vpop.f32.mrb[0].mxu0
      %956 = vdwg.mxu0
      %v957 = vld [vmem:[#allocation2] sm:$0xff]
      %v958 = vld [vmem:[#allocation2 + $0x8] sm:$0xff]
      %v959 = vld [vmem:[#allocation2 + $0x10] sm:$0xff]
      %v960 = vld [vmem:[#allocation2 + $0x18] sm:$0xff]
      %v961 = vld [vmem:[#allocation2 + $0x20] sm:$0xff]
      %v962 = vld [vmem:[#allocation2 + $0x28] sm:$0xff]
      %v963 = vld [vmem:[#allocation2 + $0x30] sm:$0xff]
      %v964 = vld [vmem:[#allocation2 + $0x38] sm:$0xff]
      %v965 = vadd.f32 %v957, %v927
      %v966 = vadd.f32 %v958, %v930
      %v967 = vadd.f32 %v959, %v935
      %v968 = vadd.f32 %v960, %v938
      %v969 = vadd.f32 %v961, %v943
      %v970 = vadd.f32 %v962, %v946
      %v971 = vadd.f32 %v963, %v951
      %v972 = vadd.f32 %v964, %v954
      %973 = vst.msk [vmem:[#allocation2] sm:$0xff] %vm290, %v965
      %974 = vst.msk [vmem:[#allocation2 + $0x8] sm:$0xff] %vm290, %v966
      %975 = vst.msk [vmem:[#allocation2 + $0x10] sm:$0xff] %vm290, %v967
      %976 = vst.msk [vmem:[#allocation2 + $0x18] sm:$0xff] %vm290, %v968
      %977 = vst.msk [vmem:[#allocation2 + $0x20] sm:$0xff] %vm290, %v969
      %978 = vst.msk [vmem:[#allocation2 + $0x28] sm:$0xff] %vm290, %v970
      %979 = vst.msk [vmem:[#allocation2 + $0x30] sm:$0xff] %vm290, %v971
      %980 = vst.msk [vmem:[#allocation2 + $0x38] sm:$0xff] %vm290, %v972
      %v981 = vld [vmem:[%s834] sm:$0xf]
      %v982 = vld [vmem:[%s834 + $0x4] sm:$0x1]
      %v983 = vld [vmem:[%s834 + $0x8] sm:$0xf]
      %v984 = vld [vmem:[%s834 + $0xc] sm:$0x1]
      %v985 = vld [vmem:[%s834 + $0x10] sm:$0xf]
      %v986 = vld [vmem:[%s834 + $0x14] sm:$0x1]
      %v987 = vld [vmem:[%s834 + $0x18] sm:$0xf]
      %v988 = vld [vmem:[%s834 + $0x1c] sm:$0x1]
      %v989 = vld [vmem:[%s834 + $0x20] sm:$0xf]
      %v990 = vld [vmem:[%s834 + $0x24] sm:$0x1]
      %v991 = vld [vmem:[%s834 + $0x28] sm:$0xf]
      %v992 = vld [vmem:[%s834 + $0x2c] sm:$0x1]
      %v993 = vld [vmem:[%s834 + $0x30] sm:$0xf]
      %v994 = vld [vmem:[%s834 + $0x34] sm:$0x1]
      %v995 = vld [vmem:[%s834 + $0x38] sm:$0xf]
      %v996 = vld [vmem:[%s834 + $0x3c] sm:$0x1]
      %v998 = vshrl.u32 %v981, 16
      %v1000 = vrot.slane %v998, 4
      %v1001 = vshll.u32 %v981, 16
      %v1003 = vrot.slane %v1001, 5
      %v1004 = vor.u32 %v1000, %v1003
      %v1005 = vrot.slane %v1004, 4
      %v1007 = vshll.u32 %v982, 16
      %v1009 = vrot.slane %v1007, 5
      %v1010 = vsel %vm394, %v1005, %v1009
      %v1012 = vshrl.u32 %v983, 16
      %v1014 = vrot.slane %v1012, 4
      %v1015 = vshll.u32 %v983, 16
      %v1017 = vrot.slane %v1015, 5
      %v1018 = vor.u32 %v1014, %v1017
      %v1019 = vrot.slane %v1018, 4
      %v1021 = vshll.u32 %v984, 16
      %v1023 = vrot.slane %v1021, 5
      %v1024 = vsel %vm394, %v1019, %v1023
      %v1026 = vshrl.u32 %v985, 16
      %v1028 = vrot.slane %v1026, 4
      %v1029 = vshll.u32 %v985, 16
      %v1031 = vrot.slane %v1029, 5
      %v1032 = vor.u32 %v1028, %v1031
      %v1033 = vrot.slane %v1032, 4
      %v1035 = vshll.u32 %v986, 16
      %v1037 = vrot.slane %v1035, 5
      %v1038 = vsel %vm394, %v1033, %v1037
      %v1040 = vshrl.u32 %v987, 16
      %v1042 = vrot.slane %v1040, 4
      %v1043 = vshll.u32 %v987, 16
      %v1045 = vrot.slane %v1043, 5
      %v1046 = vor.u32 %v1042, %v1045
      %v1047 = vrot.slane %v1046, 4
      %v1049 = vshll.u32 %v988, 16
      %v1051 = vrot.slane %v1049, 5
      %v1052 = vsel %vm394, %v1047, %v1051
      %v1054 = vshrl.u32 %v989, 16
      %v1056 = vrot.slane %v1054, 4
      %v1057 = vshll.u32 %v989, 16
      %v1059 = vrot.slane %v1057, 5
      %v1060 = vor.u32 %v1056, %v1059
      %v1061 = vrot.slane %v1060, 4
      %v1063 = vshll.u32 %v990, 16
      %v1065 = vrot.slane %v1063, 5
      %v1066 = vsel %vm394, %v1061, %v1065
      %v1068 = vshrl.u32 %v991, 16
      %v1070 = vrot.slane %v1068, 4
      %v1071 = vshll.u32 %v991, 16
      %v1073 = vrot.slane %v1071, 5
      %v1074 = vor.u32 %v1070, %v1073
      %v1075 = vrot.slane %v1074, 4
      %v1077 = vshll.u32 %v992, 16
      %v1079 = vrot.slane %v1077, 5
      %v1080 = vsel %vm394, %v1075, %v1079
      %v1082 = vshrl.u32 %v993, 16
      %v1084 = vrot.slane %v1082, 4
      %v1085 = vshll.u32 %v993, 16
      %v1087 = vrot.slane %v1085, 5
      %v1088 = vor.u32 %v1084, %v1087
      %v1089 = vrot.slane %v1088, 4
      %v1091 = vshll.u32 %v994, 16
      %v1093 = vrot.slane %v1091, 5
      %v1094 = vsel %vm394, %v1089, %v1093
      %v1096 = vshrl.u32 %v995, 16
      %v1098 = vrot.slane %v1096, 4
      %v1099 = vshll.u32 %v995, 16
      %v1101 = vrot.slane %v1099, 5
      %v1102 = vor.u32 %v1098, %v1101
      %v1103 = vrot.slane %v1102, 4
      %v1105 = vshll.u32 %v996, 16
      %v1107 = vrot.slane %v1105, 5
      %v1108 = vsel %vm394, %v1103, %v1107
      %s1109 = scalar_lea.vmem %s1, 64
      %v1110 = vld [vmem:[%s1109] sm:$0xf]
      %v1111 = vld [vmem:[%s1109 + $0x4] sm:$0xf]
      %v1112 = vld [vmem:[%s1109 + $0x8] sm:$0xf]
      %v1113 = vld [vmem:[%s1109 + $0xc] sm:$0xf]
      %v1114 = vunpack.c.l.b16 %v1010
      %v1115 = vunpack.c.l.b16 %v1024
      %v1116 = vunpack.c.l.b16 %v1038
      %v1117 = vunpack.c.l.b16 %v1052
      %v1118 = vunpack.c.l.b16 %v1066
      %v1119 = vunpack.c.l.b16 %v1080
      %v1120 = vunpack.c.l.b16 %v1094
      %v1121 = vunpack.c.l.b16 %v1108
      %v1122 = vpack.c.b16 %v1115, %v1114
      %v1123 = vpack.c.b16 %v1117, %v1116
      %v1124 = vpack.c.b16 %v1119, %v1118
      %v1125 = vpack.c.b16 %v1121, %v1120
      %v1130 = vunpack.c.l.b16 %v1110
      %v1131 = vunpack.c.l.b16 %v1111
      %v1132 = vunpack.c.l.b16 %v1112
      %v1133 = vunpack.c.l.b16 %v1113
      %v1134 = vpack.c.b16 %v1131, %v1130
      %v1135 = vpack.c.b16 %v1133, %v1132
      %v1139 = vsel %vm290, %v1122, 0
      %v1142 = vsel %vm290, %v1123, 0
      %v1145 = vsel %vm290, %v1124, 0
      %v1148 = vsel %vm290, %v1125, 0
      %1150 = vmatprep.subr.bf16.mxu0 0
      %1151 = vmatpush1.bf16.msra.mxu0 %v1134
      %1152 = vmatprep.subr.bf16.mxu0 0
      %1153 = vmatpush1.bf16.msra.mxu0 %v1135
      %1154 = vmatprep.subr.bf16.mxu0 0
      %1155 = vmatpush1.bf16.msra.mxu0 0
      %1156 = vmatprep.subr.bf16.mxu0 0
      %1157 = vmatpush1.bf16.msra.mxu0 0
      %1158 = vmatprep.subr.bf16.mxu0 0
      %1159 = vmatpush1.bf16.msra.mxu0 0
      %1160 = vmatprep.subr.bf16.mxu0 0
      %1161 = vmatpush1.bf16.msra.mxu0 0
      %1162 = vmatprep.subr.bf16.mxu0 0
      %1163 = vmatpush1.bf16.msra.mxu0 0
      %1164 = vmatprep.subr.bf16.mxu0 0
      %1165 = vmatpush1.bf16.msra.mxu0 0
      %1166 = vmatprep.subr.bf16.mxu0 0
      %1167 = vmatpush1.bf16.msra.mxu0 0
      %1168 = vmatprep.subr.bf16.mxu0 0
      %1169 = vmatpush1.bf16.msra.mxu0 0
      %1170 = vmatprep.subr.bf16.mxu0 0
      %1171 = vmatpush1.bf16.msra.mxu0 0
      %1172 = vmatprep.subr.bf16.mxu0 0
      %1173 = vmatpush1.bf16.msra.mxu0 0
      %1174 = vmatprep.subr.bf16.mxu0 0
      %1175 = vmatpush1.bf16.msra.mxu0 0
      %1176 = vmatprep.subr.bf16.mxu0 0
      %1177 = vmatpush1.bf16.msra.mxu0 0
      %1178 = vmatprep.subr.bf16.mxu0 0
      %1179 = vmatpush1.bf16.msra.mxu0 0
      %1180 = vmatprep.subr.bf16.mxu0 0
      %1181 = vmatpush1.bf16.msra.mxu0 0
      %1182 = vmatprep.mubr.bf16.mxu0 0
      %1183 = vmatmul.mubr.bf16.gmra.mrb[0].mxu0 %v1139
      %v1184 = vpop.f32.mrb[0].mxu0
      %v1185 = vadd.f32 0.0, %v1184
      %v1186 = vpop.f32.mrb[0].mxu0
      %v1187 = vpop.f32.mrb[0].mxu0
      %v1188 = vadd.f32 0.0, %v1187
      %v1189 = vpop.f32.mrb[0].mxu0
      %1190 = vmatprep.mubr.bf16.mxu0 0
      %1191 = vmatmul.mubr.bf16.gmra.mrb[0].mxu0 %v1142
      %v1192 = vpop.f32.mrb[0].mxu0
      %v1193 = vadd.f32 0.0, %v1192
      %v1194 = vpop.f32.mrb[0].mxu0
      %v1195 = vpop.f32.mrb[0].mxu0
      %v1196 = vadd.f32 0.0, %v1195
      %v1197 = vpop.f32.mrb[0].mxu0
      %1198 = vmatprep.mubr.bf16.mxu0 0
      %1199 = vmatmul.mubr.bf16.gmra.mrb[0].mxu0 %v1145
      %v1200 = vpop.f32.mrb[0].mxu0
      %v1201 = vadd.f32 0.0, %v1200
      %v1202 = vpop.f32.mrb[0].mxu0
      %v1203 = vpop.f32.mrb[0].mxu0
      %v1204 = vadd.f32 0.0, %v1203
      %v1205 = vpop.f32.mrb[0].mxu0
      %1206 = vmatprep.mubr.bf16.mxu0 0
      %1207 = vmatmul.mubr.bf16.gmra.mrb[0].mxu0 %v1148
      %v1208 = vpop.f32.mrb[0].mxu0
      %v1209 = vadd.f32 0.0, %v1208
      %v1210 = vpop.f32.mrb[0].mxu0
      %v1211 = vpop.f32.mrb[0].mxu0
      %v1212 = vadd.f32 0.0, %v1211
      %v1213 = vpop.f32.mrb[0].mxu0
      %1214 = vdwg.mxu0
      %v1215 = vld [vmem:[#allocation2] sm:$0xff]
      %v1216 = vld [vmem:[#allocation2 + $0x8] sm:$0xff]
      %v1217 = vld [vmem:[#allocation2 + $0x10] sm:$0xff]
      %v1218 = vld [vmem:[#allocation2 + $0x18] sm:$0xff]
      %v1219 = vld [vmem:[#allocation2 + $0x20] sm:$0xff]
      %v1220 = vld [vmem:[#allocation2 + $0x28] sm:$0xff]
      %v1221 = vld [vmem:[#allocation2 + $0x30] sm:$0xff]
      %v1222 = vld [vmem:[#allocation2 + $0x38] sm:$0xff]
      %v1223 = vadd.f32 %v1215, %v1185
      %v1224 = vadd.f32 %v1216, %v1188
      %v1225 = vadd.f32 %v1217, %v1193
      %v1226 = vadd.f32 %v1218, %v1196
      %v1227 = vadd.f32 %v1219, %v1201
      %v1228 = vadd.f32 %v1220, %v1204
      %v1229 = vadd.f32 %v1221, %v1209
      %v1230 = vadd.f32 %v1222, %v1212
      %1231 = vst.msk [vmem:[#allocation2] sm:$0xff] %vm290, %v1223
      %1232 = vst.msk [vmem:[#allocation2 + $0x8] sm:$0xff] %vm290, %v1224
      %1233 = vst.msk [vmem:[#allocation2 + $0x10] sm:$0xff] %vm290, %v1225
      %1234 = vst.msk [vmem:[#allocation2 + $0x18] sm:$0xff] %vm290, %v1226
      %1235 = vst.msk [vmem:[#allocation2 + $0x20] sm:$0xff] %vm290, %v1227
      %1236 = vst.msk [vmem:[#allocation2 + $0x28] sm:$0xff] %vm290, %v1228
      %1237 = vst.msk [vmem:[#allocation2 + $0x30] sm:$0xff] %vm290, %v1229
      %1238 = vst.msk [vmem:[#allocation2 + $0x38] sm:$0xff] %vm290, %v1230
      %v1239 = vld [vmem:[%s834] sm:$0xe]
      %v1240 = vld [vmem:[%s834 + $0x4] sm:$0x1]
      %v1241 = vld [vmem:[%s834 + $0x8] sm:$0xe]
      %v1242 = vld [vmem:[%s834 + $0xc] sm:$0x1]
      %v1243 = vld [vmem:[%s834 + $0x10] sm:$0xe]
      %v1244 = vld [vmem:[%s834 + $0x14] sm:$0x1]
      %v1245 = vld [vmem:[%s834 + $0x18] sm:$0xe]
      %v1246 = vld [vmem:[%s834 + $0x1c] sm:$0x1]
      %v1247 = vld [vmem:[%s834 + $0x20] sm:$0xe]
      %v1248 = vld [vmem:[%s834 + $0x24] sm:$0x1]
      %v1249 = vld [vmem:[%s834 + $0x28] sm:$0xe]
      %v1250 = vld [vmem:[%s834 + $0x2c] sm:$0x1]
      %v1251 = vld [vmem:[%s834 + $0x30] sm:$0xe]
      %v1252 = vld [vmem:[%s834 + $0x34] sm:$0x1]
      %v1253 = vld [vmem:[%s834 + $0x38] sm:$0xe]
      %v1254 = vld [vmem:[%s834 + $0x3c] sm:$0x1]
      %v1271 = vrot.slane %v1239, 5
      %v1272 = vrot.slane %v1271, 4
      %v1273 = vrot.slane %v1240, 5
      %v1274 = vsel %vm671, %v1272, %v1273
      %v1275 = vrot.slane %v1241, 5
      %v1276 = vrot.slane %v1275, 4
      %v1277 = vrot.slane %v1242, 5
      %v1278 = vsel %vm671, %v1276, %v1277
      %v1279 = vrot.slane %v1243, 5
      %v1280 = vrot.slane %v1279, 4
      %v1281 = vrot.slane %v1244, 5
      %v1282 = vsel %vm671, %v1280, %v1281
      %v1283 = vrot.slane %v1245, 5
      %v1284 = vrot.slane %v1283, 4
      %v1285 = vrot.slane %v1246, 5
      %v1286 = vsel %vm671, %v1284, %v1285
      %v1287 = vrot.slane %v1247, 5
      %v1288 = vrot.slane %v1287, 4
      %v1289 = vrot.slane %v1248, 5
      %v1290 = vsel %vm671, %v1288, %v1289
      %v1291 = vrot.slane %v1249, 5
      %v1292 = vrot.slane %v1291, 4
      %v1293 = vrot.slane %v1250, 5
      %v1294 = vsel %vm671, %v1292, %v1293
      %v1295 = vrot.slane %v1251, 5
      %v1296 = vrot.slane %v1295, 4
      %v1297 = vrot.slane %v1252, 5
      %v1298 = vsel %vm671, %v1296, %v1297
      %v1299 = vrot.slane %v1253, 5
      %v1300 = vrot.slane %v1299, 4
      %v1301 = vrot.slane %v1254, 5
      %v1302 = vsel %vm671, %v1300, %v1301
      %s1303 = scalar_lea.vmem %s1, 80
      %v1304 = vld [vmem:[%s1303] sm:$0xf]
      %v1305 = vld [vmem:[%s1303 + $0x4] sm:$0xf]
      %v1306 = vld [vmem:[%s1303 + $0x8] sm:$0xf]
      %v1307 = vld [vmem:[%s1303 + $0xc] sm:$0xf]
      %v1308 = vunpack.c.l.b16 %v1274
      %v1309 = vunpack.c.l.b16 %v1278
      %v1310 = vunpack.c.l.b16 %v1282
      %v1311 = vunpack.c.l.b16 %v1286
      %v1312 = vunpack.c.l.b16 %v1290
      %v1313 = vunpack.c.l.b16 %v1294
      %v1314 = vunpack.c.l.b16 %v1298
      %v1315 = vunpack.c.l.b16 %v1302
      %v1316 = vpack.c.b16 %v1309, %v1308
      %v1317 = vpack.c.b16 %v1311, %v1310
      %v1318 = vpack.c.b16 %v1313, %v1312
      %v1319 = vpack.c.b16 %v1315, %v1314
      %v1324 = vunpack.c.l.b16 %v1304
      %v1325 = vunpack.c.l.b16 %v1305
      %v1326 = vunpack.c.l.b16 %v1306
      %v1327 = vunpack.c.l.b16 %v1307
      %v1328 = vpack.c.b16 %v1325, %v1324
      %v1329 = vpack.c.b16 %v1327, %v1326
      %v1333 = vsel %vm290, %v1316, 0
      %v1336 = vsel %vm290, %v1317, 0
      %v1339 = vsel %vm290, %v1318, 0
      %v1342 = vsel %vm290, %v1319, 0
      %1344 = vmatprep.subr.bf16.mxu0 0
      %1345 = vmatpush1.bf16.msra.mxu0 %v1328
      %1346 = vmatprep.subr.bf16.mxu0 0
      %1347 = vmatpush1.bf16.msra.mxu0 %v1329
      %1348 = vmatprep.subr.bf16.mxu0 0
      %1349 = vmatpush1.bf16.msra.mxu0 0
      %1350 = vmatprep.subr.bf16.mxu0 0
      %1351 = vmatpush1.bf16.msra.mxu0 0
      %1352 = vmatprep.subr.bf16.mxu0 0
      %1353 = vmatpush1.bf16.msra.mxu0 0
      %1354 = vmatprep.subr.bf16.mxu0 0
      %1355 = vmatpush1.bf16.msra.mxu0 0
      %1356 = vmatprep.subr.bf16.mxu0 0
      %1357 = vmatpush1.bf16.msra.mxu0 0
      %1358 = vmatprep.subr.bf16.mxu0 0
      %1359 = vmatpush1.bf16.msra.mxu0 0
      %1360 = vmatprep.subr.bf16.mxu0 0
      %1361 = vmatpush1.bf16.msra.mxu0 0
      %1362 = vmatprep.subr.bf16.mxu0 0
      %1363 = vmatpush1.bf16.msra.mxu0 0
      %1364 = vmatprep.subr.bf16.mxu0 0
      %1365 = vmatpush1.bf16.msra.mxu0 0
      %1366 = vmatprep.subr.bf16.mxu0 0
      %1367 = vmatpush1.bf16.msra.mxu0 0
      %1368 = vmatprep.subr.bf16.mxu0 0
      %1369 = vmatpush1.bf16.msra.mxu0 0
      %1370 = vmatprep.subr.bf16.mxu0 0
      %1371 = vmatpush1.bf16.msra.mxu0 0
      %1372 = vmatprep.subr.bf16.mxu0 0
      %1373 = vmatpush1.bf16.msra.mxu0 0
      %1374 = vmatprep.subr.bf16.mxu0 0
      %1375 = vmatpush1.bf16.msra.mxu0 0
      %1376 = vmatprep.mubr.bf16.mxu0 0
      %1377 = vmatmul.mubr.bf16.gmra.mrb[0].mxu0 %v1333
      %v1378 = vpop.f32.mrb[0].mxu0
      %v1379 = vadd.f32 0.0, %v1378
      %v1380 = vpop.f32.mrb[0].mxu0
      %v1381 = vpop.f32.mrb[0].mxu0
      %v1382 = vadd.f32 0.0, %v1381
      %v1383 = vpop.f32.mrb[0].mxu0
      %1384 = vmatprep.mubr.bf16.mxu0 0
      %1385 = vmatmul.mubr.bf16.gmra.mrb[0].mxu0 %v1336
      %v1386 = vpop.f32.mrb[0].mxu0
      %v1387 = vadd.f32 0.0, %v1386
      %v1388 = vpop.f32.mrb[0].mxu0
      %v1389 = vpop.f32.mrb[0].mxu0
      %v1390 = vadd.f32 0.0, %v1389
      %v1391 = vpop.f32.mrb[0].mxu0
      %1392 = vmatprep.mubr.bf16.mxu0 0
      %1393 = vmatmul.mubr.bf16.gmra.mrb[0].mxu0 %v1339
      %v1394 = vpop.f32.mrb[0].mxu0
      %v1395 = vadd.f32 0.0, %v1394
      %v1396 = vpop.f32.mrb[0].mxu0
      %v1397 = vpop.f32.mrb[0].mxu0
      %v1398 = vadd.f32 0.0, %v1397
      %v1399 = vpop.f32.mrb[0].mxu0
      %1400 = vmatprep.mubr.bf16.mxu0 0
      %1401 = vmatmul.mubr.bf16.gmra.mrb[0].mxu0 %v1342
      %v1402 = vpop.f32.mrb[0].mxu0
      %v1403 = vadd.f32 0.0, %v1402
      %v1404 = vpop.f32.mrb[0].mxu0
      %v1405 = vpop.f32.mrb[0].mxu0
      %v1406 = vadd.f32 0.0, %v1405
      %v1407 = vpop.f32.mrb[0].mxu0
      %1408 = vdwg.mxu0
      %v1409 = vld [vmem:[#allocation2] sm:$0xff]
      %v1410 = vld [vmem:[#allocation2 + $0x8] sm:$0xff]
      %v1411 = vld [vmem:[#allocation2 + $0x10] sm:$0xff]
      %v1412 = vld [vmem:[#allocation2 + $0x18] sm:$0xff]
      %v1413 = vld [vmem:[#allocation2 + $0x20] sm:$0xff]
      %v1414 = vld [vmem:[#allocation2 + $0x28] sm:$0xff]
      %v1415 = vld [vmem:[#allocation2 + $0x30] sm:$0xff]
      %v1416 = vld [vmem:[#allocation2 + $0x38] sm:$0xff]
      %v1417 = vadd.f32 %v1409, %v1379
      %v1418 = vadd.f32 %v1410, %v1382
      %v1419 = vadd.f32 %v1411, %v1387
      %v1420 = vadd.f32 %v1412, %v1390
      %v1421 = vadd.f32 %v1413, %v1395
      %v1422 = vadd.f32 %v1414, %v1398
      %v1423 = vadd.f32 %v1415, %v1403
      %v1424 = vadd.f32 %v1416, %v1406
      %1425 = vst.msk [vmem:[#allocation2] sm:$0xff] %vm290, %v1417
      %1426 = vst.msk [vmem:[#allocation2 + $0x8] sm:$0xff] %vm290, %v1418
      %1427 = vst.msk [vmem:[#allocation2 + $0x10] sm:$0xff] %vm290, %v1419
      %1428 = vst.msk [vmem:[#allocation2 + $0x18] sm:$0xff] %vm290, %v1420
      %1429 = vst.msk [vmem:[#allocation2 + $0x20] sm:$0xff] %vm290, %v1421
      %1430 = vst.msk [vmem:[#allocation2 + $0x28] sm:$0xff] %vm290, %v1422
      %1431 = vst.msk [vmem:[#allocation2 + $0x30] sm:$0xff] %vm290, %v1423
      %1432 = vst.msk [vmem:[#allocation2 + $0x38] sm:$0xff] %vm290, %v1424
      %s1433 = scalar_lea.vmem %s234, 16
      %v1434 = vld [vmem:[%s1433] sm:$0xf]
      %v1435 = vld [vmem:[%s1433 + $0x8] sm:$0xf]
      %v1436 = vld [vmem:[%s1433 + $0x10] sm:$0xf]
      %v1437 = vld [vmem:[%s1433 + $0x18] sm:$0xf]
      %v1438 = vld [vmem:[%s1433 + $0x20] sm:$0xf]
      %v1439 = vld [vmem:[%s1433 + $0x28] sm:$0xf]
      %v1440 = vld [vmem:[%s1433 + $0x30] sm:$0xf]
      %v1441 = vld [vmem:[%s1433 + $0x38] sm:$0xf]
      %s1442 = scalar_lea.vmem %s1, 96
      %v1443 = vld [vmem:[%s1442] sm:$0xf]
      %v1444 = vld [vmem:[%s1442 + $0x4] sm:$0xf]
      %v1445 = vld [vmem:[%s1442 + $0x8] sm:$0xf]
      %v1446 = vld [vmem:[%s1442 + $0xc] sm:$0xf]
      %v1455 = vunpack.c.l.b16 %v1434
      %v1456 = vunpack.c.l.b16 %v1435
      %v1457 = vunpack.c.l.b16 %v1436
      %v1458 = vunpack.c.l.b16 %v1437
      %v1459 = vunpack.c.l.b16 %v1438
      %v1460 = vunpack.c.l.b16 %v1439
      %v1461 = vunpack.c.l.b16 %v1440
      %v1462 = vunpack.c.l.b16 %v1441
      %v1463 = vpack.c.b16 %v1456, %v1455
      %v1464 = vpack.c.b16 %v1458, %v1457
      %v1465 = vpack.c.b16 %v1460, %v1459
      %v1466 = vpack.c.b16 %v1462, %v1461
      %v1471 = vunpack.c.l.b16 %v1443
      %v1472 = vunpack.c.l.b16 %v1444
      %v1473 = vunpack.c.l.b16 %v1445
      %v1474 = vunpack.c.l.b16 %v1446
      %v1475 = vpack.c.b16 %v1472, %v1471
      %v1476 = vpack.c.b16 %v1474, %v1473
      %v1480 = vsel %vm290, %v1463, 0
      %v1483 = vsel %vm290, %v1464, 0
      %v1486 = vsel %vm290, %v1465, 0
      %v1489 = vsel %vm290, %v1466, 0
      %1491 = vmatprep.subr.bf16.mxu0 0
      %1492 = vmatpush1.bf16.msra.mxu0 %v1475
      %1493 = vmatprep.subr.bf16.mxu0 0
      %1494 = vmatpush1.bf16.msra.mxu0 %v1476
      %1495 = vmatprep.subr.bf16.mxu0 0
      %1496 = vmatpush1.bf16.msra.mxu0 0
      %1497 = vmatprep.subr.bf16.mxu0 0
      %1498 = vmatpush1.bf16.msra.mxu0 0
      %1499 = vmatprep.subr.bf16.mxu0 0
      %1500 = vmatpush1.bf16.msra.mxu0 0
      %1501 = vmatprep.subr.bf16.mxu0 0
      %1502 = vmatpush1.bf16.msra.mxu0 0
      %1503 = vmatprep.subr.bf16.mxu0 0
      %1504 = vmatpush1.bf16.msra.mxu0 0
      %1505 = vmatprep.subr.bf16.mxu0 0
      %1506 = vmatpush1.bf16.msra.mxu0 0
      %1507 = vmatprep.subr.bf16.mxu0 0
      %1508 = vmatpush1.bf16.msra.mxu0 0
      %1509 = vmatprep.subr.bf16.mxu0 0
      %1510 = vmatpush1.bf16.msra.mxu0 0
      %1511 = vmatprep.subr.bf16.mxu0 0
      %1512 = vmatpush1.bf16.msra.mxu0 0
      %1513 = vmatprep.subr.bf16.mxu0 0
      %1514 = vmatpush1.bf16.msra.mxu0 0
      %1515 = vmatprep.subr.bf16.mxu0 0
      %1516 = vmatpush1.bf16.msra.mxu0 0
      %1517 = vmatprep.subr.bf16.mxu0 0
      %1518 = vmatpush1.bf16.msra.mxu0 0
      %1519 = vmatprep.subr.bf16.mxu0 0
      %1520 = vmatpush1.bf16.msra.mxu0 0
      %1521 = vmatprep.subr.bf16.mxu0 0
      %1522 = vmatpush1.bf16.msra.mxu0 0
      %1523 = vmatprep.mubr.bf16.mxu0 0
      %1524 = vmatmul.mubr.bf16.gmra.mrb[0].mxu0 %v1480
      %v1525 = vpop.f32.mrb[0].mxu0
      %v1526 = vadd.f32 0.0, %v1525
      %v1527 = vpop.f32.mrb[0].mxu0
      %v1528 = vpop.f32.mrb[0].mxu0
      %v1529 = vadd.f32 0.0, %v1528
      %v1530 = vpop.f32.mrb[0].mxu0
      %1531 = vmatprep.mubr.bf16.mxu0 0
      %1532 = vmatmul.mubr.bf16.gmra.mrb[0].mxu0 %v1483
      %v1533 = vpop.f32.mrb[0].mxu0
      %v1534 = vadd.f32 0.0, %v1533
      %v1535 = vpop.f32.mrb[0].mxu0
      %v1536 = vpop.f32.mrb[0].mxu0
      %v1537 = vadd.f32 0.0, %v1536
      %v1538 = vpop.f32.mrb[0].mxu0
      %1539 = vmatprep.mubr.bf16.mxu0 0
      %1540 = vmatmul.mubr.bf16.gmra.mrb[0].mxu0 %v1486
      %v1541 = vpop.f32.mrb[0].mxu0
      %v1542 = vadd.f32 0.0, %v1541
      %v1543 = vpop.f32.mrb[0].mxu0
      %v1544 = vpop.f32.mrb[0].mxu0
      %v1545 = vadd.f32 0.0, %v1544
      %v1546 = vpop.f32.mrb[0].mxu0
      %1547 = vmatprep.mubr.bf16.mxu0 0
      %1548 = vmatmul.mubr.bf16.gmra.mrb[0].mxu0 %v1489
      %v1549 = vpop.f32.mrb[0].mxu0
      %v1550 = vadd.f32 0.0, %v1549
      %v1551 = vpop.f32.mrb[0].mxu0
      %v1552 = vpop.f32.mrb[0].mxu0
      %v1553 = vadd.f32 0.0, %v1552
      %v1554 = vpop.f32.mrb[0].mxu0
      %1555 = vdwg.mxu0
      %v1556 = vld [vmem:[#allocation2] sm:$0xff]
      %v1557 = vld [vmem:[#allocation2 + $0x8] sm:$0xff]
      %v1558 = vld [vmem:[#allocation2 + $0x10] sm:$0xff]
      %v1559 = vld [vmem:[#allocation2 + $0x18] sm:$0xff]
      %v1560 = vld [vmem:[#allocation2 + $0x20] sm:$0xff]
      %v1561 = vld [vmem:[#allocation2 + $0x28] sm:$0xff]
      %v1562 = vld [vmem:[#allocation2 + $0x30] sm:$0xff]
      %v1563 = vld [vmem:[#allocation2 + $0x38] sm:$0xff]
      %v1564 = vadd.f32 %v1556, %v1526
      %v1565 = vadd.f32 %v1557, %v1529
      %v1566 = vadd.f32 %v1558, %v1534
      %v1567 = vadd.f32 %v1559, %v1537
      %v1568 = vadd.f32 %v1560, %v1542
      %v1569 = vadd.f32 %v1561, %v1545
      %v1570 = vadd.f32 %v1562, %v1550
      %v1571 = vadd.f32 %v1563, %v1553
      %1572 = vst.msk [vmem:[#allocation2] sm:$0xff] %vm290, %v1564
      %1573 = vst.msk [vmem:[#allocation2 + $0x8] sm:$0xff] %vm290, %v1565
      %1574 = vst.msk [vmem:[#allocation2 + $0x10] sm:$0xff] %vm290, %v1566
      %1575 = vst.msk [vmem:[#allocation2 + $0x18] sm:$0xff] %vm290, %v1567
      %1576 = vst.msk [vmem:[#allocation2 + $0x20] sm:$0xff] %vm290, %v1568
      %1577 = vst.msk [vmem:[#allocation2 + $0x28] sm:$0xff] %vm290, %v1569
      %1578 = vst.msk [vmem:[#allocation2 + $0x30] sm:$0xff] %vm290, %v1570
      %1579 = vst.msk [vmem:[#allocation2 + $0x38] sm:$0xff] %vm290, %v1571
      %v1580 = vld [vmem:[%s1433] sm:$0xf]
      %v1581 = vld [vmem:[%s1433 + $0x4] sm:$0x1]
      %v1582 = vld [vmem:[%s1433 + $0x8] sm:$0xf]
      %v1583 = vld [vmem:[%s1433 + $0xc] sm:$0x1]
      %v1584 = vld [vmem:[%s1433 + $0x10] sm:$0xf]
      %v1585 = vld [vmem:[%s1433 + $0x14] sm:$0x1]
      %v1586 = vld [vmem:[%s1433 + $0x18] sm:$0xf]
      %v1587 = vld [vmem:[%s1433 + $0x1c] sm:$0x1]
      %v1588 = vld [vmem:[%s1433 + $0x20] sm:$0xf]
      %v1589 = vld [vmem:[%s1433 + $0x24] sm:$0x1]
      %v1590 = vld [vmem:[%s1433 + $0x28] sm:$0xf]
      %v1591 = vld [vmem:[%s1433 + $0x2c] sm:$0x1]
      %v1592 = vld [vmem:[%s1433 + $0x30] sm:$0xf]
      %v1593 = vld [vmem:[%s1433 + $0x34] sm:$0x1]
      %v1594 = vld [vmem:[%s1433 + $0x38] sm:$0xf]
      %v1595 = vld [vmem:[%s1433 + $0x3c] sm:$0x1]
      %v1597 = vshrl.u32 %v1580, 16
      %v1599 = vrot.slane %v1597, 4
      %v1600 = vshll.u32 %v1580, 16
      %v1602 = vrot.slane %v1600, 5
      %v1603 = vor.u32 %v1599, %v1602
      %v1604 = vrot.slane %v1603, 4
      %v1606 = vshll.u32 %v1581, 16
      %v1608 = vrot.slane %v1606, 5
      %v1609 = vsel %vm394, %v1604, %v1608
      %v1611 = vshrl.u32 %v1582, 16
      %v1613 = vrot.slane %v1611, 4
      %v1614 = vshll.u32 %v1582, 16
      %v1616 = vrot.slane %v1614, 5
      %v1617 = vor.u32 %v1613, %v1616
      %v1618 = vrot.slane %v1617, 4
      %v1620 = vshll.u32 %v1583, 16
      %v1622 = vrot.slane %v1620, 5
      %v1623 = vsel %vm394, %v1618, %v1622
      %v1625 = vshrl.u32 %v1584, 16
      %v1627 = vrot.slane %v1625, 4
      %v1628 = vshll.u32 %v1584, 16
      %v1630 = vrot.slane %v1628, 5
      %v1631 = vor.u32 %v1627, %v1630
      %v1632 = vrot.slane %v1631, 4
      %v1634 = vshll.u32 %v1585, 16
      %v1636 = vrot.slane %v1634, 5
      %v1637 = vsel %vm394, %v1632, %v1636
      %v1639 = vshrl.u32 %v1586, 16
      %v1641 = vrot.slane %v1639, 4
      %v1642 = vshll.u32 %v1586, 16
      %v1644 = vrot.slane %v1642, 5
      %v1645 = vor.u32 %v1641, %v1644
      %v1646 = vrot.slane %v1645, 4
      %v1648 = vshll.u32 %v1587, 16
      %v1650 = vrot.slane %v1648, 5
      %v1651 = vsel %vm394, %v1646, %v1650
      %v1653 = vshrl.u32 %v1588, 16
      %v1655 = vrot.slane %v1653, 4
      %v1656 = vshll.u32 %v1588, 16
      %v1658 = vrot.slane %v1656, 5
      %v1659 = vor.u32 %v1655, %v1658
      %v1660 = vrot.slane %v1659, 4
      %v1662 = vshll.u32 %v1589, 16
      %v1664 = vrot.slane %v1662, 5
      %v1665 = vsel %vm394, %v1660, %v1664
      %v1667 = vshrl.u32 %v1590, 16
      %v1669 = vrot.slane %v1667, 4
      %v1670 = vshll.u32 %v1590, 16
      %v1672 = vrot.slane %v1670, 5
      %v1673 = vor.u32 %v1669, %v1672
      %v1674 = vrot.slane %v1673, 4
      %v1676 = vshll.u32 %v1591, 16
      %v1678 = vrot.slane %v1676, 5
      %v1679 = vsel %vm394, %v1674, %v1678
      %v1681 = vshrl.u32 %v1592, 16
      %v1683 = vrot.slane %v1681, 4
      %v1684 = vshll.u32 %v1592, 16
      %v1686 = vrot.slane %v1684, 5
      %v1687 = vor.u32 %v1683, %v1686
      %v1688 = vrot.slane %v1687, 4
      %v1690 = vshll.u32 %v1593, 16
      %v1692 = vrot.slane %v1690, 5
      %v1693 = vsel %vm394, %v1688, %v1692
      %v1695 = vshrl.u32 %v1594, 16
      %v1697 = vrot.slane %v1695, 4
      %v1698 = vshll.u32 %v1594, 16
      %v1700 = vrot.slane %v1698, 5
      %v1701 = vor.u32 %v1697, %v1700
      %v1702 = vrot.slane %v1701, 4
      %v1704 = vshll.u32 %v1595, 16
      %v1706 = vrot.slane %v1704, 5
      %v1707 = vsel %vm394, %v1702, %v1706
      %s1708 = scalar_lea.vmem %s1, 112
      %v1709 = vld [vmem:[%s1708] sm:$0xf]
      %v1710 = vld [vmem:[%s1708 + $0x4] sm:$0xf]
      %v1711 = vld [vmem:[%s1708 + $0x8] sm:$0xf]
      %v1712 = vld [vmem:[%s1708 + $0xc] sm:$0xf]
      %v1713 = vunpack.c.l.b16 %v1609
      %v1714 = vunpack.c.l.b16 %v1623
      %v1715 = vunpack.c.l.b16 %v1637
      %v1716 = vunpack.c.l.b16 %v1651
      %v1717 = vunpack.c.l.b16 %v1665
      %v1718 = vunpack.c.l.b16 %v1679
      %v1719 = vunpack.c.l.b16 %v1693
      %v1720 = vunpack.c.l.b16 %v1707
      %v1721 = vpack.c.b16 %v1714, %v1713
      %v1722 = vpack.c.b16 %v1716, %v1715
      %v1723 = vpack.c.b16 %v1718, %v1717
      %v1724 = vpack.c.b16 %v1720, %v1719
      %v1729 = vunpack.c.l.b16 %v1709
      %v1730 = vunpack.c.l.b16 %v1710
      %v1731 = vunpack.c.l.b16 %v1711
      %v1732 = vunpack.c.l.b16 %v1712
      %v1733 = vpack.c.b16 %v1730, %v1729
      %v1734 = vpack.c.b16 %v1732, %v1731
      %v1738 = vsel %vm290, %v1721, 0
      %v1741 = vsel %vm290, %v1722, 0
      %v1744 = vsel %vm290, %v1723, 0
      %v1747 = vsel %vm290, %v1724, 0
      %1749 = vmatprep.subr.bf16.mxu0 0
      %1750 = vmatpush1.bf16.msra.mxu0 %v1733
      %1751 = vmatprep.subr.bf16.mxu0 0
      %1752 = vmatpush1.bf16.msra.mxu0 %v1734
      %1753 = vmatprep.subr.bf16.mxu0 0
      %1754 = vmatpush1.bf16.msra.mxu0 0
      %1755 = vmatprep.subr.bf16.mxu0 0
      %1756 = vmatpush1.bf16.msra.mxu0 0
      %1757 = vmatprep.subr.bf16.mxu0 0
      %1758 = vmatpush1.bf16.msra.mxu0 0
      %1759 = vmatprep.subr.bf16.mxu0 0
      %1760 = vmatpush1.bf16.msra.mxu0 0
      %1761 = vmatprep.subr.bf16.mxu0 0
      %1762 = vmatpush1.bf16.msra.mxu0 0
      %1763 = vmatprep.subr.bf16.mxu0 0
      %1764 = vmatpush1.bf16.msra.mxu0 0
      %1765 = vmatprep.subr.bf16.mxu0 0
      %1766 = vmatpush1.bf16.msra.mxu0 0
      %1767 = vmatprep.subr.bf16.mxu0 0
      %1768 = vmatpush1.bf16.msra.mxu0 0
      %1769 = vmatprep.subr.bf16.mxu0 0
      %1770 = vmatpush1.bf16.msra.mxu0 0
      %1771 = vmatprep.subr.bf16.mxu0 0
      %1772 = vmatpush1.bf16.msra.mxu0 0
      %1773 = vmatprep.subr.bf16.mxu0 0
      %1774 = vmatpush1.bf16.msra.mxu0 0
      %1775 = vmatprep.subr.bf16.mxu0 0
      %1776 = vmatpush1.bf16.msra.mxu0 0
      %1777 = vmatprep.subr.bf16.mxu0 0
      %1778 = vmatpush1.bf16.msra.mxu0 0
      %1779 = vmatprep.subr.bf16.mxu0 0
      %1780 = vmatpush1.bf16.msra.mxu0 0
      %1781 = vmatprep.mubr.bf16.mxu0 0
      %1782 = vmatmul.mubr.bf16.gmra.mrb[0].mxu0 %v1738
      %v1783 = vpop.f32.mrb[0].mxu0
      %v1784 = vadd.f32 0.0, %v1783
      %v1785 = vpop.f32.mrb[0].mxu0
      %v1786 = vpop.f32.mrb[0].mxu0
      %v1787 = vadd.f32 0.0, %v1786
      %v1788 = vpop.f32.mrb[0].mxu0
      %1789 = vmatprep.mubr.bf16.mxu0 0
      %1790 = vmatmul.mubr.bf16.gmra.mrb[0].mxu0 %v1741
      %v1791 = vpop.f32.mrb[0].mxu0
      %v1792 = vadd.f32 0.0, %v1791
      %v1793 = vpop.f32.mrb[0].mxu0
      %v1794 = vpop.f32.mrb[0].mxu0
      %v1795 = vadd.f32 0.0, %v1794
      %v1796 = vpop.f32.mrb[0].mxu0
      %1797 = vmatprep.mubr.bf16.mxu0 0
      %1798 = vmatmul.mubr.bf16.gmra.mrb[0].mxu0 %v1744
      %v1799 = vpop.f32.mrb[0].mxu0
      %v1800 = vadd.f32 0.0, %v1799
      %v1801 = vpop.f32.mrb[0].mxu0
      %v1802 = vpop.f32.mrb[0].mxu0
      %v1803 = vadd.f32 0.0, %v1802
      %v1804 = vpop.f32.mrb[0].mxu0
      %1805 = vmatprep.mubr.bf16.mxu0 0
      %1806 = vmatmul.mubr.bf16.gmra.mrb[0].mxu0 %v1747
      %v1807 = vpop.f32.mrb[0].mxu0
      %v1808 = vadd.f32 0.0, %v1807
      %v1809 = vpop.f32.mrb[0].mxu0
      %v1810 = vpop.f32.mrb[0].mxu0
      %v1811 = vadd.f32 0.0, %v1810
      %v1812 = vpop.f32.mrb[0].mxu0
      %1813 = vdwg.mxu0
      %v1814 = vld [vmem:[#allocation2] sm:$0xff]
      %v1815 = vld [vmem:[#allocation2 + $0x8] sm:$0xff]
      %v1816 = vld [vmem:[#allocation2 + $0x10] sm:$0xff]
      %v1817 = vld [vmem:[#allocation2 + $0x18] sm:$0xff]
      %v1818 = vld [vmem:[#allocation2 + $0x20] sm:$0xff]
      %v1819 = vld [vmem:[#allocation2 + $0x28] sm:$0xff]
      %v1820 = vld [vmem:[#allocation2 + $0x30] sm:$0xff]
      %v1821 = vld [vmem:[#allocation2 + $0x38] sm:$0xff]
      %v1822 = vadd.f32 %v1814, %v1784
      %v1823 = vadd.f32 %v1815, %v1787
      %v1824 = vadd.f32 %v1816, %v1792
      %v1825 = vadd.f32 %v1817, %v1795
      %v1826 = vadd.f32 %v1818, %v1800
      %v1827 = vadd.f32 %v1819, %v1803
      %v1828 = vadd.f32 %v1820, %v1808
      %v1829 = vadd.f32 %v1821, %v1811
      %1830 = vst.msk [vmem:[#allocation2] sm:$0xff] %vm290, %v1822
      %1831 = vst.msk [vmem:[#allocation2 + $0x8] sm:$0xff] %vm290, %v1823
      %1832 = vst.msk [vmem:[#allocation2 + $0x10] sm:$0xff] %vm290, %v1824
      %1833 = vst.msk [vmem:[#allocation2 + $0x18] sm:$0xff] %vm290, %v1825
      %1834 = vst.msk [vmem:[#allocation2 + $0x20] sm:$0xff] %vm290, %v1826
      %1835 = vst.msk [vmem:[#allocation2 + $0x28] sm:$0xff] %vm290, %v1827
      %1836 = vst.msk [vmem:[#allocation2 + $0x30] sm:$0xff] %vm290, %v1828
      %1837 = vst.msk [vmem:[#allocation2 + $0x38] sm:$0xff] %vm290, %v1829
      %v1838 = vld [vmem:[%s1433] sm:$0xe]
      %v1839 = vld [vmem:[%s1433 + $0x4] sm:$0x1]
      %v1840 = vld [vmem:[%s1433 + $0x8] sm:$0xe]
      %v1841 = vld [vmem:[%s1433 + $0xc] sm:$0x1]
      %v1842 = vld [vmem:[%s1433 + $0x10] sm:$0xe]
      %v1843 = vld [vmem:[%s1433 + $0x14] sm:$0x1]
      %v1844 = vld [vmem:[%s1433 + $0x18] sm:$0xe]
      %v1845 = vld [vmem:[%s1433 + $0x1c] sm:$0x1]
      %v1846 = vld [vmem:[%s1433 + $0x20] sm:$0xe]
      %v1847 = vld [vmem:[%s1433 + $0x24] sm:$0x1]
      %v1848 = vld [vmem:[%s1433 + $0x28] sm:$0xe]
      %v1849 = vld [vmem:[%s1433 + $0x2c] sm:$0x1]
      %v1850 = vld [vmem:[%s1433 + $0x30] sm:$0xe]
      %v1851 = vld [vmem:[%s1433 + $0x34] sm:$0x1]
      %v1852 = vld [vmem:[%s1433 + $0x38] sm:$0xe]
      %v1853 = vld [vmem:[%s1433 + $0x3c] sm:$0x1]
      %v1870 = vrot.slane %v1838, 5
      %v1871 = vrot.slane %v1870, 4
      %v1872 = vrot.slane %v1839, 5
      %v1873 = vsel %vm671, %v1871, %v1872
      %v1874 = vrot.slane %v1840, 5
      %v1875 = vrot.slane %v1874, 4
      %v1876 = vrot.slane %v1841, 5
      %v1877 = vsel %vm671, %v1875, %v1876
      %v1878 = vrot.slane %v1842, 5
      %v1879 = vrot.slane %v1878, 4
      %v1880 = vrot.slane %v1843, 5
      %v1881 = vsel %vm671, %v1879, %v1880
      %v1882 = vrot.slane %v1844, 5
      %v1883 = vrot.slane %v1882, 4
      %v1884 = vrot.slane %v1845, 5
      %v1885 = vsel %vm671, %v1883, %v1884
      %v1886 = vrot.slane %v1846, 5
      %v1887 = vrot.slane %v1886, 4
      %v1888 = vrot.slane %v1847, 5
      %v1889 = vsel %vm671, %v1887, %v1888
      %v1890 = vrot.slane %v1848, 5
      %v1891 = vrot.slane %v1890, 4
      %v1892 = vrot.slane %v1849, 5
      %v1893 = vsel %vm671, %v1891, %v1892
      %v1894 = vrot.slane %v1850, 5
      %v1895 = vrot.slane %v1894, 4
      %v1896 = vrot.slane %v1851, 5
      %v1897 = vsel %vm671, %v1895, %v1896
      %v1898 = vrot.slane %v1852, 5
      %v1899 = vrot.slane %v1898, 4
      %v1900 = vrot.slane %v1853, 5
      %v1901 = vsel %vm671, %v1899, %v1900
      %s1902 = scalar_lea.vmem %s1, 128
      %v1903 = vld [vmem:[%s1902] sm:$0xf]
      %v1904 = vld [vmem:[%s1902 + $0x4] sm:$0xf]
      %v1905 = vld [vmem:[%s1902 + $0x8] sm:$0xf]
      %v1906 = vld [vmem:[%s1902 + $0xc] sm:$0xf]
      %v1907 = vunpack.c.l.b16 %v1873
      %v1908 = vunpack.c.l.b16 %v1877
      %v1909 = vunpack.c.l.b16 %v1881
      %v1910 = vunpack.c.l.b16 %v1885
      %v1911 = vunpack.c.l.b16 %v1889
      %v1912 = vunpack.c.l.b16 %v1893
      %v1913 = vunpack.c.l.b16 %v1897
      %v1914 = vunpack.c.l.b16 %v1901
      %v1915 = vpack.c.b16 %v1908, %v1907
      %v1916 = vpack.c.b16 %v1910, %v1909
      %v1917 = vpack.c.b16 %v1912, %v1911
      %v1918 = vpack.c.b16 %v1914, %v1913
      %v1923 = vunpack.c.l.b16 %v1903
      %v1924 = vunpack.c.l.b16 %v1904
      %v1925 = vunpack.c.l.b16 %v1905
      %v1926 = vunpack.c.l.b16 %v1906
      %v1927 = vpack.c.b16 %v1924, %v1923
      %v1928 = vpack.c.b16 %v1926, %v1925
      %v1932 = vsel %vm290, %v1915, 0
      %v1935 = vsel %vm290, %v1916, 0
      %v1938 = vsel %vm290, %v1917, 0
      %v1941 = vsel %vm290, %v1918, 0
      %1943 = vmatprep.subr.bf16.mxu0 0
      %1944 = vmatpush1.bf16.msra.mxu0 %v1927
      %1945 = vmatprep.subr.bf16.mxu0 0
      %1946 = vmatpush1.bf16.msra.mxu0 %v1928
      %1947 = vmatprep.subr.bf16.mxu0 0
      %1948 = vmatpush1.bf16.msra.mxu0 0
      %1949 = vmatprep.subr.bf16.mxu0 0
      %1950 = vmatpush1.bf16.msra.mxu0 0
      %1951 = vmatprep.subr.bf16.mxu0 0
      %1952 = vmatpush1.bf16.msra.mxu0 0
      %1953 = vmatprep.subr.bf16.mxu0 0
      %1954 = vmatpush1.bf16.msra.mxu0 0
      %1955 = vmatprep.subr.bf16.mxu0 0
      %1956 = vmatpush1.bf16.msra.mxu0 0
      %1957 = vmatprep.subr.bf16.mxu0 0
      %1958 = vmatpush1.bf16.msra.mxu0 0
      %1959 = vmatprep.subr.bf16.mxu0 0
      %1960 = vmatpush1.bf16.msra.mxu0 0
      %1961 = vmatprep.subr.bf16.mxu0 0
      %1962 = vmatpush1.bf16.msra.mxu0 0
      %1963 = vmatprep.subr.bf16.mxu0 0
      %1964 = vmatpush1.bf16.msra.mxu0 0
      %1965 = vmatprep.subr.bf16.mxu0 0
      %1966 = vmatpush1.bf16.msra.mxu0 0
      %1967 = vmatprep.subr.bf16.mxu0 0
      %1968 = vmatpush1.bf16.msra.mxu0 0
      %1969 = vmatprep.subr.bf16.mxu0 0
      %1970 = vmatpush1.bf16.msra.mxu0 0
      %1971 = vmatprep.subr.bf16.mxu0 0
      %1972 = vmatpush1.bf16.msra.mxu0 0
      %1973 = vmatprep.subr.bf16.mxu0 0
      %1974 = vmatpush1.bf16.msra.mxu0 0
      %1975 = vmatprep.mubr.bf16.mxu0 0
      %1976 = vmatmul.mubr.bf16.gmra.mrb[0].mxu0 %v1932
      %v1977 = vpop.f32.mrb[0].mxu0
      %v1978 = vadd.f32 0.0, %v1977
      %v1979 = vpop.f32.mrb[0].mxu0
      %v1980 = vpop.f32.mrb[0].mxu0
      %v1981 = vadd.f32 0.0, %v1980
      %v1982 = vpop.f32.mrb[0].mxu0
      %1983 = vmatprep.mubr.bf16.mxu0 0
      %1984 = vmatmul.mubr.bf16.gmra.mrb[0].mxu0 %v1935
      %v1985 = vpop.f32.mrb[0].mxu0
      %v1986 = vadd.f32 0.0, %v1985
      %v1987 = vpop.f32.mrb[0].mxu0
      %v1988 = vpop.f32.mrb[0].mxu0
      %v1989 = vadd.f32 0.0, %v1988
      %v1990 = vpop.f32.mrb[0].mxu0
      %1991 = vmatprep.mubr.bf16.mxu0 0
      %1992 = vmatmul.mubr.bf16.gmra.mrb[0].mxu0 %v1938
      %v1993 = vpop.f32.mrb[0].mxu0
      %v1994 = vadd.f32 0.0, %v1993
      %v1995 = vpop.f32.mrb[0].mxu0
      %v1996 = vpop.f32.mrb[0].mxu0
      %v1997 = vadd.f32 0.0, %v1996
      %v1998 = vpop.f32.mrb[0].mxu0
      %1999 = vmatprep.mubr.bf16.mxu0 0
      %2000 = vmatmul.mubr.bf16.gmra.mrb[0].mxu0 %v1941
      %v2001 = vpop.f32.mrb[0].mxu0
      %v2002 = vadd.f32 0.0, %v2001
      %v2003 = vpop.f32.mrb[0].mxu0
      %v2004 = vpop.f32.mrb[0].mxu0
      %v2005 = vadd.f32 0.0, %v2004
      %v2006 = vpop.f32.mrb[0].mxu0
      %2007 = vdwg.mxu0
      %v2008 = vld [vmem:[#allocation2] sm:$0xff]
      %v2009 = vld [vmem:[#allocation2 + $0x8] sm:$0xff]
      %v2010 = vld [vmem:[#allocation2 + $0x10] sm:$0xff]
      %v2011 = vld [vmem:[#allocation2 + $0x18] sm:$0xff]
      %v2012 = vld [vmem:[#allocation2 + $0x20] sm:$0xff]
      %v2013 = vld [vmem:[#allocation2 + $0x28] sm:$0xff]
      %v2014 = vld [vmem:[#allocation2 + $0x30] sm:$0xff]
      %v2015 = vld [vmem:[#allocation2 + $0x38] sm:$0xff]
      %v2016 = vadd.f32 %v2008, %v1978
      %v2017 = vadd.f32 %v2009, %v1981
      %v2018 = vadd.f32 %v2010, %v1986
      %v2019 = vadd.f32 %v2011, %v1989
      %v2020 = vadd.f32 %v2012, %v1994
      %v2021 = vadd.f32 %v2013, %v1997
      %v2022 = vadd.f32 %v2014, %v2002
      %v2023 = vadd.f32 %v2015, %v2005
      %2024 = vst.msk [vmem:[#allocation2] sm:$0xff] %vm290, %v2016
      %2025 = vst.msk [vmem:[#allocation2 + $0x8] sm:$0xff] %vm290, %v2017
      %2026 = vst.msk [vmem:[#allocation2 + $0x10] sm:$0xff] %vm290, %v2018
      %2027 = vst.msk [vmem:[#allocation2 + $0x18] sm:$0xff] %vm290, %v2019
      %2028 = vst.msk [vmem:[#allocation2 + $0x20] sm:$0xff] %vm290, %v2020
      %2029 = vst.msk [vmem:[#allocation2 + $0x28] sm:$0xff] %vm290, %v2021
      %2030 = vst.msk [vmem:[#allocation2 + $0x30] sm:$0xff] %vm290, %v2022
      %2031 = vst.msk [vmem:[#allocation2 + $0x38] sm:$0xff] %vm290, %v2023
      %v2032 = vld [vmem:[#allocation2] sm:$0xff]
      %v2033 = vld [vmem:[#allocation2 + $0x8] sm:$0xff]
      %v2034 = vld [vmem:[#allocation2 + $0x10] sm:$0xff]
      %v2035 = vld [vmem:[#allocation2 + $0x18] sm:$0xff]
      %v2036 = vld [vmem:[#allocation2 + $0x20] sm:$0xff]
      %v2037 = vld [vmem:[#allocation2 + $0x28] sm:$0xff]
      %v2038 = vld [vmem:[#allocation2 + $0x30] sm:$0xff]
      %v2039 = vld [vmem:[#allocation2 + $0x38] sm:$0xff]
      %v2040 = vld [vmem:[%s2] sm:$0x1]
      %v2042 = vlaneseq
      %v2043 = vshrl.u32 %v2042, 7
      %v2044 = vsub.s32 0, %v2043
      %v2045 = vrot.slane %v2040, %v2044
      %v2047 = vmul.f32 %v2032, %v2045
      %v2048 = vmul.f32 %v2033, %v2045
      %v2049 = vmul.f32 %v2034, %v2045
      %v2050 = vmul.f32 %v2035, %v2045
      %v2051 = vmul.f32 %v2036, %v2045
      %v2052 = vmul.f32 %v2037, %v2045
      %v2053 = vmul.f32 %v2038, %v2045
      %v2054 = vmul.f32 %v2039, %v2045
      %v2055 = vld [vmem:[%s3] sm:$0x1]
      %v2057 = vlaneseq
      %v2058 = vshrl.u32 %v2057, 7
      %v2059 = vsub.s32 0, %v2058
      %v2060 = vrot.slane %v2055, %v2059
      %v2062 = vadd.f32 %v2047, %v2060
      %v2063 = vadd.f32 %v2048, %v2060
      %v2064 = vadd.f32 %v2049, %v2060
      %v2065 = vadd.f32 %v2050, %v2060
      %v2066 = vadd.f32 %v2051, %v2060
      %v2067 = vadd.f32 %v2052, %v2060
      %v2068 = vadd.f32 %v2053, %v2060
      %v2069 = vadd.f32 %v2054, %v2060
      %v2070 = vsub.f32 0.0, %v2062
      %v2071 = vsub.f32 0.0, %v2063
      %v2072 = vsub.f32 0.0, %v2064
      %v2073 = vsub.f32 0.0, %v2065
      %v2074 = vsub.f32 0.0, %v2066
      %v2075 = vsub.f32 0.0, %v2067
      %v2076 = vsub.f32 0.0, %v2068
      %v2077 = vsub.f32 0.0, %v2069
      %v2078 = vmul.f32 %v2070, 1.442695
      %v2079 = vpow.pop %v2078
      %v2080 = vmul.f32 %v2071, 1.442695
      %v2081 = vpow.pop %v2080
      %v2082 = vmul.f32 %v2072, 1.442695
      %v2083 = vpow.pop %v2082
      %v2084 = vmul.f32 %v2073, 1.442695
      %v2085 = vpow.pop %v2084
      %v2086 = vmul.f32 %v2074, 1.442695
      %v2087 = vpow.pop %v2086
      %v2088 = vmul.f32 %v2075, 1.442695
      %v2089 = vpow.pop %v2088
      %v2090 = vmul.f32 %v2076, 1.442695
      %v2091 = vpow.pop %v2090
      %v2092 = vmul.f32 %v2077, 1.442695
      %v2093 = vpow.pop %v2092
      %v2094 = vadd.f32 %v2079, 1.0
      %v2095 = vadd.f32 %v2081, 1.0
      %v2096 = vadd.f32 %v2083, 1.0
      %v2097 = vadd.f32 %v2085, 1.0
      %v2098 = vadd.f32 %v2087, 1.0
      %v2099 = vadd.f32 %v2089, 1.0
      %v2100 = vadd.f32 %v2091, 1.0
      %v2101 = vadd.f32 %v2093, 1.0
      %v2102 = vrcp.pop %v2094
      %v2103 = vmul.f32 %v2062, %v2102
      %v2104 = vrcp.pop %v2095
      %v2105 = vmul.f32 %v2063, %v2104
      %v2106 = vrcp.pop %v2096
      %v2107 = vmul.f32 %v2064, %v2106
      %v2108 = vrcp.pop %v2097
      %v2109 = vmul.f32 %v2065, %v2108
      %v2110 = vrcp.pop %v2098
      %v2111 = vmul.f32 %v2066, %v2110
      %v2112 = vrcp.pop %v2099
      %v2113 = vmul.f32 %v2067, %v2112
      %v2114 = vrcp.pop %v2100
      %v2115 = vmul.f32 %v2068, %v2114
      %v2116 = vrcp.pop %v2101
      %v2117 = vmul.f32 %v2069, %v2116
      %v2118 = vld [vmem:[%s239] sm:$0xff]
      %v2119 = vld [vmem:[%s239 + $0x8] sm:$0xff]
      %v2120 = vld [vmem:[%s239 + $0x10] sm:$0xff]
      %v2121 = vld [vmem:[%s239 + $0x18] sm:$0xff]
      %v2122 = vld [vmem:[%s239 + $0x20] sm:$0xff]
      %v2123 = vld [vmem:[%s239 + $0x28] sm:$0xff]
      %v2124 = vld [vmem:[%s239 + $0x30] sm:$0xff]
      %v2125 = vld [vmem:[%s239 + $0x38] sm:$0xff]
      %v2126 = vadd.f32 %v2118, %v2103
      %v2127 = vadd.f32 %v2119, %v2105
      %v2128 = vadd.f32 %v2120, %v2107
      %v2129 = vadd.f32 %v2121, %v2109
      %v2130 = vadd.f32 %v2122, %v2111
      %v2131 = vadd.f32 %v2123, %v2113
      %v2132 = vadd.f32 %v2124, %v2115
      %v2133 = vadd.f32 %v2125, %v2117
      %2134 = vst.msk [vmem:[%s244] sm:$0xff] %vm290, %v2126
      %2135 = vst.msk [vmem:[%s244 + $0x8] sm:$0xff] %vm290, %v2127
      %2136 = vst.msk [vmem:[%s244 + $0x10] sm:$0xff] %vm290, %v2128
      %2137 = vst.msk [vmem:[%s244 + $0x18] sm:$0xff] %vm290, %v2129
      %2138 = vst.msk [vmem:[%s244 + $0x20] sm:$0xff] %vm290, %v2130
      %2139 = vst.msk [vmem:[%s244 + $0x28] sm:$0xff] %vm290, %v2131
      %2140 = vst.msk [vmem:[%s244 + $0x30] sm:$0xff] %vm290, %v2132
      %2141 = vst.msk [vmem:[%s244 + $0x38] sm:$0xff] %vm290, %v2133
      %p2142 = scmp.lt.s32.totalorder %s16, 1
      %s2143 = scalar_select %p2142, %s16, 1
      %s2144 = smul.addr %s2143, 8
      %s2145 = smul.addr %s2144, 8
      %s2146 = scalar_lea.vmem %s5, %s2145
      // Predicated region
      $region41: #{normal_cell_forward.10} parent=39 // pred_check
        %p2147 = pneg %p149
      $region42: #{normal_cell_forward.10} parent=39 // pred_check_branch
        %2149 = sbr.rel (%p2147) target = $region44
      $region43: #{normal_cell_forward.10} parent=39 // pred_region
        _
      $region44: #{normal_cell_forward.10} parent=39 // pred_fallthru
        _
    $region40: #{normal_cell_forward.10} parent=5 // pred_fallthru
      _
    %p2150 = scmp.le.s32.totalorder 2, %s11
    // Predicated region
    $region45: #{normal_cell_forward.10} parent=5 // pred_check
      %p2151 = pneg %p2150
    $region46: #{normal_cell_forward.10} parent=5 // pred_check_branch
      %2153 = sbr.rel (%p2151) target = $region48
    $region47: #{normal_cell_forward.10} parent=5 // pred_region
      %s2154 = ssub.s32 %s11, 2
      // Predicated region
      $region49: #{normal_cell_forward.10} parent=47 // pred_check
        %p2155 = pneg %p155
      $region50: #{normal_cell_forward.10} parent=47 // pred_check_branch
        %2157 = sbr.rel (%p2155) target = $region52
      $region51: #{normal_cell_forward.10} parent=47 // pred_region
        %p2158 = scmp.lt.s32.totalorder %s17, 1
        %s2159 = scalar_select %p2158, %s17, 1
        %s2160 = smul.addr %s2159, 8
        %s2161 = smul.addr %s2160, 8
        %s2162 = scalar_lea.vmem %s5, %s2161
      $region52: #{normal_cell_forward.10} parent=47 // pred_fallthru
        _
    $region48: #{normal_cell_forward.10} parent=5 // pred_fallthru
      _
  $region6: #{normal_cell_forward.10} parent=0 // loop_footer
    %s15 = sadd.s32 1, %s11
  $region7: #{normal_cell_forward.10} parent=0 // loop_footer_branch
    %10 = sbr.rel target = $region3
  $region8: #{normal_cell_forward.10} parent=0 // loop_exit
    _

// kernel: normal_cell_forward.7
$region0: #{normal_cell_forward.7}
  #allocation0 [shape = 'u32[]', space=smem, size = 0x4, offset = 0x4, fixed_abs, tag = 'smem constant byte address 0x4 - core index']
  #allocation1 [shape = 'u32[144,128]{1,0:T(1,128)}', space=vmem, size = 0x12000, scoped, tag = 'internal scratch']
  #allocation2 [shape = 'f32[64,32]{1,0:T(8,128)}', space=vmem, size = 0x8000, scoped, tag = 'scratch operand']
  %s0 = inlined_call_operand.vmem [shape: bf16[2,10,10,128], index: 0, kind: input, shape index: {}]
  %s1 = inlined_call_operand.vmem [shape: bf16[9,128,32], index: 1, kind: input, shape index: {}]
  %s2 = inlined_call_operand.vmem [shape: f32[1,32], index: 2, kind: input, shape index: {}]
  %s3 = inlined_call_operand.vmem [shape: f32[1,32], index: 3, kind: input, shape index: {}]
  %s4 = inlined_call_operand.vmem [shape: bf16[2,64,32], index: 4, kind: output, shape index: {}]
  %s5 = sld [smem:[#allocation0]]
  $region49: #{normal_cell_forward.7} parent=0
    _
  %s7 = ssub.s32 1, %s5
  %s8 = scalar_select 0, %s7, %s5
  loop: start=0, step=1, limit=4
  $region2: #{normal_cell_forward.7} parent=0 // loop_pre_header
    _
  $region3: #{normal_cell_forward.7} parent=0 // loop_header
    %s10 = sphi 0, %s14
    %p11 = scmp.ge.s32.totalorder %s10, 4
    %s20 = sphi 0, %s22
    %s23 = sphi 0, %s20
    %s24 = sphi 0, %s23
    %s40 = sphi 0, %s24
    %s44 = sphi 0, %s44
    %s46 = sphi 0, %s44
    %s47 = sphi 0, %s46
    %s61 = sphi 0, %s47
    %s65 = sphi 0, %s65
    %s67 = sphi 0, %s65
    %s68 = sphi 0, %s67
    %s82 = sphi 0, %s68
    %s86 = sphi 0, %s86
    %s88 = sphi 0, %s86
    %s89 = sphi 0, %s88
    %s103 = sphi 0, %s89
    %s109 = sphi 0, %s111
    %s112 = sphi 0, %s109
    %s113 = sphi 0, %s112
    %s129 = sphi 0, %s113
  $region4: #{normal_cell_forward.7} parent=0 // loop_header_branch
    %13 = sbr.rel (%p11) target = $region8
  $region5: #{normal_cell_forward.7} parent=0 // loop_body
    %s15 = ssub.s32 %s10, 1
    %s16 = ssub.s32 %s10, 2
    %s17 = sadd.s32 %s10, 1
    %s18 = ssub.s32 %s10, %s17
    %p19 = scmp.eq.s32.totalorder %s18, 0
    %s21 = sadd.s32 %s20, 1
    %s22 = scalar_select %p19, %s20, %s21
    %p25 = pneg %p19
    %p26 = scmp.eq.s32.totalorder %s10, 1
    %p27 = por %p25, %p26
    %p28 = scmp.ne.s32.totalorder %s20, %s23
    %p29 = scmp.eq.s32.totalorder %s10, 0
    %p30 = por %p28, %p29
    %p31 = scmp.ne.s32.totalorder %s20, %s23
    %p32 = scmp.eq.s32.totalorder %s15, 1
    %p33 = por %p31, %p32
    %p34 = scmp.ne.s32.totalorder %s23, %s24
    %p35 = scmp.eq.s32.totalorder %s15, 0
    %p36 = por %p34, %p35
    %p37 = scmp.ne.s32.totalorder %s23, %s24
    %p38 = scmp.eq.s32.totalorder %s16, 1
    %p39 = por %p37, %p38
    %p41 = scmp.ne.s32.totalorder %s24, %s40
    %p42 = scmp.eq.s32.totalorder %s16, 0
    %p43 = por %p41, %p42
    %s45 = sadd.s32 %s44, 1
    %p48 = scmp.eq.s32.totalorder %s10, 1
    %p49 = scmp.ne.s32.totalorder %s44, %s46
    %p50 = scmp.eq.s32.totalorder %s10, 0
    %p51 = por %p49, %p50
    %p52 = scmp.ne.s32.totalorder %s44, %s46
    %p53 = scmp.eq.s32.totalorder %s15, 1
    %p54 = por %p52, %p53
    %p55 = scmp.ne.s32.totalorder %s46, %s47
    %p56 = scmp.eq.s32.totalorder %s15, 0
    %p57 = por %p55, %p56
    %p58 = scmp.ne.s32.totalorder %s46, %s47
    %p59 = scmp.eq.s32.totalorder %s16, 1
    %p60 = por %p58, %p59
    %p62 = scmp.ne.s32.totalorder %s47, %s61
    %p63 = scmp.eq.s32.totalorder %s16, 0
    %p64 = por %p62, %p63
    %s66 = sadd.s32 %s65, 1
    %p69 = scmp.eq.s32.totalorder %s10, 1
    %p70 = scmp.ne.s32.totalorder %s65, %s67
    %p71 = scmp.eq.s32.totalorder %s10, 0
    %p72 = por %p70, %p71
    %p73 = scmp.ne.s32.totalorder %s65, %s67
    %p74 = scmp.eq.s32.totalorder %s15, 1
    %p75 = por %p73, %p74
    %p76 = scmp.ne.s32.totalorder %s67, %s68
    %p77 = scmp.eq.s32.totalorder %s15, 0
    %p78 = por %p76, %p77
    %p79 = scmp.ne.s32.totalorder %s67, %s68
    %p80 = scmp.eq.s32.totalorder %s16, 1
    %p81 = por %p79, %p80
    %p83 = scmp.ne.s32.totalorder %s68, %s82
    %p84 = scmp.eq.s32.totalorder %s16, 0
    %p85 = por %p83, %p84
    %s87 = sadd.s32 %s86, 1
    %p90 = scmp.eq.s32.totalorder %s10, 1
    %p91 = scmp.ne.s32.totalorder %s86, %s88
    %p92 = scmp.eq.s32.totalorder %s10, 0
    %p93 = por %p91, %p92
    %p94 = scmp.ne.s32.totalorder %s86, %s88
    %p95 = scmp.eq.s32.totalorder %s15, 1
    %p96 = por %p94, %p95
    %p97 = scmp.ne.s32.totalorder %s88, %s89
    %p98 = scmp.eq.s32.totalorder %s15, 0
    %p99 = por %p97, %p98
    %p100 = scmp.ne.s32.totalorder %s88, %s89
    %p101 = scmp.eq.s32.totalorder %s16, 1
    %p102 = por %p100, %p101
    %p104 = scmp.ne.s32.totalorder %s89, %s103
    %p105 = scmp.eq.s32.totalorder %s16, 0
    %p106 = por %p104, %p105
    %s107 = ssub.s32 %s10, %s17
    %p108 = scmp.eq.s32.totalorder %s107, 0
    %s110 = sadd.s32 %s109, 1
    %s111 = scalar_select %p108, %s109, %s110
    %p114 = pneg %p108
    %p115 = scmp.eq.s32.totalorder %s10, 1
    %p116 = por %p114, %p115
    %p117 = scmp.ne.s32.totalorder %s109, %s112
    %p118 = scmp.eq.s32.totalorder %s10, 0
    %p119 = por %p117, %p118
    %p120 = scmp.ne.s32.totalorder %s109, %s112
    %p121 = scmp.eq.s32.totalorder %s15, 1
    %p122 = por %p120, %p121
    %p123 = scmp.ne.s32.totalorder %s112, %s113
    %p124 = scmp.eq.s32.totalorder %s15, 0
    %p125 = por %p123, %p124
    %p126 = scmp.ne.s32.totalorder %s112, %s113
    %p127 = scmp.eq.s32.totalorder %s16, 1
    %p128 = por %p126, %p127
    %p130 = scmp.ne.s32.totalorder %s113, %s129
    %p131 = scmp.eq.s32.totalorder %s16, 0
    %p132 = por %p130, %p131
    %p133 = scmp.le.s32.totalorder 1, %s10
    %p134 = scmp.lt.s32.totalorder %s10, 3
    %p135 = pnand %p133, %p134
    %p136 = pneg %p135
    // Predicated region
    $region9: #{normal_cell_forward.7} parent=5 // pred_check
      _
    $region10: #{normal_cell_forward.7} parent=5 // pred_check_branch
      %138 = sbr.rel (%p135) target = $region12
    $region11: #{normal_cell_forward.7} parent=5 // pred_region
      %s139 = ssub.s32 %s10, 1
      // Predicated region
      $region13: #{normal_cell_forward.7} parent=11 // pred_check
        %p140 = pneg %p57
      $region14: #{normal_cell_forward.7} parent=11 // pred_check_branch
        %142 = sbr.rel (%p140) target = $region16
      $region15: #{normal_cell_forward.7} parent=11 // pred_region
        _
      $region16: #{normal_cell_forward.7} parent=11 // pred_fallthru
        _
      // Predicated region
      $region17: #{normal_cell_forward.7} parent=11 // pred_check
        %p143 = pneg %p78
      $region18: #{normal_cell_forward.7} parent=11 // pred_check_branch
        %145 = sbr.rel (%p143) target = $region20
      $region19: #{normal_cell_forward.7} parent=11 // pred_region
        _
      $region20: #{normal_cell_forward.7} parent=11 // pred_fallthru
        _
      // Predicated region
      $region21: #{normal_cell_forward.7} parent=11 // pred_check
        %p146 = pneg %p99
      $region22: #{normal_cell_forward.7} parent=11 // pred_check_branch
        %148 = sbr.rel (%p146) target = $region24
      $region23: #{normal_cell_forward.7} parent=11 // pred_region
        _
      $region24: #{normal_cell_forward.7} parent=11 // pred_fallthru
        _
    $region12: #{normal_cell_forward.7} parent=5 // pred_fallthru
      _
    %p149 = scmp.lt.s32.totalorder %s10, 2
    // Predicated region
    $region25: #{normal_cell_forward.7} parent=5 // pred_check
      %p150 = pneg %p149
    $region26: #{normal_cell_forward.7} parent=5 // pred_check_branch
      %152 = sbr.rel (%p150) target = $region28
    $region27: #{normal_cell_forward.7} parent=5 // pred_region
      // Predicated region
      $region29: #{normal_cell_forward.7} parent=27 // pred_check
        %p153 = pneg %p30
      $region30: #{normal_cell_forward.7} parent=27 // pred_check_branch
        %155 = sbr.rel (%p153) target = $region32
      $region31: #{normal_cell_forward.7} parent=27 // pred_region
        %p156 = scmp.lt.s32.totalorder %s10, 1
        %s157 = scalar_select %p156, %s10, 1
        %s158 = smul.addr %s157, 20
        %s159 = smul.addr %s158, 4
        %s160 = scalar_lea.vmem %s0, %s159
      $region32: #{normal_cell_forward.7} parent=27 // pred_fallthru
        _
    $region28: #{normal_cell_forward.7} parent=5 // pred_fallthru
      _
    %p161 = scmp.le.s32.totalorder 1, %s10
    %p162 = scmp.lt.s32.totalorder %s10, 3
    %p163 = pnand %p161, %p162
    %p164 = pneg %p163
    // Predicated region
    $region33: #{normal_cell_forward.7} parent=5 // pred_check
      _
    $region34: #{normal_cell_forward.7} parent=5 // pred_check_branch
      %166 = sbr.rel (%p163) target = $region36
    $region35: #{normal_cell_forward.7} parent=5 // pred_region
      %s167 = ssub.s32 %s10, 1
      %p168 = scmp.lt.s32.totalorder %s15, 1
      %s169 = scalar_select %p168, %s15, 1
      %s170 = smul.addr %s169, 20
      %s171 = smul.addr %s170, 4
      %s172 = scalar_lea.vmem %s0, %s171
      %p173 = pneg %p36
      %p174 = pneg %p33
      %p175 = pneg %p57
      %p176 = pneg %p54
      %p177 = pneg %p78
      %p178 = pneg %p75
      %p179 = pneg %p99
      %p180 = pneg %p96
      %p181 = pneg %p125
      %p182 = pneg %p122
      %p183 = scmp.lt.s32.totalorder %s15, 1
      %s184 = scalar_select %p183, %s15, 1
      %s185 = smul.addr %s184, 8
      %s186 = smul.addr %s185, 4
      %s187 = scalar_lea.vmem %s4, %s186
      %p188 = scmp.lt.s32.totalorder %s15, 1
      %s189 = scalar_select %p188, %s15, 1
      %s190 = smul.addr %s189, 20
      %s191 = smul.addr %s190, 4
      %s192 = scalar_lea.vmem %s0, %s191
      %p193 = scmp.lt.s32.totalorder %s15, 1
      %s194 = scalar_select %p193, %s15, 1
      %s195 = smul.addr %s194, 8
      %s196 = smul.addr %s195, 4
      %s197 = scalar_lea.vmem %s4, %s196
      %v199 = vld [vmem:[%s192] sm:$0xf]
      %v200 = vld [vmem:[%s192 + $0x8] sm:$0xf]
      %v201 = vld [vmem:[%s192 + $0x10] sm:$0xf]
      %v202 = vld [vmem:[%s192 + $0x18] sm:$0xf]
      %v203 = vld [vmem:[%s192 + $0x20] sm:$0xf]
      %v204 = vld [vmem:[%s192 + $0x28] sm:$0xf]
      %v205 = vld [vmem:[%s192 + $0x30] sm:$0xf]
      %v206 = vld [vmem:[%s192 + $0x38] sm:$0xf]
      %v207 = vld [vmem:[%s1] sm:$0xf]
      %v208 = vld [vmem:[%s1 + $0x4] sm:$0xf]
      %v209 = vld [vmem:[%s1 + $0x8] sm:$0xf]
      %v210 = vld [vmem:[%s1 + $0xc] sm:$0xf]
      %v211 = vld [vmem:[%s1 + $0x10] sm:$0xf]
      %v212 = vld [vmem:[%s1 + $0x14] sm:$0xf]
      %v213 = vld [vmem:[%s1 + $0x18] sm:$0xf]
      %v214 = vld [vmem:[%s1 + $0x1c] sm:$0xf]
      %v215 = vld [vmem:[%s1 + $0x20] sm:$0xf]
      %v216 = vld [vmem:[%s1 + $0x24] sm:$0xf]
      %v217 = vld [vmem:[%s1 + $0x28] sm:$0xf]
      %v218 = vld [vmem:[%s1 + $0x2c] sm:$0xf]
      %v219 = vld [vmem:[%s1 + $0x30] sm:$0xf]
      %v220 = vld [vmem:[%s1 + $0x34] sm:$0xf]
      %v221 = vld [vmem:[%s1 + $0x38] sm:$0xf]
      %v222 = vld [vmem:[%s1 + $0x3c] sm:$0xf]
      %v231 = vunpack.c.l.b16 %v199
      %v232 = vunpack.c.l.b16 %v200
      %v233 = vunpack.c.l.b16 %v201
      %v234 = vunpack.c.l.b16 %v202
      %v235 = vunpack.c.l.b16 %v203
      %v236 = vunpack.c.l.b16 %v204
      %v237 = vunpack.c.l.b16 %v205
      %v238 = vunpack.c.l.b16 %v206
      %v239 = vpack.c.b16 %v232, %v231
      %v240 = vpack.c.b16 %v234, %v233
      %v241 = vpack.c.b16 %v236, %v235
      %v242 = vpack.c.b16 %v238, %v237
      %v263 = vunpack.c.l.b16 %v207
      %v264 = vunpack.c.l.b16 %v208
      %v265 = vunpack.c.l.b16 %v209
      %v266 = vunpack.c.l.b16 %v210
      %v267 = vunpack.c.l.b16 %v211
      %v268 = vunpack.c.l.b16 %v212
      %v269 = vunpack.c.l.b16 %v213
      %v270 = vunpack.c.l.b16 %v214
      %v271 = vunpack.c.l.b16 %v215
      %v272 = vunpack.c.l.b16 %v216
      %v273 = vunpack.c.l.b16 %v217
      %v274 = vunpack.c.l.b16 %v218
      %v275 = vunpack.c.l.b16 %v219
      %v276 = vunpack.c.l.b16 %v220
      %v277 = vunpack.c.l.b16 %v221
      %v278 = vunpack.c.l.b16 %v222
      %v279 = vpack.c.b16 %v264, %v263
      %v280 = vpack.c.b16 %v266, %v265
      %v281 = vpack.c.b16 %v268, %v267
      %v282 = vpack.c.b16 %v270, %v269
      %v283 = vpack.c.b16 %v272, %v271
      %v284 = vpack.c.b16 %v274, %v273
      %v285 = vpack.c.b16 %v276, %v275
      %v286 = vpack.c.b16 %v278, %v277
      %295 = vmatprep.subr.bf16.mxu0 0
      %296 = vmatpush1.bf16.msra.mxu0 %v279
      %297 = vmatprep.subr.bf16.mxu0 0
      %298 = vmatpush1.bf16.msra.mxu0 %v280
      %299 = vmatprep.subr.bf16.mxu0 0
      %300 = vmatpush1.bf16.msra.mxu0 %v281
      %301 = vmatprep.subr.bf16.mxu0 0
      %302 = vmatpush1.bf16.msra.mxu0 %v282
      %303 = vmatprep.subr.bf16.mxu0 0
      %304 = vmatpush1.bf16.msra.mxu0 %v283
      %305 = vmatprep.subr.bf16.mxu0 0
      %306 = vmatpush1.bf16.msra.mxu0 %v284
      %307 = vmatprep.subr.bf16.mxu0 0
      %308 = vmatpush1.bf16.msra.mxu0 %v285
      %309 = vmatprep.subr.bf16.mxu0 0
      %310 = vmatpush1.bf16.msra.mxu0 %v286
      %311 = vmatprep.subr.bf16.mxu0 0
      %312 = vmatpush1.bf16.msra.mxu0 0
      %313 = vmatprep.subr.bf16.mxu0 0
      %314 = vmatpush1.bf16.msra.mxu0 0
      %315 = vmatprep.subr.bf16.mxu0 0
      %316 = vmatpush1.bf16.msra.mxu0 0
      %317 = vmatprep.subr.bf16.mxu0 0
      %318 = vmatpush1.bf16.msra.mxu0 0
      %319 = vmatprep.subr.bf16.mxu0 0
      %320 = vmatpush1.bf16.msra.mxu0 0
      %321 = vmatprep.subr.bf16.mxu0 0
      %322 = vmatpush1.bf16.msra.mxu0 0
      %323 = vmatprep.subr.bf16.mxu0 0
      %324 = vmatpush1.bf16.msra.mxu0 0
      %325 = vmatprep.subr.bf16.mxu0 0
      %326 = vmatpush1.bf16.msra.mxu0 0
      %327 = vmatprep.mubr.bf16.mxu0 0
      %328 = vmatmul.mubr.bf16.gmra.mrb[0].mxu0 %v239
      %v329 = vpop.f32.mrb[0].mxu0
      %v330 = vadd.f32 0.0, %v329
      %v331 = vpop.f32.mrb[0].mxu0
      %v332 = vpop.f32.mrb[0].mxu0
      %v333 = vadd.f32 0.0, %v332
      %v334 = vpop.f32.mrb[0].mxu0
      %335 = vmatprep.mubr.bf16.mxu0 0
      %336 = vmatmul.mubr.bf16.gmra.mrb[0].mxu0 %v240
      %v337 = vpop.f32.mrb[0].mxu0
      %v338 = vadd.f32 0.0, %v337
      %v339 = vpop.f32.mrb[0].mxu0
      %v340 = vpop.f32.mrb[0].mxu0
      %v341 = vadd.f32 0.0, %v340
      %v342 = vpop.f32.mrb[0].mxu0
      %343 = vmatprep.mubr.bf16.mxu0 0
      %344 = vmatmul.mubr.bf16.gmra.mrb[0].mxu0 %v241
      %v345 = vpop.f32.mrb[0].mxu0
      %v346 = vadd.f32 0.0, %v345
      %v347 = vpop.f32.mrb[0].mxu0
      %v348 = vpop.f32.mrb[0].mxu0
      %v349 = vadd.f32 0.0, %v348
      %v350 = vpop.f32.mrb[0].mxu0
      %351 = vmatprep.mubr.bf16.mxu0 0
      %352 = vmatmul.mubr.bf16.gmra.mrb[0].mxu0 %v242
      %v353 = vpop.f32.mrb[0].mxu0
      %v354 = vadd.f32 0.0, %v353
      %v355 = vpop.f32.mrb[0].mxu0
      %v356 = vpop.f32.mrb[0].mxu0
      %v357 = vadd.f32 0.0, %v356
      %v358 = vpop.f32.mrb[0].mxu0
      %359 = vdwg.mxu0
      %vm360 = vcmask 261120
      %361 = vst.msk [vmem:[#allocation2] sm:$0xff] %vm360, %v330
      %362 = vst.msk [vmem:[#allocation2 + $0x8] sm:$0xff] %vm360, %v333
      %363 = vst.msk [vmem:[#allocation2 + $0x10] sm:$0xff] %vm360, %v338
      %364 = vst.msk [vmem:[#allocation2 + $0x18] sm:$0xff] %vm360, %v341
      %365 = vst.msk [vmem:[#allocation2 + $0x20] sm:$0xff] %vm360, %v346
      %366 = vst.msk [vmem:[#allocation2 + $0x28] sm:$0xff] %vm360, %v349
      %367 = vst.msk [vmem:[#allocation2 + $0x30] sm:$0xff] %vm360, %v354
      %368 = vst.msk [vmem:[#allocation2 + $0x38] sm:$0xff] %vm360, %v357
      %v369 = vld [vmem:[%s192] sm:$0xf]
      %v370 = vld [vmem:[%s192 + $0x4] sm:$0x1]
      %v371 = vld [vmem:[%s192 + $0x8] sm:$0xf]
      %v372 = vld [vmem:[%s192 + $0xc] sm:$0x1]
      %v373 = vld [vmem:[%s192 + $0x10] sm:$0xf]
      %v374 = vld [vmem:[%s192 + $0x14] sm:$0x1]
      %v375 = vld [vmem:[%s192 + $0x18] sm:$0xf]
      %v376 = vld [vmem:[%s192 + $0x1c] sm:$0x1]
      %v377 = vld [vmem:[%s192 + $0x20] sm:$0xf]
      %v378 = vld [vmem:[%s192 + $0x24] sm:$0x1]
      %v379 = vld [vmem:[%s192 + $0x28] sm:$0xf]
      %v380 = vld [vmem:[%s192 + $0x2c] sm:$0x1]
      %v381 = vld [vmem:[%s192 + $0x30] sm:$0xf]
      %v382 = vld [vmem:[%s192 + $0x34] sm:$0x1]
      %v383 = vld [vmem:[%s192 + $0x38] sm:$0xf]
      %v384 = vld [vmem:[%s192 + $0x3c] sm:$0x1]
      %vm385 = vsmask.f32 3328
      %vm386 = vsmask.f32 7440
      %vm387 = vmor %vm385, %vm386
      %v389 = vshrl.u32 %v369, 16
      %v391 = vrot.slane %v389, 4
      %v392 = vshll.u32 %v369, 16
      %v394 = vrot.slane %v392, 5
      %v395 = vor.u32 %v391, %v394
      %v396 = vrot.slane %v395, 4
      %v398 = vshll.u32 %v370, 16
      %v400 = vrot.slane %v398, 5
      %v401 = vsel %vm387, %v396, %v400
      %v403 = vshrl.u32 %v371, 16
      %v405 = vrot.slane %v403, 4
      %v406 = vshll.u32 %v371, 16
      %v408 = vrot.slane %v406, 5
      %v409 = vor.u32 %v405, %v408
      %v410 = vrot.slane %v409, 4
      %v412 = vshll.u32 %v372, 16
      %v414 = vrot.slane %v412, 5
      %v415 = vsel %vm387, %v410, %v414
      %v417 = vshrl.u32 %v373, 16
      %v419 = vrot.slane %v417, 4
      %v420 = vshll.u32 %v373, 16
      %v422 = vrot.slane %v420, 5
      %v423 = vor.u32 %v419, %v422
      %v424 = vrot.slane %v423, 4
      %v426 = vshll.u32 %v374, 16
      %v428 = vrot.slane %v426, 5
      %v429 = vsel %vm387, %v424, %v428
      %v431 = vshrl.u32 %v375, 16
      %v433 = vrot.slane %v431, 4
      %v434 = vshll.u32 %v375, 16
      %v436 = vrot.slane %v434, 5
      %v437 = vor.u32 %v433, %v436
      %v438 = vrot.slane %v437, 4
      %v440 = vshll.u32 %v376, 16
      %v442 = vrot.slane %v440, 5
      %v443 = vsel %vm387, %v438, %v442
      %v445 = vshrl.u32 %v377, 16
      %v447 = vrot.slane %v445, 4
      %v448 = vshll.u32 %v377, 16
      %v450 = vrot.slane %v448, 5
      %v451 = vor.u32 %v447, %v450
      %v452 = vrot.slane %v451, 4
      %v454 = vshll.u32 %v378, 16
      %v456 = vrot.slane %v454, 5
      %v457 = vsel %vm387, %v452, %v456
      %v459 = vshrl.u32 %v379, 16
      %v461 = vrot.slane %v459, 4
      %v462 = vshll.u32 %v379, 16
      %v464 = vrot.slane %v462, 5
      %v465 = vor.u32 %v461, %v464
      %v466 = vrot.slane %v465, 4
      %v468 = vshll.u32 %v380, 16
      %v470 = vrot.slane %v468, 5
      %v471 = vsel %vm387, %v466, %v470
      %v473 = vshrl.u32 %v381, 16
      %v475 = vrot.slane %v473, 4
      %v476 = vshll.u32 %v381, 16
      %v478 = vrot.slane %v476, 5
      %v479 = vor.u32 %v475, %v478
      %v480 = vrot.slane %v479, 4
      %v482 = vshll.u32 %v382, 16
      %v484 = vrot.slane %v482, 5
      %v485 = vsel %vm387, %v480, %v484
      %v487 = vshrl.u32 %v383, 16
      %v489 = vrot.slane %v487, 4
      %v490 = vshll.u32 %v383, 16
      %v492 = vrot.slane %v490, 5
      %v493 = vor.u32 %v489, %v492
      %v494 = vrot.slane %v493, 4
      %v496 = vshll.u32 %v384, 16
      %v498 = vrot.slane %v496, 5
      %v499 = vsel %vm387, %v494, %v498
      %s500 = scalar_lea.vmem %s1, 64
      %v501 = vld [vmem:[%s500] sm:$0xf]
      %v502 = vld [vmem:[%s500 + $0x4] sm:$0xf]
      %v503 = vld [vmem:[%s500 + $0x8] sm:$0xf]
      %v504 = vld [vmem:[%s500 + $0xc] sm:$0xf]
      %v505 = vld [vmem:[%s500 + $0x10] sm:$0xf]
      %v506 = vld [vmem:[%s500 + $0x14] sm:$0xf]
      %v507 = vld [vmem:[%s500 + $0x18] sm:$0xf]
      %v508 = vld [vmem:[%s500 + $0x1c] sm:$0xf]
      %v509 = vld [vmem:[%s500 + $0x20] sm:$0xf]
      %v510 = vld [vmem:[%s500 + $0x24] sm:$0xf]
      %v511 = vld [vmem:[%s500 + $0x28] sm:$0xf]
      %v512 = vld [vmem:[%s500 + $0x2c] sm:$0xf]
      %v513 = vld [vmem:[%s500 + $0x30] sm:$0xf]
      %v514 = vld [vmem:[%s500 + $0x34] sm:$0xf]
      %v515 = vld [vmem:[%s500 + $0x38] sm:$0xf]
      %v516 = vld [vmem:[%s500 + $0x3c] sm:$0xf]
      %v517 = vunpack.c.l.b16 %v401
      %v518 = vunpack.c.l.b16 %v415
      %v519 = vunpack.c.l.b16 %v429
      %v520 = vunpack.c.l.b16 %v443
      %v521 = vunpack.c.l.b16 %v457
      %v522 = vunpack.c.l.b16 %v471
      %v523 = vunpack.c.l.b16 %v485
      %v524 = vunpack.c.l.b16 %v499
      %v525 = vpack.c.b16 %v518, %v517
      %v526 = vpack.c.b16 %v520, %v519
      %v527 = vpack.c.b16 %v522, %v521
      %v528 = vpack.c.b16 %v524, %v523
      %v549 = vunpack.c.l.b16 %v501
      %v550 = vunpack.c.l.b16 %v502
      %v551 = vunpack.c.l.b16 %v503
      %v552 = vunpack.c.l.b16 %v504
      %v553 = vunpack.c.l.b16 %v505
      %v554 = vunpack.c.l.b16 %v506
      %v555 = vunpack.c.l.b16 %v507
      %v556 = vunpack.c.l.b16 %v508
      %v557 = vunpack.c.l.b16 %v509
      %v558 = vunpack.c.l.b16 %v510
      %v559 = vunpack.c.l.b16 %v511
      %v560 = vunpack.c.l.b16 %v512
      %v561 = vunpack.c.l.b16 %v513
      %v562 = vunpack.c.l.b16 %v514
      %v563 = vunpack.c.l.b16 %v515
      %v564 = vunpack.c.l.b16 %v516
      %v565 = vpack.c.b16 %v550, %v549
      %v566 = vpack.c.b16 %v552, %v551
      %v567 = vpack.c.b16 %v554, %v553
      %v568 = vpack.c.b16 %v556, %v555
      %v569 = vpack.c.b16 %v558, %v557
      %v570 = vpack.c.b16 %v560, %v559
      %v571 = vpack.c.b16 %v562, %v561
      %v572 = vpack.c.b16 %v564, %v563
      %581 = vmatprep.subr.bf16.mxu0 0
      %582 = vmatpush1.bf16.msra.mxu0 %v565
      %583 = vmatprep.subr.bf16.mxu0 0
      %584 = vmatpush1.bf16.msra.mxu0 %v566
      %585 = vmatprep.subr.bf16.mxu0 0
      %586 = vmatpush1.bf16.msra.mxu0 %v567
      %587 = vmatprep.subr.bf16.mxu0 0
      %588 = vmatpush1.bf16.msra.mxu0 %v568
      %589 = vmatprep.subr.bf16.mxu0 0
      %590 = vmatpush1.bf16.msra.mxu0 %v569
      %591 = vmatprep.subr.bf16.mxu0 0
      %592 = vmatpush1.bf16.msra.mxu0 %v570
      %593 = vmatprep.subr.bf16.mxu0 0
      %594 = vmatpush1.bf16.msra.mxu0 %v571
      %595 = vmatprep.subr.bf16.mxu0 0
      %596 = vmatpush1.bf16.msra.mxu0 %v572
      %597 = vmatprep.subr.bf16.mxu0 0
      %598 = vmatpush1.bf16.msra.mxu0 0
      %599 = vmatprep.subr.bf16.mxu0 0
      %600 = vmatpush1.bf16.msra.mxu0 0
      %601 = vmatprep.subr.bf16.mxu0 0
      %602 = vmatpush1.bf16.msra.mxu0 0
      %603 = vmatprep.subr.bf16.mxu0 0
      %604 = vmatpush1.bf16.msra.mxu0 0
      %605 = vmatprep.subr.bf16.mxu0 0
      %606 = vmatpush1.bf16.msra.mxu0 0
      %607 = vmatprep.subr.bf16.mxu0 0
      %608 = vmatpush1.bf16.msra.mxu0 0
      %609 = vmatprep.subr.bf16.mxu0 0
      %610 = vmatpush1.bf16.msra.mxu0 0
      %611 = vmatprep.subr.bf16.mxu0 0
      %612 = vmatpush1.bf16.msra.mxu0 0
      %613 = vmatprep.mubr.bf16.mxu0 0
      %614 = vmatmul.mubr.bf16.gmra.mrb[0].mxu0 %v525
      %v615 = vpop.f32.mrb[0].mxu0
      %v616 = vadd.f32 0.0, %v615
      %v617 = vpop.f32.mrb[0].mxu0
      %v618 = vpop.f32.mrb[0].mxu0
      %v619 = vadd.f32 0.0, %v618
      %v620 = vpop.f32.mrb[0].mxu0
      %621 = vmatprep.mubr.bf16.mxu0 0
      %622 = vmatmul.mubr.bf16.gmra.mrb[0].mxu0 %v526
      %v623 = vpop.f32.mrb[0].mxu0
      %v624 = vadd.f32 0.0, %v623
      %v625 = vpop.f32.mrb[0].mxu0
      %v626 = vpop.f32.mrb[0].mxu0
      %v627 = vadd.f32 0.0, %v626
      %v628 = vpop.f32.mrb[0].mxu0
      %629 = vmatprep.mubr.bf16.mxu0 0
      %630 = vmatmul.mubr.bf16.gmra.mrb[0].mxu0 %v527
      %v631 = vpop.f32.mrb[0].mxu0
      %v632 = vadd.f32 0.0, %v631
      %v633 = vpop.f32.mrb[0].mxu0
      %v634 = vpop.f32.mrb[0].mxu0
      %v635 = vadd.f32 0.0, %v634
      %v636 = vpop.f32.mrb[0].mxu0
      %637 = vmatprep.mubr.bf16.mxu0 0
      %638 = vmatmul.mubr.bf16.gmra.mrb[0].mxu0 %v528
      %v639 = vpop.f32.mrb[0].mxu0
      %v640 = vadd.f32 0.0, %v639
      %v641 = vpop.f32.mrb[0].mxu0
      %v642 = vpop.f32.mrb[0].mxu0
      %v643 = vadd.f32 0.0, %v642
      %v644 = vpop.f32.mrb[0].mxu0
      %645 = vdwg.mxu0
      %v646 = vld [vmem:[#allocation2] sm:$0xff]
      %v647 = vld [vmem:[#allocation2 + $0x8] sm:$0xff]
      %v648 = vld [vmem:[#allocation2 + $0x10] sm:$0xff]
      %v649 = vld [vmem:[#allocation2 + $0x18] sm:$0xff]
      %v650 = vld [vmem:[#allocation2 + $0x20] sm:$0xff]
      %v651 = vld [vmem:[#allocation2 + $0x28] sm:$0xff]
      %v652 = vld [vmem:[#allocation2 + $0x30] sm:$0xff]
      %v653 = vld [vmem:[#allocation2 + $0x38] sm:$0xff]
      %v654 = vadd.f32 %v646, %v616
      %v655 = vadd.f32 %v647, %v619
      %v656 = vadd.f32 %v648, %v624
      %v657 = vadd.f32 %v649, %v627
      %v658 = vadd.f32 %v650, %v632
      %v659 = vadd.f32 %v651, %v635
      %v660 = vadd.f32 %v652, %v640
      %v661 = vadd.f32 %v653, %v643
      %662 = vst.msk [vmem:[#allocation2] sm:$0xff] %vm360, %v654
      %663 = vst.msk [vmem:[#allocation2 + $0x8] sm:$0xff] %vm360, %v655
      %664 = vst.msk [vmem:[#allocation2 + $0x10] sm:$0xff] %vm360, %v656
      %665 = vst.msk [vmem:[#allocation2 + $0x18] sm:$0xff] %vm360, %v657
      %666 = vst.msk [vmem:[#allocation2 + $0x20] sm:$0xff] %vm360, %v658
      %667 = vst.msk [vmem:[#allocation2 + $0x28] sm:$0xff] %vm360, %v659
      %668 = vst.msk [vmem:[#allocation2 + $0x30] sm:$0xff] %vm360, %v660
      %669 = vst.msk [vmem:[#allocation2 + $0x38] sm:$0xff] %vm360, %v661
      %v670 = vld [vmem:[%s192] sm:$0xe]
      %v671 = vld [vmem:[%s192 + $0x4] sm:$0x1]
      %v672 = vld [vmem:[%s192 + $0x8] sm:$0xe]
      %v673 = vld [vmem:[%s192 + $0xc] sm:$0x1]
      %v674 = vld [vmem:[%s192 + $0x10] sm:$0xe]
      %v675 = vld [vmem:[%s192 + $0x14] sm:$0x1]
      %v676 = vld [vmem:[%s192 + $0x18] sm:$0xe]
      %v677 = vld [vmem:[%s192 + $0x1c] sm:$0x1]
      %v678 = vld [vmem:[%s192 + $0x20] sm:$0xe]
      %v679 = vld [vmem:[%s192 + $0x24] sm:$0x1]
      %v680 = vld [vmem:[%s192 + $0x28] sm:$0xe]
      %v681 = vld [vmem:[%s192 + $0x2c] sm:$0x1]
      %v682 = vld [vmem:[%s192 + $0x30] sm:$0xe]
      %v683 = vld [vmem:[%s192 + $0x34] sm:$0x1]
      %v684 = vld [vmem:[%s192 + $0x38] sm:$0xe]
      %v685 = vld [vmem:[%s192 + $0x3c] sm:$0x1]
      %vm702 = vcmask 1042432
      %vm703 = vcmask 1046532
      %vm704 = vmor %vm702, %vm703
      %v705 = vrot.slane %v670, 5
      %v706 = vrot.slane %v705, 4
      %v707 = vrot.slane %v671, 5
      %v708 = vsel %vm704, %v706, %v707
      %v709 = vrot.slane %v672, 5
      %v710 = vrot.slane %v709, 4
      %v711 = vrot.slane %v673, 5
      %v712 = vsel %vm704, %v710, %v711
      %v713 = vrot.slane %v674, 5
      %v714 = vrot.slane %v713, 4
      %v715 = vrot.slane %v675, 5
      %v716 = vsel %vm704, %v714, %v715
      %v717 = vrot.slane %v676, 5
      %v718 = vrot.slane %v717, 4
      %v719 = vrot.slane %v677, 5
      %v720 = vsel %vm704, %v718, %v719
      %v721 = vrot.slane %v678, 5
      %v722 = vrot.slane %v721, 4
      %v723 = vrot.slane %v679, 5
      %v724 = vsel %vm704, %v722, %v723
      %v725 = vrot.slane %v680, 5
      %v726 = vrot.slane %v725, 4
      %v727 = vrot.slane %v681, 5
      %v728 = vsel %vm704, %v726, %v727
      %v729 = vrot.slane %v682, 5
      %v730 = vrot.slane %v729, 4
      %v731 = vrot.slane %v683, 5
      %v732 = vsel %vm704, %v730, %v731
      %v733 = vrot.slane %v684, 5
      %v734 = vrot.slane %v733, 4
      %v735 = vrot.slane %v685, 5
      %v736 = vsel %vm704, %v734, %v735
      %s737 = scalar_lea.vmem %s1, 128
      %v738 = vld [vmem:[%s737] sm:$0xf]
      %v739 = vld [vmem:[%s737 + $0x4] sm:$0xf]
      %v740 = vld [vmem:[%s737 + $0x8] sm:$0xf]
      %v741 = vld [vmem:[%s737 + $0xc] sm:$0xf]
      %v742 = vld [vmem:[%s737 + $0x10] sm:$0xf]
      %v743 = vld [vmem:[%s737 + $0x14] sm:$0xf]
      %v744 = vld [vmem:[%s737 + $0x18] sm:$0xf]
      %v745 = vld [vmem:[%s737 + $0x1c] sm:$0xf]
      %v746 = vld [vmem:[%s737 + $0x20] sm:$0xf]
      %v747 = vld [vmem:[%s737 + $0x24] sm:$0xf]
      %v748 = vld [vmem:[%s737 + $0x28] sm:$0xf]
      %v749 = vld [vmem:[%s737 + $0x2c] sm:$0xf]
      %v750 = vld [vmem:[%s737 + $0x30] sm:$0xf]
      %v751 = vld [vmem:[%s737 + $0x34] sm:$0xf]
      %v752 = vld [vmem:[%s737 + $0x38] sm:$0xf]
      %v753 = vld [vmem:[%s737 + $0x3c] sm:$0xf]
      %v754 = vunpack.c.l.b16 %v708
      %v755 = vunpack.c.l.b16 %v712
      %v756 = vunpack.c.l.b16 %v716
      %v757 = vunpack.c.l.b16 %v720
      %v758 = vunpack.c.l.b16 %v724
      %v759 = vunpack.c.l.b16 %v728
      %v760 = vunpack.c.l.b16 %v732
      %v761 = vunpack.c.l.b16 %v736
      %v762 = vpack.c.b16 %v755, %v754
      %v763 = vpack.c.b16 %v757, %v756
      %v764 = vpack.c.b16 %v759, %v758
      %v765 = vpack.c.b16 %v761, %v760
      %v786 = vunpack.c.l.b16 %v738
      %v787 = vunpack.c.l.b16 %v739
      %v788 = vunpack.c.l.b16 %v740
      %v789 = vunpack.c.l.b16 %v741
      %v790 = vunpack.c.l.b16 %v742
      %v791 = vunpack.c.l.b16 %v743
      %v792 = vunpack.c.l.b16 %v744
      %v793 = vunpack.c.l.b16 %v745
      %v794 = vunpack.c.l.b16 %v746
      %v795 = vunpack.c.l.b16 %v747
      %v796 = vunpack.c.l.b16 %v748
      %v797 = vunpack.c.l.b16 %v749
      %v798 = vunpack.c.l.b16 %v750
      %v799 = vunpack.c.l.b16 %v751
      %v800 = vunpack.c.l.b16 %v752
      %v801 = vunpack.c.l.b16 %v753
      %v802 = vpack.c.b16 %v787, %v786
      %v803 = vpack.c.b16 %v789, %v788
      %v804 = vpack.c.b16 %v791, %v790
      %v805 = vpack.c.b16 %v793, %v792
      %v806 = vpack.c.b16 %v795, %v794
      %v807 = vpack.c.b16 %v797, %v796
      %v808 = vpack.c.b16 %v799, %v798
      %v809 = vpack.c.b16 %v801, %v800
      %818 = vmatprep.subr.bf16.mxu0 0
      %819 = vmatpush1.bf16.msra.mxu0 %v802
      %820 = vmatprep.subr.bf16.mxu0 0
      %821 = vmatpush1.bf16.msra.mxu0 %v803
      %822 = vmatprep.subr.bf16.mxu0 0
      %823 = vmatpush1.bf16.msra.mxu0 %v804
      %824 = vmatprep.subr.bf16.mxu0 0
      %825 = vmatpush1.bf16.msra.mxu0 %v805
      %826 = vmatprep.subr.bf16.mxu0 0
      %827 = vmatpush1.bf16.msra.mxu0 %v806
      %828 = vmatprep.subr.bf16.mxu0 0
      %829 = vmatpush1.bf16.msra.mxu0 %v807
      %830 = vmatprep.subr.bf16.mxu0 0
      %831 = vmatpush1.bf16.msra.mxu0 %v808
      %832 = vmatprep.subr.bf16.mxu0 0
      %833 = vmatpush1.bf16.msra.mxu0 %v809
      %834 = vmatprep.subr.bf16.mxu0 0
      %835 = vmatpush1.bf16.msra.mxu0 0
      %836 = vmatprep.subr.bf16.mxu0 0
      %837 = vmatpush1.bf16.msra.mxu0 0
      %838 = vmatprep.subr.bf16.mxu0 0
      %839 = vmatpush1.bf16.msra.mxu0 0
      %840 = vmatprep.subr.bf16.mxu0 0
      %841 = vmatpush1.bf16.msra.mxu0 0
      %842 = vmatprep.subr.bf16.mxu0 0
      %843 = vmatpush1.bf16.msra.mxu0 0
      %844 = vmatprep.subr.bf16.mxu0 0
      %845 = vmatpush1.bf16.msra.mxu0 0
      %846 = vmatprep.subr.bf16.mxu0 0
      %847 = vmatpush1.bf16.msra.mxu0 0
      %848 = vmatprep.subr.bf16.mxu0 0
      %849 = vmatpush1.bf16.msra.mxu0 0
      %850 = vmatprep.mubr.bf16.mxu0 0
      %851 = vmatmul.mubr.bf16.gmra.mrb[0].mxu0 %v762
      %v852 = vpop.f32.mrb[0].mxu0
      %v853 = vadd.f32 0.0, %v852
      %v854 = vpop.f32.mrb[0].mxu0
      %v855 = vpop.f32.mrb[0].mxu0
      %v856 = vadd.f32 0.0, %v855
      %v857 = vpop.f32.mrb[0].mxu0
      %858 = vmatprep.mubr.bf16.mxu0 0
      %859 = vmatmul.mubr.bf16.gmra.mrb[0].mxu0 %v763
      %v860 = vpop.f32.mrb[0].mxu0
      %v861 = vadd.f32 0.0, %v860
      %v862 = vpop.f32.mrb[0].mxu0
      %v863 = vpop.f32.mrb[0].mxu0
      %v864 = vadd.f32 0.0, %v863
      %v865 = vpop.f32.mrb[0].mxu0
      %866 = vmatprep.mubr.bf16.mxu0 0
      %867 = vmatmul.mubr.bf16.gmra.mrb[0].mxu0 %v764
      %v868 = vpop.f32.mrb[0].mxu0
      %v869 = vadd.f32 0.0, %v868
      %v870 = vpop.f32.mrb[0].mxu0
      %v871 = vpop.f32.mrb[0].mxu0
      %v872 = vadd.f32 0.0, %v871
      %v873 = vpop.f32.mrb[0].mxu0
      %874 = vmatprep.mubr.bf16.mxu0 0
      %875 = vmatmul.mubr.bf16.gmra.mrb[0].mxu0 %v765
      %v876 = vpop.f32.mrb[0].mxu0
      %v877 = vadd.f32 0.0, %v876
      %v878 = vpop.f32.mrb[0].mxu0
      %v879 = vpop.f32.mrb[0].mxu0
      %v880 = vadd.f32 0.0, %v879
      %v881 = vpop.f32.mrb[0].mxu0
      %882 = vdwg.mxu0
      %v883 = vld [vmem:[#allocation2] sm:$0xff]
      %v884 = vld [vmem:[#allocation2 + $0x8] sm:$0xff]
      %v885 = vld [vmem:[#allocation2 + $0x10] sm:$0xff]
      %v886 = vld [vmem:[#allocation2 + $0x18] sm:$0xff]
      %v887 = vld [vmem:[#allocation2 + $0x20] sm:$0xff]
      %v888 = vld [vmem:[#allocation2 + $0x28] sm:$0xff]
      %v889 = vld [vmem:[#allocation2 + $0x30] sm:$0xff]
      %v890 = vld [vmem:[#allocation2 + $0x38] sm:$0xff]
      %v891 = vadd.f32 %v883, %v853
      %v892 = vadd.f32 %v884, %v856
      %v893 = vadd.f32 %v885, %v861
      %v894 = vadd.f32 %v886, %v864
      %v895 = vadd.f32 %v887, %v869
      %v896 = vadd.f32 %v888, %v872
      %v897 = vadd.f32 %v889, %v877
      %v898 = vadd.f32 %v890, %v880
      %899 = vst.msk [vmem:[#allocation2] sm:$0xff] %vm360, %v891
      %900 = vst.msk [vmem:[#allocation2 + $0x8] sm:$0xff] %vm360, %v892
      %901 = vst.msk [vmem:[#allocation2 + $0x10] sm:$0xff] %vm360, %v893
      %902 = vst.msk [vmem:[#allocation2 + $0x18] sm:$0xff] %vm360, %v894
      %903 = vst.msk [vmem:[#allocation2 + $0x20] sm:$0xff] %vm360, %v895
      %904 = vst.msk [vmem:[#allocation2 + $0x28] sm:$0xff] %vm360, %v896
      %905 = vst.msk [vmem:[#allocation2 + $0x30] sm:$0xff] %vm360, %v897
      %906 = vst.msk [vmem:[#allocation2 + $0x38] sm:$0xff] %vm360, %v898
      %s907 = scalar_lea.vmem %s192, 8
      %v908 = vld [vmem:[%s907] sm:$0xf]
      %v909 = vld [vmem:[%s907 + $0x8] sm:$0xf]
      %v910 = vld [vmem:[%s907 + $0x10] sm:$0xf]
      %v911 = vld [vmem:[%s907 + $0x18] sm:$0xf]
      %v912 = vld [vmem:[%s907 + $0x20] sm:$0xf]
      %v913 = vld [vmem:[%s907 + $0x28] sm:$0xf]
      %v914 = vld [vmem:[%s907 + $0x30] sm:$0xf]
      %v915 = vld [vmem:[%s907 + $0x38] sm:$0xf]
      %s916 = scalar_lea.vmem %s1, 192
      %v917 = vld [vmem:[%s916] sm:$0xf]
      %v918 = vld [vmem:[%s916 + $0x4] sm:$0xf]
      %v919 = vld [vmem:[%s916 + $0x8] sm:$0xf]
      %v920 = vld [vmem:[%s916 + $0xc] sm:$0xf]
      %v921 = vld [vmem:[%s916 + $0x10] sm:$0xf]
      %v922 = vld [vmem:[%s916 + $0x14] sm:$0xf]
      %v923 = vld [vmem:[%s916 + $0x18] sm:$0xf]
      %v924 = vld [vmem:[%s916 + $0x1c] sm:$0xf]
      %v925 = vld [vmem:[%s916 + $0x20] sm:$0xf]
      %v926 = vld [vmem:[%s916 + $0x24] sm:$0xf]
      %v927 = vld [vmem:[%s916 + $0x28] sm:$0xf]
      %v928 = vld [vmem:[%s916 + $0x2c] sm:$0xf]
      %v929 = vld [vmem:[%s916 + $0x30] sm:$0xf]
      %v930 = vld [vmem:[%s916 + $0x34] sm:$0xf]
      %v931 = vld [vmem:[%s916 + $0x38] sm:$0xf]
      %v932 = vld [vmem:[%s916 + $0x3c] sm:$0xf]
      %v941 = vunpack.c.l.b16 %v908
      %v942 = vunpack.c.l.b16 %v909
      %v943 = vunpack.c.l.b16 %v910
      %v944 = vunpack.c.l.b16 %v911
      %v945 = vunpack.c.l.b16 %v912
      %v946 = vunpack.c.l.b16 %v913
      %v947 = vunpack.c.l.b16 %v914
      %v948 = vunpack.c.l.b16 %v915
      %v949 = vpack.c.b16 %v942, %v941
      %v950 = vpack.c.b16 %v944, %v943
      %v951 = vpack.c.b16 %v946, %v945
      %v952 = vpack.c.b16 %v948, %v947
      %v973 = vunpack.c.l.b16 %v917
      %v974 = vunpack.c.l.b16 %v918
      %v975 = vunpack.c.l.b16 %v919
      %v976 = vunpack.c.l.b16 %v920
      %v977 = vunpack.c.l.b16 %v921
      %v978 = vunpack.c.l.b16 %v922
      %v979 = vunpack.c.l.b16 %v923
      %v980 = vunpack.c.l.b16 %v924
      %v981 = vunpack.c.l.b16 %v925
      %v982 = vunpack.c.l.b16 %v926
      %v983 = vunpack.c.l.b16 %v927
      %v984 = vunpack.c.l.b16 %v928
      %v985 = vunpack.c.l.b16 %v929
      %v986 = vunpack.c.l.b16 %v930
      %v987 = vunpack.c.l.b16 %v931
      %v988 = vunpack.c.l.b16 %v932
      %v989 = vpack.c.b16 %v974, %v973
      %v990 = vpack.c.b16 %v976, %v975
      %v991 = vpack.c.b16 %v978, %v977
      %v992 = vpack.c.b16 %v980, %v979
      %v993 = vpack.c.b16 %v982, %v981
      %v994 = vpack.c.b16 %v984, %v983
      %v995 = vpack.c.b16 %v986, %v985
      %v996 = vpack.c.b16 %v988, %v987
      %1005 = vmatprep.subr.bf16.mxu0 0
      %1006 = vmatpush1.bf16.msra.mxu0 %v989
      %1007 = vmatprep.subr.bf16.mxu0 0
      %1008 = vmatpush1.bf16.msra.mxu0 %v990
      %1009 = vmatprep.subr.bf16.mxu0 0
      %1010 = vmatpush1.bf16.msra.mxu0 %v991
      %1011 = vmatprep.subr.bf16.mxu0 0
      %1012 = vmatpush1.bf16.msra.mxu0 %v992
      %1013 = vmatprep.subr.bf16.mxu0 0
      %1014 = vmatpush1.bf16.msra.mxu0 %v993
      %1015 = vmatprep.subr.bf16.mxu0 0
      %1016 = vmatpush1.bf16.msra.mxu0 %v994
      %1017 = vmatprep.subr.bf16.mxu0 0
      %1018 = vmatpush1.bf16.msra.mxu0 %v995
      %1019 = vmatprep.subr.bf16.mxu0 0
      %1020 = vmatpush1.bf16.msra.mxu0 %v996
      %1021 = vmatprep.subr.bf16.mxu0 0
      %1022 = vmatpush1.bf16.msra.mxu0 0
      %1023 = vmatprep.subr.bf16.mxu0 0
      %1024 = vmatpush1.bf16.msra.mxu0 0
      %1025 = vmatprep.subr.bf16.mxu0 0
      %1026 = vmatpush1.bf16.msra.mxu0 0
      %1027 = vmatprep.subr.bf16.mxu0 0
      %1028 = vmatpush1.bf16.msra.mxu0 0
      %1029 = vmatprep.subr.bf16.mxu0 0
      %1030 = vmatpush1.bf16.msra.mxu0 0
      %1031 = vmatprep.subr.bf16.mxu0 0
      %1032 = vmatpush1.bf16.msra.mxu0 0
      %1033 = vmatprep.subr.bf16.mxu0 0
      %1034 = vmatpush1.bf16.msra.mxu0 0
      %1035 = vmatprep.subr.bf16.mxu0 0
      %1036 = vmatpush1.bf16.msra.mxu0 0
      %1037 = vmatprep.mubr.bf16.mxu0 0
      %1038 = vmatmul.mubr.bf16.gmra.mrb[0].mxu0 %v949
      %v1039 = vpop.f32.mrb[0].mxu0
      %v1040 = vadd.f32 0.0, %v1039
      %v1041 = vpop.f32.mrb[0].mxu0
      %v1042 = vpop.f32.mrb[0].mxu0
      %v1043 = vadd.f32 0.0, %v1042
      %v1044 = vpop.f32.mrb[0].mxu0
      %1045 = vmatprep.mubr.bf16.mxu0 0
      %1046 = vmatmul.mubr.bf16.gmra.mrb[0].mxu0 %v950
      %v1047 = vpop.f32.mrb[0].mxu0
      %v1048 = vadd.f32 0.0, %v1047
      %v1049 = vpop.f32.mrb[0].mxu0
      %v1050 = vpop.f32.mrb[0].mxu0
      %v1051 = vadd.f32 0.0, %v1050
      %v1052 = vpop.f32.mrb[0].mxu0
      %1053 = vmatprep.mubr.bf16.mxu0 0
      %1054 = vmatmul.mubr.bf16.gmra.mrb[0].mxu0 %v951
      %v1055 = vpop.f32.mrb[0].mxu0
      %v1056 = vadd.f32 0.0, %v1055
      %v1057 = vpop.f32.mrb[0].mxu0
      %v1058 = vpop.f32.mrb[0].mxu0
      %v1059 = vadd.f32 0.0, %v1058
      %v1060 = vpop.f32.mrb[0].mxu0
      %1061 = vmatprep.mubr.bf16.mxu0 0
      %1062 = vmatmul.mubr.bf16.gmra.mrb[0].mxu0 %v952
      %v1063 = vpop.f32.mrb[0].mxu0
      %v1064 = vadd.f32 0.0, %v1063
      %v1065 = vpop.f32.mrb[0].mxu0
      %v1066 = vpop.f32.mrb[0].mxu0
      %v1067 = vadd.f32 0.0, %v1066
      %v1068 = vpop.f32.mrb[0].mxu0
      %1069 = vdwg.mxu0
      %v1070 = vld [vmem:[#allocation2] sm:$0xff]
      %v1071 = vld [vmem:[#allocation2 + $0x8] sm:$0xff]
      %v1072 = vld [vmem:[#allocation2 + $0x10] sm:$0xff]
      %v1073 = vld [vmem:[#allocation2 + $0x18] sm:$0xff]
      %v1074 = vld [vmem:[#allocation2 + $0x20] sm:$0xff]
      %v1075 = vld [vmem:[#allocation2 + $0x28] sm:$0xff]
      %v1076 = vld [vmem:[#allocation2 + $0x30] sm:$0xff]
      %v1077 = vld [vmem:[#allocation2 + $0x38] sm:$0xff]
      %v1078 = vadd.f32 %v1070, %v1040
      %v1079 = vadd.f32 %v1071, %v1043
      %v1080 = vadd.f32 %v1072, %v1048
      %v1081 = vadd.f32 %v1073, %v1051
      %v1082 = vadd.f32 %v1074, %v1056
      %v1083 = vadd.f32 %v1075, %v1059
      %v1084 = vadd.f32 %v1076, %v1064
      %v1085 = vadd.f32 %v1077, %v1067
      %1086 = vst.msk [vmem:[#allocation2] sm:$0xff] %vm360, %v1078
      %1087 = vst.msk [vmem:[#allocation2 + $0x8] sm:$0xff] %vm360, %v1079
      %1088 = vst.msk [vmem:[#allocation2 + $0x10] sm:$0xff] %vm360, %v1080
      %1089 = vst.msk [vmem:[#allocation2 + $0x18] sm:$0xff] %vm360, %v1081
      %1090 = vst.msk [vmem:[#allocation2 + $0x20] sm:$0xff] %vm360, %v1082
      %1091 = vst.msk [vmem:[#allocation2 + $0x28] sm:$0xff] %vm360, %v1083
      %1092 = vst.msk [vmem:[#allocation2 + $0x30] sm:$0xff] %vm360, %v1084
      %1093 = vst.msk [vmem:[#allocation2 + $0x38] sm:$0xff] %vm360, %v1085
      %v1094 = vld [vmem:[%s907] sm:$0xf]
      %v1095 = vld [vmem:[%s907 + $0x4] sm:$0x1]
      %v1096 = vld [vmem:[%s907 + $0x8] sm:$0xf]
      %v1097 = vld [vmem:[%s907 + $0xc] sm:$0x1]
      %v1098 = vld [vmem:[%s907 + $0x10] sm:$0xf]
      %v1099 = vld [vmem:[%s907 + $0x14] sm:$0x1]
      %v1100 = vld [vmem:[%s907 + $0x18] sm:$0xf]
      %v1101 = vld [vmem:[%s907 + $0x1c] sm:$0x1]
      %v1102 = vld [vmem:[%s907 + $0x20] sm:$0xf]
      %v1103 = vld [vmem:[%s907 + $0x24] sm:$0x1]
      %v1104 = vld [vmem:[%s907 + $0x28] sm:$0xf]
      %v1105 = vld [vmem:[%s907 + $0x2c] sm:$0x1]
      %v1106 = vld [vmem:[%s907 + $0x30] sm:$0xf]
      %v1107 = vld [vmem:[%s907 + $0x34] sm:$0x1]
      %v1108 = vld [vmem:[%s907 + $0x38] sm:$0xf]
      %v1109 = vld [vmem:[%s907 + $0x3c] sm:$0x1]
      %v1111 = vshrl.u32 %v1094, 16
      %v1113 = vrot.slane %v1111, 4
      %v1114 = vshll.u32 %v1094, 16
      %v1116 = vrot.slane %v1114, 5
      %v1117 = vor.u32 %v1113, %v1116
      %v1118 = vrot.slane %v1117, 4
      %v1120 = vshll.u32 %v1095, 16
      %v1122 = vrot.slane %v1120, 5
      %v1123 = vsel %vm387, %v1118, %v1122
      %v1125 = vshrl.u32 %v1096, 16
      %v1127 = vrot.slane %v1125, 4
      %v1128 = vshll.u32 %v1096, 16
      %v1130 = vrot.slane %v1128, 5
      %v1131 = vor.u32 %v1127, %v1130
      %v1132 = vrot.slane %v1131, 4
      %v1134 = vshll.u32 %v1097, 16
      %v1136 = vrot.slane %v1134, 5
      %v1137 = vsel %vm387, %v1132, %v1136
      %v1139 = vshrl.u32 %v1098, 16
      %v1141 = vrot.slane %v1139, 4
      %v1142 = vshll.u32 %v1098, 16
      %v1144 = vrot.slane %v1142, 5
      %v1145 = vor.u32 %v1141, %v1144
      %v1146 = vrot.slane %v1145, 4
      %v1148 = vshll.u32 %v1099, 16
      %v1150 = vrot.slane %v1148, 5
      %v1151 = vsel %vm387, %v1146, %v1150
      %v1153 = vshrl.u32 %v1100, 16
      %v1155 = vrot.slane %v1153, 4
      %v1156 = vshll.u32 %v1100, 16
      %v1158 = vrot.slane %v1156, 5
      %v1159 = vor.u32 %v1155, %v1158
      %v1160 = vrot.slane %v1159, 4
      %v1162 = vshll.u32 %v1101, 16
      %v1164 = vrot.slane %v1162, 5
      %v1165 = vsel %vm387, %v1160, %v1164
      %v1167 = vshrl.u32 %v1102, 16
      %v1169 = vrot.slane %v1167, 4
      %v1170 = vshll.u32 %v1102, 16
      %v1172 = vrot.slane %v1170, 5
      %v1173 = vor.u32 %v1169, %v1172
      %v1174 = vrot.slane %v1173, 4
      %v1176 = vshll.u32 %v1103, 16
      %v1178 = vrot.slane %v1176, 5
      %v1179 = vsel %vm387, %v1174, %v1178
      %v1181 = vshrl.u32 %v1104, 16
      %v1183 = vrot.slane %v1181, 4
      %v1184 = vshll.u32 %v1104, 16
      %v1186 = vrot.slane %v1184, 5
      %v1187 = vor.u32 %v1183, %v1186
      %v1188 = vrot.slane %v1187, 4
      %v1190 = vshll.u32 %v1105, 16
      %v1192 = vrot.slane %v1190, 5
      %v1193 = vsel %vm387, %v1188, %v1192
      %v1195 = vshrl.u32 %v1106, 16
      %v1197 = vrot.slane %v1195, 4
      %v1198 = vshll.u32 %v1106, 16
      %v1200 = vrot.slane %v1198, 5
      %v1201 = vor.u32 %v1197, %v1200
      %v1202 = vrot.slane %v1201, 4
      %v1204 = vshll.u32 %v1107, 16
      %v1206 = vrot.slane %v1204, 5
      %v1207 = vsel %vm387, %v1202, %v1206
      %v1209 = vshrl.u32 %v1108, 16
      %v1211 = vrot.slane %v1209, 4
      %v1212 = vshll.u32 %v1108, 16
      %v1214 = vrot.slane %v1212, 5
      %v1215 = vor.u32 %v1211, %v1214
      %v1216 = vrot.slane %v1215, 4
      %v1218 = vshll.u32 %v1109, 16
      %v1220 = vrot.slane %v1218, 5
      %v1221 = vsel %vm387, %v1216, %v1220
      %s1222 = scalar_lea.vmem %s1, 256
      %v1223 = vld [vmem:[%s1222] sm:$0xf]
      %v1224 = vld [vmem:[%s1222 + $0x4] sm:$0xf]
      %v1225 = vld [vmem:[%s1222 + $0x8] sm:$0xf]
      %v1226 = vld [vmem:[%s1222 + $0xc] sm:$0xf]
      %v1227 = vld [vmem:[%s1222 + $0x10] sm:$0xf]
      %v1228 = vld [vmem:[%s1222 + $0x14] sm:$0xf]
      %v1229 = vld [vmem:[%s1222 + $0x18] sm:$0xf]
      %v1230 = vld [vmem:[%s1222 + $0x1c] sm:$0xf]
      %v1231 = vld [vmem:[%s1222 + $0x20] sm:$0xf]
      %v1232 = vld [vmem:[%s1222 + $0x24] sm:$0xf]
      %v1233 = vld [vmem:[%s1222 + $0x28] sm:$0xf]
      %v1234 = vld [vmem:[%s1222 + $0x2c] sm:$0xf]
      %v1235 = vld [vmem:[%s1222 + $0x30] sm:$0xf]
      %v1236 = vld [vmem:[%s1222 + $0x34] sm:$0xf]
      %v1237 = vld [vmem:[%s1222 + $0x38] sm:$0xf]
      %v1238 = vld [vmem:[%s1222 + $0x3c] sm:$0xf]
      %v1239 = vunpack.c.l.b16 %v1123
      %v1240 = vunpack.c.l.b16 %v1137
      %v1241 = vunpack.c.l.b16 %v1151
      %v1242 = vunpack.c.l.b16 %v1165
      %v1243 = vunpack.c.l.b16 %v1179
      %v1244 = vunpack.c.l.b16 %v1193
      %v1245 = vunpack.c.l.b16 %v1207
      %v1246 = vunpack.c.l.b16 %v1221
      %v1247 = vpack.c.b16 %v1240, %v1239
      %v1248 = vpack.c.b16 %v1242, %v1241
      %v1249 = vpack.c.b16 %v1244, %v1243
      %v1250 = vpack.c.b16 %v1246, %v1245
      %v1271 = vunpack.c.l.b16 %v1223
      %v1272 = vunpack.c.l.b16 %v1224
      %v1273 = vunpack.c.l.b16 %v1225
      %v1274 = vunpack.c.l.b16 %v1226
      %v1275 = vunpack.c.l.b16 %v1227
      %v1276 = vunpack.c.l.b16 %v1228
      %v1277 = vunpack.c.l.b16 %v1229
      %v1278 = vunpack.c.l.b16 %v1230
      %v1279 = vunpack.c.l.b16 %v1231
      %v1280 = vunpack.c.l.b16 %v1232
      %v1281 = vunpack.c.l.b16 %v1233
      %v1282 = vunpack.c.l.b16 %v1234
      %v1283 = vunpack.c.l.b16 %v1235
      %v1284 = vunpack.c.l.b16 %v1236
      %v1285 = vunpack.c.l.b16 %v1237
      %v1286 = vunpack.c.l.b16 %v1238
      %v1287 = vpack.c.b16 %v1272, %v1271
      %v1288 = vpack.c.b16 %v1274, %v1273
      %v1289 = vpack.c.b16 %v1276, %v1275
      %v1290 = vpack.c.b16 %v1278, %v1277
      %v1291 = vpack.c.b16 %v1280, %v1279
      %v1292 = vpack.c.b16 %v1282, %v1281
      %v1293 = vpack.c.b16 %v1284, %v1283
      %v1294 = vpack.c.b16 %v1286, %v1285
      %1303 = vmatprep.subr.bf16.mxu0 0
      %1304 = vmatpush1.bf16.msra.mxu0 %v1287
      %1305 = vmatprep.subr.bf16.mxu0 0
      %1306 = vmatpush1.bf16.msra.mxu0 %v1288
      %1307 = vmatprep.subr.bf16.mxu0 0
      %1308 = vmatpush1.bf16.msra.mxu0 %v1289
      %1309 = vmatprep.subr.bf16.mxu0 0
      %1310 = vmatpush1.bf16.msra.mxu0 %v1290
      %1311 = vmatprep.subr.bf16.mxu0 0
      %1312 = vmatpush1.bf16.msra.mxu0 %v1291
      %1313 = vmatprep.subr.bf16.mxu0 0
      %1314 = vmatpush1.bf16.msra.mxu0 %v1292
      %1315 = vmatprep.subr.bf16.mxu0 0
      %1316 = vmatpush1.bf16.msra.mxu0 %v1293
      %1317 = vmatprep.subr.bf16.mxu0 0
      %1318 = vmatpush1.bf16.msra.mxu0 %v1294
      %1319 = vmatprep.subr.bf16.mxu0 0
      %1320 = vmatpush1.bf16.msra.mxu0 0
      %1321 = vmatprep.subr.bf16.mxu0 0
      %1322 = vmatpush1.bf16.msra.mxu0 0
      %1323 = vmatprep.subr.bf16.mxu0 0
      %1324 = vmatpush1.bf16.msra.mxu0 0
      %1325 = vmatprep.subr.bf16.mxu0 0
      %1326 = vmatpush1.bf16.msra.mxu0 0
      %1327 = vmatprep.subr.bf16.mxu0 0
      %1328 = vmatpush1.bf16.msra.mxu0 0
      %1329 = vmatprep.subr.bf16.mxu0 0
      %1330 = vmatpush1.bf16.msra.mxu0 0
      %1331 = vmatprep.subr.bf16.mxu0 0
      %1332 = vmatpush1.bf16.msra.mxu0 0
      %1333 = vmatprep.subr.bf16.mxu0 0
      %1334 = vmatpush1.bf16.msra.mxu0 0
      %1335 = vmatprep.mubr.bf16.mxu0 0
      %1336 = vmatmul.mubr.bf16.gmra.mrb[0].mxu0 %v1247
      %v1337 = vpop.f32.mrb[0].mxu0
      %v1338 = vadd.f32 0.0, %v1337
      %v1339 = vpop.f32.mrb[0].mxu0
      %v1340 = vpop.f32.mrb[0].mxu0
      %v1341 = vadd.f32 0.0, %v1340
      %v1342 = vpop.f32.mrb[0].mxu0
      %1343 = vmatprep.mubr.bf16.mxu0 0
      %1344 = vmatmul.mubr.bf16.gmra.mrb[0].mxu0 %v1248
      %v1345 = vpop.f32.mrb[0].mxu0
      %v1346 = vadd.f32 0.0, %v1345
      %v1347 = vpop.f32.mrb[0].mxu0
      %v1348 = vpop.f32.mrb[0].mxu0
      %v1349 = vadd.f32 0.0, %v1348
      %v1350 = vpop.f32.mrb[0].mxu0
      %1351 = vmatprep.mubr.bf16.mxu0 0
      %1352 = vmatmul.mubr.bf16.gmra.mrb[0].mxu0 %v1249
      %v1353 = vpop.f32.mrb[0].mxu0
      %v1354 = vadd.f32 0.0, %v1353
      %v1355 = vpop.f32.mrb[0].mxu0
      %v1356 = vpop.f32.mrb[0].mxu0
      %v1357 = vadd.f32 0.0, %v1356
      %v1358 = vpop.f32.mrb[0].mxu0
      %1359 = vmatprep.mubr.bf16.mxu0 0
      %1360 = vmatmul.mubr.bf16.gmra.mrb[0].mxu0 %v1250
      %v1361 = vpop.f32.mrb[0].mxu0
      %v1362 = vadd.f32 0.0, %v1361
      %v1363 = vpop.f32.mrb[0].mxu0
      %v1364 = vpop.f32.mrb[0].mxu0
      %v1365 = vadd.f32 0.0, %v1364
      %v1366 = vpop.f32.mrb[0].mxu0
      %1367 = vdwg.mxu0
      %v1368 = vld [vmem:[#allocation2] sm:$0xff]
      %v1369 = vld [vmem:[#allocation2 + $0x8] sm:$0xff]
      %v1370 = vld [vmem:[#allocation2 + $0x10] sm:$0xff]
      %v1371 = vld [vmem:[#allocation2 + $0x18] sm:$0xff]
      %v1372 = vld [vmem:[#allocation2 + $0x20] sm:$0xff]
      %v1373 = vld [vmem:[#allocation2 + $0x28] sm:$0xff]
      %v1374 = vld [vmem:[#allocation2 + $0x30] sm:$0xff]
      %v1375 = vld [vmem:[#allocation2 + $0x38] sm:$0xff]
      %v1376 = vadd.f32 %v1368, %v1338
      %v1377 = vadd.f32 %v1369, %v1341
      %v1378 = vadd.f32 %v1370, %v1346
      %v1379 = vadd.f32 %v1371, %v1349
      %v1380 = vadd.f32 %v1372, %v1354
      %v1381 = vadd.f32 %v1373, %v1357
      %v1382 = vadd.f32 %v1374, %v1362
      %v1383 = vadd.f32 %v1375, %v1365
      %1384 = vst.msk [vmem:[#allocation2] sm:$0xff] %vm360, %v1376
      %1385 = vst.msk [vmem:[#allocation2 + $0x8] sm:$0xff] %vm360, %v1377
      %1386 = vst.msk [vmem:[#allocation2 + $0x10] sm:$0xff] %vm360, %v1378
      %1387 = vst.msk [vmem:[#allocation2 + $0x18] sm:$0xff] %vm360, %v1379
      %1388 = vst.msk [vmem:[#allocation2 + $0x20] sm:$0xff] %vm360, %v1380
      %1389 = vst.msk [vmem:[#allocation2 + $0x28] sm:$0xff] %vm360, %v1381
      %1390 = vst.msk [vmem:[#allocation2 + $0x30] sm:$0xff] %vm360, %v1382
      %1391 = vst.msk [vmem:[#allocation2 + $0x38] sm:$0xff] %vm360, %v1383
      %v1392 = vld [vmem:[%s907] sm:$0xe]
      %v1393 = vld [vmem:[%s907 + $0x4] sm:$0x1]
      %v1394 = vld [vmem:[%s907 + $0x8] sm:$0xe]
      %v1395 = vld [vmem:[%s907 + $0xc] sm:$0x1]
      %v1396 = vld [vmem:[%s907 + $0x10] sm:$0xe]
      %v1397 = vld [vmem:[%s907 + $0x14] sm:$0x1]
      %v1398 = vld [vmem:[%s907 + $0x18] sm:$0xe]
      %v1399 = vld [vmem:[%s907 + $0x1c] sm:$0x1]
      %v1400 = vld [vmem:[%s907 + $0x20] sm:$0xe]
      %v1401 = vld [vmem:[%s907 + $0x24] sm:$0x1]
      %v1402 = vld [vmem:[%s907 + $0x28] sm:$0xe]
      %v1403 = vld [vmem:[%s907 + $0x2c] sm:$0x1]
      %v1404 = vld [vmem:[%s907 + $0x30] sm:$0xe]
      %v1405 = vld [vmem:[%s907 + $0x34] sm:$0x1]
      %v1406 = vld [vmem:[%s907 + $0x38] sm:$0xe]
      %v1407 = vld [vmem:[%s907 + $0x3c] sm:$0x1]
      %v1424 = vrot.slane %v1392, 5
      %v1425 = vrot.slane %v1424, 4
      %v1426 = vrot.slane %v1393, 5
      %v1427 = vsel %vm704, %v1425, %v1426
      %v1428 = vrot.slane %v1394, 5
      %v1429 = vrot.slane %v1428, 4
      %v1430 = vrot.slane %v1395, 5
      %v1431 = vsel %vm704, %v1429, %v1430
      %v1432 = vrot.slane %v1396, 5
      %v1433 = vrot.slane %v1432, 4
      %v1434 = vrot.slane %v1397, 5
      %v1435 = vsel %vm704, %v1433, %v1434
      %v1436 = vrot.slane %v1398, 5
      %v1437 = vrot.slane %v1436, 4
      %v1438 = vrot.slane %v1399, 5
      %v1439 = vsel %vm704, %v1437, %v1438
      %v1440 = vrot.slane %v1400, 5
      %v1441 = vrot.slane %v1440, 4
      %v1442 = vrot.slane %v1401, 5
      %v1443 = vsel %vm704, %v1441, %v1442
      %v1444 = vrot.slane %v1402, 5
      %v1445 = vrot.slane %v1444, 4
      %v1446 = vrot.slane %v1403, 5
      %v1447 = vsel %vm704, %v1445, %v1446
      %v1448 = vrot.slane %v1404, 5
      %v1449 = vrot.slane %v1448, 4
      %v1450 = vrot.slane %v1405, 5
      %v1451 = vsel %vm704, %v1449, %v1450
      %v1452 = vrot.slane %v1406, 5
      %v1453 = vrot.slane %v1452, 4
      %v1454 = vrot.slane %v1407, 5
      %v1455 = vsel %vm704, %v1453, %v1454
      %s1456 = scalar_lea.vmem %s1, 320
      %v1457 = vld [vmem:[%s1456] sm:$0xf]
      %v1458 = vld [vmem:[%s1456 + $0x4] sm:$0xf]
      %v1459 = vld [vmem:[%s1456 + $0x8] sm:$0xf]
      %v1460 = vld [vmem:[%s1456 + $0xc] sm:$0xf]
      %v1461 = vld [vmem:[%s1456 + $0x10] sm:$0xf]
      %v1462 = vld [vmem:[%s1456 + $0x14] sm:$0xf]
      %v1463 = vld [vmem:[%s1456 + $0x18] sm:$0xf]
      %v1464 = vld [vmem:[%s1456 + $0x1c] sm:$0xf]
      %v1465 = vld [vmem:[%s1456 + $0x20] sm:$0xf]
      %v1466 = vld [vmem:[%s1456 + $0x24] sm:$0xf]
      %v1467 = vld [vmem:[%s1456 + $0x28] sm:$0xf]
      %v1468 = vld [vmem:[%s1456 + $0x2c] sm:$0xf]
      %v1469 = vld [vmem:[%s1456 + $0x30] sm:$0xf]
      %v1470 = vld [vmem:[%s1456 + $0x34] sm:$0xf]
      %v1471 = vld [vmem:[%s1456 + $0x38] sm:$0xf]
      %v1472 = vld [vmem:[%s1456 + $0x3c] sm:$0xf]
      %v1473 = vunpack.c.l.b16 %v1427
      %v1474 = vunpack.c.l.b16 %v1431
      %v1475 = vunpack.c.l.b16 %v1435
      %v1476 = vunpack.c.l.b16 %v1439
      %v1477 = vunpack.c.l.b16 %v1443
      %v1478 = vunpack.c.l.b16 %v1447
      %v1479 = vunpack.c.l.b16 %v1451
      %v1480 = vunpack.c.l.b16 %v1455
      %v1481 = vpack.c.b16 %v1474, %v1473
      %v1482 = vpack.c.b16 %v1476, %v1475
      %v1483 = vpack.c.b16 %v1478, %v1477
      %v1484 = vpack.c.b16 %v1480, %v1479
      %v1505 = vunpack.c.l.b16 %v1457
      %v1506 = vunpack.c.l.b16 %v1458
      %v1507 = vunpack.c.l.b16 %v1459
      %v1508 = vunpack.c.l.b16 %v1460
      %v1509 = vunpack.c.l.b16 %v1461
      %v1510 = vunpack.c.l.b16 %v1462
      %v1511 = vunpack.c.l.b16 %v1463
      %v1512 = vunpack.c.l.b16 %v1464
      %v1513 = vunpack.c.l.b16 %v1465
      %v1514 = vunpack.c.l.b16 %v1466
      %v1515 = vunpack.c.l.b16 %v1467
      %v1516 = vunpack.c.l.b16 %v1468
      %v1517 = vunpack.c.l.b16 %v1469
      %v1518 = vunpack.c.l.b16 %v1470
      %v1519 = vunpack.c.l.b16 %v1471
      %v1520 = vunpack.c.l.b16 %v1472
      %v1521 = vpack.c.b16 %v1506, %v1505
      %v1522 = vpack.c.b16 %v1508, %v1507
      %v1523 = vpack.c.b16 %v1510, %v1509
      %v1524 = vpack.c.b16 %v1512, %v1511
      %v1525 = vpack.c.b16 %v1514, %v1513
      %v1526 = vpack.c.b16 %v1516, %v1515
      %v1527 = vpack.c.b16 %v1518, %v1517
      %v1528 = vpack.c.b16 %v1520, %v1519
      %1537 = vmatprep.subr.bf16.mxu0 0
      %1538 = vmatpush1.bf16.msra.mxu0 %v1521
      %1539 = vmatprep.subr.bf16.mxu0 0
      %1540 = vmatpush1.bf16.msra.mxu0 %v1522
      %1541 = vmatprep.subr.bf16.mxu0 0
      %1542 = vmatpush1.bf16.msra.mxu0 %v1523
      %1543 = vmatprep.subr.bf16.mxu0 0
      %1544 = vmatpush1.bf16.msra.mxu0 %v1524
      %1545 = vmatprep.subr.bf16.mxu0 0
      %1546 = vmatpush1.bf16.msra.mxu0 %v1525
      %1547 = vmatprep.subr.bf16.mxu0 0
      %1548 = vmatpush1.bf16.msra.mxu0 %v1526
      %1549 = vmatprep.subr.bf16.mxu0 0
      %1550 = vmatpush1.bf16.msra.mxu0 %v1527
      %1551 = vmatprep.subr.bf16.mxu0 0
      %1552 = vmatpush1.bf16.msra.mxu0 %v1528
      %1553 = vmatprep.subr.bf16.mxu0 0
      %1554 = vmatpush1.bf16.msra.mxu0 0
      %1555 = vmatprep.subr.bf16.mxu0 0
      %1556 = vmatpush1.bf16.msra.mxu0 0
      %1557 = vmatprep.subr.bf16.mxu0 0
      %1558 = vmatpush1.bf16.msra.mxu0 0
      %1559 = vmatprep.subr.bf16.mxu0 0
      %1560 = vmatpush1.bf16.msra.mxu0 0
      %1561 = vmatprep.subr.bf16.mxu0 0
      %1562 = vmatpush1.bf16.msra.mxu0 0
      %1563 = vmatprep.subr.bf16.mxu0 0
      %1564 = vmatpush1.bf16.msra.mxu0 0
      %1565 = vmatprep.subr.bf16.mxu0 0
      %1566 = vmatpush1.bf16.msra.mxu0 0
      %1567 = vmatprep.subr.bf16.mxu0 0
      %1568 = vmatpush1.bf16.msra.mxu0 0
      %1569 = vmatprep.mubr.bf16.mxu0 0
      %1570 = vmatmul.mubr.bf16.gmra.mrb[0].mxu0 %v1481
      %v1571 = vpop.f32.mrb[0].mxu0
      %v1572 = vadd.f32 0.0, %v1571
      %v1573 = vpop.f32.mrb[0].mxu0
      %v1574 = vpop.f32.mrb[0].mxu0
      %v1575 = vadd.f32 0.0, %v1574
      %v1576 = vpop.f32.mrb[0].mxu0
      %1577 = vmatprep.mubr.bf16.mxu0 0
      %1578 = vmatmul.mubr.bf16.gmra.mrb[0].mxu0 %v1482
      %v1579 = vpop.f32.mrb[0].mxu0
      %v1580 = vadd.f32 0.0, %v1579
      %v1581 = vpop.f32.mrb[0].mxu0
      %v1582 = vpop.f32.mrb[0].mxu0
      %v1583 = vadd.f32 0.0, %v1582
      %v1584 = vpop.f32.mrb[0].mxu0
      %1585 = vmatprep.mubr.bf16.mxu0 0
      %1586 = vmatmul.mubr.bf16.gmra.mrb[0].mxu0 %v1483
      %v1587 = vpop.f32.mrb[0].mxu0
      %v1588 = vadd.f32 0.0, %v1587
      %v1589 = vpop.f32.mrb[0].mxu0
      %v1590 = vpop.f32.mrb[0].mxu0
      %v1591 = vadd.f32 0.0, %v1590
      %v1592 = vpop.f32.mrb[0].mxu0
      %1593 = vmatprep.mubr.bf16.mxu0 0
      %1594 = vmatmul.mubr.bf16.gmra.mrb[0].mxu0 %v1484
      %v1595 = vpop.f32.mrb[0].mxu0
      %v1596 = vadd.f32 0.0, %v1595
      %v1597 = vpop.f32.mrb[0].mxu0
      %v1598 = vpop.f32.mrb[0].mxu0
      %v1599 = vadd.f32 0.0, %v1598
      %v1600 = vpop.f32.mrb[0].mxu0
      %1601 = vdwg.mxu0
      %v1602 = vld [vmem:[#allocation2] sm:$0xff]
      %v1603 = vld [vmem:[#allocation2 + $0x8] sm:$0xff]
      %v1604 = vld [vmem:[#allocation2 + $0x10] sm:$0xff]
      %v1605 = vld [vmem:[#allocation2 + $0x18] sm:$0xff]
      %v1606 = vld [vmem:[#allocation2 + $0x20] sm:$0xff]
      %v1607 = vld [vmem:[#allocation2 + $0x28] sm:$0xff]
      %v1608 = vld [vmem:[#allocation2 + $0x30] sm:$0xff]
      %v1609 = vld [vmem:[#allocation2 + $0x38] sm:$0xff]
      %v1610 = vadd.f32 %v1602, %v1572
      %v1611 = vadd.f32 %v1603, %v1575
      %v1612 = vadd.f32 %v1604, %v1580
      %v1613 = vadd.f32 %v1605, %v1583
      %v1614 = vadd.f32 %v1606, %v1588
      %v1615 = vadd.f32 %v1607, %v1591
      %v1616 = vadd.f32 %v1608, %v1596
      %v1617 = vadd.f32 %v1609, %v1599
      %1618 = vst.msk [vmem:[#allocation2] sm:$0xff] %vm360, %v1610
      %1619 = vst.msk [vmem:[#allocation2 + $0x8] sm:$0xff] %vm360, %v1611
      %1620 = vst.msk [vmem:[#allocation2 + $0x10] sm:$0xff] %vm360, %v1612
      %1621 = vst.msk [vmem:[#allocation2 + $0x18] sm:$0xff] %vm360, %v1613
      %1622 = vst.msk [vmem:[#allocation2 + $0x20] sm:$0xff] %vm360, %v1614
      %1623 = vst.msk [vmem:[#allocation2 + $0x28] sm:$0xff] %vm360, %v1615
      %1624 = vst.msk [vmem:[#allocation2 + $0x30] sm:$0xff] %vm360, %v1616
      %1625 = vst.msk [vmem:[#allocation2 + $0x38] sm:$0xff] %vm360, %v1617
      %s1626 = scalar_lea.vmem %s192, 16
      %v1627 = vld [vmem:[%s1626] sm:$0xf]
      %v1628 = vld [vmem:[%s1626 + $0x8] sm:$0xf]
      %v1629 = vld [vmem:[%s1626 + $0x10] sm:$0xf]
      %v1630 = vld [vmem:[%s1626 + $0x18] sm:$0xf]
      %v1631 = vld [vmem:[%s1626 + $0x20] sm:$0xf]
      %v1632 = vld [vmem:[%s1626 + $0x28] sm:$0xf]
      %v1633 = vld [vmem:[%s1626 + $0x30] sm:$0xf]
      %v1634 = vld [vmem:[%s1626 + $0x38] sm:$0xf]
      %s1635 = scalar_lea.vmem %s1, 384
      %v1636 = vld [vmem:[%s1635] sm:$0xf]
      %v1637 = vld [vmem:[%s1635 + $0x4] sm:$0xf]
      %v1638 = vld [vmem:[%s1635 + $0x8] sm:$0xf]
      %v1639 = vld [vmem:[%s1635 + $0xc] sm:$0xf]
      %v1640 = vld [vmem:[%s1635 + $0x10] sm:$0xf]
      %v1641 = vld [vmem:[%s1635 + $0x14] sm:$0xf]
      %v1642 = vld [vmem:[%s1635 + $0x18] sm:$0xf]
      %v1643 = vld [vmem:[%s1635 + $0x1c] sm:$0xf]
      %v1644 = vld [vmem:[%s1635 + $0x20] sm:$0xf]
      %v1645 = vld [vmem:[%s1635 + $0x24] sm:$0xf]
      %v1646 = vld [vmem:[%s1635 + $0x28] sm:$0xf]
      %v1647 = vld [vmem:[%s1635 + $0x2c] sm:$0xf]
      %v1648 = vld [vmem:[%s1635 + $0x30] sm:$0xf]
      %v1649 = vld [vmem:[%s1635 + $0x34] sm:$0xf]
      %v1650 = vld [vmem:[%s1635 + $0x38] sm:$0xf]
      %v1651 = vld [vmem:[%s1635 + $0x3c] sm:$0xf]
      %v1660 = vunpack.c.l.b16 %v1627
      %v1661 = vunpack.c.l.b16 %v1628
      %v1662 = vunpack.c.l.b16 %v1629
      %v1663 = vunpack.c.l.b16 %v1630
      %v1664 = vunpack.c.l.b16 %v1631
      %v1665 = vunpack.c.l.b16 %v1632
      %v1666 = vunpack.c.l.b16 %v1633
      %v1667 = vunpack.c.l.b16 %v1634
      %v1668 = vpack.c.b16 %v1661, %v1660
      %v1669 = vpack.c.b16 %v1663, %v1662
      %v1670 = vpack.c.b16 %v1665, %v1664
      %v1671 = vpack.c.b16 %v1667, %v1666
      %v1692 = vunpack.c.l.b16 %v1636
      %v1693 = vunpack.c.l.b16 %v1637
      %v1694 = vunpack.c.l.b16 %v1638
      %v1695 = vunpack.c.l.b16 %v1639
      %v1696 = vunpack.c.l.b16 %v1640
      %v1697 = vunpack.c.l.b16 %v1641
      %v1698 = vunpack.c.l.b16 %v1642
      %v1699 = vunpack.c.l.b16 %v1643
      %v1700 = vunpack.c.l.b16 %v1644
      %v1701 = vunpack.c.l.b16 %v1645
      %v1702 = vunpack.c.l.b16 %v1646
      %v1703 = vunpack.c.l.b16 %v1647
      %v1704 = vunpack.c.l.b16 %v1648
      %v1705 = vunpack.c.l.b16 %v1649
      %v1706 = vunpack.c.l.b16 %v1650
      %v1707 = vunpack.c.l.b16 %v1651
      %v1708 = vpack.c.b16 %v1693, %v1692
      %v1709 = vpack.c.b16 %v1695, %v1694
      %v1710 = vpack.c.b16 %v1697, %v1696
      %v1711 = vpack.c.b16 %v1699, %v1698
      %v1712 = vpack.c.b16 %v1701, %v1700
      %v1713 = vpack.c.b16 %v1703, %v1702
      %v1714 = vpack.c.b16 %v1705, %v1704
      %v1715 = vpack.c.b16 %v1707, %v1706
      %1724 = vmatprep.subr.bf16.mxu0 0
      %1725 = vmatpush1.bf16.msra.mxu0 %v1708
      %1726 = vmatprep.subr.bf16.mxu0 0
      %1727 = vmatpush1.bf16.msra.mxu0 %v1709
      %1728 = vmatprep.subr.bf16.mxu0 0
      %1729 = vmatpush1.bf16.msra.mxu0 %v1710
      %1730 = vmatprep.subr.bf16.mxu0 0
      %1731 = vmatpush1.bf16.msra.mxu0 %v1711
      %1732 = vmatprep.subr.bf16.mxu0 0
      %1733 = vmatpush1.bf16.msra.mxu0 %v1712
      %1734 = vmatprep.subr.bf16.mxu0 0
      %1735 = vmatpush1.bf16.msra.mxu0 %v1713
      %1736 = vmatprep.subr.bf16.mxu0 0
      %1737 = vmatpush1.bf16.msra.mxu0 %v1714
      %1738 = vmatprep.subr.bf16.mxu0 0
      %1739 = vmatpush1.bf16.msra.mxu0 %v1715
      %1740 = vmatprep.subr.bf16.mxu0 0
      %1741 = vmatpush1.bf16.msra.mxu0 0
      %1742 = vmatprep.subr.bf16.mxu0 0
      %1743 = vmatpush1.bf16.msra.mxu0 0
      %1744 = vmatprep.subr.bf16.mxu0 0
      %1745 = vmatpush1.bf16.msra.mxu0 0
      %1746 = vmatprep.subr.bf16.mxu0 0
      %1747 = vmatpush1.bf16.msra.mxu0 0
      %1748 = vmatprep.subr.bf16.mxu0 0
      %1749 = vmatpush1.bf16.msra.mxu0 0
      %1750 = vmatprep.subr.bf16.mxu0 0
      %1751 = vmatpush1.bf16.msra.mxu0 0
      %1752 = vmatprep.subr.bf16.mxu0 0
      %1753 = vmatpush1.bf16.msra.mxu0 0
      %1754 = vmatprep.subr.bf16.mxu0 0
      %1755 = vmatpush1.bf16.msra.mxu0 0
      %1756 = vmatprep.mubr.bf16.mxu0 0
      %1757 = vmatmul.mubr.bf16.gmra.mrb[0].mxu0 %v1668
      %v1758 = vpop.f32.mrb[0].mxu0
      %v1759 = vadd.f32 0.0, %v1758
      %v1760 = vpop.f32.mrb[0].mxu0
      %v1761 = vpop.f32.mrb[0].mxu0
      %v1762 = vadd.f32 0.0, %v1761
      %v1763 = vpop.f32.mrb[0].mxu0
      %1764 = vmatprep.mubr.bf16.mxu0 0
      %1765 = vmatmul.mubr.bf16.gmra.mrb[0].mxu0 %v1669
      %v1766 = vpop.f32.mrb[0].mxu0
      %v1767 = vadd.f32 0.0, %v1766
      %v1768 = vpop.f32.mrb[0].mxu0
      %v1769 = vpop.f32.mrb[0].mxu0
      %v1770 = vadd.f32 0.0, %v1769
      %v1771 = vpop.f32.mrb[0].mxu0
      %1772 = vmatprep.mubr.bf16.mxu0 0
      %1773 = vmatmul.mubr.bf16.gmra.mrb[0].mxu0 %v1670
      %v1774 = vpop.f32.mrb[0].mxu0
      %v1775 = vadd.f32 0.0, %v1774
      %v1776 = vpop.f32.mrb[0].mxu0
      %v1777 = vpop.f32.mrb[0].mxu0
      %v1778 = vadd.f32 0.0, %v1777
      %v1779 = vpop.f32.mrb[0].mxu0
      %1780 = vmatprep.mubr.bf16.mxu0 0
      %1781 = vmatmul.mubr.bf16.gmra.mrb[0].mxu0 %v1671
      %v1782 = vpop.f32.mrb[0].mxu0
      %v1783 = vadd.f32 0.0, %v1782
      %v1784 = vpop.f32.mrb[0].mxu0
      %v1785 = vpop.f32.mrb[0].mxu0
      %v1786 = vadd.f32 0.0, %v1785
      %v1787 = vpop.f32.mrb[0].mxu0
      %1788 = vdwg.mxu0
      %v1789 = vld [vmem:[#allocation2] sm:$0xff]
      %v1790 = vld [vmem:[#allocation2 + $0x8] sm:$0xff]
      %v1791 = vld [vmem:[#allocation2 + $0x10] sm:$0xff]
      %v1792 = vld [vmem:[#allocation2 + $0x18] sm:$0xff]
      %v1793 = vld [vmem:[#allocation2 + $0x20] sm:$0xff]
      %v1794 = vld [vmem:[#allocation2 + $0x28] sm:$0xff]
      %v1795 = vld [vmem:[#allocation2 + $0x30] sm:$0xff]
      %v1796 = vld [vmem:[#allocation2 + $0x38] sm:$0xff]
      %v1797 = vadd.f32 %v1789, %v1759
      %v1798 = vadd.f32 %v1790, %v1762
      %v1799 = vadd.f32 %v1791, %v1767
      %v1800 = vadd.f32 %v1792, %v1770
      %v1801 = vadd.f32 %v1793, %v1775
      %v1802 = vadd.f32 %v1794, %v1778
      %v1803 = vadd.f32 %v1795, %v1783
      %v1804 = vadd.f32 %v1796, %v1786
      %1805 = vst.msk [vmem:[#allocation2] sm:$0xff] %vm360, %v1797
      %1806 = vst.msk [vmem:[#allocation2 + $0x8] sm:$0xff] %vm360, %v1798
      %1807 = vst.msk [vmem:[#allocation2 + $0x10] sm:$0xff] %vm360, %v1799
      %1808 = vst.msk [vmem:[#allocation2 + $0x18] sm:$0xff] %vm360, %v1800
      %1809 = vst.msk [vmem:[#allocation2 + $0x20] sm:$0xff] %vm360, %v1801
      %1810 = vst.msk [vmem:[#allocation2 + $0x28] sm:$0xff] %vm360, %v1802
      %1811 = vst.msk [vmem:[#allocation2 + $0x30] sm:$0xff] %vm360, %v1803
      %1812 = vst.msk [vmem:[#allocation2 + $0x38] sm:$0xff] %vm360, %v1804
      %v1813 = vld [vmem:[%s1626] sm:$0xf]
      %v1814 = vld [vmem:[%s1626 + $0x4] sm:$0x1]
      %v1815 = vld [vmem:[%s1626 + $0x8] sm:$0xf]
      %v1816 = vld [vmem:[%s1626 + $0xc] sm:$0x1]
      %v1817 = vld [vmem:[%s1626 + $0x10] sm:$0xf]
      %v1818 = vld [vmem:[%s1626 + $0x14] sm:$0x1]
      %v1819 = vld [vmem:[%s1626 + $0x18] sm:$0xf]
      %v1820 = vld [vmem:[%s1626 + $0x1c] sm:$0x1]
      %v1821 = vld [vmem:[%s1626 + $0x20] sm:$0xf]
      %v1822 = vld [vmem:[%s1626 + $0x24] sm:$0x1]
      %v1823 = vld [vmem:[%s1626 + $0x28] sm:$0xf]
      %v1824 = vld [vmem:[%s1626 + $0x2c] sm:$0x1]
      %v1825 = vld [vmem:[%s1626 + $0x30] sm:$0xf]
      %v1826 = vld [vmem:[%s1626 + $0x34] sm:$0x1]
      %v1827 = vld [vmem:[%s1626 + $0x38] sm:$0xf]
      %v1828 = vld [vmem:[%s1626 + $0x3c] sm:$0x1]
      %v1830 = vshrl.u32 %v1813, 16
      %v1832 = vrot.slane %v1830, 4
      %v1833 = vshll.u32 %v1813, 16
      %v1835 = vrot.slane %v1833, 5
      %v1836 = vor.u32 %v1832, %v1835
      %v1837 = vrot.slane %v1836, 4
      %v1839 = vshll.u32 %v1814, 16
      %v1841 = vrot.slane %v1839, 5
      %v1842 = vsel %vm387, %v1837, %v1841
      %v1844 = vshrl.u32 %v1815, 16
      %v1846 = vrot.slane %v1844, 4
      %v1847 = vshll.u32 %v1815, 16
      %v1849 = vrot.slane %v1847, 5
      %v1850 = vor.u32 %v1846, %v1849
      %v1851 = vrot.slane %v1850, 4
      %v1853 = vshll.u32 %v1816, 16
      %v1855 = vrot.slane %v1853, 5
      %v1856 = vsel %vm387, %v1851, %v1855
      %v1858 = vshrl.u32 %v1817, 16
      %v1860 = vrot.slane %v1858, 4
      %v1861 = vshll.u32 %v1817, 16
      %v1863 = vrot.slane %v1861, 5
      %v1864 = vor.u32 %v1860, %v1863
      %v1865 = vrot.slane %v1864, 4
      %v1867 = vshll.u32 %v1818, 16
      %v1869 = vrot.slane %v1867, 5
      %v1870 = vsel %vm387, %v1865, %v1869
      %v1872 = vshrl.u32 %v1819, 16
      %v1874 = vrot.slane %v1872, 4
      %v1875 = vshll.u32 %v1819, 16
      %v1877 = vrot.slane %v1875, 5
      %v1878 = vor.u32 %v1874, %v1877
      %v1879 = vrot.slane %v1878, 4
      %v1881 = vshll.u32 %v1820, 16
      %v1883 = vrot.slane %v1881, 5
      %v1884 = vsel %vm387, %v1879, %v1883
      %v1886 = vshrl.u32 %v1821, 16
      %v1888 = vrot.slane %v1886, 4
      %v1889 = vshll.u32 %v1821, 16
      %v1891 = vrot.slane %v1889, 5
      %v1892 = vor.u32 %v1888, %v1891
      %v1893 = vrot.slane %v1892, 4
      %v1895 = vshll.u32 %v1822, 16
      %v1897 = vrot.slane %v1895, 5
      %v1898 = vsel %vm387, %v1893, %v1897
      %v1900 = vshrl.u32 %v1823, 16
      %v1902 = vrot.slane %v1900, 4
      %v1903 = vshll.u32 %v1823, 16
      %v1905 = vrot.slane %v1903, 5
      %v1906 = vor.u32 %v1902, %v1905
      %v1907 = vrot.slane %v1906, 4
      %v1909 = vshll.u32 %v1824, 16
      %v1911 = vrot.slane %v1909, 5
      %v1912 = vsel %vm387, %v1907, %v1911
      %v1914 = vshrl.u32 %v1825, 16
      %v1916 = vrot.slane %v1914, 4
      %v1917 = vshll.u32 %v1825, 16
      %v1919 = vrot.slane %v1917, 5
      %v1920 = vor.u32 %v1916, %v1919
      %v1921 = vrot.slane %v1920, 4
      %v1923 = vshll.u32 %v1826, 16
      %v1925 = vrot.slane %v1923, 5
      %v1926 = vsel %vm387, %v1921, %v1925
      %v1928 = vshrl.u32 %v1827, 16
      %v1930 = vrot.slane %v1928, 4
      %v1931 = vshll.u32 %v1827, 16
      %v1933 = vrot.slane %v1931, 5
      %v1934 = vor.u32 %v1930, %v1933
      %v1935 = vrot.slane %v1934, 4
      %v1937 = vshll.u32 %v1828, 16
      %v1939 = vrot.slane %v1937, 5
      %v1940 = vsel %vm387, %v1935, %v1939
      %s1941 = scalar_lea.vmem %s1, 448
      %v1942 = vld [vmem:[%s1941] sm:$0xf]
      %v1943 = vld [vmem:[%s1941 + $0x4] sm:$0xf]
      %v1944 = vld [vmem:[%s1941 + $0x8] sm:$0xf]
      %v1945 = vld [vmem:[%s1941 + $0xc] sm:$0xf]
      %v1946 = vld [vmem:[%s1941 + $0x10] sm:$0xf]
      %v1947 = vld [vmem:[%s1941 + $0x14] sm:$0xf]
      %v1948 = vld [vmem:[%s1941 + $0x18] sm:$0xf]
      %v1949 = vld [vmem:[%s1941 + $0x1c] sm:$0xf]
      %v1950 = vld [vmem:[%s1941 + $0x20] sm:$0xf]
      %v1951 = vld [vmem:[%s1941 + $0x24] sm:$0xf]
      %v1952 = vld [vmem:[%s1941 + $0x28] sm:$0xf]
      %v1953 = vld [vmem:[%s1941 + $0x2c] sm:$0xf]
      %v1954 = vld [vmem:[%s1941 + $0x30] sm:$0xf]
      %v1955 = vld [vmem:[%s1941 + $0x34] sm:$0xf]
      %v1956 = vld [vmem:[%s1941 + $0x38] sm:$0xf]
      %v1957 = vld [vmem:[%s1941 + $0x3c] sm:$0xf]
      %v1958 = vunpack.c.l.b16 %v1842
      %v1959 = vunpack.c.l.b16 %v1856
      %v1960 = vunpack.c.l.b16 %v1870
      %v1961 = vunpack.c.l.b16 %v1884
      %v1962 = vunpack.c.l.b16 %v1898
      %v1963 = vunpack.c.l.b16 %v1912
      %v1964 = vunpack.c.l.b16 %v1926
      %v1965 = vunpack.c.l.b16 %v1940
      %v1966 = vpack.c.b16 %v1959, %v1958
      %v1967 = vpack.c.b16 %v1961, %v1960
      %v1968 = vpack.c.b16 %v1963, %v1962
      %v1969 = vpack.c.b16 %v1965, %v1964
      %v1990 = vunpack.c.l.b16 %v1942
      %v1991 = vunpack.c.l.b16 %v1943
      %v1992 = vunpack.c.l.b16 %v1944
      %v1993 = vunpack.c.l.b16 %v1945
      %v1994 = vunpack.c.l.b16 %v1946
      %v1995 = vunpack.c.l.b16 %v1947
      %v1996 = vunpack.c.l.b16 %v1948
      %v1997 = vunpack.c.l.b16 %v1949
      %v1998 = vunpack.c.l.b16 %v1950
      %v1999 = vunpack.c.l.b16 %v1951
      %v2000 = vunpack.c.l.b16 %v1952
      %v2001 = vunpack.c.l.b16 %v1953
      %v2002 = vunpack.c.l.b16 %v1954
      %v2003 = vunpack.c.l.b16 %v1955
      %v2004 = vunpack.c.l.b16 %v1956
      %v2005 = vunpack.c.l.b16 %v1957
      %v2006 = vpack.c.b16 %v1991, %v1990
      %v2007 = vpack.c.b16 %v1993, %v1992
      %v2008 = vpack.c.b16 %v1995, %v1994
      %v2009 = vpack.c.b16 %v1997, %v1996
      %v2010 = vpack.c.b16 %v1999, %v1998
      %v2011 = vpack.c.b16 %v2001, %v2000
      %v2012 = vpack.c.b16 %v2003, %v2002
      %v2013 = vpack.c.b16 %v2005, %v2004
      %2022 = vmatprep.subr.bf16.mxu0 0
      %2023 = vmatpush1.bf16.msra.mxu0 %v2006
      %2024 = vmatprep.subr.bf16.mxu0 0
      %2025 = vmatpush1.bf16.msra.mxu0 %v2007
      %2026 = vmatprep.subr.bf16.mxu0 0
      %2027 = vmatpush1.bf16.msra.mxu0 %v2008
      %2028 = vmatprep.subr.bf16.mxu0 0
      %2029 = vmatpush1.bf16.msra.mxu0 %v2009
      %2030 = vmatprep.subr.bf16.mxu0 0
      %2031 = vmatpush1.bf16.msra.mxu0 %v2010
      %2032 = vmatprep.subr.bf16.mxu0 0
      %2033 = vmatpush1.bf16.msra.mxu0 %v2011
      %2034 = vmatprep.subr.bf16.mxu0 0
      %2035 = vmatpush1.bf16.msra.mxu0 %v2012
      %2036 = vmatprep.subr.bf16.mxu0 0
      %2037 = vmatpush1.bf16.msra.mxu0 %v2013
      %2038 = vmatprep.subr.bf16.mxu0 0
      %2039 = vmatpush1.bf16.msra.mxu0 0
      %2040 = vmatprep.subr.bf16.mxu0 0
      %2041 = vmatpush1.bf16.msra.mxu0 0
      %2042 = vmatprep.subr.bf16.mxu0 0
      %2043 = vmatpush1.bf16.msra.mxu0 0
      %2044 = vmatprep.subr.bf16.mxu0 0
      %2045 = vmatpush1.bf16.msra.mxu0 0
      %2046 = vmatprep.subr.bf16.mxu0 0
      %2047 = vmatpush1.bf16.msra.mxu0 0
      %2048 = vmatprep.subr.bf16.mxu0 0
      %2049 = vmatpush1.bf16.msra.mxu0 0
      %2050 = vmatprep.subr.bf16.mxu0 0
      %2051 = vmatpush1.bf16.msra.mxu0 0
      %2052 = vmatprep.subr.bf16.mxu0 0
      %2053 = vmatpush1.bf16.msra.mxu0 0
      %2054 = vmatprep.mubr.bf16.mxu0 0
      %2055 = vmatmul.mubr.bf16.gmra.mrb[0].mxu0 %v1966
      %v2056 = vpop.f32.mrb[0].mxu0
      %v2057 = vadd.f32 0.0, %v2056
      %v2058 = vpop.f32.mrb[0].mxu0
      %v2059 = vpop.f32.mrb[0].mxu0
      %v2060 = vadd.f32 0.0, %v2059
      %v2061 = vpop.f32.mrb[0].mxu0
      %2062 = vmatprep.mubr.bf16.mxu0 0
      %2063 = vmatmul.mubr.bf16.gmra.mrb[0].mxu0 %v1967
      %v2064 = vpop.f32.mrb[0].mxu0
      %v2065 = vadd.f32 0.0, %v2064
      %v2066 = vpop.f32.mrb[0].mxu0
      %v2067 = vpop.f32.mrb[0].mxu0
      %v2068 = vadd.f32 0.0, %v2067
      %v2069 = vpop.f32.mrb[0].mxu0
      %2070 = vmatprep.mubr.bf16.mxu0 0
      %2071 = vmatmul.mubr.bf16.gmra.mrb[0].mxu0 %v1968
      %v2072 = vpop.f32.mrb[0].mxu0
      %v2073 = vadd.f32 0.0, %v2072
      %v2074 = vpop.f32.mrb[0].mxu0
      %v2075 = vpop.f32.mrb[0].mxu0
      %v2076 = vadd.f32 0.0, %v2075
      %v2077 = vpop.f32.mrb[0].mxu0
      %2078 = vmatprep.mubr.bf16.mxu0 0
      %2079 = vmatmul.mubr.bf16.gmra.mrb[0].mxu0 %v1969
      %v2080 = vpop.f32.mrb[0].mxu0
      %v2081 = vadd.f32 0.0, %v2080
      %v2082 = vpop.f32.mrb[0].mxu0
      %v2083 = vpop.f32.mrb[0].mxu0
      %v2084 = vadd.f32 0.0, %v2083
      %v2085 = vpop.f32.mrb[0].mxu0
      %2086 = vdwg.mxu0
      %v2087 = vld [vmem:[#allocation2] sm:$0xff]
      %v2088 = vld [vmem:[#allocation2 + $0x8] sm:$0xff]
      %v2089 = vld [vmem:[#allocation2 + $0x10] sm:$0xff]
      %v2090 = vld [vmem:[#allocation2 + $0x18] sm:$0xff]
      %v2091 = vld [vmem:[#allocation2 + $0x20] sm:$0xff]
      %v2092 = vld [vmem:[#allocation2 + $0x28] sm:$0xff]
      %v2093 = vld [vmem:[#allocation2 + $0x30] sm:$0xff]
      %v2094 = vld [vmem:[#allocation2 + $0x38] sm:$0xff]
      %v2095 = vadd.f32 %v2087, %v2057
      %v2096 = vadd.f32 %v2088, %v2060
      %v2097 = vadd.f32 %v2089, %v2065
      %v2098 = vadd.f32 %v2090, %v2068
      %v2099 = vadd.f32 %v2091, %v2073
      %v2100 = vadd.f32 %v2092, %v2076
      %v2101 = vadd.f32 %v2093, %v2081
      %v2102 = vadd.f32 %v2094, %v2084
      %2103 = vst.msk [vmem:[#allocation2] sm:$0xff] %vm360, %v2095
      %2104 = vst.msk [vmem:[#allocation2 + $0x8] sm:$0xff] %vm360, %v2096
      %2105 = vst.msk [vmem:[#allocation2 + $0x10] sm:$0xff] %vm360, %v2097
      %2106 = vst.msk [vmem:[#allocation2 + $0x18] sm:$0xff] %vm360, %v2098
      %2107 = vst.msk [vmem:[#allocation2 + $0x20] sm:$0xff] %vm360, %v2099
      %2108 = vst.msk [vmem:[#allocation2 + $0x28] sm:$0xff] %vm360, %v2100
      %2109 = vst.msk [vmem:[#allocation2 + $0x30] sm:$0xff] %vm360, %v2101
      %2110 = vst.msk [vmem:[#allocation2 + $0x38] sm:$0xff] %vm360, %v2102
      %v2111 = vld [vmem:[%s1626] sm:$0xe]
      %v2112 = vld [vmem:[%s1626 + $0x4] sm:$0x1]
      %v2113 = vld [vmem:[%s1626 + $0x8] sm:$0xe]
      %v2114 = vld [vmem:[%s1626 + $0xc] sm:$0x1]
      %v2115 = vld [vmem:[%s1626 + $0x10] sm:$0xe]
      %v2116 = vld [vmem:[%s1626 + $0x14] sm:$0x1]
      %v2117 = vld [vmem:[%s1626 + $0x18] sm:$0xe]
      %v2118 = vld [vmem:[%s1626 + $0x1c] sm:$0x1]
      %v2119 = vld [vmem:[%s1626 + $0x20] sm:$0xe]
      %v2120 = vld [vmem:[%s1626 + $0x24] sm:$0x1]
      %v2121 = vld [vmem:[%s1626 + $0x28] sm:$0xe]
      %v2122 = vld [vmem:[%s1626 + $0x2c] sm:$0x1]
      %v2123 = vld [vmem:[%s1626 + $0x30] sm:$0xe]
      %v2124 = vld [vmem:[%s1626 + $0x34] sm:$0x1]
      %v2125 = vld [vmem:[%s1626 + $0x38] sm:$0xe]
      %v2126 = vld [vmem:[%s1626 + $0x3c] sm:$0x1]
      %v2143 = vrot.slane %v2111, 5
      %v2144 = vrot.slane %v2143, 4
      %v2145 = vrot.slane %v2112, 5
      %v2146 = vsel %vm704, %v2144, %v2145
      %v2147 = vrot.slane %v2113, 5
      %v2148 = vrot.slane %v2147, 4
      %v2149 = vrot.slane %v2114, 5
      %v2150 = vsel %vm704, %v2148, %v2149
      %v2151 = vrot.slane %v2115, 5
      %v2152 = vrot.slane %v2151, 4
      %v2153 = vrot.slane %v2116, 5
      %v2154 = vsel %vm704, %v2152, %v2153
      %v2155 = vrot.slane %v2117, 5
      %v2156 = vrot.slane %v2155, 4
      %v2157 = vrot.slane %v2118, 5
      %v2158 = vsel %vm704, %v2156, %v2157
      %v2159 = vrot.slane %v2119, 5
      %v2160 = vrot.slane %v2159, 4
      %v2161 = vrot.slane %v2120, 5
      %v2162 = vsel %vm704, %v2160, %v2161
      %v2163 = vrot.slane %v2121, 5
      %v2164 = vrot.slane %v2163, 4
      %v2165 = vrot.slane %v2122, 5
      %v2166 = vsel %vm704, %v2164, %v2165
      %v2167 = vrot.slane %v2123, 5
      %v2168 = vrot.slane %v2167, 4
      %v2169 = vrot.slane %v2124, 5
      %v2170 = vsel %vm704, %v2168, %v2169
      %v2171 = vrot.slane %v2125, 5
      %v2172 = vrot.slane %v2171, 4
      %v2173 = vrot.slane %v2126, 5
      %v2174 = vsel %vm704, %v2172, %v2173
      %s2175 = scalar_lea.vmem %s1, 512
      %v2176 = vld [vmem:[%s2175] sm:$0xf]
      %v2177 = vld [vmem:[%s2175 + $0x4] sm:$0xf]
      %v2178 = vld [vmem:[%s2175 + $0x8] sm:$0xf]
      %v2179 = vld [vmem:[%s2175 + $0xc] sm:$0xf]
      %v2180 = vld [vmem:[%s2175 + $0x10] sm:$0xf]
      %v2181 = vld [vmem:[%s2175 + $0x14] sm:$0xf]
      %v2182 = vld [vmem:[%s2175 + $0x18] sm:$0xf]
      %v2183 = vld [vmem:[%s2175 + $0x1c] sm:$0xf]
      %v2184 = vld [vmem:[%s2175 + $0x20] sm:$0xf]
      %v2185 = vld [vmem:[%s2175 + $0x24] sm:$0xf]
      %v2186 = vld [vmem:[%s2175 + $0x28] sm:$0xf]
      %v2187 = vld [vmem:[%s2175 + $0x2c] sm:$0xf]
      %v2188 = vld [vmem:[%s2175 + $0x30] sm:$0xf]
      %v2189 = vld [vmem:[%s2175 + $0x34] sm:$0xf]
      %v2190 = vld [vmem:[%s2175 + $0x38] sm:$0xf]
      %v2191 = vld [vmem:[%s2175 + $0x3c] sm:$0xf]
      %v2192 = vunpack.c.l.b16 %v2146
      %v2193 = vunpack.c.l.b16 %v2150
      %v2194 = vunpack.c.l.b16 %v2154
      %v2195 = vunpack.c.l.b16 %v2158
      %v2196 = vunpack.c.l.b16 %v2162
      %v2197 = vunpack.c.l.b16 %v2166
      %v2198 = vunpack.c.l.b16 %v2170
      %v2199 = vunpack.c.l.b16 %v2174
      %v2200 = vpack.c.b16 %v2193, %v2192
      %v2201 = vpack.c.b16 %v2195, %v2194
      %v2202 = vpack.c.b16 %v2197, %v2196
      %v2203 = vpack.c.b16 %v2199, %v2198
      %v2224 = vunpack.c.l.b16 %v2176
      %v2225 = vunpack.c.l.b16 %v2177
      %v2226 = vunpack.c.l.b16 %v2178
      %v2227 = vunpack.c.l.b16 %v2179
      %v2228 = vunpack.c.l.b16 %v2180
      %v2229 = vunpack.c.l.b16 %v2181
      %v2230 = vunpack.c.l.b16 %v2182
      %v2231 = vunpack.c.l.b16 %v2183
      %v2232 = vunpack.c.l.b16 %v2184
      %v2233 = vunpack.c.l.b16 %v2185
      %v2234 = vunpack.c.l.b16 %v2186
      %v2235 = vunpack.c.l.b16 %v2187
      %v2236 = vunpack.c.l.b16 %v2188
      %v2237 = vunpack.c.l.b16 %v2189
      %v2238 = vunpack.c.l.b16 %v2190
      %v2239 = vunpack.c.l.b16 %v2191
      %v2240 = vpack.c.b16 %v2225, %v2224
      %v2241 = vpack.c.b16 %v2227, %v2226
      %v2242 = vpack.c.b16 %v2229, %v2228
      %v2243 = vpack.c.b16 %v2231, %v2230
      %v2244 = vpack.c.b16 %v2233, %v2232
      %v2245 = vpack.c.b16 %v2235, %v2234
      %v2246 = vpack.c.b16 %v2237, %v2236
      %v2247 = vpack.c.b16 %v2239, %v2238
      %2256 = vmatprep.subr.bf16.mxu0 0
      %2257 = vmatpush1.bf16.msra.mxu0 %v2240
      %2258 = vmatprep.subr.bf16.mxu0 0
      %2259 = vmatpush1.bf16.msra.mxu0 %v2241
      %2260 = vmatprep.subr.bf16.mxu0 0
      %2261 = vmatpush1.bf16.msra.mxu0 %v2242
      %2262 = vmatprep.subr.bf16.mxu0 0
      %2263 = vmatpush1.bf16.msra.mxu0 %v2243
      %2264 = vmatprep.subr.bf16.mxu0 0
      %2265 = vmatpush1.bf16.msra.mxu0 %v2244
      %2266 = vmatprep.subr.bf16.mxu0 0
      %2267 = vmatpush1.bf16.msra.mxu0 %v2245
      %2268 = vmatprep.subr.bf16.mxu0 0
      %2269 = vmatpush1.bf16.msra.mxu0 %v2246
      %2270 = vmatprep.subr.bf16.mxu0 0
      %2271 = vmatpush1.bf16.msra.mxu0 %v2247
      %2272 = vmatprep.subr.bf16.mxu0 0
      %2273 = vmatpush1.bf16.msra.mxu0 0
      %2274 = vmatprep.subr.bf16.mxu0 0
      %2275 = vmatpush1.bf16.msra.mxu0 0
      %2276 = vmatprep.subr.bf16.mxu0 0
      %2277 = vmatpush1.bf16.msra.mxu0 0
      %2278 = vmatprep.subr.bf16.mxu0 0
      %2279 = vmatpush1.bf16.msra.mxu0 0
      %2280 = vmatprep.subr.bf16.mxu0 0
      %2281 = vmatpush1.bf16.msra.mxu0 0
      %2282 = vmatprep.subr.bf16.mxu0 0
      %2283 = vmatpush1.bf16.msra.mxu0 0
      %2284 = vmatprep.subr.bf16.mxu0 0
      %2285 = vmatpush1.bf16.msra.mxu0 0
      %2286 = vmatprep.subr.bf16.mxu0 0
      %2287 = vmatpush1.bf16.msra.mxu0 0
      %2288 = vmatprep.mubr.bf16.mxu0 0
      %2289 = vmatmul.mubr.bf16.gmra.mrb[0].mxu0 %v2200
      %v2290 = vpop.f32.mrb[0].mxu0
      %v2291 = vadd.f32 0.0, %v2290
      %v2292 = vpop.f32.mrb[0].mxu0
      %v2293 = vpop.f32.mrb[0].mxu0
      %v2294 = vadd.f32 0.0, %v2293
      %v2295 = vpop.f32.mrb[0].mxu0
      %2296 = vmatprep.mubr.bf16.mxu0 0
      %2297 = vmatmul.mubr.bf16.gmra.mrb[0].mxu0 %v2201
      %v2298 = vpop.f32.mrb[0].mxu0
      %v2299 = vadd.f32 0.0, %v2298
      %v2300 = vpop.f32.mrb[0].mxu0
      %v2301 = vpop.f32.mrb[0].mxu0
      %v2302 = vadd.f32 0.0, %v2301
      %v2303 = vpop.f32.mrb[0].mxu0
      %2304 = vmatprep.mubr.bf16.mxu0 0
      %2305 = vmatmul.mubr.bf16.gmra.mrb[0].mxu0 %v2202
      %v2306 = vpop.f32.mrb[0].mxu0
      %v2307 = vadd.f32 0.0, %v2306
      %v2308 = vpop.f32.mrb[0].mxu0
      %v2309 = vpop.f32.mrb[0].mxu0
      %v2310 = vadd.f32 0.0, %v2309
      %v2311 = vpop.f32.mrb[0].mxu0
      %2312 = vmatprep.mubr.bf16.mxu0 0
      %2313 = vmatmul.mubr.bf16.gmra.mrb[0].mxu0 %v2203
      %v2314 = vpop.f32.mrb[0].mxu0
      %v2315 = vadd.f32 0.0, %v2314
      %v2316 = vpop.f32.mrb[0].mxu0
      %v2317 = vpop.f32.mrb[0].mxu0
      %v2318 = vadd.f32 0.0, %v2317
      %v2319 = vpop.f32.mrb[0].mxu0
      %2320 = vdwg.mxu0
      %v2321 = vld [vmem:[#allocation2] sm:$0xff]
      %v2322 = vld [vmem:[#allocation2 + $0x8] sm:$0xff]
      %v2323 = vld [vmem:[#allocation2 + $0x10] sm:$0xff]
      %v2324 = vld [vmem:[#allocation2 + $0x18] sm:$0xff]
      %v2325 = vld [vmem:[#allocation2 + $0x20] sm:$0xff]
      %v2326 = vld [vmem:[#allocation2 + $0x28] sm:$0xff]
      %v2327 = vld [vmem:[#allocation2 + $0x30] sm:$0xff]
      %v2328 = vld [vmem:[#allocation2 + $0x38] sm:$0xff]
      %v2329 = vadd.f32 %v2321, %v2291
      %v2330 = vadd.f32 %v2322, %v2294
      %v2331 = vadd.f32 %v2323, %v2299
      %v2332 = vadd.f32 %v2324, %v2302
      %v2333 = vadd.f32 %v2325, %v2307
      %v2334 = vadd.f32 %v2326, %v2310
      %v2335 = vadd.f32 %v2327, %v2315
      %v2336 = vadd.f32 %v2328, %v2318
      %2337 = vst.msk [vmem:[#allocation2] sm:$0xff] %vm360, %v2329
      %2338 = vst.msk [vmem:[#allocation2 + $0x8] sm:$0xff] %vm360, %v2330
      %2339 = vst.msk [vmem:[#allocation2 + $0x10] sm:$0xff] %vm360, %v2331
      %2340 = vst.msk [vmem:[#allocation2 + $0x18] sm:$0xff] %vm360, %v2332
      %2341 = vst.msk [vmem:[#allocation2 + $0x20] sm:$0xff] %vm360, %v2333
      %2342 = vst.msk [vmem:[#allocation2 + $0x28] sm:$0xff] %vm360, %v2334
      %2343 = vst.msk [vmem:[#allocation2 + $0x30] sm:$0xff] %vm360, %v2335
      %2344 = vst.msk [vmem:[#allocation2 + $0x38] sm:$0xff] %vm360, %v2336
      %v2345 = vld [vmem:[#allocation2] sm:$0xff]
      %v2346 = vld [vmem:[#allocation2 + $0x8] sm:$0xff]
      %v2347 = vld [vmem:[#allocation2 + $0x10] sm:$0xff]
      %v2348 = vld [vmem:[#allocation2 + $0x18] sm:$0xff]
      %v2349 = vld [vmem:[#allocation2 + $0x20] sm:$0xff]
      %v2350 = vld [vmem:[#allocation2 + $0x28] sm:$0xff]
      %v2351 = vld [vmem:[#allocation2 + $0x30] sm:$0xff]
      %v2352 = vld [vmem:[#allocation2 + $0x38] sm:$0xff]
      %v2353 = vld [vmem:[%s2] sm:$0x1]
      %v2355 = vlaneseq
      %v2356 = vshrl.u32 %v2355, 7
      %v2357 = vsub.s32 0, %v2356
      %v2358 = vrot.slane %v2353, %v2357
      %v2360 = vmul.f32 %v2345, %v2358
      %v2361 = vmul.f32 %v2346, %v2358
      %v2362 = vmul.f32 %v2347, %v2358
      %v2363 = vmul.f32 %v2348, %v2358
      %v2364 = vmul.f32 %v2349, %v2358
      %v2365 = vmul.f32 %v2350, %v2358
      %v2366 = vmul.f32 %v2351, %v2358
      %v2367 = vmul.f32 %v2352, %v2358
      %v2368 = vld [vmem:[%s3] sm:$0x1]
      %v2370 = vlaneseq
      %v2371 = vshrl.u32 %v2370, 7
      %v2372 = vsub.s32 0, %v2371
      %v2373 = vrot.slane %v2368, %v2372
      %v2375 = vadd.f32 %v2360, %v2373
      %v2376 = vadd.f32 %v2361, %v2373
      %v2377 = vadd.f32 %v2362, %v2373
      %v2378 = vadd.f32 %v2363, %v2373
      %v2379 = vadd.f32 %v2364, %v2373
      %v2380 = vadd.f32 %v2365, %v2373
      %v2381 = vadd.f32 %v2366, %v2373
      %v2382 = vadd.f32 %v2367, %v2373
      %v2383 = vsub.f32 0.0, %v2375
      %v2384 = vsub.f32 0.0, %v2376
      %v2385 = vsub.f32 0.0, %v2377
      %v2386 = vsub.f32 0.0, %v2378
      %v2387 = vsub.f32 0.0, %v2379
      %v2388 = vsub.f32 0.0, %v2380
      %v2389 = vsub.f32 0.0, %v2381
      %v2390 = vsub.f32 0.0, %v2382
      %v2391 = vmul.f32 %v2383, 1.442695
      %v2392 = vpow.pop %v2391
      %v2393 = vmul.f32 %v2384, 1.442695
      %v2394 = vpow.pop %v2393
      %v2395 = vmul.f32 %v2385, 1.442695
      %v2396 = vpow.pop %v2395
      %v2397 = vmul.f32 %v2386, 1.442695
      %v2398 = vpow.pop %v2397
      %v2399 = vmul.f32 %v2387, 1.442695
      %v2400 = vpow.pop %v2399
      %v2401 = vmul.f32 %v2388, 1.442695
      %v2402 = vpow.pop %v2401
      %v2403 = vmul.f32 %v2389, 1.442695
      %v2404 = vpow.pop %v2403
      %v2405 = vmul.f32 %v2390, 1.442695
      %v2406 = vpow.pop %v2405
      %v2407 = vadd.f32 %v2392, 1.0
      %v2408 = vadd.f32 %v2394, 1.0
      %v2409 = vadd.f32 %v2396, 1.0
      %v2410 = vadd.f32 %v2398, 1.0
      %v2411 = vadd.f32 %v2400, 1.0
      %v2412 = vadd.f32 %v2402, 1.0
      %v2413 = vadd.f32 %v2404, 1.0
      %v2414 = vadd.f32 %v2406, 1.0
      %v2415 = vrcp.pop %v2407
      %v2416 = vmul.f32 %v2375, %v2415
      %v2417 = vrcp.pop %v2408
      %v2418 = vmul.f32 %v2376, %v2417
      %v2419 = vrcp.pop %v2409
      %v2420 = vmul.f32 %v2377, %v2419
      %v2421 = vrcp.pop %v2410
      %v2422 = vmul.f32 %v2378, %v2421
      %v2423 = vrcp.pop %v2411
      %v2424 = vmul.f32 %v2379, %v2423
      %v2425 = vrcp.pop %v2412
      %v2426 = vmul.f32 %v2380, %v2425
      %v2427 = vrcp.pop %v2413
      %v2428 = vmul.f32 %v2381, %v2427
      %v2429 = vrcp.pop %v2414
      %v2430 = vmul.f32 %v2382, %v2429
      %v2431 = vpack.c.bf16 %v2418, %v2416
      %v2432 = vpack.c.bf16 %v2422, %v2420
      %v2433 = vpack.c.bf16 %v2426, %v2424
      %v2434 = vpack.c.bf16 %v2430, %v2428
      %v2439 = vunpack.c.l.b16 %v2431
      %v2440 = vunpack.c.h.b16 %v2431
      %v2441 = vunpack.c.l.b16 %v2432
      %v2442 = vunpack.c.h.b16 %v2432
      %v2443 = vunpack.c.l.b16 %v2433
      %v2444 = vunpack.c.h.b16 %v2433
      %v2445 = vunpack.c.l.b16 %v2434
      %v2446 = vunpack.c.h.b16 %v2434
      %v2447 = vpack.c.b16 %v2439, %v2439
      %v2448 = vpack.c.b16 %v2440, %v2440
      %v2449 = vpack.c.b16 %v2441, %v2441
      %v2450 = vpack.c.b16 %v2442, %v2442
      %v2451 = vpack.c.b16 %v2443, %v2443
      %v2452 = vpack.c.b16 %v2444, %v2444
      %v2453 = vpack.c.b16 %v2445, %v2445
      %v2454 = vpack.c.b16 %v2446, %v2446
      %vm2463 = vcmask 257024
      %2464 = vst.msk [vmem:[%s197] sm:$0xf] %vm2463, %v2447
      %2465 = vst.msk [vmem:[%s197 + $0x4] sm:$0xf] %vm2463, %v2448
      %2466 = vst.msk [vmem:[%s197 + $0x8] sm:$0xf] %vm2463, %v2449
      %2467 = vst.msk [vmem:[%s197 + $0xc] sm:$0xf] %vm2463, %v2450
      %2468 = vst.msk [vmem:[%s197 + $0x10] sm:$0xf] %vm2463, %v2451
      %2469 = vst.msk [vmem:[%s197 + $0x14] sm:$0xf] %vm2463, %v2452
      %2470 = vst.msk [vmem:[%s197 + $0x18] sm:$0xf] %vm2463, %v2453
      %2471 = vst.msk [vmem:[%s197 + $0x1c] sm:$0xf] %vm2463, %v2454
      %p2472 = scmp.lt.s32.totalorder %s15, 1
      %s2473 = scalar_select %p2472, %s15, 1
      %s2474 = smul.addr %s2473, 8
      %s2475 = smul.addr %s2474, 4
      %s2476 = scalar_lea.vmem %s4, %s2475
      // Predicated region
      $region37: #{normal_cell_forward.7} parent=35 // pred_check
        %p2477 = pneg %p122
      $region38: #{normal_cell_forward.7} parent=35 // pred_check_branch
        %2479 = sbr.rel (%p2477) target = $region40
      $region39: #{normal_cell_forward.7} parent=35 // pred_region
        _
      $region40: #{normal_cell_forward.7} parent=35 // pred_fallthru
        _
    $region36: #{normal_cell_forward.7} parent=5 // pred_fallthru
      _
    %p2480 = scmp.le.s32.totalorder 2, %s10
    // Predicated region
    $region41: #{normal_cell_forward.7} parent=5 // pred_check
      %p2481 = pneg %p2480
    $region42: #{normal_cell_forward.7} parent=5 // pred_check_branch
      %2483 = sbr.rel (%p2481) target = $region44
    $region43: #{normal_cell_forward.7} parent=5 // pred_region
      %s2484 = ssub.s32 %s10, 2
      // Predicated region
      $region45: #{normal_cell_forward.7} parent=43 // pred_check
        %p2485 = pneg %p128
      $region46: #{normal_cell_forward.7} parent=43 // pred_check_branch
        %2487 = sbr.rel (%p2485) target = $region48
      $region47: #{normal_cell_forward.7} parent=43 // pred_region
        %p2488 = scmp.lt.s32.totalorder %s16, 1
        %s2489 = scalar_select %p2488, %s16, 1
        %s2490 = smul.addr %s2489, 8
        %s2491 = smul.addr %s2490, 4
        %s2492 = scalar_lea.vmem %s4, %s2491
      $region48: #{normal_cell_forward.7} parent=43 // pred_fallthru
        _
    $region44: #{normal_cell_forward.7} parent=5 // pred_fallthru
      _
  $region6: #{normal_cell_forward.7} parent=0 // loop_footer
    %s14 = sadd.s32 1, %s10
  $region7: #{normal_cell_forward.7} parent=0 // loop_footer_branch
    %9 = sbr.rel target = $region3
  $region8: #{normal_cell_forward.7} parent=0 // loop_exit
    _

</llo_original>
